<compile_context>
chip_gen: v7x
topology: tpu7x:2x2x1
jax: 0.10.0
libtpu: 0.0.40
codegen_flags: <defaults>
</compile_context>

<pallas_src>
import functools
import math

import jax
import jax.numpy as jnp
from jax import lax
from jax.experimental import pallas as pl
from jax.experimental.pallas import tpu as pltpu

H_SIZE = 2                      # h_size in LevalProp.__init__
NEG_SLOPE = 0.2                 # LeakyReLU negative slope
SCALE = 4                       # disp_up / warp_and_aggregate scale
MATMUL_DTYPE = jnp.bfloat16     # MXU operand dtype (accumulate in f32)
ACT_DTYPE = jnp.float32         # trunk activation scratch; bf16 halves VMEM on v7x
VMEM_LIMIT_BYTES = 48 * 1024 * 1024


def _leaky(v):
    return jnp.where(v > 0, v, NEG_SLOPE * v)


# ---------------------------------------------------------------------------
# Kernel 1: warp + SAD + space-to-depth + conv_neighbors (fused, per y4 strip)
# ---------------------------------------------------------------------------
def _warp_cn_kernel(d_ref, l_ref, r_ref, s_ref, wn_ref, bn_ref, o_ref):
    """d_ref : (1, R, NH, W) f32 expanded disparities (R = TYB*4 full-res rows)
    l_ref/r_ref : (1, Cf, R, W) bf16 features (NCHW row strip)
    s_ref : (4, W, w4) bf16 column-selection matrices (sx -> lane group)
    wn_ref: (64*NH, 16*NH) bf16 permuted conv_neighbors weight
    bn_ref: (1, 16*NH) f32 conv_neighbors bias
    o_ref : (1, TYB, w4, 16*NH) f32  -- conv_neighbors output (NHWC)."""
    Cf, R, W = l_ref.shape[1], l_ref.shape[2], l_ref.shape[3]
    NH = d_ref.shape[2]
    TYB, w4 = o_ref.shape[1], o_ref.shape[2]

    left = l_ref[0].astype(jnp.float32)                 # (Cf, R, W)
    right = r_ref[0]                                    # (Cf, R, W) bf16
    d = d_ref[0]                                        # (R, NH, W) f32

    sum_l = jnp.sum(jnp.abs(left), axis=0)              # (R, W)

    # Fused gather+interp "tent" matrices for all (hyp, offset) at once.
    # T[r, j, wout, win] = relu(1 - |win - clamp(wout - d + off)|) exactly
    # reproduces torch's clip(floor)/clip(floor+1) lerp, including at borders.
    pos = lax.broadcasted_iota(jnp.int32, (1, 1, W), 2).astype(jnp.float32)
    dr = pos - d                                         # (R, NH, W)
    xt = jnp.stack([dr + 1.0, dr, dr - 1.0], axis=2)     # (R, NH, 3, W), offs [+1,0,-1]
    xt = jnp.clip(xt, 0.0, float(W - 1)).reshape(R, NH * 3, W)

    win = lax.broadcasted_iota(jnp.int32, (1, 1, 1, W), 3).astype(jnp.float32)
    tent = jnp.maximum(1.0 - jnp.abs(win - xt[..., None]), 0.0)   # (R, J, W, W)
    tent = tent.astype(right.dtype)

    # One MXU einsum for every (hyp, offset): warped right features.
    rw = jnp.einsum("crw,rjow->crjo", right, tent,
                    preferred_element_type=jnp.float32)           # (Cf, R, J, W)
    sad = jnp.sum(jnp.abs(left[:, :, None, :] - rw), axis=0)      # (R, J, W)

    # Per-hyp cost rows in torch order [sum|l|, off=+1, off=0, off=-1].
    pieces = []
    for hyp in range(NH):
        pieces.append(sum_l[:, None, :])
        pieces.append(sad[:, hyp * 3:(hyp + 1) * 3, :])
    cost = jnp.concatenate(pieces, axis=1)               # (R, NH*4, W)
    # per y4 block: rows ordered (sy, hyp, slot)
    cost = cost.reshape(TYB, SCALE * NH * 4, W).astype(MATMUL_DTYPE)

    # Space-to-depth via column-selection matmuls, then the 1x1 conv_neighbors
    # matmul (weight rows were pre-permuted to match (sx, sy, hyp, slot) order).
    sel = s_ref[...]                                     # (4, W, w4) bf16
    xs = [jnp.einsum("tkw,wx->tkx", cost, sel[sx],
                     preferred_element_type=jnp.float32).astype(MATMUL_DTYPE)
          for sx in range(SCALE)]
    xcat = jnp.concatenate(xs, axis=1)                   # (TYB, 64*NH, w4)

    xn = lax.dot_general(xcat, wn_ref[...],
                         dimension_numbers=(((1,), (0,)), ((), ())),
                         preferred_element_type=jnp.float32)      # (TYB, w4, 16*NH)
    xn = xn + bn_ref[...][None]                          # (1,1,16*NH) broadcast
    o_ref[0] = _leaky(xn)


def warp_cn_pallas(d_all, l, r, wn_k, bn):
    """d_all: (N, H, NH, W) f32; l/r: (N, Cf, H, W).
    Returns conv_neighbors output xn: (N, h4, w4, 16*H_SIZE) f32 (NHWC)."""
    N, H, NH, W = d_all.shape
    _, Cf, _, _ = l.shape
    h4, w4 = H // SCALE, W // SCALE
    cn = 16 * H_SIZE

    # TYB full y4 blocks per grid step; R = TYB*4 rows keeps the (8,128) rule.
    # TODO(synk): for very large W, tile the W_out axis of the tent matrices
    # instead of only bounding TYB (v7x 64 MiB VMEM).
    TYB = 2 if (h4 % 2 == 0 and h4 >= 2) else h4
    R = TYB * SCALE

    # Column-selection matrices: S[sx, x, x4] = 1 iff x == 4*x4 + sx.
    xi = jnp.arange(W, dtype=jnp.int32)[None, :, None]
    tgt = (SCALE * jnp.arange(w4, dtype=jnp.int32)[None, None, :]
           + jnp.arange(SCALE, dtype=jnp.int32)[:, None, None])
    sel = (xi == tgt).astype(MATMUL_DTYPE)               # (4, W, w4)

    grid = (N, h4 // TYB)
    steps = N * (h4 // TYB)
    flops = steps * (2 * Cf * R * W * (3 * NH * W)
                     + SCALE * 2 * TYB * (SCALE * NH * 4) * W * w4
                     + 2 * TYB * w4 * (64 * NH) * cn)
    bytes_acc = int(d_all.size * 4 + 2 * l.size * 2 + N * h4 * w4 * cn * 4
                    + sel.size * 2 + wn_k.size * 2 + bn.size * 4)

    return pl.pallas_call(
        _warp_cn_kernel,
        out_shape=jax.ShapeDtypeStruct((N, h4, w4, cn), jnp.float32),
        grid=grid,
        in_specs=[
            pl.BlockSpec((1, R, NH, W), lambda n, t: (n, t, 0, 0)),
            pl.BlockSpec((1, Cf, R, W), lambda n, t: (n, 0, t, 0)),
            pl.BlockSpec((1, Cf, R, W), lambda n, t: (n, 0, t, 0)),
            pl.BlockSpec((SCALE, W, w4), lambda n, t: (0, 0, 0)),
            pl.BlockSpec(wn_k.shape, lambda n, t: (0, 0)),
            pl.BlockSpec(bn.shape, lambda n, t: (0, 0)),
        ],
        out_specs=pl.BlockSpec((1, TYB, w4, cn), lambda n, t: (n, t, 0, 0)),
        compiler_params=pltpu.CompilerParams(
            dimension_semantics=("parallel", "parallel"),
            vmem_limit_bytes=VMEM_LIMIT_BYTES),
        cost_estimate=pl.CostEstimate(flops=int(flops), transcendentals=0,
                                      bytes_accessed=bytes_acc),
    )(d_all, l.astype(MATMUL_DTYPE), r.astype(MATMUL_DTYPE), sel, wn_k, bn)


# ---------------------------------------------------------------------------
# Kernel 2: fused conv trunk  (conv1 + ResBlock x2 + convn + residual/split)
# ---------------------------------------------------------------------------
def _pick_tm(h, w):
    """Row-block height: aim for MXU M = TM*w >= 256, cap patch VMEM ~2 MiB."""
    target = max(1, -(-256 // max(w, 1)))
    cap = max(1, (2 * 1024 * 1024) // max(1, w * 9 * 64 * 2))
    divs = [d for d in range(1, h + 1) if h % d == 0]
    cands = [d for d in divs if d <= cap] or [1]
    ge = [d for d in cands if d >= target]
    return min(ge) if ge else max(cands)


def _trunk_kernel(hyp_ref, xn_ref,
                  w1_ref, b1_ref, w2_ref, b2_ref, w3_ref, b3_ref,
                  w4_ref, b4_ref, w5_ref, b5_ref, wo_ref, bo_ref,
                  out_ref, s_in, s_a, s_b, *, tm):
    h, w = hyp_ref.shape[1], hyp_ref.shape[2]
    c1 = hyp_ref.shape[3]                        # 16 * H_SIZE
    nb = h // tm

    # Zero only the 1-px halo borders (interiors are fully overwritten below).
    for ref in (s_in, s_a, s_b):
        cpad = ref.shape[2]
        zrow = jnp.zeros((1, w + 2, cpad), ref.dtype)
        zcol = jnp.zeros((h + 2, 1, cpad), ref.dtype)
        ref[0:1, :, :] = zrow
        ref[h + 1:h + 2, :, :] = zrow
        ref[:, 0:1, :] = zcol
        ref[:, w + 1:w + 2, :] = zcol

    # s_in = concat(hyps, xn) -- one lane-dense store; bf16 is lossless here
    # because s_in is only ever consumed as a bf16 matmul operand.
    s_in[1:h + 1, 1:w + 1, :] = jnp.concatenate(
        [hyp_ref[0], xn_ref[0]], axis=-1).astype(s_in.dtype)

    def conv_block(src, y0, wmat):
        # 3x3 conv on a TM-row block: im2col patch built in VMEM only.
        taps = [src[pl.ds(y0 + dy, tm), dx:dx + w, :]
                for dy in range(3) for dx in range(3)]
        patch = jnp.concatenate(taps, axis=-1).astype(MATMUL_DTYPE)  # (tm,w,9*Cin)
        return jnp.einsum("twk,ko->two", patch, wmat,
                          preferred_element_type=jnp.float32)

    def stage(src, dst, w_ref, b_ref, residual):
        wmat = w_ref[...]
        bias = b_ref[...][None]                              # (1,1,Co)

        def body(i, carry):
            y0 = pl.multiple_of(i * tm, tm)
            o = conv_block(src, y0, wmat) + bias
            if residual:
                o = o + dst[pl.ds(1 + y0, tm), 1:w + 1, :].astype(jnp.float32)
            o = _leaky(o)
            dst[pl.ds(1 + y0, tm), 1:w + 1, :] = o.astype(dst.dtype)
            return carry

        lax.fori_loop(0, nb, body, 0)

    stage(s_in, s_a, w1_ref, b1_ref, False)     # conv1 + LeakyReLU
    stage(s_a, s_b, w2_ref, b2_ref, False)      # ResBlock1 conv a + LeakyReLU
    stage(s_b, s_a, w3_ref, b3_ref, True)       # ResBlock1 conv b + skip + LeakyReLU
    stage(s_a, s_b, w4_ref, b4_ref, False)      # ResBlock2 conv a + LeakyReLU
    stage(s_b, s_a, w5_ref, b5_ref, True)       # ResBlock2 conv b + skip + LeakyReLU

    # convn (32 -> 17*H_SIZE), fused with the `hyps + dh` residual; nh and wgt
    # are emitted as ONE merged 34-lane output stream (split in the wrapper).
    wo = wo_ref[...]
    bo = bo_ref[...][None]

    def body_o(i, carry):
        y0 = pl.multiple_of(i * tm, tm)
        o = conv_block(s_a, y0, wo) + bo                     # (tm, w, 17*H_SIZE)
        hyp_rows = hyp_ref[0, pl.ds(y0, tm), :, :]           # (tm, w, 16*H_SIZE) f32
        merged = jnp.concatenate([o[..., :c1] + hyp_rows, o[..., c1:]], axis=-1)
        out_ref[0, pl.ds(y0, tm), :, :] = merged
        return carry

    lax.fori_loop(0, nb, body_o, 0)


def trunk_pallas(hyps_nhwc, xn, params):
    """hyps_nhwc / xn: (N, h, w, 16*H_SIZE) NHWC.
    Returns merged (N, h, w, 17*H_SIZE) = [hyps + dh | wgt]."""
    N, h, w, c1 = hyps_nhwc.shape
    cin = 2 * c1                                  # 32 * H_SIZE
    c32 = 32
    cout = 17 * H_SIZE
    tm = _pick_tm(h, w)

    layer_names = (("w1", "b1"), ("rb1_w0", "rb1_b0"), ("rb1_w1", "rb1_b1"),
                   ("rb2_w0", "rb2_b0"), ("rb2_w1", "rb2_b1"), ("wout", "bout"))

    args = [hyps_nhwc, xn]
    in_specs = [pl.BlockSpec((1, h, w, c1), lambda n: (n, 0, 0, 0)),
                pl.BlockSpec((1, h, w, c1), lambda n: (n, 0, 0, 0))]
    wsize = 0
    for wname, bname in layer_names:
        wm, bm = params[wname], params[bname]
        args += [wm, bm]
        in_specs += [pl.BlockSpec(wm.shape, lambda n: (0, 0)),
                     pl.BlockSpec(bm.shape, lambda n: (0, 0))]
        wsize += wm.size * 2 + bm.size * 4

    flops = 2 * N * h * w * 9 * (cin * c32 + 4 * c32 * c32 + c32 * cout)
    bytes_acc = int(hyps_nhwc.size * 4 + xn.size * 4 + wsize + N * h * w * cout * 4)

    # TODO(synk): for very large h*w (single image > VMEM on v7x) tile the grid
    # over row strips with halo DMA instead of one whole image per step.
    return pl.pallas_call(
        functools.partial(_trunk_kernel, tm=tm),
        out_shape=jax.ShapeDtypeStruct((N, h, w, cout), jnp.float32),
        grid=(N,),
        in_specs=in_specs,
        out_specs=pl.BlockSpec((1, h, w, cout), lambda n: (n, 0, 0, 0)),
        scratch_shapes=[pltpu.VMEM((h + 2, w + 2, cin), MATMUL_DTYPE),
                        pltpu.VMEM((h + 2, w + 2, c32), ACT_DTYPE),
                        pltpu.VMEM((h + 2, w + 2, c32), ACT_DTYPE)],
        compiler_params=pltpu.CompilerParams(
            dimension_semantics=("parallel",),
            vmem_limit_bytes=VMEM_LIMIT_BYTES),
        cost_estimate=pl.CostEstimate(flops=int(flops), transcendentals=0,
                                      bytes_accessed=bytes_acc),
    )(*args)


# ---------------------------------------------------------------------------
# LevalProp forward (NHWC internally, NCHW only at the module boundary)
# ---------------------------------------------------------------------------
def leval_prop_forward(params, hyps, l, r):
    N, _, h4, w4 = hyps[0].shape
    NH = len(hyps)
    assert NH == H_SIZE
    _, Cf, H, W = l.shape
    assert W // w4 == SCALE and H == h4 * SCALE

    # disp_up(..., tile_expand=True) for every hypothesis -> (N, H, NH, W)
    center = (SCALE - 1) / 2
    index = jnp.arange(SCALE, dtype=jnp.float32) - center
    coef_y, coef_x = jnp.meshgrid(index, index, indexing="ij")
    coef_x = coef_x.reshape(1, SCALE * SCALE, 1, 1)
    coef_y = coef_y.reshape(1, SCALE * SCALE, 1, 1)
    d_list = []
    for hyp in hyps:
        d, dx, dy = hyp[:, 0:1], hyp[:, 1:2], hyp[:, 2:3]
        dexp = d + coef_x * dx + coef_y * dy                       # (N,16,h4,w4)
        dexp = dexp.reshape(N, 1, SCALE, SCALE, h4, w4)
        dexp = dexp.transpose(0, 1, 4, 2, 5, 3).reshape(N, H, W)
        d_list.append(dexp)
    d_all = jnp.stack(d_list, axis=2)                              # (N, H, NH, W)

    # warp + SAD + space-to-depth + conv_neighbors, all in one kernel
    xn = warp_cn_pallas(d_all, l, r, params["wn_k"], params["bn"])  # (N,h4,w4,32)

    hyps_nhwc = jnp.concatenate(hyps, axis=1).transpose(0, 2, 3, 1)  # (N,h4,w4,32)

    # conv1 + ResBlock x2 + convn + (hyps + dh | wgt) fused in one kernel
    merged = trunk_pallas(hyps_nhwc, xn, params)                    # (N,h4,w4,34)

    new_hyps = merged[..., :16 * H_SIZE].transpose(0, 3, 1, 2)      # NCHW out
    wgt = merged[..., 16 * H_SIZE:].transpose(0, 3, 1, 2)
    return new_hyps, wgt


# ---------------------------------------------------------------------------
# Deterministic parameter init (PyTorch conv shapes -> kernel layouts)
# ---------------------------------------------------------------------------
def init_params(key):
    ks = jax.random.split(key, 14)
    NH = H_SIZE

    def w3x3(k, co, ci):
        wt = jax.random.normal(k, (co, ci, 3, 3), jnp.float32) / math.sqrt(ci * 9)
        # (co, ci, ky, kx) -> (9*ci, co), row index = (ky*3 + kx)*ci + ci_idx
        return wt.transpose(2, 3, 1, 0).reshape(9 * ci, co).astype(MATMUL_DTYPE)

    def bias(k, co):
        return (jax.random.normal(k, (co,), jnp.float32) * 0.05).reshape(1, co)

    p = {}
    # conv_neighbors (torch Conv2d(64*h, 16*h, 1)): permute input channels so
    # that kernel row k = sx*(16*NH) + sy*(4*NH) + hyp*4 + slot matches the
    # torch channel hyp*64 + sy*16 + sx*4 + slot (space-to-depth + hyp-cat).
    wn_t = jax.random.normal(ks[0], (16 * NH, 64 * NH), jnp.float32) / math.sqrt(64 * NH)
    k_idx = jnp.arange(64 * NH)
    sx = k_idx // (16 * NH)
    rem = k_idx % (16 * NH)
    sy = rem // (4 * NH)
    rem2 = rem % (4 * NH)
    hyp = rem2 // 4
    slot = rem2 % 4
    ch = hyp * 64 + sy * 16 + sx * 4 + slot
    p["wn_k"] = wn_t[:, ch].T.astype(MATMUL_DTYPE)       # (64*NH, 16*NH)
    p["bn"] = bias(ks[1], 16 * NH)

    p["w1"], p["b1"] = w3x3(ks[2], 32, 32 * NH), bias(ks[3], 32)
    p["rb1_w0"], p["rb1_b0"] = w3x3(ks[4], 32, 32), bias(ks[5], 32)
    p["rb1_w1"], p["rb1_b1"] = w3x3(ks[6], 32, 32), bias(ks[7], 32)
    p["rb2_w0"], p["rb2_b0"] = w3x3(ks[8], 32, 32), bias(ks[9], 32)
    p["rb2_w1"], p["rb2_b1"] = w3x3(ks[10], 32, 32), bias(ks[11], 32)
    p["wout"], p["bout"] = w3x3(ks[12], 17 * NH, 32), bias(ks[13], 17 * NH)
    return p


if __name__ == "__main__":
    key = jax.random.PRNGKey(0)
    kp, kh0, kh1, kl, kr = jax.random.split(key, 5)
    params = init_params(kp)

    N, Cf, H, W = 2, 4, 16, 16            # full-res features; hyps at 1/4 res
    h4, w4 = H // 4, W // 4
    hyps = [jax.random.normal(kh0, (N, 16, h4, w4), jnp.float32),
            jax.random.normal(kh1, (N, 16, h4, w4), jnp.float32)]
    l = jax.random.normal(kl, (N, Cf, H, W), jnp.float32)
    r = jax.random.normal(kr, (N, Cf, H, W), jnp.float32)

    fwd = jax.jit(functools.partial(leval_prop_forward, params))
    new_hyps, w_out = fwd(hyps, l, r)
    jax.block_until_ready((new_hyps, w_out))

    assert new_hyps.shape == (N, 16 * H_SIZE, h4, w4)
    assert w_out.shape == (N, H_SIZE, h4, w4)
    print("KERNEL_OK")
</pallas_src>

<mosaic_0001>
module attributes {stable_mosaic.version = 11 : i64} {
  func.func @_warp_cn_kernel(%arg0: i32, %arg1: i32, %arg2: memref<1x8x2x16xf32, #tpu.memory_space<vmem>>, %arg3: memref<1x4x8x16xbf16, #tpu.memory_space<vmem>>, %arg4: memref<1x4x8x16xbf16, #tpu.memory_space<vmem>>, %arg5: memref<4x16x4xbf16, #tpu.memory_space<vmem>>, %arg6: memref<128x32xbf16, #tpu.memory_space<vmem>>, %arg7: memref<1x32xf32, #tpu.memory_space<vmem>>, %arg8: memref<1x2x4x32xf32, #tpu.memory_space<vmem>>) attributes {dimension_semantics = [#tpu.dimension_semantics<parallel>, #tpu.dimension_semantics<parallel>], iteration_bounds = array<i64: 2, 2>, scalar_prefetch = 0 : i64, scratch_operands = 0 : i64, tpu.core_type = #tpu.core_type<tc>, window_params = [{transform_indices = @transform_0, window_bounds = array<i64: 1, 8, 2, 16>}, {transform_indices = @transform_1, window_bounds = array<i64: 1, 4, 8, 16>}, {transform_indices = @transform_2, window_bounds = array<i64: 1, 4, 8, 16>}, {pipeline_mode = #tpu.pipeline_mode<synchronous>, transform_indices = @transform_3, window_bounds = array<i64: 4, 16, 4>}, {pipeline_mode = #tpu.pipeline_mode<synchronous>, transform_indices = @transform_4, window_bounds = array<i64: 128, 32>}, {pipeline_mode = #tpu.pipeline_mode<synchronous>, transform_indices = @transform_5, window_bounds = array<i64: 1, 32>}, {transform_indices = @transform_6, window_bounds = array<i64: 1, 2, 4, 32>}]} {
    %c0 = arith.constant 0 : index
    %c0_0 = arith.constant 0 : index
    %c0_1 = arith.constant 0 : index
    %c0_2 = arith.constant 0 : index
    %0 = vector.load %arg3[%c0, %c0_0, %c0_1, %c0_2] : memref<1x4x8x16xbf16, #tpu.memory_space<vmem>>, vector<1x4x8x16xbf16>
    %1 = vector.shape_cast %0 : vector<1x4x8x16xbf16> to vector<4x8x16xbf16>
    %2 = arith.extf %1 : vector<4x8x16xbf16> to vector<4x8x16xf32>
    %c0_3 = arith.constant 0 : index
    %c0_4 = arith.constant 0 : index
    %c0_5 = arith.constant 0 : index
    %c0_6 = arith.constant 0 : index
    %3 = vector.load %arg4[%c0_3, %c0_4, %c0_5, %c0_6] : memref<1x4x8x16xbf16, #tpu.memory_space<vmem>>, vector<1x4x8x16xbf16>
    %4 = vector.shape_cast %3 : vector<1x4x8x16xbf16> to vector<4x8x16xbf16>
    %c0_7 = arith.constant 0 : index
    %c0_8 = arith.constant 0 : index
    %c0_9 = arith.constant 0 : index
    %c0_10 = arith.constant 0 : index
    %5 = vector.load %arg2[%c0_7, %c0_8, %c0_9, %c0_10] : memref<1x8x2x16xf32, #tpu.memory_space<vmem>>, vector<1x8x2x16xf32>
    %6 = vector.shape_cast %5 : vector<1x8x2x16xf32> to vector<8x2x16xf32>
    %7 = math.absf %2 : vector<4x8x16xf32>
    %cst = arith.constant dense<0.000000e+00> : vector<8x16xf32>
    %8 = vector.multi_reduction <add>, %7, %cst [0] : vector<4x8x16xf32> to vector<8x16xf32>
    %9 = tpu.iota {dimensions = array<i32: 2>} : vector<1x1x16xi32>
    %10 = arith.sitofp %9 : vector<1x1x16xi32> to vector<1x1x16xf32>
    %11 = vector.broadcast %10 : vector<1x1x16xf32> to vector<8x2x16xf32>
    %12 = arith.subf %11, %6 : vector<8x2x16xf32>
    %cst_11 = arith.constant 1.000000e+00 : f32
    %13 = vector.broadcast %cst_11 : f32 to vector<8x2x16xf32>
    %14 = arith.addf %12, %13 : vector<8x2x16xf32>
    %cst_12 = arith.constant 1.000000e+00 : f32
    %15 = vector.broadcast %cst_12 : f32 to vector<8x2x16xf32>
    %16 = arith.subf %12, %15 : vector<8x2x16xf32>
    %17 = vector.shape_cast %14 : vector<8x2x16xf32> to vector<8x2x1x16xf32>
    %18 = vector.shape_cast %12 : vector<8x2x16xf32> to vector<8x2x1x16xf32>
    %19 = vector.shape_cast %16 : vector<8x2x16xf32> to vector<8x2x1x16xf32>
    %20 = tpu.concatenate %17, %18, %19 in 2 : vector<8x2x1x16xf32>, vector<8x2x1x16xf32>, vector<8x2x1x16xf32> -> vector<8x2x3x16xf32>
    %cst_13 = arith.constant 0.000000e+00 : f32
    %cst_14 = arith.constant 1.500000e+01 : f32
    %21 = vector.broadcast %cst_13 : f32 to vector<8x2x3x16xf32>
    %22 = arith.maximumf %21, %20 : vector<8x2x3x16xf32>
    %23 = vector.broadcast %cst_14 : f32 to vector<8x2x3x16xf32>
    %24 = arith.minimumf %23, %22 : vector<8x2x3x16xf32>
    %25 = vector.shape_cast %24 : vector<8x2x3x16xf32> to vector<8x6x16xf32>
    %26 = tpu.iota {dimensions = array<i32: 3>} : vector<1x1x1x16xi32>
    %27 = arith.sitofp %26 : vector<1x1x1x16xi32> to vector<1x1x1x16xf32>
    %28 = vector.shape_cast %25 : vector<8x6x16xf32> to vector<8x6x16x1xf32>
    %29 = vector.broadcast %27 : vector<1x1x1x16xf32> to vector<8x6x16x16xf32>
    %30 = vector.broadcast %28 : vector<8x6x16x1xf32> to vector<8x6x16x16xf32>
    %31 = arith.subf %29, %30 : vector<8x6x16x16xf32>
    %32 = math.absf %31 : vector<8x6x16x16xf32>
    %cst_15 = arith.constant 1.000000e+00 : f32
    %33 = vector.broadcast %cst_15 : f32 to vector<8x6x16x16xf32>
    %34 = arith.subf %33, %32 : vector<8x6x16x16xf32>
    %cst_16 = arith.constant 0.000000e+00 : f32
    %35 = vector.broadcast %cst_16 : f32 to vector<8x6x16x16xf32>
    %36 = arith.maximumf %34, %35 : vector<8x6x16x16xf32>
    %37 = arith.truncf %36 : vector<8x6x16x16xf32> to vector<8x6x16x16xbf16>
    "tpu.trace_start"() <{level = 10 : i32, message = "crw,rjow->crjo"}> : () -> ()
    %cst_17 = arith.constant dense<0.000000e+00> : vector<8x6x16x4xf32>
    %38 = tpu.matmul %37, %4, %cst_17 {dimension_numbers = #tpu.dot_dimension_numbers<[3], [2], [1, 2], [0], [0, 0, 0, 1, 0, 2, 1, 0], [0], [1]>} : vector<8x6x16x16xbf16>, vector<4x8x16xbf16>, vector<8x6x16x4xf32> -> vector<8x6x16x4xf32>
    %39 = tpu.transpose %38, [3, 0, 1, 2] : vector<8x6x16x4xf32> -> vector<4x8x6x16xf32>
    "tpu.trace_stop"() : () -> ()
    %40 = vector.shape_cast %2 : vector<4x8x16xf32> to vector<4x8x1x16xf32>
    %41 = vector.broadcast %40 : vector<4x8x1x16xf32> to vector<4x8x6x16xf32>
    %42 = arith.subf %41, %39 : vector<4x8x6x16xf32>
    %43 = math.absf %42 : vector<4x8x6x16xf32>
    %cst_18 = arith.constant dense<0.000000e+00> : vector<8x6x16xf32>
    %44 = vector.multi_reduction <add>, %43, %cst_18 [0] : vector<4x8x6x16xf32> to vector<8x6x16xf32>
    %45 = vector.shape_cast %8 : vector<8x16xf32> to vector<8x1x16xf32>
    %46 = vector.extract_strided_slice %44 {offsets = [0, 0, 0], sizes = [8, 3, 16], strides = [1, 1, 1]} : vector<8x6x16xf32> to vector<8x3x16xf32>
    %47 = vector.shape_cast %8 : vector<8x16xf32> to vector<8x1x16xf32>
    %48 = vector.extract_strided_slice %44 {offsets = [0, 3, 0], sizes = [8, 3, 16], strides = [1, 1, 1]} : vector<8x6x16xf32> to vector<8x3x16xf32>
    %49 = tpu.concatenate %45, %46, %47, %48 in 1 : vector<8x1x16xf32>, vector<8x3x16xf32>, vector<8x1x16xf32>, vector<8x3x16xf32> -> vector<8x8x16xf32>
    %50 = vector.shape_cast %49 : vector<8x8x16xf32> to vector<2x32x16xf32>
    %51 = arith.truncf %50 : vector<2x32x16xf32> to vector<2x32x16xbf16>
    %c0_19 = arith.constant 0 : index
    %c0_20 = arith.constant 0 : index
    %c0_21 = arith.constant 0 : index
    %52 = vector.load %arg5[%c0_19, %c0_20, %c0_21] : memref<4x16x4xbf16, #tpu.memory_space<vmem>>, vector<4x16x4xbf16>
    %53 = vector.extract_strided_slice %52 {offsets = [0, 0, 0], sizes = [1, 16, 4], strides = [1, 1, 1]} : vector<4x16x4xbf16> to vector<1x16x4xbf16>
    %54 = vector.shape_cast %53 : vector<1x16x4xbf16> to vector<16x4xbf16>
    "tpu.trace_start"() <{level = 10 : i32, message = "tkw,wx->tkx"}> : () -> ()
    %cst_22 = arith.constant dense<0.000000e+00> : vector<2x32x4xf32>
    %55 = tpu.matmul %51, %54, %cst_22 {dimension_numbers = #tpu.dot_dimension_numbers<[2], [0], [0, 1], [1], [0, 0, 0, 1, 1, 1], [], []>} : vector<2x32x16xbf16>, vector<16x4xbf16>, vector<2x32x4xf32> -> vector<2x32x4xf32>
    "tpu.trace_stop"() : () -> ()
    %56 = arith.truncf %55 : vector<2x32x4xf32> to vector<2x32x4xbf16>
    %57 = vector.extract_strided_slice %52 {offsets = [1, 0, 0], sizes = [1, 16, 4], strides = [1, 1, 1]} : vector<4x16x4xbf16> to vector<1x16x4xbf16>
    %58 = vector.shape_cast %57 : vector<1x16x4xbf16> to vector<16x4xbf16>
    "tpu.trace_start"() <{level = 10 : i32, message = "tkw,wx->tkx"}> : () -> ()
    %cst_23 = arith.constant dense<0.000000e+00> : vector<2x32x4xf32>
    %59 = tpu.matmul %51, %58, %cst_23 {dimension_numbers = #tpu.dot_dimension_numbers<[2], [0], [0, 1], [1], [0, 0, 0, 1, 1, 1], [], []>} : vector<2x32x16xbf16>, vector<16x4xbf16>, vector<2x32x4xf32> -> vector<2x32x4xf32>
    "tpu.trace_stop"() : () -> ()
    %60 = arith.truncf %59 : vector<2x32x4xf32> to vector<2x32x4xbf16>
    %61 = vector.extract_strided_slice %52 {offsets = [2, 0, 0], sizes = [1, 16, 4], strides = [1, 1, 1]} : vector<4x16x4xbf16> to vector<1x16x4xbf16>
    %62 = vector.shape_cast %61 : vector<1x16x4xbf16> to vector<16x4xbf16>
    "tpu.trace_start"() <{level = 10 : i32, message = "tkw,wx->tkx"}> : () -> ()
    %cst_24 = arith.constant dense<0.000000e+00> : vector<2x32x4xf32>
    %63 = tpu.matmul %51, %62, %cst_24 {dimension_numbers = #tpu.dot_dimension_numbers<[2], [0], [0, 1], [1], [0, 0, 0, 1, 1, 1], [], []>} : vector<2x32x16xbf16>, vector<16x4xbf16>, vector<2x32x4xf32> -> vector<2x32x4xf32>
    "tpu.trace_stop"() : () -> ()
    %64 = arith.truncf %63 : vector<2x32x4xf32> to vector<2x32x4xbf16>
    %65 = vector.extract_strided_slice %52 {offsets = [3, 0, 0], sizes = [1, 16, 4], strides = [1, 1, 1]} : vector<4x16x4xbf16> to vector<1x16x4xbf16>
    %66 = vector.shape_cast %65 : vector<1x16x4xbf16> to vector<16x4xbf16>
    "tpu.trace_start"() <{level = 10 : i32, message = "tkw,wx->tkx"}> : () -> ()
    %cst_25 = arith.constant dense<0.000000e+00> : vector<2x32x4xf32>
    %67 = tpu.matmul %51, %66, %cst_25 {dimension_numbers = #tpu.dot_dimension_numbers<[2], [0], [0, 1], [1], [0, 0, 0, 1, 1, 1], [], []>} : vector<2x32x16xbf16>, vector<16x4xbf16>, vector<2x32x4xf32> -> vector<2x32x4xf32>
    "tpu.trace_stop"() : () -> ()
    %68 = arith.truncf %67 : vector<2x32x4xf32> to vector<2x32x4xbf16>
    %69 = tpu.concatenate %56, %60, %64, %68 in 1 : vector<2x32x4xbf16>, vector<2x32x4xbf16>, vector<2x32x4xbf16>, vector<2x32x4xbf16> -> vector<2x128x4xbf16>
    %c0_26 = arith.constant 0 : index
    %c0_27 = arith.constant 0 : index
    %70 = vector.load %arg6[%c0_26, %c0_27] : memref<128x32xbf16, #tpu.memory_space<vmem>>, vector<128x32xbf16>
    %cst_28 = arith.constant dense<0.000000e+00> : vector<2x4x32xf32>
    %71 = tpu.matmul %69, %70, %cst_28 {dimension_numbers = #tpu.dot_dimension_numbers<[1], [0], [0, 2], [1], [0, 0, 0, 2, 1, 1], [], []>} : vector<2x128x4xbf16>, vector<128x32xbf16>, vector<2x4x32xf32> -> vector<2x4x32xf32>
    %c0_29 = arith.constant 0 : index
    %c0_30 = arith.constant 0 : index
    %72 = vector.load %arg7[%c0_29, %c0_30] : memref<1x32xf32, #tpu.memory_space<vmem>>, vector<1x32xf32>
    %73 = vector.shape_cast %72 : vector<1x32xf32> to vector<1x1x32xf32>
    %74 = vector.broadcast %73 : vector<1x1x32xf32> to vector<2x4x32xf32>
    %75 = arith.addf %71, %74 : vector<2x4x32xf32>
    %cst_31 = arith.constant 0.000000e+00 : f32
    %76 = vector.broadcast %cst_31 : f32 to vector<2x4x32xf32>
    %77 = arith.cmpf ogt, %75, %76 : vector<2x4x32xf32>
    %cst_32 = arith.constant 2.000000e-01 : f32
    %78 = vector.broadcast %cst_32 : f32 to vector<2x4x32xf32>
    %79 = arith.mulf %78, %75 : vector<2x4x32xf32>
    %80 = arith.select %77, %75, %79 : vector<2x4x32xi1>, vector<2x4x32xf32>
    %c0_33 = arith.constant 0 : index
    %c0_34 = arith.constant 0 : index
    %c0_35 = arith.constant 0 : index
    %c0_36 = arith.constant 0 : index
    %81 = vector.load %arg8[%c0_33, %c0_34, %c0_35, %c0_36] : memref<1x2x4x32xf32, #tpu.memory_space<vmem>>, vector<1x2x4x32xf32>
    %82 = vector.shape_cast %81 : vector<1x2x4x32xf32> to vector<2x4x32xf32>
    %83 = vector.shape_cast %80 : vector<2x4x32xf32> to vector<1x2x4x32xf32>
    tpu.vector_store %arg8[%c0_33, %c0_34, %c0_35, %c0_36], %83 {strides = array<i32>} : memref<1x2x4x32xf32, #tpu.memory_space<vmem>>, vector<1x2x4x32xf32>,
    return
  }
  func.func @transform_0(%arg0: i32, %arg1: i32) -> (i32, i32, i32, i32) {
    %c0_i32 = arith.constant 0 : i32
    %c0_i32_0 = arith.constant 0 : i32
    %c0_i32_1 = arith.constant 0 : i32
    return %arg0, %arg1, %c0_i32, %c0_i32_0 : i32, i32, i32, i32
  }
  func.func @transform_1(%arg0: i32, %arg1: i32) -> (i32, i32, i32, i32) {
    %c0_i32 = arith.constant 0 : i32
    %c0_i32_0 = arith.constant 0 : i32
    %c0_i32_1 = arith.constant 0 : i32
    return %arg0, %c0_i32, %arg1, %c0_i32_0 : i32, i32, i32, i32
  }
  func.func @transform_2(%arg0: i32, %arg1: i32) -> (i32, i32, i32, i32) {
    %c0_i32 = arith.constant 0 : i32
    %c0_i32_0 = arith.constant 0 : i32
    %c0_i32_1 = arith.constant 0 : i32
    return %arg0, %c0_i32, %arg1, %c0_i32_0 : i32, i32, i32, i32
  }
  func.func @transform_3(%arg0: i32, %arg1: i32) -> (i32, i32, i32) {
    %c0_i32 = arith.constant 0 : i32
    %c0_i32_0 = arith.constant 0 : i32
    %c0_i32_1 = arith.constant 0 : i32
    %c0_i32_2 = arith.constant 0 : i32
    return %c0_i32, %c0_i32_0, %c0_i32_1 : i32, i32, i32
  }
  func.func @transform_4(%arg0: i32, %arg1: i32) -> (i32, i32) {
    %c0_i32 = arith.constant 0 : i32
    %c0_i32_0 = arith.constant 0 : i32
    %c0_i32_1 = arith.constant 0 : i32
    return %c0_i32, %c0_i32_0 : i32, i32
  }
  func.func @transform_5(%arg0: i32, %arg1: i32) -> (i32, i32) {
    %c0_i32 = arith.constant 0 : i32
    %c0_i32_0 = arith.constant 0 : i32
    %c0_i32_1 = arith.constant 0 : i32
    return %c0_i32, %c0_i32_0 : i32, i32
  }
  func.func @transform_6(%arg0: i32, %arg1: i32) -> (i32, i32, i32, i32) {
    %c0_i32 = arith.constant 0 : i32
    %c0_i32_0 = arith.constant 0 : i32
    %c0_i32_1 = arith.constant 0 : i32
    return %arg0, %arg1, %c0_i32, %c0_i32_0 : i32, i32, i32, i32
  }
}

module attributes {stable_mosaic.version = 11 : i64} {
  func.func @_trunk_kernel(%arg0: i32, %arg1: memref<1x4x4x32xf32, #tpu.memory_space<vmem>>, %arg2: memref<1x4x4x32xf32, #tpu.memory_space<vmem>>, %arg3: memref<576x32xbf16, #tpu.memory_space<vmem>>, %arg4: memref<1x32xf32, #tpu.memory_space<vmem>>, %arg5: memref<288x32xbf16, #tpu.memory_space<vmem>>, %arg6: memref<1x32xf32, #tpu.memory_space<vmem>>, %arg7: memref<288x32xbf16, #tpu.memory_space<vmem>>, %arg8: memref<1x32xf32, #tpu.memory_space<vmem>>, %arg9: memref<288x32xbf16, #tpu.memory_space<vmem>>, %arg10: memref<1x32xf32, #tpu.memory_space<vmem>>, %arg11: memref<288x32xbf16, #tpu.memory_space<vmem>>, %arg12: memref<1x32xf32, #tpu.memory_space<vmem>>, %arg13: memref<288x34xbf16, #tpu.memory_space<vmem>>, %arg14: memref<1x34xf32, #tpu.memory_space<vmem>>, %arg15: memref<1x4x4x34xf32, #tpu.memory_space<vmem>>, %arg16: memref<6x6x64xbf16, #tpu.memory_space<vmem>>, %arg17: memref<6x6x32xf32, #tpu.memory_space<vmem>>, %arg18: memref<6x6x32xf32, #tpu.memory_space<vmem>>) attributes {dimension_semantics = [#tpu.dimension_semantics<parallel>], iteration_bounds = array<i64: 2>, scalar_prefetch = 0 : i64, scratch_operands = 3 : i64, tpu.core_type = #tpu.core_type<tc>, window_params = [{transform_indices = @transform_0, window_bounds = array<i64: 1, 4, 4, 32>}, {transform_indices = @transform_1, window_bounds = array<i64: 1, 4, 4, 32>}, {pipeline_mode = #tpu.pipeline_mode<synchronous>, transform_indices = @transform_2, window_bounds = array<i64: 576, 32>}, {pipeline_mode = #tpu.pipeline_mode<synchronous>, transform_indices = @transform_3, window_bounds = array<i64: 1, 32>}, {pipeline_mode = #tpu.pipeline_mode<synchronous>, transform_indices = @transform_4, window_bounds = array<i64: 288, 32>}, {pipeline_mode = #tpu.pipeline_mode<synchronous>, transform_indices = @transform_5, window_bounds = array<i64: 1, 32>}, {pipeline_mode = #tpu.pipeline_mode<synchronous>, transform_indices = @transform_6, window_bounds = array<i64: 288, 32>}, {pipeline_mode = #tpu.pipeline_mode<synchronous>, transform_indices = @transform_7, window_bounds = array<i64: 1, 32>}, {pipeline_mode = #tpu.pipeline_mode<synchronous>, transform_indices = @transform_8, window_bounds = array<i64: 288, 32>}, {pipeline_mode = #tpu.pipeline_mode<synchronous>, transform_indices = @transform_9, window_bounds = array<i64: 1, 32>}, {pipeline_mode = #tpu.pipeline_mode<synchronous>, transform_indices = @transform_10, window_bounds = array<i64: 288, 32>}, {pipeline_mode = #tpu.pipeline_mode<synchronous>, transform_indices = @transform_11, window_bounds = array<i64: 1, 32>}, {pipeline_mode = #tpu.pipeline_mode<synchronous>, transform_indices = @transform_12, window_bounds = array<i64: 288, 34>}, {pipeline_mode = #tpu.pipeline_mode<synchronous>, transform_indices = @transform_13, window_bounds = array<i64: 1, 34>}, {transform_indices = @transform_14, window_bounds = array<i64: 1, 4, 4, 34>}]} {
    %cst = arith.constant 0.000000e+00 : bf16
    %0 = vector.broadcast %cst : bf16 to vector<1x6x64xbf16>
    %cst_0 = arith.constant 0.000000e+00 : bf16
    %1 = vector.broadcast %cst_0 : bf16 to vector<6x1x64xbf16>
    %c0 = arith.constant 0 : index
    %c0_1 = arith.constant 0 : index
    %c0_2 = arith.constant 0 : index
    %2 = vector.load %arg16[%c0, %c0_1, %c0_2] : memref<6x6x64xbf16, #tpu.memory_space<vmem>>, vector<1x6x64xbf16>
    tpu.vector_store %arg16[%c0, %c0_1, %c0_2], %0 {strides = array<i32>} : memref<6x6x64xbf16, #tpu.memory_space<vmem>>, vector<1x6x64xbf16>,
    %c5 = arith.constant 5 : index
    %c0_3 = arith.constant 0 : index
    %c0_4 = arith.constant 0 : index
    %3 = vector.load %arg16[%c5, %c0_3, %c0_4] : memref<6x6x64xbf16, #tpu.memory_space<vmem>>, vector<1x6x64xbf16>
    tpu.vector_store %arg16[%c5, %c0_3, %c0_4], %0 {strides = array<i32>} : memref<6x6x64xbf16, #tpu.memory_space<vmem>>, vector<1x6x64xbf16>,
    %c0_5 = arith.constant 0 : index
    %c0_6 = arith.constant 0 : index
    %c0_7 = arith.constant 0 : index
    %4 = vector.load %arg16[%c0_5, %c0_6, %c0_7] : memref<6x6x64xbf16, #tpu.memory_space<vmem>>, vector<6x1x64xbf16>
    tpu.vector_store %arg16[%c0_5, %c0_6, %c0_7], %1 {strides = array<i32>} : memref<6x6x64xbf16, #tpu.memory_space<vmem>>, vector<6x1x64xbf16>,
    %c0_8 = arith.constant 0 : index
    %c5_9 = arith.constant 5 : index
    %c0_10 = arith.constant 0 : index
    %5 = vector.load %arg16[%c0_8, %c5_9, %c0_10] : memref<6x6x64xbf16, #tpu.memory_space<vmem>>, vector<6x1x64xbf16>
    tpu.vector_store %arg16[%c0_8, %c5_9, %c0_10], %1 {strides = array<i32>} : memref<6x6x64xbf16, #tpu.memory_space<vmem>>, vector<6x1x64xbf16>,
    %cst_11 = arith.constant 0.000000e+00 : f32
    %6 = vector.broadcast %cst_11 : f32 to vector<1x6x32xf32>
    %cst_12 = arith.constant 0.000000e+00 : f32
    %7 = vector.broadcast %cst_12 : f32 to vector<6x1x32xf32>
    %c0_13 = arith.constant 0 : index
    %c0_14 = arith.constant 0 : index
    %c0_15 = arith.constant 0 : index
    %8 = vector.load %arg17[%c0_13, %c0_14, %c0_15] : memref<6x6x32xf32, #tpu.memory_space<vmem>>, vector<1x6x32xf32>
    tpu.vector_store %arg17[%c0_13, %c0_14, %c0_15], %6 {strides = array<i32>} : memref<6x6x32xf32, #tpu.memory_space<vmem>>, vector<1x6x32xf32>,
    %c5_16 = arith.constant 5 : index
    %c0_17 = arith.constant 0 : index
    %c0_18 = arith.constant 0 : index
    %9 = vector.load %arg17[%c5_16, %c0_17, %c0_18] : memref<6x6x32xf32, #tpu.memory_space<vmem>>, vector<1x6x32xf32>
    tpu.vector_store %arg17[%c5_16, %c0_17, %c0_18], %6 {strides = array<i32>} : memref<6x6x32xf32, #tpu.memory_space<vmem>>, vector<1x6x32xf32>,
    %c0_19 = arith.constant 0 : index
    %c0_20 = arith.constant 0 : index
    %c0_21 = arith.constant 0 : index
    %10 = vector.load %arg17[%c0_19, %c0_20, %c0_21] : memref<6x6x32xf32, #tpu.memory_space<vmem>>, vector<6x1x32xf32>
    tpu.vector_store %arg17[%c0_19, %c0_20, %c0_21], %7 {strides = array<i32>} : memref<6x6x32xf32, #tpu.memory_space<vmem>>, vector<6x1x32xf32>,
    %c0_22 = arith.constant 0 : index
    %c5_23 = arith.constant 5 : index
    %c0_24 = arith.constant 0 : index
    %11 = vector.load %arg17[%c0_22, %c5_23, %c0_24] : memref<6x6x32xf32, #tpu.memory_space<vmem>>, vector<6x1x32xf32>
    tpu.vector_store %arg17[%c0_22, %c5_23, %c0_24], %7 {strides = array<i32>} : memref<6x6x32xf32, #tpu.memory_space<vmem>>, vector<6x1x32xf32>,
    %cst_25 = arith.constant 0.000000e+00 : f32
    %12 = vector.broadcast %cst_25 : f32 to vector<1x6x32xf32>
    %cst_26 = arith.constant 0.000000e+00 : f32
    %13 = vector.broadcast %cst_26 : f32 to vector<6x1x32xf32>
    %c0_27 = arith.constant 0 : index
    %c0_28 = arith.constant 0 : index
    %c0_29 = arith.constant 0 : index
    %14 = vector.load %arg18[%c0_27, %c0_28, %c0_29] : memref<6x6x32xf32, #tpu.memory_space<vmem>>, vector<1x6x32xf32>
    tpu.vector_store %arg18[%c0_27, %c0_28, %c0_29], %12 {strides = array<i32>} : memref<6x6x32xf32, #tpu.memory_space<vmem>>, vector<1x6x32xf32>,
    %c5_30 = arith.constant 5 : index
    %c0_31 = arith.constant 0 : index
    %c0_32 = arith.constant 0 : index
    %15 = vector.load %arg18[%c5_30, %c0_31, %c0_32] : memref<6x6x32xf32, #tpu.memory_space<vmem>>, vector<1x6x32xf32>
    tpu.vector_store %arg18[%c5_30, %c0_31, %c0_32], %12 {strides = array<i32>} : memref<6x6x32xf32, #tpu.memory_space<vmem>>, vector<1x6x32xf32>,
    %c0_33 = arith.constant 0 : index
    %c0_34 = arith.constant 0 : index
    %c0_35 = arith.constant 0 : index
    %16 = vector.load %arg18[%c0_33, %c0_34, %c0_35] : memref<6x6x32xf32, #tpu.memory_space<vmem>>, vector<6x1x32xf32>
    tpu.vector_store %arg18[%c0_33, %c0_34, %c0_35], %13 {strides = array<i32>} : memref<6x6x32xf32, #tpu.memory_space<vmem>>, vector<6x1x32xf32>,
    %c0_36 = arith.constant 0 : index
    %c5_37 = arith.constant 5 : index
    %c0_38 = arith.constant 0 : index
    %17 = vector.load %arg18[%c0_36, %c5_37, %c0_38] : memref<6x6x32xf32, #tpu.memory_space<vmem>>, vector<6x1x32xf32>
    tpu.vector_store %arg18[%c0_36, %c5_37, %c0_38], %13 {strides = array<i32>} : memref<6x6x32xf32, #tpu.memory_space<vmem>>, vector<6x1x32xf32>,
    %c0_39 = arith.constant 0 : index
    %c0_40 = arith.constant 0 : index
    %c0_41 = arith.constant 0 : index
    %c0_42 = arith.constant 0 : index
    %18 = vector.load %arg1[%c0_39, %c0_40, %c0_41, %c0_42] : memref<1x4x4x32xf32, #tpu.memory_space<vmem>>, vector<1x4x4x32xf32>
    %19 = vector.shape_cast %18 : vector<1x4x4x32xf32> to vector<4x4x32xf32>
    %c0_43 = arith.constant 0 : index
    %c0_44 = arith.constant 0 : index
    %c0_45 = arith.constant 0 : index
    %c0_46 = arith.constant 0 : index
    %20 = vector.load %arg2[%c0_43, %c0_44, %c0_45, %c0_46] : memref<1x4x4x32xf32, #tpu.memory_space<vmem>>, vector<1x4x4x32xf32>
    %21 = vector.shape_cast %20 : vector<1x4x4x32xf32> to vector<4x4x32xf32>
    %22 = tpu.concatenate %19, %21 in 2 : vector<4x4x32xf32>, vector<4x4x32xf32> -> vector<4x4x64xf32>
    %23 = arith.truncf %22 : vector<4x4x64xf32> to vector<4x4x64xbf16>
    %c1 = arith.constant 1 : index
    %c1_47 = arith.constant 1 : index
    %c0_48 = arith.constant 0 : index
    %24 = vector.load %arg16[%c1, %c1_47, %c0_48] : memref<6x6x64xbf16, #tpu.memory_space<vmem>>, vector<4x4x64xbf16>
    tpu.vector_store %arg16[%c1, %c1_47, %c0_48], %23 {strides = array<i32>} : memref<6x6x64xbf16, #tpu.memory_space<vmem>>, vector<4x4x64xbf16>,
    %c0_49 = arith.constant 0 : index
    %c0_50 = arith.constant 0 : index
    %25 = vector.load %arg3[%c0_49, %c0_50] : memref<576x32xbf16, #tpu.memory_space<vmem>>, vector<576x32xbf16>
    %c0_51 = arith.constant 0 : index
    %c0_52 = arith.constant 0 : index
    %26 = vector.load %arg4[%c0_51, %c0_52] : memref<1x32xf32, #tpu.memory_space<vmem>>, vector<1x32xf32>
    %27 = vector.shape_cast %26 : vector<1x32xf32> to vector<1x1x32xf32>
    %c0_i32 = arith.constant 0 : i32
    %c4_i32 = arith.constant 4 : i32
    %28 = arith.muli %c0_i32, %c4_i32 : i32
    %29 = tpu.assume_multiple %28, 4 : i32
    %c0_i32_53 = arith.constant 0 : i32
    %30 = arith.addi %29, %c0_i32_53 : i32
    %31 = arith.index_cast %30 : i32 to index
    %c0_54 = arith.constant 0 : index
    %c0_55 = arith.constant 0 : index
    %32 = vector.load %arg16[%31, %c0_54, %c0_55] : memref<6x6x64xbf16, #tpu.memory_space<vmem>>, vector<4x4x64xbf16>
    %c0_i32_56 = arith.constant 0 : i32
    %33 = arith.addi %29, %c0_i32_56 : i32
    %34 = arith.index_cast %33 : i32 to index
    %c1_57 = arith.constant 1 : index
    %c0_58 = arith.constant 0 : index
    %35 = vector.load %arg16[%34, %c1_57, %c0_58] : memref<6x6x64xbf16, #tpu.memory_space<vmem>>, vector<4x4x64xbf16>
    %c0_i32_59 = arith.constant 0 : i32
    %36 = arith.addi %29, %c0_i32_59 : i32
    %37 = arith.index_cast %36 : i32 to index
    %c2 = arith.constant 2 : index
    %c0_60 = arith.constant 0 : index
    %38 = vector.load %arg16[%37, %c2, %c0_60] : memref<6x6x64xbf16, #tpu.memory_space<vmem>>, vector<4x4x64xbf16>
    %c1_i32 = arith.constant 1 : i32
    %39 = arith.addi %29, %c1_i32 : i32
    %40 = arith.index_cast %39 : i32 to index
    %c0_61 = arith.constant 0 : index
    %c0_62 = arith.constant 0 : index
    %41 = vector.load %arg16[%40, %c0_61, %c0_62] : memref<6x6x64xbf16, #tpu.memory_space<vmem>>, vector<4x4x64xbf16>
    %c1_i32_63 = arith.constant 1 : i32
    %42 = arith.addi %29, %c1_i32_63 : i32
    %43 = arith.index_cast %42 : i32 to index
    %c1_64 = arith.constant 1 : index
    %c0_65 = arith.constant 0 : index
    %44 = vector.load %arg16[%43, %c1_64, %c0_65] : memref<6x6x64xbf16, #tpu.memory_space<vmem>>, vector<4x4x64xbf16>
    %c1_i32_66 = arith.constant 1 : i32
    %45 = arith.addi %29, %c1_i32_66 : i32
    %46 = arith.index_cast %45 : i32 to index
    %c2_67 = arith.constant 2 : index
    %c0_68 = arith.constant 0 : index
    %47 = vector.load %arg16[%46, %c2_67, %c0_68] : memref<6x6x64xbf16, #tpu.memory_space<vmem>>, vector<4x4x64xbf16>
    %c2_i32 = arith.constant 2 : i32
    %48 = arith.addi %29, %c2_i32 : i32
    %49 = arith.index_cast %48 : i32 to index
    %c0_69 = arith.constant 0 : index
    %c0_70 = arith.constant 0 : index
    %50 = vector.load %arg16[%49, %c0_69, %c0_70] : memref<6x6x64xbf16, #tpu.memory_space<vmem>>, vector<4x4x64xbf16>
    %c2_i32_71 = arith.constant 2 : i32
    %51 = arith.addi %29, %c2_i32_71 : i32
    %52 = arith.index_cast %51 : i32 to index
    %c1_72 = arith.constant 1 : index
    %c0_73 = arith.constant 0 : index
    %53 = vector.load %arg16[%52, %c1_72, %c0_73] : memref<6x6x64xbf16, #tpu.memory_space<vmem>>, vector<4x4x64xbf16>
    %c2_i32_74 = arith.constant 2 : i32
    %54 = arith.addi %29, %c2_i32_74 : i32
    %55 = arith.index_cast %54 : i32 to index
    %c2_75 = arith.constant 2 : index
    %c0_76 = arith.constant 0 : index
    %56 = vector.load %arg16[%55, %c2_75, %c0_76] : memref<6x6x64xbf16, #tpu.memory_space<vmem>>, vector<4x4x64xbf16>
    %57 = tpu.concatenate %32, %35, %38, %41, %44, %47, %50, %53, %56 in 2 : vector<4x4x64xbf16>, vector<4x4x64xbf16>, vector<4x4x64xbf16>, vector<4x4x64xbf16>, vector<4x4x64xbf16>, vector<4x4x64xbf16>, vector<4x4x64xbf16>, vector<4x4x64xbf16>, vector<4x4x64xbf16> -> vector<4x4x576xbf16>
    "tpu.trace_start"() <{level = 10 : i32, message = "twk,ko->two"}> : () -> ()
    %cst_77 = arith.constant dense<0.000000e+00> : vector<4x4x32xf32>
    %58 = tpu.matmul %57, %25, %cst_77 {dimension_numbers = #tpu.dot_dimension_numbers<[2], [0], [0, 1], [1], [0, 0, 0, 1, 1, 1], [], []>} : vector<4x4x576xbf16>, vector<576x32xbf16>, vector<4x4x32xf32> -> vector<4x4x32xf32>
    "tpu.trace_stop"() : () -> ()
    %59 = vector.broadcast %27 : vector<1x1x32xf32> to vector<4x4x32xf32>
    %60 = arith.addf %58, %59 : vector<4x4x32xf32>
    %cst_78 = arith.constant 0.000000e+00 : f32
    %61 = vector.broadcast %cst_78 : f32 to vector<4x4x32xf32>
    %62 = arith.cmpf ogt, %60, %61 : vector<4x4x32xf32>
    %cst_79 = arith.constant 2.000000e-01 : f32
    %63 = vector.broadcast %cst_79 : f32 to vector<4x4x32xf32>
    %64 = arith.mulf %63, %60 : vector<4x4x32xf32>
    %65 = arith.select %62, %60, %64 : vector<4x4x32xi1>, vector<4x4x32xf32>
    %c1_i32_80 = arith.constant 1 : i32
    %66 = arith.addi %c1_i32_80, %29 : i32
    %67 = arith.index_cast %66 : i32 to index
    %c1_81 = arith.constant 1 : index
    %c0_82 = arith.constant 0 : index
    %68 = vector.load %arg17[%67, %c1_81, %c0_82] : memref<6x6x32xf32, #tpu.memory_space<vmem>>, vector<4x4x32xf32>
    tpu.vector_store %arg17[%67, %c1_81, %c0_82], %65 {strides = array<i32>} : memref<6x6x32xf32, #tpu.memory_space<vmem>>, vector<4x4x32xf32>,
    %c1_i32_83 = arith.constant 1 : i32
    %c0_84 = arith.constant 0 : index
    %c0_85 = arith.constant 0 : index
    %69 = vector.load %arg5[%c0_84, %c0_85] : memref<288x32xbf16, #tpu.memory_space<vmem>>, vector<288x32xbf16>
    %c0_86 = arith.constant 0 : index
    %c0_87 = arith.constant 0 : index
    %70 = vector.load %arg6[%c0_86, %c0_87] : memref<1x32xf32, #tpu.memory_space<vmem>>, vector<1x32xf32>
    %71 = vector.shape_cast %70 : vector<1x32xf32> to vector<1x1x32xf32>
    %c0_i32_88 = arith.constant 0 : i32
    %c4_i32_89 = arith.constant 4 : i32
    %72 = arith.muli %c0_i32_88, %c4_i32_89 : i32
    %73 = tpu.assume_multiple %72, 4 : i32
    %c0_i32_90 = arith.constant 0 : i32
    %74 = arith.addi %73, %c0_i32_90 : i32
    %75 = arith.index_cast %74 : i32 to index
    %c0_91 = arith.constant 0 : index
    %c0_92 = arith.constant 0 : index
    %76 = vector.load %arg17[%75, %c0_91, %c0_92] : memref<6x6x32xf32, #tpu.memory_space<vmem>>, vector<4x4x32xf32>
    %c0_i32_93 = arith.constant 0 : i32
    %77 = arith.addi %73, %c0_i32_93 : i32
    %78 = arith.index_cast %77 : i32 to index
    %c1_94 = arith.constant 1 : index
    %c0_95 = arith.constant 0 : index
    %79 = vector.load %arg17[%78, %c1_94, %c0_95] : memref<6x6x32xf32, #tpu.memory_space<vmem>>, vector<4x4x32xf32>
    %c0_i32_96 = arith.constant 0 : i32
    %80 = arith.addi %73, %c0_i32_96 : i32
    %81 = arith.index_cast %80 : i32 to index
    %c2_97 = arith.constant 2 : index
    %c0_98 = arith.constant 0 : index
    %82 = vector.load %arg17[%81, %c2_97, %c0_98] : memref<6x6x32xf32, #tpu.memory_space<vmem>>, vector<4x4x32xf32>
    %c1_i32_99 = arith.constant 1 : i32
    %83 = arith.addi %73, %c1_i32_99 : i32
    %84 = arith.index_cast %83 : i32 to index
    %c0_100 = arith.constant 0 : index
    %c0_101 = arith.constant 0 : index
    %85 = vector.load %arg17[%84, %c0_100, %c0_101] : memref<6x6x32xf32, #tpu.memory_space<vmem>>, vector<4x4x32xf32>
    %c1_i32_102 = arith.constant 1 : i32
    %86 = arith.addi %73, %c1_i32_102 : i32
    %87 = arith.index_cast %86 : i32 to index
    %c1_103 = arith.constant 1 : index
    %c0_104 = arith.constant 0 : index
    %88 = vector.load %arg17[%87, %c1_103, %c0_104] : memref<6x6x32xf32, #tpu.memory_space<vmem>>, vector<4x4x32xf32>
    %c1_i32_105 = arith.constant 1 : i32
    %89 = arith.addi %73, %c1_i32_105 : i32
    %90 = arith.index_cast %89 : i32 to index
    %c2_106 = arith.constant 2 : index
    %c0_107 = arith.constant 0 : index
    %91 = vector.load %arg17[%90, %c2_106, %c0_107] : memref<6x6x32xf32, #tpu.memory_space<vmem>>, vector<4x4x32xf32>
    %c2_i32_108 = arith.constant 2 : i32
    %92 = arith.addi %73, %c2_i32_108 : i32
    %93 = arith.index_cast %92 : i32 to index
    %c0_109 = arith.constant 0 : index
    %c0_110 = arith.constant 0 : index
    %94 = vector.load %arg17[%93, %c0_109, %c0_110] : memref<6x6x32xf32, #tpu.memory_space<vmem>>, vector<4x4x32xf32>
    %c2_i32_111 = arith.constant 2 : i32
    %95 = arith.addi %73, %c2_i32_111 : i32
    %96 = arith.index_cast %95 : i32 to index
    %c1_112 = arith.constant 1 : index
    %c0_113 = arith.constant 0 : index
    %97 = vector.load %arg17[%96, %c1_112, %c0_113] : memref<6x6x32xf32, #tpu.memory_space<vmem>>, vector<4x4x32xf32>
    %c2_i32_114 = arith.constant 2 : i32
    %98 = arith.addi %73, %c2_i32_114 : i32
    %99 = arith.index_cast %98 : i32 to index
    %c2_115 = arith.constant 2 : index
    %c0_116 = arith.constant 0 : index
    %100 = vector.load %arg17[%99, %c2_115, %c0_116] : memref<6x6x32xf32, #tpu.memory_space<vmem>>, vector<4x4x32xf32>
    %101 = tpu.concatenate %76, %79, %82, %85, %88, %91, %94, %97, %100 in 2 : vector<4x4x32xf32>, vector<4x4x32xf32>, vector<4x4x32xf32>, vector<4x4x32xf32>, vector<4x4x32xf32>, vector<4x4x32xf32>, vector<4x4x32xf32>, vector<4x4x32xf32>, vector<4x4x32xf32> -> vector<4x4x288xf32>
    %102 = arith.truncf %101 : vector<4x4x288xf32> to vector<4x4x288xbf16>
    "tpu.trace_start"() <{level = 10 : i32, message = "twk,ko->two"}> : () -> ()
    %cst_117 = arith.constant dense<0.000000e+00> : vector<4x4x32xf32>
    %103 = tpu.matmul %102, %69, %cst_117 {dimension_numbers = #tpu.dot_dimension_numbers<[2], [0], [0, 1], [1], [0, 0, 0, 1, 1, 1], [], []>} : vector<4x4x288xbf16>, vector<288x32xbf16>, vector<4x4x32xf32> -> vector<4x4x32xf32>
    "tpu.trace_stop"() : () -> ()
    %104 = vector.broadcast %71 : vector<1x1x32xf32> to vector<4x4x32xf32>
    %105 = arith.addf %103, %104 : vector<4x4x32xf32>
    %cst_118 = arith.constant 0.000000e+00 : f32
    %106 = vector.broadcast %cst_118 : f32 to vector<4x4x32xf32>
    %107 = arith.cmpf ogt, %105, %106 : vector<4x4x32xf32>
    %cst_119 = arith.constant 2.000000e-01 : f32
    %108 = vector.broadcast %cst_119 : f32 to vector<4x4x32xf32>
    %109 = arith.mulf %108, %105 : vector<4x4x32xf32>
    %110 = arith.select %107, %105, %109 : vector<4x4x32xi1>, vector<4x4x32xf32>
    %c1_i32_120 = arith.constant 1 : i32
    %111 = arith.addi %c1_i32_120, %73 : i32
    %112 = arith.index_cast %111 : i32 to index
    %c1_121 = arith.constant 1 : index
    %c0_122 = arith.constant 0 : index
    %113 = vector.load %arg18[%112, %c1_121, %c0_122] : memref<6x6x32xf32, #tpu.memory_space<vmem>>, vector<4x4x32xf32>
    tpu.vector_store %arg18[%112, %c1_121, %c0_122], %110 {strides = array<i32>} : memref<6x6x32xf32, #tpu.memory_space<vmem>>, vector<4x4x32xf32>,
    %c1_i32_123 = arith.constant 1 : i32
    %c0_124 = arith.constant 0 : index
    %c0_125 = arith.constant 0 : index
    %114 = vector.load %arg7[%c0_124, %c0_125] : memref<288x32xbf16, #tpu.memory_space<vmem>>, vector<288x32xbf16>
    %c0_126 = arith.constant 0 : index
    %c0_127 = arith.constant 0 : index
    %115 = vector.load %arg8[%c0_126, %c0_127] : memref<1x32xf32, #tpu.memory_space<vmem>>, vector<1x32xf32>
    %116 = vector.shape_cast %115 : vector<1x32xf32> to vector<1x1x32xf32>
    %c0_i32_128 = arith.constant 0 : i32
    %c4_i32_129 = arith.constant 4 : i32
    %117 = arith.muli %c0_i32_128, %c4_i32_129 : i32
    %118 = tpu.assume_multiple %117, 4 : i32
    %c0_i32_130 = arith.constant 0 : i32
    %119 = arith.addi %118, %c0_i32_130 : i32
    %120 = arith.index_cast %119 : i32 to index
    %c0_131 = arith.constant 0 : index
    %c0_132 = arith.constant 0 : index
    %121 = vector.load %arg18[%120, %c0_131, %c0_132] : memref<6x6x32xf32, #tpu.memory_space<vmem>>, vector<4x4x32xf32>
    %c0_i32_133 = arith.constant 0 : i32
    %122 = arith.addi %118, %c0_i32_133 : i32
    %123 = arith.index_cast %122 : i32 to index
    %c1_134 = arith.constant 1 : index
    %c0_135 = arith.constant 0 : index
    %124 = vector.load %arg18[%123, %c1_134, %c0_135] : memref<6x6x32xf32, #tpu.memory_space<vmem>>, vector<4x4x32xf32>
    %c0_i32_136 = arith.constant 0 : i32
    %125 = arith.addi %118, %c0_i32_136 : i32
    %126 = arith.index_cast %125 : i32 to index
    %c2_137 = arith.constant 2 : index
    %c0_138 = arith.constant 0 : index
    %127 = vector.load %arg18[%126, %c2_137, %c0_138] : memref<6x6x32xf32, #tpu.memory_space<vmem>>, vector<4x4x32xf32>
    %c1_i32_139 = arith.constant 1 : i32
    %128 = arith.addi %118, %c1_i32_139 : i32
    %129 = arith.index_cast %128 : i32 to index
    %c0_140 = arith.constant 0 : index
    %c0_141 = arith.constant 0 : index
    %130 = vector.load %arg18[%129, %c0_140, %c0_141] : memref<6x6x32xf32, #tpu.memory_space<vmem>>, vector<4x4x32xf32>
    %c1_i32_142 = arith.constant 1 : i32
    %131 = arith.addi %118, %c1_i32_142 : i32
    %132 = arith.index_cast %131 : i32 to index
    %c1_143 = arith.constant 1 : index
    %c0_144 = arith.constant 0 : index
    %133 = vector.load %arg18[%132, %c1_143, %c0_144] : memref<6x6x32xf32, #tpu.memory_space<vmem>>, vector<4x4x32xf32>
    %c1_i32_145 = arith.constant 1 : i32
    %134 = arith.addi %118, %c1_i32_145 : i32
    %135 = arith.index_cast %134 : i32 to index
    %c2_146 = arith.constant 2 : index
    %c0_147 = arith.constant 0 : index
    %136 = vector.load %arg18[%135, %c2_146, %c0_147] : memref<6x6x32xf32, #tpu.memory_space<vmem>>, vector<4x4x32xf32>
    %c2_i32_148 = arith.constant 2 : i32
    %137 = arith.addi %118, %c2_i32_148 : i32
    %138 = arith.index_cast %137 : i32 to index
    %c0_149 = arith.constant 0 : index
    %c0_150 = arith.constant 0 : index
    %139 = vector.load %arg18[%138, %c0_149, %c0_150] : memref<6x6x32xf32, #tpu.memory_space<vmem>>, vector<4x4x32xf32>
    %c2_i32_151 = arith.constant 2 : i32
    %140 = arith.addi %118, %c2_i32_151 : i32
    %141 = arith.index_cast %140 : i32 to index
    %c1_152 = arith.constant 1 : index
    %c0_153 = arith.constant 0 : index
    %142 = vector.load %arg18[%141, %c1_152, %c0_153] : memref<6x6x32xf32, #tpu.memory_space<vmem>>, vector<4x4x32xf32>
    %c2_i32_154 = arith.constant 2 : i32
    %143 = arith.addi %118, %c2_i32_154 : i32
    %144 = arith.index_cast %143 : i32 to index
    %c2_155 = arith.constant 2 : index
    %c0_156 = arith.constant 0 : index
    %145 = vector.load %arg18[%144, %c2_155, %c0_156] : memref<6x6x32xf32, #tpu.memory_space<vmem>>, vector<4x4x32xf32>
    %146 = tpu.concatenate %121, %124, %127, %130, %133, %136, %139, %142, %145 in 2 : vector<4x4x32xf32>, vector<4x4x32xf32>, vector<4x4x32xf32>, vector<4x4x32xf32>, vector<4x4x32xf32>, vector<4x4x32xf32>, vector<4x4x32xf32>, vector<4x4x32xf32>, vector<4x4x32xf32> -> vector<4x4x288xf32>
    %147 = arith.truncf %146 : vector<4x4x288xf32> to vector<4x4x288xbf16>
    "tpu.trace_start"() <{level = 10 : i32, message = "twk,ko->two"}> : () -> ()
    %cst_157 = arith.constant dense<0.000000e+00> : vector<4x4x32xf32>
    %148 = tpu.matmul %147, %114, %cst_157 {dimension_numbers = #tpu.dot_dimension_numbers<[2], [0], [0, 1], [1], [0, 0, 0, 1, 1, 1], [], []>} : vector<4x4x288xbf16>, vector<288x32xbf16>, vector<4x4x32xf32> -> vector<4x4x32xf32>
    "tpu.trace_stop"() : () -> ()
    %149 = vector.broadcast %116 : vector<1x1x32xf32> to vector<4x4x32xf32>
    %150 = arith.addf %148, %149 : vector<4x4x32xf32>
    %c1_i32_158 = arith.constant 1 : i32
    %151 = arith.addi %c1_i32_158, %118 : i32
    %152 = arith.index_cast %151 : i32 to index
    %c1_159 = arith.constant 1 : index
    %c0_160 = arith.constant 0 : index
    %153 = vector.load %arg17[%152, %c1_159, %c0_160] : memref<6x6x32xf32, #tpu.memory_space<vmem>>, vector<4x4x32xf32>
    %154 = arith.addf %150, %153 : vector<4x4x32xf32>
    %cst_161 = arith.constant 0.000000e+00 : f32
    %155 = vector.broadcast %cst_161 : f32 to vector<4x4x32xf32>
    %156 = arith.cmpf ogt, %154, %155 : vector<4x4x32xf32>
    %cst_162 = arith.constant 2.000000e-01 : f32
    %157 = vector.broadcast %cst_162 : f32 to vector<4x4x32xf32>
    %158 = arith.mulf %157, %154 : vector<4x4x32xf32>
    %159 = arith.select %156, %154, %158 : vector<4x4x32xi1>, vector<4x4x32xf32>
    %c1_i32_163 = arith.constant 1 : i32
    %160 = arith.addi %c1_i32_163, %118 : i32
    %161 = arith.index_cast %160 : i32 to index
    %c1_164 = arith.constant 1 : index
    %c0_165 = arith.constant 0 : index
    %162 = vector.load %arg17[%161, %c1_164, %c0_165] : memref<6x6x32xf32, #tpu.memory_space<vmem>>, vector<4x4x32xf32>
    tpu.vector_store %arg17[%161, %c1_164, %c0_165], %159 {strides = array<i32>} : memref<6x6x32xf32, #tpu.memory_space<vmem>>, vector<4x4x32xf32>,
    %c1_i32_166 = arith.constant 1 : i32
    %c0_167 = arith.constant 0 : index
    %c0_168 = arith.constant 0 : index
    %163 = vector.load %arg9[%c0_167, %c0_168] : memref<288x32xbf16, #tpu.memory_space<vmem>>, vector<288x32xbf16>
    %c0_169 = arith.constant 0 : index
    %c0_170 = arith.constant 0 : index
    %164 = vector.load %arg10[%c0_169, %c0_170] : memref<1x32xf32, #tpu.memory_space<vmem>>, vector<1x32xf32>
    %165 = vector.shape_cast %164 : vector<1x32xf32> to vector<1x1x32xf32>
    %c0_i32_171 = arith.constant 0 : i32
    %c4_i32_172 = arith.constant 4 : i32
    %166 = arith.muli %c0_i32_171, %c4_i32_172 : i32
    %167 = tpu.assume_multiple %166, 4 : i32
    %c0_i32_173 = arith.constant 0 : i32
    %168 = arith.addi %167, %c0_i32_173 : i32
    %169 = arith.index_cast %168 : i32 to index
    %c0_174 = arith.constant 0 : index
    %c0_175 = arith.constant 0 : index
    %170 = vector.load %arg17[%169, %c0_174, %c0_175] : memref<6x6x32xf32, #tpu.memory_space<vmem>>, vector<4x4x32xf32>
    %c0_i32_176 = arith.constant 0 : i32
    %171 = arith.addi %167, %c0_i32_176 : i32
    %172 = arith.index_cast %171 : i32 to index
    %c1_177 = arith.constant 1 : index
    %c0_178 = arith.constant 0 : index
    %173 = vector.load %arg17[%172, %c1_177, %c0_178] : memref<6x6x32xf32, #tpu.memory_space<vmem>>, vector<4x4x32xf32>
    %c0_i32_179 = arith.constant 0 : i32
    %174 = arith.addi %167, %c0_i32_179 : i32
    %175 = arith.index_cast %174 : i32 to index
    %c2_180 = arith.constant 2 : index
    %c0_181 = arith.constant 0 : index
    %176 = vector.load %arg17[%175, %c2_180, %c0_181] : memref<6x6x32xf32, #tpu.memory_space<vmem>>, vector<4x4x32xf32>
    %c1_i32_182 = arith.constant 1 : i32
    %177 = arith.addi %167, %c1_i32_182 : i32
    %178 = arith.index_cast %177 : i32 to index
    %c0_183 = arith.constant 0 : index
    %c0_184 = arith.constant 0 : index
    %179 = vector.load %arg17[%178, %c0_183, %c0_184] : memref<6x6x32xf32, #tpu.memory_space<vmem>>, vector<4x4x32xf32>
    %c1_i32_185 = arith.constant 1 : i32
    %180 = arith.addi %167, %c1_i32_185 : i32
    %181 = arith.index_cast %180 : i32 to index
    %c1_186 = arith.constant 1 : index
    %c0_187 = arith.constant 0 : index
    %182 = vector.load %arg17[%181, %c1_186, %c0_187] : memref<6x6x32xf32, #tpu.memory_space<vmem>>, vector<4x4x32xf32>
    %c1_i32_188 = arith.constant 1 : i32
    %183 = arith.addi %167, %c1_i32_188 : i32
    %184 = arith.index_cast %183 : i32 to index
    %c2_189 = arith.constant 2 : index
    %c0_190 = arith.constant 0 : index
    %185 = vector.load %arg17[%184, %c2_189, %c0_190] : memref<6x6x32xf32, #tpu.memory_space<vmem>>, vector<4x4x32xf32>
    %c2_i32_191 = arith.constant 2 : i32
    %186 = arith.addi %167, %c2_i32_191 : i32
    %187 = arith.index_cast %186 : i32 to index
    %c0_192 = arith.constant 0 : index
    %c0_193 = arith.constant 0 : index
    %188 = vector.load %arg17[%187, %c0_192, %c0_193] : memref<6x6x32xf32, #tpu.memory_space<vmem>>, vector<4x4x32xf32>
    %c2_i32_194 = arith.constant 2 : i32
    %189 = arith.addi %167, %c2_i32_194 : i32
    %190 = arith.index_cast %189 : i32 to index
    %c1_195 = arith.constant 1 : index
    %c0_196 = arith.constant 0 : index
    %191 = vector.load %arg17[%190, %c1_195, %c0_196] : memref<6x6x32xf32, #tpu.memory_space<vmem>>, vector<4x4x32xf32>
    %c2_i32_197 = arith.constant 2 : i32
    %192 = arith.addi %167, %c2_i32_197 : i32
    %193 = arith.index_cast %192 : i32 to index
    %c2_198 = arith.constant 2 : index
    %c0_199 = arith.constant 0 : index
    %194 = vector.load %arg17[%193, %c2_198, %c0_199] : memref<6x6x32xf32, #tpu.memory_space<vmem>>, vector<4x4x32xf32>
    %195 = tpu.concatenate %170, %173, %176, %179, %182, %185, %188, %191, %194 in 2 : vector<4x4x32xf32>, vector<4x4x32xf32>, vector<4x4x32xf32>, vector<4x4x32xf32>, vector<4x4x32xf32>, vector<4x4x32xf32>, vector<4x4x32xf32>, vector<4x4x32xf32>, vector<4x4x32xf32> -> vector<4x4x288xf32>
    %196 = arith.truncf %195 : vector<4x4x288xf32> to vector<4x4x288xbf16>
    "tpu.trace_start"() <{level = 10 : i32, message = "twk,ko->two"}> : () -> ()
    %cst_200 = arith.constant dense<0.000000e+00> : vector<4x4x32xf32>
    %197 = tpu.matmul %196, %163, %cst_200 {dimension_numbers = #tpu.dot_dimension_numbers<[2], [0], [0, 1], [1], [0, 0, 0, 1, 1, 1], [], []>} : vector<4x4x288xbf16>, vector<288x32xbf16>, vector<4x4x32xf32> -> vector<4x4x32xf32>
    "tpu.trace_stop"() : () -> ()
    %198 = vector.broadcast %165 : vector<1x1x32xf32> to vector<4x4x32xf32>
    %199 = arith.addf %197, %198 : vector<4x4x32xf32>
    %cst_201 = arith.constant 0.000000e+00 : f32
    %200 = vector.broadcast %cst_201 : f32 to vector<4x4x32xf32>
    %201 = arith.cmpf ogt, %199, %200 : vector<4x4x32xf32>
    %cst_202 = arith.constant 2.000000e-01 : f32
    %202 = vector.broadcast %cst_202 : f32 to vector<4x4x32xf32>
    %203 = arith.mulf %202, %199 : vector<4x4x32xf32>
    %204 = arith.select %201, %199, %203 : vector<4x4x32xi1>, vector<4x4x32xf32>
    %c1_i32_203 = arith.constant 1 : i32
    %205 = arith.addi %c1_i32_203, %167 : i32
    %206 = arith.index_cast %205 : i32 to index
    %c1_204 = arith.constant 1 : index
    %c0_205 = arith.constant 0 : index
    %207 = vector.load %arg18[%206, %c1_204, %c0_205] : memref<6x6x32xf32, #tpu.memory_space<vmem>>, vector<4x4x32xf32>
    tpu.vector_store %arg18[%206, %c1_204, %c0_205], %204 {strides = array<i32>} : memref<6x6x32xf32, #tpu.memory_space<vmem>>, vector<4x4x32xf32>,
    %c1_i32_206 = arith.constant 1 : i32
    %c0_207 = arith.constant 0 : index
    %c0_208 = arith.constant 0 : index
    %208 = vector.load %arg11[%c0_207, %c0_208] : memref<288x32xbf16, #tpu.memory_space<vmem>>, vector<288x32xbf16>
    %c0_209 = arith.constant 0 : index
    %c0_210 = arith.constant 0 : index
    %209 = vector.load %arg12[%c0_209, %c0_210] : memref<1x32xf32, #tpu.memory_space<vmem>>, vector<1x32xf32>
    %210 = vector.shape_cast %209 : vector<1x32xf32> to vector<1x1x32xf32>
    %c0_i32_211 = arith.constant 0 : i32
    %c4_i32_212 = arith.constant 4 : i32
    %211 = arith.muli %c0_i32_211, %c4_i32_212 : i32
    %212 = tpu.assume_multiple %211, 4 : i32
    %c0_i32_213 = arith.constant 0 : i32
    %213 = arith.addi %212, %c0_i32_213 : i32
    %214 = arith.index_cast %213 : i32 to index
    %c0_214 = arith.constant 0 : index
    %c0_215 = arith.constant 0 : index
    %215 = vector.load %arg18[%214, %c0_214, %c0_215] : memref<6x6x32xf32, #tpu.memory_space<vmem>>, vector<4x4x32xf32>
    %c0_i32_216 = arith.constant 0 : i32
    %216 = arith.addi %212, %c0_i32_216 : i32
    %217 = arith.index_cast %216 : i32 to index
    %c1_217 = arith.constant 1 : index
    %c0_218 = arith.constant 0 : index
    %218 = vector.load %arg18[%217, %c1_217, %c0_218] : memref<6x6x32xf32, #tpu.memory_space<vmem>>, vector<4x4x32xf32>
    %c0_i32_219 = arith.constant 0 : i32
    %219 = arith.addi %212, %c0_i32_219 : i32
    %220 = arith.index_cast %219 : i32 to index
    %c2_220 = arith.constant 2 : index
    %c0_221 = arith.constant 0 : index
    %221 = vector.load %arg18[%220, %c2_220, %c0_221] : memref<6x6x32xf32, #tpu.memory_space<vmem>>, vector<4x4x32xf32>
    %c1_i32_222 = arith.constant 1 : i32
    %222 = arith.addi %212, %c1_i32_222 : i32
    %223 = arith.index_cast %222 : i32 to index
    %c0_223 = arith.constant 0 : index
    %c0_224 = arith.constant 0 : index
    %224 = vector.load %arg18[%223, %c0_223, %c0_224] : memref<6x6x32xf32, #tpu.memory_space<vmem>>, vector<4x4x32xf32>
    %c1_i32_225 = arith.constant 1 : i32
    %225 = arith.addi %212, %c1_i32_225 : i32
    %226 = arith.index_cast %225 : i32 to index
    %c1_226 = arith.constant 1 : index
    %c0_227 = arith.constant 0 : index
    %227 = vector.load %arg18[%226, %c1_226, %c0_227] : memref<6x6x32xf32, #tpu.memory_space<vmem>>, vector<4x4x32xf32>
    %c1_i32_228 = arith.constant 1 : i32
    %228 = arith.addi %212, %c1_i32_228 : i32
    %229 = arith.index_cast %228 : i32 to index
    %c2_229 = arith.constant 2 : index
    %c0_230 = arith.constant 0 : index
    %230 = vector.load %arg18[%229, %c2_229, %c0_230] : memref<6x6x32xf32, #tpu.memory_space<vmem>>, vector<4x4x32xf32>
    %c2_i32_231 = arith.constant 2 : i32
    %231 = arith.addi %212, %c2_i32_231 : i32
    %232 = arith.index_cast %231 : i32 to index
    %c0_232 = arith.constant 0 : index
    %c0_233 = arith.constant 0 : index
    %233 = vector.load %arg18[%232, %c0_232, %c0_233] : memref<6x6x32xf32, #tpu.memory_space<vmem>>, vector<4x4x32xf32>
    %c2_i32_234 = arith.constant 2 : i32
    %234 = arith.addi %212, %c2_i32_234 : i32
    %235 = arith.index_cast %234 : i32 to index
    %c1_235 = arith.constant 1 : index
    %c0_236 = arith.constant 0 : index
    %236 = vector.load %arg18[%235, %c1_235, %c0_236] : memref<6x6x32xf32, #tpu.memory_space<vmem>>, vector<4x4x32xf32>
    %c2_i32_237 = arith.constant 2 : i32
    %237 = arith.addi %212, %c2_i32_237 : i32
    %238 = arith.index_cast %237 : i32 to index
    %c2_238 = arith.constant 2 : index
    %c0_239 = arith.constant 0 : index
    %239 = vector.load %arg18[%238, %c2_238, %c0_239] : memref<6x6x32xf32, #tpu.memory_space<vmem>>, vector<4x4x32xf32>
    %240 = tpu.concatenate %215, %218, %221, %224, %227, %230, %233, %236, %239 in 2 : vector<4x4x32xf32>, vector<4x4x32xf32>, vector<4x4x32xf32>, vector<4x4x32xf32>, vector<4x4x32xf32>, vector<4x4x32xf32>, vector<4x4x32xf32>, vector<4x4x32xf32>, vector<4x4x32xf32> -> vector<4x4x288xf32>
    %241 = arith.truncf %240 : vector<4x4x288xf32> to vector<4x4x288xbf16>
    "tpu.trace_start"() <{level = 10 : i32, message = "twk,ko->two"}> : () -> ()
    %cst_240 = arith.constant dense<0.000000e+00> : vector<4x4x32xf32>
    %242 = tpu.matmul %241, %208, %cst_240 {dimension_numbers = #tpu.dot_dimension_numbers<[2], [0], [0, 1], [1], [0, 0, 0, 1, 1, 1], [], []>} : vector<4x4x288xbf16>, vector<288x32xbf16>, vector<4x4x32xf32> -> vector<4x4x32xf32>
    "tpu.trace_stop"() : () -> ()
    %243 = vector.broadcast %210 : vector<1x1x32xf32> to vector<4x4x32xf32>
    %244 = arith.addf %242, %243 : vector<4x4x32xf32>
    %c1_i32_241 = arith.constant 1 : i32
    %245 = arith.addi %c1_i32_241, %212 : i32
    %246 = arith.index_cast %245 : i32 to index
    %c1_242 = arith.constant 1 : index
    %c0_243 = arith.constant 0 : index
    %247 = vector.load %arg17[%246, %c1_242, %c0_243] : memref<6x6x32xf32, #tpu.memory_space<vmem>>, vector<4x4x32xf32>
    %248 = arith.addf %244, %247 : vector<4x4x32xf32>
    %cst_244 = arith.constant 0.000000e+00 : f32
    %249 = vector.broadcast %cst_244 : f32 to vector<4x4x32xf32>
    %250 = arith.cmpf ogt, %248, %249 : vector<4x4x32xf32>
    %cst_245 = arith.constant 2.000000e-01 : f32
    %251 = vector.broadcast %cst_245 : f32 to vector<4x4x32xf32>
    %252 = arith.mulf %251, %248 : vector<4x4x32xf32>
    %253 = arith.select %250, %248, %252 : vector<4x4x32xi1>, vector<4x4x32xf32>
    %c1_i32_246 = arith.constant 1 : i32
    %254 = arith.addi %c1_i32_246, %212 : i32
    %255 = arith.index_cast %254 : i32 to index
    %c1_247 = arith.constant 1 : index
    %c0_248 = arith.constant 0 : index
    %256 = vector.load %arg17[%255, %c1_247, %c0_248] : memref<6x6x32xf32, #tpu.memory_space<vmem>>, vector<4x4x32xf32>
    tpu.vector_store %arg17[%255, %c1_247, %c0_248], %253 {strides = array<i32>} : memref<6x6x32xf32, #tpu.memory_space<vmem>>, vector<4x4x32xf32>,
    %c1_i32_249 = arith.constant 1 : i32
    %c0_250 = arith.constant 0 : index
    %c0_251 = arith.constant 0 : index
    %257 = vector.load %arg13[%c0_250, %c0_251] : memref<288x34xbf16, #tpu.memory_space<vmem>>, vector<288x34xbf16>
    %c0_252 = arith.constant 0 : index
    %c0_253 = arith.constant 0 : index
    %258 = vector.load %arg14[%c0_252, %c0_253] : memref<1x34xf32, #tpu.memory_space<vmem>>, vector<1x34xf32>
    %259 = vector.shape_cast %258 : vector<1x34xf32> to vector<1x1x34xf32>
    %c0_i32_254 = arith.constant 0 : i32
    %c4_i32_255 = arith.constant 4 : i32
    %260 = arith.muli %c0_i32_254, %c4_i32_255 : i32
    %261 = tpu.assume_multiple %260, 4 : i32
    %c0_i32_256 = arith.constant 0 : i32
    %262 = arith.addi %261, %c0_i32_256 : i32
    %263 = arith.index_cast %262 : i32 to index
    %c0_257 = arith.constant 0 : index
    %c0_258 = arith.constant 0 : index
    %264 = vector.load %arg17[%263, %c0_257, %c0_258] : memref<6x6x32xf32, #tpu.memory_space<vmem>>, vector<4x4x32xf32>
    %c0_i32_259 = arith.constant 0 : i32
    %265 = arith.addi %261, %c0_i32_259 : i32
    %266 = arith.index_cast %265 : i32 to index
    %c1_260 = arith.constant 1 : index
    %c0_261 = arith.constant 0 : index
    %267 = vector.load %arg17[%266, %c1_260, %c0_261] : memref<6x6x32xf32, #tpu.memory_space<vmem>>, vector<4x4x32xf32>
    %c0_i32_262 = arith.constant 0 : i32
    %268 = arith.addi %261, %c0_i32_262 : i32
    %269 = arith.index_cast %268 : i32 to index
    %c2_263 = arith.constant 2 : index
    %c0_264 = arith.constant 0 : index
    %270 = vector.load %arg17[%269, %c2_263, %c0_264] : memref<6x6x32xf32, #tpu.memory_space<vmem>>, vector<4x4x32xf32>
    %c1_i32_265 = arith.constant 1 : i32
    %271 = arith.addi %261, %c1_i32_265 : i32
    %272 = arith.index_cast %271 : i32 to index
    %c0_266 = arith.constant 0 : index
    %c0_267 = arith.constant 0 : index
    %273 = vector.load %arg17[%272, %c0_266, %c0_267] : memref<6x6x32xf32, #tpu.memory_space<vmem>>, vector<4x4x32xf32>
    %c1_i32_268 = arith.constant 1 : i32
    %274 = arith.addi %261, %c1_i32_268 : i32
    %275 = arith.index_cast %274 : i32 to index
    %c1_269 = arith.constant 1 : index
    %c0_270 = arith.constant 0 : index
    %276 = vector.load %arg17[%275, %c1_269, %c0_270] : memref<6x6x32xf32, #tpu.memory_space<vmem>>, vector<4x4x32xf32>
    %c1_i32_271 = arith.constant 1 : i32
    %277 = arith.addi %261, %c1_i32_271 : i32
    %278 = arith.index_cast %277 : i32 to index
    %c2_272 = arith.constant 2 : index
    %c0_273 = arith.constant 0 : index
    %279 = vector.load %arg17[%278, %c2_272, %c0_273] : memref<6x6x32xf32, #tpu.memory_space<vmem>>, vector<4x4x32xf32>
    %c2_i32_274 = arith.constant 2 : i32
    %280 = arith.addi %261, %c2_i32_274 : i32
    %281 = arith.index_cast %280 : i32 to index
    %c0_275 = arith.constant 0 : index
    %c0_276 = arith.constant 0 : index
    %282 = vector.load %arg17[%281, %c0_275, %c0_276] : memref<6x6x32xf32, #tpu.memory_space<vmem>>, vector<4x4x32xf32>
    %c2_i32_277 = arith.constant 2 : i32
    %283 = arith.addi %261, %c2_i32_277 : i32
    %284 = arith.index_cast %283 : i32 to index
    %c1_278 = arith.constant 1 : index
    %c0_279 = arith.constant 0 : index
    %285 = vector.load %arg17[%284, %c1_278, %c0_279] : memref<6x6x32xf32, #tpu.memory_space<vmem>>, vector<4x4x32xf32>
    %c2_i32_280 = arith.constant 2 : i32
    %286 = arith.addi %261, %c2_i32_280 : i32
    %287 = arith.index_cast %286 : i32 to index
    %c2_281 = arith.constant 2 : index
    %c0_282 = arith.constant 0 : index
    %288 = vector.load %arg17[%287, %c2_281, %c0_282] : memref<6x6x32xf32, #tpu.memory_space<vmem>>, vector<4x4x32xf32>
    %289 = tpu.concatenate %264, %267, %270, %273, %276, %279, %282, %285, %288 in 2 : vector<4x4x32xf32>, vector<4x4x32xf32>, vector<4x4x32xf32>, vector<4x4x32xf32>, vector<4x4x32xf32>, vector<4x4x32xf32>, vector<4x4x32xf32>, vector<4x4x32xf32>, vector<4x4x32xf32> -> vector<4x4x288xf32>
    %290 = arith.truncf %289 : vector<4x4x288xf32> to vector<4x4x288xbf16>
    "tpu.trace_start"() <{level = 10 : i32, message = "twk,ko->two"}> : () -> ()
    %cst_283 = arith.constant dense<0.000000e+00> : vector<4x4x34xf32>
    %291 = tpu.matmul %290, %257, %cst_283 {dimension_numbers = #tpu.dot_dimension_numbers<[2], [0], [0, 1], [1], [0, 0, 0, 1, 1, 1], [], []>} : vector<4x4x288xbf16>, vector<288x34xbf16>, vector<4x4x34xf32> -> vector<4x4x34xf32>
    "tpu.trace_stop"() : () -> ()
    %292 = vector.broadcast %259 : vector<1x1x34xf32> to vector<4x4x34xf32>
    %293 = arith.addf %291, %292 : vector<4x4x34xf32>
    %c0_284 = arith.constant 0 : index
    %294 = arith.index_cast %261 : i32 to index
    %c0_285 = arith.constant 0 : index
    %c0_286 = arith.constant 0 : index
    %295 = vector.load %arg1[%c0_284, %294, %c0_285, %c0_286] : memref<1x4x4x32xf32, #tpu.memory_space<vmem>>, vector<1x4x4x32xf32>
    %296 = vector.shape_cast %295 : vector<1x4x4x32xf32> to vector<4x4x32xf32>
    %297 = vector.extract_strided_slice %293 {offsets = [0, 0, 0], sizes = [4, 4, 32], strides = [1, 1, 1]} : vector<4x4x34xf32> to vector<4x4x32xf32>
    %298 = arith.addf %297, %296 : vector<4x4x32xf32>
    %299 = vector.extract_strided_slice %293 {offsets = [0, 0, 32], sizes = [4, 4, 2], strides = [1, 1, 1]} : vector<4x4x34xf32> to vector<4x4x2xf32>
    %300 = tpu.concatenate %298, %299 in 2 : vector<4x4x32xf32>, vector<4x4x2xf32> -> vector<4x4x34xf32>
    %c0_287 = arith.constant 0 : index
    %301 = arith.index_cast %261 : i32 to index
    %c0_288 = arith.constant 0 : index
    %c0_289 = arith.constant 0 : index
    %302 = vector.load %arg15[%c0_287, %301, %c0_288, %c0_289] : memref<1x4x4x34xf32, #tpu.memory_space<vmem>>, vector<1x4x4x34xf32>
    %303 = vector.shape_cast %302 : vector<1x4x4x34xf32> to vector<4x4x34xf32>
    %304 = vector.shape_cast %300 : vector<4x4x34xf32> to vector<1x4x4x34xf32>
    tpu.vector_store %arg15[%c0_287, %301, %c0_288, %c0_289], %304 {strides = array<i32>} : memref<1x4x4x34xf32, #tpu.memory_space<vmem>>, vector<1x4x4x34xf32>,
    %c1_i32_290 = arith.constant 1 : i32
    return
  }
  func.func @transform_0(%arg0: i32) -> (i32, i32, i32, i32) {
    %c0_i32 = arith.constant 0 : i32
    %c0_i32_0 = arith.constant 0 : i32
    %c0_i32_1 = arith.constant 0 : i32
    %c0_i32_2 = arith.constant 0 : i32
    return %arg0, %c0_i32, %c0_i32_0, %c0_i32_1 : i32, i32, i32, i32
  }
  func.func @transform_1(%arg0: i32) -> (i32, i32, i32, i32) {
    %c0_i32 = arith.constant 0 : i32
    %c0_i32_0 = arith.constant 0 : i32
    %c0_i32_1 = arith.constant 0 : i32
    %c0_i32_2 = arith.constant 0 : i32
    return %arg0, %c0_i32, %c0_i32_0, %c0_i32_1 : i32, i32, i32, i32
  }
  func.func @transform_2(%arg0: i32) -> (i32, i32) {
    %c0_i32 = arith.constant 0 : i32
    %c0_i32_0 = arith.constant 0 : i32
    %c0_i32_1 = arith.constant 0 : i32
    return %c0_i32, %c0_i32_0 : i32, i32
  }
  func.func @transform_3(%arg0: i32) -> (i32, i32) {
    %c0_i32 = arith.constant 0 : i32
    %c0_i32_0 = arith.constant 0 : i32
    %c0_i32_1 = arith.constant 0 : i32
    return %c0_i32, %c0_i32_0 : i32, i32
  }
  func.func @transform_4(%arg0: i32) -> (i32, i32) {
    %c0_i32 = arith.constant 0 : i32
    %c0_i32_0 = arith.constant 0 : i32
    %c0_i32_1 = arith.constant 0 : i32
    return %c0_i32, %c0_i32_0 : i32, i32
  }
  func.func @transform_5(%arg0: i32) -> (i32, i32) {
    %c0_i32 = arith.constant 0 : i32
    %c0_i32_0 = arith.constant 0 : i32
    %c0_i32_1 = arith.constant 0 : i32
    return %c0_i32, %c0_i32_0 : i32, i32
  }
  func.func @transform_6(%arg0: i32) -> (i32, i32) {
    %c0_i32 = arith.constant 0 : i32
    %c0_i32_0 = arith.constant 0 : i32
    %c0_i32_1 = arith.constant 0 : i32
    return %c0_i32, %c0_i32_0 : i32, i32
  }
  func.func @transform_7(%arg0: i32) -> (i32, i32) {
    %c0_i32 = arith.constant 0 : i32
    %c0_i32_0 = arith.constant 0 : i32
    %c0_i32_1 = arith.constant 0 : i32
    return %c0_i32, %c0_i32_0 : i32, i32
  }
  func.func @transform_8(%arg0: i32) -> (i32, i32) {
    %c0_i32 = arith.constant 0 : i32
    %c0_i32_0 = arith.constant 0 : i32
    %c0_i32_1 = arith.constant 0 : i32
    return %c0_i32, %c0_i32_0 : i32, i32
  }
  func.func @transform_9(%arg0: i32) -> (i32, i32) {
    %c0_i32 = arith.constant 0 : i32
    %c0_i32_0 = arith.constant 0 : i32
    %c0_i32_1 = arith.constant 0 : i32
    return %c0_i32, %c0_i32_0 : i32, i32
  }
  func.func @transform_10(%arg0: i32) -> (i32, i32) {
    %c0_i32 = arith.constant 0 : i32
    %c0_i32_0 = arith.constant 0 : i32
    %c0_i32_1 = arith.constant 0 : i32
    return %c0_i32, %c0_i32_0 : i32, i32
  }
  func.func @transform_11(%arg0: i32) -> (i32, i32) {
    %c0_i32 = arith.constant 0 : i32
    %c0_i32_0 = arith.constant 0 : i32
    %c0_i32_1 = arith.constant 0 : i32
    return %c0_i32, %c0_i32_0 : i32, i32
  }
  func.func @transform_12(%arg0: i32) -> (i32, i32) {
    %c0_i32 = arith.constant 0 : i32
    %c0_i32_0 = arith.constant 0 : i32
    %c0_i32_1 = arith.constant 0 : i32
    return %c0_i32, %c0_i32_0 : i32, i32
  }
  func.func @transform_13(%arg0: i32) -> (i32, i32) {
    %c0_i32 = arith.constant 0 : i32
    %c0_i32_0 = arith.constant 0 : i32
    %c0_i32_1 = arith.constant 0 : i32
    return %c0_i32, %c0_i32_0 : i32, i32
  }
  func.func @transform_14(%arg0: i32) -> (i32, i32, i32, i32) {
    %c0_i32 = arith.constant 0 : i32
    %c0_i32_0 = arith.constant 0 : i32
    %c0_i32_1 = arith.constant 0 : i32
    %c0_i32_2 = arith.constant 0 : i32
    return %arg0, %c0_i32, %c0_i32_0, %c0_i32_1 : i32, i32, i32, i32
  }
}

</mosaic_0001>

<llo_original>
// kernel: leval_prop_forward.2
$region0: #{leval_prop_forward.2}
  #allocation0 [shape = 'u32[]', space=smem, size = 0x4, offset = 0x4, fixed_abs, tag = 'smem constant byte address 0x4 - core index']
  #allocation1 [shape = 'u32[144,128]{1,0:T(1,128)}', space=vmem, size = 0x12000, scoped, tag = 'internal scratch']
  %s0 = inlined_call_operand.vmem [shape: f32[2,16,2,16], index: 0, kind: input, shape index: {}]
  %s1 = inlined_call_operand.vmem [shape: bf16[2,4,16,16], index: 1, kind: input, shape index: {}]
  %s2 = inlined_call_operand.vmem [shape: bf16[2,4,16,16], index: 2, kind: input, shape index: {}]
  %s3 = inlined_call_operand.vmem [shape: bf16[4,16,4], index: 3, kind: input, shape index: {}]
  %s4 = inlined_call_operand.vmem [shape: bf16[128,32], index: 4, kind: input, shape index: {}]
  %s5 = inlined_call_operand.vmem [shape: f32[1,32], index: 5, kind: input, shape index: {}]
  %s6 = inlined_call_operand.vmem [shape: f32[2,4,4,32], index: 6, kind: output, shape index: {}]
  %s7 = sld [smem:[#allocation0]]
  $region139: #{leval_prop_forward.2} parent=0
    _
  %s9 = ssub.s32 1, %s7
  %s10 = scalar_select 0, %s9, %s7
  $region1: #{leval_prop_forward.2} parent=0
    #allocation2 [shape = 'u8[16384]{0}', space=vmem, size = 0x4000, scoped, tag = 'input window, operand 1']
    #allocation3 [shape = 'u8[16384]{0}', space=vmem, size = 0x4000, scoped, tag = 'input window, operand 2']
    loop: start=0, step=1, limit=6
    $region2: #{leval_prop_forward.2} parent=1 // loop_pre_header
      _
    $region3: #{leval_prop_forward.2} parent=1 // loop_header
      %s12 = sphi 0, %s16
      %p13 = scmp.ge.s32.totalorder %s12, 6
      %s19 = sphi 0, %s31
      %s20 = sphi 0, %s27
      %s21 = sphi 0, %s19
      %s22 = sphi 0, %s20
      %s23 = sphi 0, %s21
      %s24 = sphi 0, %s22
      %s36 = sphi 0, %s38
      %s39 = sphi 0, %s36
      %s40 = sphi 0, %s39
      %s56 = sphi 0, %s40
      %s64 = sphi 0, %s66
      %s67 = sphi 0, %s64
      %s68 = sphi 0, %s67
      %s84 = sphi 0, %s68
      %s92 = sphi 0, %s94
      %s95 = sphi 0, %s92
      %s96 = sphi 0, %s95
      %s112 = sphi 0, %s96
      %s116 = sphi 0, %s116
      %s118 = sphi 0, %s116
      %s119 = sphi 0, %s118
      %s133 = sphi 0, %s119
      %s137 = sphi 0, %s137
      %s139 = sphi 0, %s137
      %s140 = sphi 0, %s139
      %s154 = sphi 0, %s140
      %s158 = sphi 0, %s158
      %s160 = sphi 0, %s158
      %s161 = sphi 0, %s160
      %s175 = sphi 0, %s161
      %s183 = sphi 0, %s185
      %s186 = sphi 0, %s183
      %s187 = sphi 0, %s186
      %s203 = sphi 0, %s187
    $region4: #{leval_prop_forward.2} parent=1 // loop_header_branch
      %15 = sbr.rel (%p13) target = $region8
    $region5: #{leval_prop_forward.2} parent=1 // loop_body
      %s17 = ssub.s32 %s12, 1
      %s18 = ssub.s32 %s12, 2
      %s25 = sadd.s32 1, %s20
      %p26 = scmp.ge.s32.totalorder %s25, 2
      %s27 = scalar_select %p26, 0, %s25
      %s28 = sadd.s32 1, %s19
      %s29 = scalar_select %p26, %s28, %s19
      %p30 = scmp.ge.s32.totalorder %s29, 2
      %s31 = scalar_select %p30, 0, %s29
      %s32 = ssub.s32 %s19, %s31
      %s33 = ssub.s32 %s20, %s27
      %s34 = sor.u32 %s32, %s33
      %p35 = scmp.eq.s32.totalorder %s34, 0
      %s37 = sadd.s32 %s36, 1
      %s38 = scalar_select %p35, %s36, %s37
      %p41 = pneg %p35
      %p42 = scmp.eq.s32.totalorder %s12, 3
      %p43 = por %p41, %p42
      %p44 = scmp.ne.s32.totalorder %s36, %s39
      %p45 = scmp.eq.s32.totalorder %s12, 0
      %p46 = por %p44, %p45
      %p47 = scmp.ne.s32.totalorder %s36, %s39
      %p48 = scmp.eq.s32.totalorder %s17, 3
      %p49 = por %p47, %p48
      %p50 = scmp.ne.s32.totalorder %s39, %s40
      %p51 = scmp.eq.s32.totalorder %s17, 0
      %p52 = por %p50, %p51
      %p53 = scmp.ne.s32.totalorder %s39, %s40
      %p54 = scmp.eq.s32.totalorder %s18, 3
      %p55 = por %p53, %p54
      %p57 = scmp.ne.s32.totalorder %s40, %s56
      %p58 = scmp.eq.s32.totalorder %s18, 0
      %p59 = por %p57, %p58
      %s60 = ssub.s32 %s19, %s31
      %s61 = ssub.s32 %s20, %s27
      %s62 = sor.u32 %s60, %s61
      %p63 = scmp.eq.s32.totalorder %s62, 0
      %s65 = sadd.s32 %s64, 1
      %s66 = scalar_select %p63, %s64, %s65
      %p69 = pneg %p63
      %p70 = scmp.eq.s32.totalorder %s12, 3
      %p71 = por %p69, %p70
      %p72 = scmp.ne.s32.totalorder %s64, %s67
      %p73 = scmp.eq.s32.totalorder %s12, 0
      %p74 = por %p72, %p73
      %p75 = scmp.ne.s32.totalorder %s64, %s67
      %p76 = scmp.eq.s32.totalorder %s17, 3
      %p77 = por %p75, %p76
      %p78 = scmp.ne.s32.totalorder %s67, %s68
      %p79 = scmp.eq.s32.totalorder %s17, 0
      %p80 = por %p78, %p79
      %p81 = scmp.ne.s32.totalorder %s67, %s68
      %p82 = scmp.eq.s32.totalorder %s18, 3
      %p83 = por %p81, %p82
      %p85 = scmp.ne.s32.totalorder %s68, %s84
      %p86 = scmp.eq.s32.totalorder %s18, 0
      %p87 = por %p85, %p86
      %s88 = ssub.s32 %s19, %s31
      %s89 = ssub.s32 %s20, %s27
      %s90 = sor.u32 %s88, %s89
      %p91 = scmp.eq.s32.totalorder %s90, 0
      %s93 = sadd.s32 %s92, 1
      %s94 = scalar_select %p91, %s92, %s93
      %p97 = pneg %p91
      %p98 = scmp.eq.s32.totalorder %s12, 3
      %p99 = por %p97, %p98
      %p100 = scmp.ne.s32.totalorder %s92, %s95
      %p101 = scmp.eq.s32.totalorder %s12, 0
      %p102 = por %p100, %p101
      %p103 = scmp.ne.s32.totalorder %s92, %s95
      %p104 = scmp.eq.s32.totalorder %s17, 3
      %p105 = por %p103, %p104
      %p106 = scmp.ne.s32.totalorder %s95, %s96
      %p107 = scmp.eq.s32.totalorder %s17, 0
      %p108 = por %p106, %p107
      %p109 = scmp.ne.s32.totalorder %s95, %s96
      %p110 = scmp.eq.s32.totalorder %s18, 3
      %p111 = por %p109, %p110
      %p113 = scmp.ne.s32.totalorder %s96, %s112
      %p114 = scmp.eq.s32.totalorder %s18, 0
      %p115 = por %p113, %p114
      %s117 = sadd.s32 %s116, 1
      %p120 = scmp.eq.s32.totalorder %s12, 3
      %p121 = scmp.ne.s32.totalorder %s116, %s118
      %p122 = scmp.eq.s32.totalorder %s12, 0
      %p123 = por %p121, %p122
      %p124 = scmp.ne.s32.totalorder %s116, %s118
      %p125 = scmp.eq.s32.totalorder %s17, 3
      %p126 = por %p124, %p125
      %p127 = scmp.ne.s32.totalorder %s118, %s119
      %p128 = scmp.eq.s32.totalorder %s17, 0
      %p129 = por %p127, %p128
      %p130 = scmp.ne.s32.totalorder %s118, %s119
      %p131 = scmp.eq.s32.totalorder %s18, 3
      %p132 = por %p130, %p131
      %p134 = scmp.ne.s32.totalorder %s119, %s133
      %p135 = scmp.eq.s32.totalorder %s18, 0
      %p136 = por %p134, %p135
      %s138 = sadd.s32 %s137, 1
      %p141 = scmp.eq.s32.totalorder %s12, 3
      %p142 = scmp.ne.s32.totalorder %s137, %s139
      %p143 = scmp.eq.s32.totalorder %s12, 0
      %p144 = por %p142, %p143
      %p145 = scmp.ne.s32.totalorder %s137, %s139
      %p146 = scmp.eq.s32.totalorder %s17, 3
      %p147 = por %p145, %p146
      %p148 = scmp.ne.s32.totalorder %s139, %s140
      %p149 = scmp.eq.s32.totalorder %s17, 0
      %p150 = por %p148, %p149
      %p151 = scmp.ne.s32.totalorder %s139, %s140
      %p152 = scmp.eq.s32.totalorder %s18, 3
      %p153 = por %p151, %p152
      %p155 = scmp.ne.s32.totalorder %s140, %s154
      %p156 = scmp.eq.s32.totalorder %s18, 0
      %p157 = por %p155, %p156
      %s159 = sadd.s32 %s158, 1
      %p162 = scmp.eq.s32.totalorder %s12, 3
      %p163 = scmp.ne.s32.totalorder %s158, %s160
      %p164 = scmp.eq.s32.totalorder %s12, 0
      %p165 = por %p163, %p164
      %p166 = scmp.ne.s32.totalorder %s158, %s160
      %p167 = scmp.eq.s32.totalorder %s17, 3
      %p168 = por %p166, %p167
      %p169 = scmp.ne.s32.totalorder %s160, %s161
      %p170 = scmp.eq.s32.totalorder %s17, 0
      %p171 = por %p169, %p170
      %p172 = scmp.ne.s32.totalorder %s160, %s161
      %p173 = scmp.eq.s32.totalorder %s18, 3
      %p174 = por %p172, %p173
      %p176 = scmp.ne.s32.totalorder %s161, %s175
      %p177 = scmp.eq.s32.totalorder %s18, 0
      %p178 = por %p176, %p177
      %s179 = ssub.s32 %s19, %s31
      %s180 = ssub.s32 %s20, %s27
      %s181 = sor.u32 %s179, %s180
      %p182 = scmp.eq.s32.totalorder %s181, 0
      %s184 = sadd.s32 %s183, 1
      %s185 = scalar_select %p182, %s183, %s184
      %p188 = pneg %p182
      %p189 = scmp.eq.s32.totalorder %s12, 3
      %p190 = por %p188, %p189
      %p191 = scmp.ne.s32.totalorder %s183, %s186
      %p192 = scmp.eq.s32.totalorder %s12, 0
      %p193 = por %p191, %p192
      %p194 = scmp.ne.s32.totalorder %s183, %s186
      %p195 = scmp.eq.s32.totalorder %s17, 3
      %p196 = por %p194, %p195
      %p197 = scmp.ne.s32.totalorder %s186, %s187
      %p198 = scmp.eq.s32.totalorder %s17, 0
      %p199 = por %p197, %p198
      %p200 = scmp.ne.s32.totalorder %s186, %s187
      %p201 = scmp.eq.s32.totalorder %s18, 3
      %p202 = por %p200, %p201
      %p204 = scmp.ne.s32.totalorder %s187, %s203
      %p205 = scmp.eq.s32.totalorder %s18, 0
      %p206 = por %p204, %p205
      %p207 = scmp.le.s32.totalorder 1, %s12
      %p208 = scmp.lt.s32.totalorder %s12, 5
      %p209 = pnand %p207, %p208
      %p210 = pneg %p209
      // Predicated region
      $region9: #{leval_prop_forward.2} parent=5 // pred_check
        _
      $region10: #{leval_prop_forward.2} parent=5 // pred_check_branch
        %212 = sbr.rel (%p209) target = $region12
      $region11: #{leval_prop_forward.2} parent=5 // pred_region
        %s213 = ssub.s32 %s12, 1
        // Predicated region
        $region13: #{leval_prop_forward.2} parent=11 // pred_check
          %p214 = pneg %p129
        $region14: #{leval_prop_forward.2} parent=11 // pred_check_branch
          %216 = sbr.rel (%p214) target = $region16
        $region15: #{leval_prop_forward.2} parent=11 // pred_region
          _
        $region16: #{leval_prop_forward.2} parent=11 // pred_fallthru
          _
        // Predicated region
        $region17: #{leval_prop_forward.2} parent=11 // pred_check
          %p217 = pneg %p150
        $region18: #{leval_prop_forward.2} parent=11 // pred_check_branch
          %219 = sbr.rel (%p217) target = $region20
        $region19: #{leval_prop_forward.2} parent=11 // pred_region
          _
        $region20: #{leval_prop_forward.2} parent=11 // pred_fallthru
          _
        // Predicated region
        $region21: #{leval_prop_forward.2} parent=11 // pred_check
          %p220 = pneg %p171
        $region22: #{leval_prop_forward.2} parent=11 // pred_check_branch
          %222 = sbr.rel (%p220) target = $region24
        $region23: #{leval_prop_forward.2} parent=11 // pred_region
          _
        $region24: #{leval_prop_forward.2} parent=11 // pred_fallthru
          _
      $region12: #{leval_prop_forward.2} parent=5 // pred_fallthru
        _
      %p223 = scmp.lt.s32.totalorder %s12, 4
      // Predicated region
      $region25: #{leval_prop_forward.2} parent=5 // pred_check
        %p224 = pneg %p223
      $region26: #{leval_prop_forward.2} parent=5 // pred_check_branch
        %226 = sbr.rel (%p224) target = $region28
      $region27: #{leval_prop_forward.2} parent=5 // pred_region
        // Predicated region
        $region29: #{leval_prop_forward.2} parent=27 // pred_check
          %p227 = pneg %p46
        $region30: #{leval_prop_forward.2} parent=27 // pred_check_branch
          %229 = sbr.rel (%p227) target = $region32
        $region31: #{leval_prop_forward.2} parent=27 // pred_region
          %s230 = smul.u32 8, %s20
          %p231 = scmp.lt.s32.totalorder %s19, 1
          %s232 = scalar_select %p231, %s19, 1
          %p233 = scmp.lt.s32.totalorder %s230, 15
          %s234 = scalar_select %p233, %s230, 15
          %s235 = smul.addr %s232, 16
          %s236 = sadd.s32 %s234, %s235
          %s237 = smul.addr %s236, 2
          %s238 = scalar_lea.vmem %s0, %s237
          %s239 = smul.u32 8, %s20
        $region32: #{leval_prop_forward.2} parent=27 // pred_fallthru
          _
        // Predicated region
        $region33: #{leval_prop_forward.2} parent=27 // pred_check
          %p240 = pneg %p74
        $region34: #{leval_prop_forward.2} parent=27 // pred_check_branch
          %242 = sbr.rel (%p240) target = $region36
        $region35: #{leval_prop_forward.2} parent=27 // pred_region
          %s243 = sand.u32 %s64, 1
          %s244 = sand.u32 %s64, 1
          %s245 = smul.addr %s244, 16
          %s246 = scalar_lea.vmem [#allocation2], %s245
          %s247 = smul.addr %s19, 8
          %s248 = sadd.s32 %s20, %s247
          %s249 = smul.addr %s248, 4
          %s250 = scalar_lea.vmem %s1, %s249
          // Predicated region
          $region37: #{leval_prop_forward.2} parent=35 // pred_check
            _
          $region38: #{leval_prop_forward.2} parent=35 // pred_check_branch
            %252 = sbr.rel (0) target = $region40
          $region39: #{leval_prop_forward.2} parent=35 // pred_region
            // Predicated region
            $region41: #{leval_prop_forward.2} parent=39 // pred_check
              _
            $region42: #{leval_prop_forward.2} parent=39 // pred_check_branch
              %254 = sbr.rel target = $region44
            $region43: #{leval_prop_forward.2} parent=39 // pred_region
              // Predicated region
              $region56: #{leval_prop_forward.2} parent=43 // pred_check
                _
              $region57: #{leval_prop_forward.2} parent=43 // pred_check_branch
                %275 = sbr.rel (0) target = $region59
              $region58: #{leval_prop_forward.2} parent=43 // pred_region
                loop: start=0, step=1, limit=1
                $region60: #{leval_prop_forward.2} parent=58 // loop_pre_header
                  _
                $region61: #{leval_prop_forward.2} parent=58 // loop_header
                  %s277 = sphi 0, %s281
                  %p278 = scmp.ge.s32.totalorder %s277, 1
                  %s282 = sphi %s250, %s250
                  %s283 = sphi %s246, %s246
                $region62: #{leval_prop_forward.2} parent=58 // loop_header_branch
                  %280 = sbr.rel (%p278) target = $region66
                $region63: #{leval_prop_forward.2} parent=58 // loop_body
                  _
                $region64: #{leval_prop_forward.2} parent=58 // loop_footer
                  %s281 = sadd.s32 1, %s277
                $region65: #{leval_prop_forward.2} parent=58 // loop_footer_branch
                  %276 = sbr.rel target = $region61
                $region66: #{leval_prop_forward.2} parent=58 // loop_exit
                  _
                loop: start=0, step=1, limit=1
                $region67: #{leval_prop_forward.2} parent=58 // loop_pre_header
                  _
                $region68: #{leval_prop_forward.2} parent=58 // loop_header
                  %s286 = sphi 0, %s290
                  %p287 = scmp.ge.s32.totalorder %s286, 1
                  %s291 = sphi %s250, %s250
                  %s292 = sphi %s246, %s246
                $region69: #{leval_prop_forward.2} parent=58 // loop_header_branch
                  %289 = sbr.rel (%p287) target = $region73
                $region70: #{leval_prop_forward.2} parent=58 // loop_body
                  %v293 = vld [vmem:[%s291] sm:$0xf]
                  %294 = vst [vmem:[%s292] sm:$0xf] %v293
                  %v295 = vld [vmem:[%s291 + $0x8] sm:$0xf]
                  %296 = vst [vmem:[%s292 + $0x4] sm:$0xf] %v295
                  %v297 = vld [vmem:[%s291 + $0x10] sm:$0xf]
                  %298 = vst [vmem:[%s292 + $0x8] sm:$0xf] %v297
                  %v299 = vld [vmem:[%s291 + $0x18] sm:$0xf]
                  %300 = vst [vmem:[%s292 + $0xc] sm:$0xf] %v299
                $region71: #{leval_prop_forward.2} parent=58 // loop_footer
                  %s290 = sadd.s32 1, %s286
                $region72: #{leval_prop_forward.2} parent=58 // loop_footer_branch
                  %285 = sbr.rel target = $region68
                $region73: #{leval_prop_forward.2} parent=58 // loop_exit
                  _
              $region59: #{leval_prop_forward.2} parent=43 // pred_fallthru
                _
            $region44: #{leval_prop_forward.2} parent=39 // pred_fallthru
              _
            // Predicated region
            $region45: #{leval_prop_forward.2} parent=39 // pred_check
              _
            $region46: #{leval_prop_forward.2} parent=39 // pred_check_branch
              %256 = sbr.rel (0) target = $region48
            $region47: #{leval_prop_forward.2} parent=39 // pred_region
              loop: start=0, step=1, limit=1
              $region49: #{leval_prop_forward.2} parent=47 // loop_pre_header
                _
              $region50: #{leval_prop_forward.2} parent=47 // loop_header
                %s259 = sphi 0, %s263
                %p260 = scmp.ge.s32.totalorder %s259, 1
                %s264 = sphi %s250, %s250
                %s265 = sphi %s246, %s246
              $region51: #{leval_prop_forward.2} parent=47 // loop_header_branch
                %262 = sbr.rel (%p260) target = $region55
              $region52: #{leval_prop_forward.2} parent=47 // loop_body
                %v266 = vld [vmem:[%s264] sm:$0xf]
                %267 = vst [vmem:[%s265] sm:$0xf] %v266
                %v268 = vld [vmem:[%s264 + $0x8] sm:$0xf]
                %269 = vst [vmem:[%s265 + $0x4] sm:$0xf] %v268
                %v270 = vld [vmem:[%s264 + $0x10] sm:$0xf]
                %271 = vst [vmem:[%s265 + $0x8] sm:$0xf] %v270
                %v272 = vld [vmem:[%s264 + $0x18] sm:$0xf]
                %273 = vst [vmem:[%s265 + $0xc] sm:$0xf] %v272
              $region53: #{leval_prop_forward.2} parent=47 // loop_footer
                %s263 = sadd.s32 1, %s259
              $region54: #{leval_prop_forward.2} parent=47 // loop_footer_branch
                %258 = sbr.rel target = $region50
              $region55: #{leval_prop_forward.2} parent=47 // loop_exit
                _
            $region48: #{leval_prop_forward.2} parent=39 // pred_fallthru
              _
          $region40: #{leval_prop_forward.2} parent=35 // pred_fallthru
            _
          %301 = vnop
        $region36: #{leval_prop_forward.2} parent=27 // pred_fallthru
          _
        // Predicated region
        $region74: #{leval_prop_forward.2} parent=27 // pred_check
          %p302 = pneg %p102
        $region75: #{leval_prop_forward.2} parent=27 // pred_check_branch
          %304 = sbr.rel (%p302) target = $region77
        $region76: #{leval_prop_forward.2} parent=27 // pred_region
          %s305 = sand.u32 %s92, 1
          %s306 = sand.u32 %s92, 1
          %s307 = smul.addr %s306, 16
          %s308 = scalar_lea.vmem [#allocation3], %s307
          %s309 = smul.addr %s19, 8
          %s310 = sadd.s32 %s20, %s309
          %s311 = smul.addr %s310, 4
          %s312 = scalar_lea.vmem %s2, %s311
          // Predicated region
          $region78: #{leval_prop_forward.2} parent=76 // pred_check
            _
          $region79: #{leval_prop_forward.2} parent=76 // pred_check_branch
            %314 = sbr.rel (0) target = $region81
          $region80: #{leval_prop_forward.2} parent=76 // pred_region
            // Predicated region
            $region82: #{leval_prop_forward.2} parent=80 // pred_check
              _
            $region83: #{leval_prop_forward.2} parent=80 // pred_check_branch
              %316 = sbr.rel target = $region85
            $region84: #{leval_prop_forward.2} parent=80 // pred_region
              // Predicated region
              $region97: #{leval_prop_forward.2} parent=84 // pred_check
                _
              $region98: #{leval_prop_forward.2} parent=84 // pred_check_branch
                %337 = sbr.rel (0) target = $region100
              $region99: #{leval_prop_forward.2} parent=84 // pred_region
                loop: start=0, step=1, limit=1
                $region101: #{leval_prop_forward.2} parent=99 // loop_pre_header
                  _
                $region102: #{leval_prop_forward.2} parent=99 // loop_header
                  %s339 = sphi 0, %s343
                  %p340 = scmp.ge.s32.totalorder %s339, 1
                  %s344 = sphi %s312, %s312
                  %s345 = sphi %s308, %s308
                $region103: #{leval_prop_forward.2} parent=99 // loop_header_branch
                  %342 = sbr.rel (%p340) target = $region107
                $region104: #{leval_prop_forward.2} parent=99 // loop_body
                  _
                $region105: #{leval_prop_forward.2} parent=99 // loop_footer
                  %s343 = sadd.s32 1, %s339
                $region106: #{leval_prop_forward.2} parent=99 // loop_footer_branch
                  %338 = sbr.rel target = $region102
                $region107: #{leval_prop_forward.2} parent=99 // loop_exit
                  _
                loop: start=0, step=1, limit=1
                $region108: #{leval_prop_forward.2} parent=99 // loop_pre_header
                  _
                $region109: #{leval_prop_forward.2} parent=99 // loop_header
                  %s348 = sphi 0, %s352
                  %p349 = scmp.ge.s32.totalorder %s348, 1
                  %s353 = sphi %s312, %s312
                  %s354 = sphi %s308, %s308
                $region110: #{leval_prop_forward.2} parent=99 // loop_header_branch
                  %351 = sbr.rel (%p349) target = $region114
                $region111: #{leval_prop_forward.2} parent=99 // loop_body
                  %v355 = vld [vmem:[%s353] sm:$0xf]
                  %356 = vst [vmem:[%s354] sm:$0xf] %v355
                  %v357 = vld [vmem:[%s353 + $0x8] sm:$0xf]
                  %358 = vst [vmem:[%s354 + $0x4] sm:$0xf] %v357
                  %v359 = vld [vmem:[%s353 + $0x10] sm:$0xf]
                  %360 = vst [vmem:[%s354 + $0x8] sm:$0xf] %v359
                  %v361 = vld [vmem:[%s353 + $0x18] sm:$0xf]
                  %362 = vst [vmem:[%s354 + $0xc] sm:$0xf] %v361
                $region112: #{leval_prop_forward.2} parent=99 // loop_footer
                  %s352 = sadd.s32 1, %s348
                $region113: #{leval_prop_forward.2} parent=99 // loop_footer_branch
                  %347 = sbr.rel target = $region109
                $region114: #{leval_prop_forward.2} parent=99 // loop_exit
                  _
              $region100: #{leval_prop_forward.2} parent=84 // pred_fallthru
                _
            $region85: #{leval_prop_forward.2} parent=80 // pred_fallthru
              _
            // Predicated region
            $region86: #{leval_prop_forward.2} parent=80 // pred_check
              _
            $region87: #{leval_prop_forward.2} parent=80 // pred_check_branch
              %318 = sbr.rel (0) target = $region89
            $region88: #{leval_prop_forward.2} parent=80 // pred_region
              loop: start=0, step=1, limit=1
              $region90: #{leval_prop_forward.2} parent=88 // loop_pre_header
                _
              $region91: #{leval_prop_forward.2} parent=88 // loop_header
                %s321 = sphi 0, %s325
                %p322 = scmp.ge.s32.totalorder %s321, 1
                %s326 = sphi %s312, %s312
                %s327 = sphi %s308, %s308
              $region92: #{leval_prop_forward.2} parent=88 // loop_header_branch
                %324 = sbr.rel (%p322) target = $region96
              $region93: #{leval_prop_forward.2} parent=88 // loop_body
                %v328 = vld [vmem:[%s326] sm:$0xf]
                %329 = vst [vmem:[%s327] sm:$0xf] %v328
                %v330 = vld [vmem:[%s326 + $0x8] sm:$0xf]
                %331 = vst [vmem:[%s327 + $0x4] sm:$0xf] %v330
                %v332 = vld [vmem:[%s326 + $0x10] sm:$0xf]
                %333 = vst [vmem:[%s327 + $0x8] sm:$0xf] %v332
                %v334 = vld [vmem:[%s326 + $0x18] sm:$0xf]
                %335 = vst [vmem:[%s327 + $0xc] sm:$0xf] %v334
              $region94: #{leval_prop_forward.2} parent=88 // loop_footer
                %s325 = sadd.s32 1, %s321
              $region95: #{leval_prop_forward.2} parent=88 // loop_footer_branch
                %320 = sbr.rel target = $region91
              $region96: #{leval_prop_forward.2} parent=88 // loop_exit
                _
            $region89: #{leval_prop_forward.2} parent=80 // pred_fallthru
              _
          $region81: #{leval_prop_forward.2} parent=76 // pred_fallthru
            _
          %363 = vnop
        $region77: #{leval_prop_forward.2} parent=27 // pred_fallthru
          _
      $region28: #{leval_prop_forward.2} parent=5 // pred_fallthru
        _
      %p364 = scmp.le.s32.totalorder 1, %s12
      %p365 = scmp.lt.s32.totalorder %s12, 5
      %p366 = pnand %p364, %p365
      %p367 = pneg %p366
      // Predicated region
      $region115: #{leval_prop_forward.2} parent=5 // pred_check
        _
      $region116: #{leval_prop_forward.2} parent=5 // pred_check_branch
        %369 = sbr.rel (%p366) target = $region118
      $region117: #{leval_prop_forward.2} parent=5 // pred_region
        %s370 = ssub.s32 %s12, 1
        %s371 = sand.u32 %s67, 1
        %s372 = sand.u32 %s67, 1
        %s373 = smul.addr %s372, 16
        %s374 = scalar_lea.vmem [#allocation2], %s373
        // Predicated region
        $region119: #{leval_prop_forward.2} parent=117 // pred_check
          %p375 = pneg %p80
        $region120: #{leval_prop_forward.2} parent=117 // pred_check_branch
          %377 = sbr.rel (%p375) target = $region122
        $region121: #{leval_prop_forward.2} parent=117 // pred_region
          _
        $region122: #{leval_prop_forward.2} parent=117 // pred_fallthru
          _
        %s378 = sand.u32 %s95, 1
        %s379 = sand.u32 %s95, 1
        %s380 = smul.addr %s379, 16
        %s381 = scalar_lea.vmem [#allocation3], %s380
        // Predicated region
        $region123: #{leval_prop_forward.2} parent=117 // pred_check
          %p382 = pneg %p108
        $region124: #{leval_prop_forward.2} parent=117 // pred_check_branch
          %384 = sbr.rel (%p382) target = $region126
        $region125: #{leval_prop_forward.2} parent=117 // pred_region
          _
        $region126: #{leval_prop_forward.2} parent=117 // pred_fallthru
          _
        %s385 = smul.u32 8, %s22
        %p386 = scmp.lt.s32.totalorder %s21, 1
        %s387 = scalar_select %p386, %s21, 1
        %p388 = scmp.lt.s32.totalorder %s385, 15
        %s389 = scalar_select %p388, %s385, 15
        %s390 = smul.addr %s387, 16
        %s391 = sadd.s32 %s389, %s390
        %s392 = smul.addr %s391, 2
        %s393 = scalar_lea.vmem %s0, %s392
        %p394 = pneg %p52
        %p395 = pneg %p49
        %s396 = sand.u32 %s67, 1
        %s397 = sand.u32 %s67, 1
        %s398 = smul.addr %s397, 16
        %s399 = scalar_lea.vmem [#allocation2], %s398
        %p400 = pneg %p80
        %p401 = pneg %p77
        %s402 = sand.u32 %s95, 1
        %s403 = sand.u32 %s95, 1
        %s404 = smul.addr %s403, 16
        %s405 = scalar_lea.vmem [#allocation3], %s404
        %p406 = pneg %p108
        %p407 = pneg %p105
        %p408 = pneg %p129
        %p409 = pneg %p126
        %p410 = pneg %p150
        %p411 = pneg %p147
        %p412 = pneg %p171
        %p413 = pneg %p168
        %p414 = pneg %p199
        %p415 = pneg %p196
        %s416 = smul.u32 2, %s22
        %p417 = scmp.lt.s32.totalorder %s21, 1
        %s418 = scalar_select %p417, %s21, 1
        %p419 = scmp.lt.s32.totalorder %s416, 3
        %s420 = scalar_select %p419, %s416, 3
        %s421 = smul.addr %s418, 4
        %s422 = sadd.s32 %s420, %s421
        %s423 = smul.addr %s422, 4
        %s424 = scalar_lea.vmem %s6, %s423
        %s425 = smul.u32 8, %s22
        %p426 = scmp.lt.s32.totalorder %s21, 1
        %s427 = scalar_select %p426, %s21, 1
        %p428 = scmp.lt.s32.totalorder %s425, 15
        %s429 = scalar_select %p428, %s425, 15
        %s430 = smul.addr %s427, 16
        %s431 = sadd.s32 %s429, %s430
        %s432 = smul.addr %s431, 2
        %s433 = scalar_lea.vmem %s0, %s432
        %s434 = smul.u32 8, %s22
        %s435 = smul.u32 2, %s22
        %p436 = scmp.lt.s32.totalorder %s21, 1
        %s437 = scalar_select %p436, %s21, 1
        %p438 = scmp.lt.s32.totalorder %s435, 3
        %s439 = scalar_select %p438, %s435, 3
        %s440 = smul.addr %s437, 4
        %s441 = sadd.s32 %s439, %s440
        %s442 = smul.addr %s441, 4
        %s443 = scalar_lea.vmem %s6, %s442
        %s444 = smul.u32 2, %s22
        %v446 = vld [vmem:[%s374] sm:$0xf]
        %v447 = vld [vmem:[%s374 + $0x4] sm:$0xf]
        %v448 = vld [vmem:[%s374 + $0x8] sm:$0xf]
        %v449 = vld [vmem:[%s374 + $0xc] sm:$0xf]
        %v450 = vunpack.c.l.bf16 %v446
        %v451 = vunpack.c.l.bf16 %v447
        %v452 = vunpack.c.l.bf16 %v448
        %v453 = vunpack.c.l.bf16 %v449
        %v454 = vld [vmem:[%s381] sm:$0xf]
        %v455 = vld [vmem:[%s381 + $0x4] sm:$0xf]
        %v456 = vld [vmem:[%s381 + $0x8] sm:$0xf]
        %v457 = vld [vmem:[%s381 + $0xc] sm:$0xf]
        %v458 = vld [vmem:[%s433] sm:$0x3]
        %v459 = vld [vmem:[%s433 + $0x2] sm:$0x3]
        %v460 = vld [vmem:[%s433 + $0x4] sm:$0x3]
        %v461 = vld [vmem:[%s433 + $0x6] sm:$0x3]
        %v462 = vld [vmem:[%s433 + $0x8] sm:$0x3]
        %v463 = vld [vmem:[%s433 + $0xa] sm:$0x3]
        %v464 = vld [vmem:[%s433 + $0xc] sm:$0x3]
        %v465 = vld [vmem:[%s433 + $0xe] sm:$0x3]
        %v466 = vand.u32 2147483647, %v450
        %v467 = vand.u32 2147483647, %v451
        %v468 = vand.u32 2147483647, %v452
        %v469 = vand.u32 2147483647, %v453
        %vm470 = vcmask 130048
        %v471 = vsel %vm470, %v466, 0.0
        %v472 = vsel %vm470, %v467, 0.0
        %v473 = vadd.f32 %v471, %v472
        %v474 = vsel %vm470, %v468, 0.0
        %v475 = vadd.f32 %v473, %v474
        %v476 = vsel %vm470, %v469, 0.0
        %v477 = vadd.f32 %v475, %v476
        %v478 = vlaneseq
        %v479 = vand.u32 %v478, 127
        %v480 = vcvt.s32.f32 %v479
        %v481 = vsub.f32 %v480, %v458
        %v482 = vsub.f32 %v480, %v459
        %v483 = vsub.f32 %v480, %v460
        %v484 = vsub.f32 %v480, %v461
        %v485 = vsub.f32 %v480, %v462
        %v486 = vsub.f32 %v480, %v463
        %v487 = vsub.f32 %v480, %v464
        %v488 = vsub.f32 %v480, %v465
        %v489 = vadd.f32 %v481, 1.0
        %v490 = vadd.f32 %v482, 1.0
        %v491 = vadd.f32 %v483, 1.0
        %v492 = vadd.f32 %v484, 1.0
        %v493 = vadd.f32 %v485, 1.0
        %v494 = vadd.f32 %v486, 1.0
        %v495 = vadd.f32 %v487, 1.0
        %v496 = vadd.f32 %v488, 1.0
        %v497 = vsub.f32 %v481, 1.0
        %v498 = vsub.f32 %v482, 1.0
        %v499 = vsub.f32 %v483, 1.0
        %v500 = vsub.f32 %v484, 1.0
        %v501 = vsub.f32 %v485, 1.0
        %v502 = vsub.f32 %v486, 1.0
        %v503 = vsub.f32 %v487, 1.0
        %v504 = vsub.f32 %v488, 1.0
        %v514 = vunpack.c.l.s4 1966171168
        %v515 = vunpack.c.0.s8 %v514
        %v516 = vlaneseq
        %v517 = vshrl.u32 %v516, 7
        %v518 = vsub.s32 %v515, %v517
        %v519 = vrot.slane %v489, %v518
        %v520 = vcombine.high %v519, %v519
        %v522 = vunpack.c.l.s4 1966171168
        %v523 = vunpack.c.0.s8 %v522
        %v524 = vlaneseq
        %v525 = vshrl.u32 %v524, 7
        %v526 = vsub.s32 %v523, %v525
        %v527 = vrot.slane %v519, %v526
        %v529 = vunpack.c.l.s4 1966171168
        %v530 = vunpack.c.0.s8 %v529
        %v531 = vlaneseq
        %v532 = vshrl.u32 %v531, 7
        %v533 = vsub.s32 %v530, %v532
        %v534 = vrot.slane %v520, %v533
        %v536 = vunpack.c.l.s4 1966171168
        %v537 = vunpack.c.0.s8 %v536
        %v538 = vlaneseq
        %v539 = vshrl.u32 %v538, 7
        %v540 = vsub.s32 %v537, %v539
        %v541 = vrot.slane %v490, %v540
        %v542 = vcombine.high %v541, %v541
        %v544 = vunpack.c.l.s4 1966171168
        %v545 = vunpack.c.0.s8 %v544
        %v546 = vlaneseq
        %v547 = vshrl.u32 %v546, 7
        %v548 = vsub.s32 %v545, %v547
        %v549 = vrot.slane %v541, %v548
        %v551 = vunpack.c.l.s4 1966171168
        %v552 = vunpack.c.0.s8 %v551
        %v553 = vlaneseq
        %v554 = vshrl.u32 %v553, 7
        %v555 = vsub.s32 %v552, %v554
        %v556 = vrot.slane %v542, %v555
        %v558 = vunpack.c.l.s4 1966171168
        %v559 = vunpack.c.0.s8 %v558
        %v560 = vlaneseq
        %v561 = vshrl.u32 %v560, 7
        %v562 = vsub.s32 %v559, %v561
        %v563 = vrot.slane %v491, %v562
        %v564 = vcombine.high %v563, %v563
        %v566 = vunpack.c.l.s4 1966171168
        %v567 = vunpack.c.0.s8 %v566
        %v568 = vlaneseq
        %v569 = vshrl.u32 %v568, 7
        %v570 = vsub.s32 %v567, %v569
        %v571 = vrot.slane %v563, %v570
        %v573 = vunpack.c.l.s4 1966171168
        %v574 = vunpack.c.0.s8 %v573
        %v575 = vlaneseq
        %v576 = vshrl.u32 %v575, 7
        %v577 = vsub.s32 %v574, %v576
        %v578 = vrot.slane %v564, %v577
        %v580 = vunpack.c.l.s4 1966171168
        %v581 = vunpack.c.0.s8 %v580
        %v582 = vlaneseq
        %v583 = vshrl.u32 %v582, 7
        %v584 = vsub.s32 %v581, %v583
        %v585 = vrot.slane %v492, %v584
        %v586 = vcombine.high %v585, %v585
        %v588 = vunpack.c.l.s4 1966171168
        %v589 = vunpack.c.0.s8 %v588
        %v590 = vlaneseq
        %v591 = vshrl.u32 %v590, 7
        %v592 = vsub.s32 %v589, %v591
        %v593 = vrot.slane %v585, %v592
        %v595 = vunpack.c.l.s4 1966171168
        %v596 = vunpack.c.0.s8 %v595
        %v597 = vlaneseq
        %v598 = vshrl.u32 %v597, 7
        %v599 = vsub.s32 %v596, %v598
        %v600 = vrot.slane %v586, %v599
        %v602 = vunpack.c.l.s4 1966171168
        %v603 = vunpack.c.0.s8 %v602
        %v604 = vlaneseq
        %v605 = vshrl.u32 %v604, 7
        %v606 = vsub.s32 %v603, %v605
        %v607 = vrot.slane %v493, %v606
        %v608 = vcombine.high %v607, %v607
        %v610 = vunpack.c.l.s4 1966171168
        %v611 = vunpack.c.0.s8 %v610
        %v612 = vlaneseq
        %v613 = vshrl.u32 %v612, 7
        %v614 = vsub.s32 %v611, %v613
        %v615 = vrot.slane %v607, %v614
        %v617 = vunpack.c.l.s4 1966171168
        %v618 = vunpack.c.0.s8 %v617
        %v619 = vlaneseq
        %v620 = vshrl.u32 %v619, 7
        %v621 = vsub.s32 %v618, %v620
        %v622 = vrot.slane %v608, %v621
        %v624 = vunpack.c.l.s4 1966171168
        %v625 = vunpack.c.0.s8 %v624
        %v626 = vlaneseq
        %v627 = vshrl.u32 %v626, 7
        %v628 = vsub.s32 %v625, %v627
        %v629 = vrot.slane %v494, %v628
        %v630 = vcombine.high %v629, %v629
        %v632 = vunpack.c.l.s4 1966171168
        %v633 = vunpack.c.0.s8 %v632
        %v634 = vlaneseq
        %v635 = vshrl.u32 %v634, 7
        %v636 = vsub.s32 %v633, %v635
        %v637 = vrot.slane %v629, %v636
        %v639 = vunpack.c.l.s4 1966171168
        %v640 = vunpack.c.0.s8 %v639
        %v641 = vlaneseq
        %v642 = vshrl.u32 %v641, 7
        %v643 = vsub.s32 %v640, %v642
        %v644 = vrot.slane %v630, %v643
        %v646 = vunpack.c.l.s4 1966171168
        %v647 = vunpack.c.0.s8 %v646
        %v648 = vlaneseq
        %v649 = vshrl.u32 %v648, 7
        %v650 = vsub.s32 %v647, %v649
        %v651 = vrot.slane %v495, %v650
        %v652 = vcombine.high %v651, %v651
        %v654 = vunpack.c.l.s4 1966171168
        %v655 = vunpack.c.0.s8 %v654
        %v656 = vlaneseq
        %v657 = vshrl.u32 %v656, 7
        %v658 = vsub.s32 %v655, %v657
        %v659 = vrot.slane %v651, %v658
        %v661 = vunpack.c.l.s4 1966171168
        %v662 = vunpack.c.0.s8 %v661
        %v663 = vlaneseq
        %v664 = vshrl.u32 %v663, 7
        %v665 = vsub.s32 %v662, %v664
        %v666 = vrot.slane %v652, %v665
        %v668 = vunpack.c.l.s4 1966171168
        %v669 = vunpack.c.0.s8 %v668
        %v670 = vlaneseq
        %v671 = vshrl.u32 %v670, 7
        %v672 = vsub.s32 %v669, %v671
        %v673 = vrot.slane %v496, %v672
        %v674 = vcombine.high %v673, %v673
        %v676 = vunpack.c.l.s4 1966171168
        %v677 = vunpack.c.0.s8 %v676
        %v678 = vlaneseq
        %v679 = vshrl.u32 %v678, 7
        %v680 = vsub.s32 %v677, %v679
        %v681 = vrot.slane %v673, %v680
        %v683 = vunpack.c.l.s4 1966171168
        %v684 = vunpack.c.0.s8 %v683
        %v685 = vlaneseq
        %v686 = vshrl.u32 %v685, 7
        %v687 = vsub.s32 %v684, %v686
        %v688 = vrot.slane %v674, %v687
        %v714 = vunpack.c.l.s4 1966171168
        %v715 = vunpack.c.0.s8 %v714
        %v716 = vlaneseq
        %v717 = vshrl.u32 %v716, 7
        %v718 = vsub.s32 %v715, %v717
        %v719 = vrot.slane %v481, %v718
        %v720 = vcombine.high %v719, %v719
        %v722 = vunpack.c.l.s4 1966171168
        %v723 = vunpack.c.0.s8 %v722
        %v724 = vlaneseq
        %v725 = vshrl.u32 %v724, 7
        %v726 = vsub.s32 %v723, %v725
        %v727 = vrot.slane %v719, %v726
        %v729 = vunpack.c.l.s4 1966171168
        %v730 = vunpack.c.0.s8 %v729
        %v731 = vlaneseq
        %v732 = vshrl.u32 %v731, 7
        %v733 = vsub.s32 %v730, %v732
        %v734 = vrot.slane %v720, %v733
        %v736 = vunpack.c.l.s4 1966171168
        %v737 = vunpack.c.0.s8 %v736
        %v738 = vlaneseq
        %v739 = vshrl.u32 %v738, 7
        %v740 = vsub.s32 %v737, %v739
        %v741 = vrot.slane %v482, %v740
        %v742 = vcombine.high %v741, %v741
        %v744 = vunpack.c.l.s4 1966171168
        %v745 = vunpack.c.0.s8 %v744
        %v746 = vlaneseq
        %v747 = vshrl.u32 %v746, 7
        %v748 = vsub.s32 %v745, %v747
        %v749 = vrot.slane %v741, %v748
        %v751 = vunpack.c.l.s4 1966171168
        %v752 = vunpack.c.0.s8 %v751
        %v753 = vlaneseq
        %v754 = vshrl.u32 %v753, 7
        %v755 = vsub.s32 %v752, %v754
        %v756 = vrot.slane %v742, %v755
        %v758 = vunpack.c.l.s4 1966171168
        %v759 = vunpack.c.0.s8 %v758
        %v760 = vlaneseq
        %v761 = vshrl.u32 %v760, 7
        %v762 = vsub.s32 %v759, %v761
        %v763 = vrot.slane %v483, %v762
        %v764 = vcombine.high %v763, %v763
        %v766 = vunpack.c.l.s4 1966171168
        %v767 = vunpack.c.0.s8 %v766
        %v768 = vlaneseq
        %v769 = vshrl.u32 %v768, 7
        %v770 = vsub.s32 %v767, %v769
        %v771 = vrot.slane %v763, %v770
        %v773 = vunpack.c.l.s4 1966171168
        %v774 = vunpack.c.0.s8 %v773
        %v775 = vlaneseq
        %v776 = vshrl.u32 %v775, 7
        %v777 = vsub.s32 %v774, %v776
        %v778 = vrot.slane %v764, %v777
        %v780 = vunpack.c.l.s4 1966171168
        %v781 = vunpack.c.0.s8 %v780
        %v782 = vlaneseq
        %v783 = vshrl.u32 %v782, 7
        %v784 = vsub.s32 %v781, %v783
        %v785 = vrot.slane %v484, %v784
        %v786 = vcombine.high %v785, %v785
        %v788 = vunpack.c.l.s4 1966171168
        %v789 = vunpack.c.0.s8 %v788
        %v790 = vlaneseq
        %v791 = vshrl.u32 %v790, 7
        %v792 = vsub.s32 %v789, %v791
        %v793 = vrot.slane %v785, %v792
        %v795 = vunpack.c.l.s4 1966171168
        %v796 = vunpack.c.0.s8 %v795
        %v797 = vlaneseq
        %v798 = vshrl.u32 %v797, 7
        %v799 = vsub.s32 %v796, %v798
        %v800 = vrot.slane %v786, %v799
        %v802 = vunpack.c.l.s4 1966171168
        %v803 = vunpack.c.0.s8 %v802
        %v804 = vlaneseq
        %v805 = vshrl.u32 %v804, 7
        %v806 = vsub.s32 %v803, %v805
        %v807 = vrot.slane %v485, %v806
        %v808 = vcombine.high %v807, %v807
        %v810 = vunpack.c.l.s4 1966171168
        %v811 = vunpack.c.0.s8 %v810
        %v812 = vlaneseq
        %v813 = vshrl.u32 %v812, 7
        %v814 = vsub.s32 %v811, %v813
        %v815 = vrot.slane %v807, %v814
        %v817 = vunpack.c.l.s4 1966171168
        %v818 = vunpack.c.0.s8 %v817
        %v819 = vlaneseq
        %v820 = vshrl.u32 %v819, 7
        %v821 = vsub.s32 %v818, %v820
        %v822 = vrot.slane %v808, %v821
        %v824 = vunpack.c.l.s4 1966171168
        %v825 = vunpack.c.0.s8 %v824
        %v826 = vlaneseq
        %v827 = vshrl.u32 %v826, 7
        %v828 = vsub.s32 %v825, %v827
        %v829 = vrot.slane %v486, %v828
        %v830 = vcombine.high %v829, %v829
        %v832 = vunpack.c.l.s4 1966171168
        %v833 = vunpack.c.0.s8 %v832
        %v834 = vlaneseq
        %v835 = vshrl.u32 %v834, 7
        %v836 = vsub.s32 %v833, %v835
        %v837 = vrot.slane %v829, %v836
        %v839 = vunpack.c.l.s4 1966171168
        %v840 = vunpack.c.0.s8 %v839
        %v841 = vlaneseq
        %v842 = vshrl.u32 %v841, 7
        %v843 = vsub.s32 %v840, %v842
        %v844 = vrot.slane %v830, %v843
        %v846 = vunpack.c.l.s4 1966171168
        %v847 = vunpack.c.0.s8 %v846
        %v848 = vlaneseq
        %v849 = vshrl.u32 %v848, 7
        %v850 = vsub.s32 %v847, %v849
        %v851 = vrot.slane %v487, %v850
        %v852 = vcombine.high %v851, %v851
        %v854 = vunpack.c.l.s4 1966171168
        %v855 = vunpack.c.0.s8 %v854
        %v856 = vlaneseq
        %v857 = vshrl.u32 %v856, 7
        %v858 = vsub.s32 %v855, %v857
        %v859 = vrot.slane %v851, %v858
        %v861 = vunpack.c.l.s4 1966171168
        %v862 = vunpack.c.0.s8 %v861
        %v863 = vlaneseq
        %v864 = vshrl.u32 %v863, 7
        %v865 = vsub.s32 %v862, %v864
        %v866 = vrot.slane %v852, %v865
        %v868 = vunpack.c.l.s4 1966171168
        %v869 = vunpack.c.0.s8 %v868
        %v870 = vlaneseq
        %v871 = vshrl.u32 %v870, 7
        %v872 = vsub.s32 %v869, %v871
        %v873 = vrot.slane %v488, %v872
        %v874 = vcombine.high %v873, %v873
        %v876 = vunpack.c.l.s4 1966171168
        %v877 = vunpack.c.0.s8 %v876
        %v878 = vlaneseq
        %v879 = vshrl.u32 %v878, 7
        %v880 = vsub.s32 %v877, %v879
        %v881 = vrot.slane %v873, %v880
        %v883 = vunpack.c.l.s4 1966171168
        %v884 = vunpack.c.0.s8 %v883
        %v885 = vlaneseq
        %v886 = vshrl.u32 %v885, 7
        %v887 = vsub.s32 %v884, %v886
        %v888 = vrot.slane %v874, %v887
        %v898 = vunpack.c.l.s4 1966171168
        %v899 = vunpack.c.0.s8 %v898
        %v900 = vlaneseq
        %v901 = vshrl.u32 %v900, 7
        %v902 = vsub.s32 %v899, %v901
        %v903 = vrot.slane %v497, %v902
        %v904 = vcombine.high %v903, %v903
        %v906 = vunpack.c.l.s4 1966171168
        %v907 = vunpack.c.0.s8 %v906
        %v908 = vlaneseq
        %v909 = vshrl.u32 %v908, 7
        %v910 = vsub.s32 %v907, %v909
        %v911 = vrot.slane %v903, %v910
        %v913 = vunpack.c.l.s4 1966171168
        %v914 = vunpack.c.0.s8 %v913
        %v915 = vlaneseq
        %v916 = vshrl.u32 %v915, 7
        %v917 = vsub.s32 %v914, %v916
        %v918 = vrot.slane %v904, %v917
        %v920 = vunpack.c.l.s4 1966171168
        %v921 = vunpack.c.0.s8 %v920
        %v922 = vlaneseq
        %v923 = vshrl.u32 %v922, 7
        %v924 = vsub.s32 %v921, %v923
        %v925 = vrot.slane %v498, %v924
        %v926 = vcombine.high %v925, %v925
        %v928 = vunpack.c.l.s4 1966171168
        %v929 = vunpack.c.0.s8 %v928
        %v930 = vlaneseq
        %v931 = vshrl.u32 %v930, 7
        %v932 = vsub.s32 %v929, %v931
        %v933 = vrot.slane %v925, %v932
        %v935 = vunpack.c.l.s4 1966171168
        %v936 = vunpack.c.0.s8 %v935
        %v937 = vlaneseq
        %v938 = vshrl.u32 %v937, 7
        %v939 = vsub.s32 %v936, %v938
        %v940 = vrot.slane %v926, %v939
        %v942 = vunpack.c.l.s4 1966171168
        %v943 = vunpack.c.0.s8 %v942
        %v944 = vlaneseq
        %v945 = vshrl.u32 %v944, 7
        %v946 = vsub.s32 %v943, %v945
        %v947 = vrot.slane %v499, %v946
        %v948 = vcombine.high %v947, %v947
        %v950 = vunpack.c.l.s4 1966171168
        %v951 = vunpack.c.0.s8 %v950
        %v952 = vlaneseq
        %v953 = vshrl.u32 %v952, 7
        %v954 = vsub.s32 %v951, %v953
        %v955 = vrot.slane %v947, %v954
        %v957 = vunpack.c.l.s4 1966171168
        %v958 = vunpack.c.0.s8 %v957
        %v959 = vlaneseq
        %v960 = vshrl.u32 %v959, 7
        %v961 = vsub.s32 %v958, %v960
        %v962 = vrot.slane %v948, %v961
        %v964 = vunpack.c.l.s4 1966171168
        %v965 = vunpack.c.0.s8 %v964
        %v966 = vlaneseq
        %v967 = vshrl.u32 %v966, 7
        %v968 = vsub.s32 %v965, %v967
        %v969 = vrot.slane %v500, %v968
        %v970 = vcombine.high %v969, %v969
        %v972 = vunpack.c.l.s4 1966171168
        %v973 = vunpack.c.0.s8 %v972
        %v974 = vlaneseq
        %v975 = vshrl.u32 %v974, 7
        %v976 = vsub.s32 %v973, %v975
        %v977 = vrot.slane %v969, %v976
        %v979 = vunpack.c.l.s4 1966171168
        %v980 = vunpack.c.0.s8 %v979
        %v981 = vlaneseq
        %v982 = vshrl.u32 %v981, 7
        %v983 = vsub.s32 %v980, %v982
        %v984 = vrot.slane %v970, %v983
        %v986 = vunpack.c.l.s4 1966171168
        %v987 = vunpack.c.0.s8 %v986
        %v988 = vlaneseq
        %v989 = vshrl.u32 %v988, 7
        %v990 = vsub.s32 %v987, %v989
        %v991 = vrot.slane %v501, %v990
        %v992 = vcombine.high %v991, %v991
        %v994 = vunpack.c.l.s4 1966171168
        %v995 = vunpack.c.0.s8 %v994
        %v996 = vlaneseq
        %v997 = vshrl.u32 %v996, 7
        %v998 = vsub.s32 %v995, %v997
        %v999 = vrot.slane %v991, %v998
        %v1001 = vunpack.c.l.s4 1966171168
        %v1002 = vunpack.c.0.s8 %v1001
        %v1003 = vlaneseq
        %v1004 = vshrl.u32 %v1003, 7
        %v1005 = vsub.s32 %v1002, %v1004
        %v1006 = vrot.slane %v992, %v1005
        %v1008 = vunpack.c.l.s4 1966171168
        %v1009 = vunpack.c.0.s8 %v1008
        %v1010 = vlaneseq
        %v1011 = vshrl.u32 %v1010, 7
        %v1012 = vsub.s32 %v1009, %v1011
        %v1013 = vrot.slane %v502, %v1012
        %v1014 = vcombine.high %v1013, %v1013
        %v1016 = vunpack.c.l.s4 1966171168
        %v1017 = vunpack.c.0.s8 %v1016
        %v1018 = vlaneseq
        %v1019 = vshrl.u32 %v1018, 7
        %v1020 = vsub.s32 %v1017, %v1019
        %v1021 = vrot.slane %v1013, %v1020
        %v1023 = vunpack.c.l.s4 1966171168
        %v1024 = vunpack.c.0.s8 %v1023
        %v1025 = vlaneseq
        %v1026 = vshrl.u32 %v1025, 7
        %v1027 = vsub.s32 %v1024, %v1026
        %v1028 = vrot.slane %v1014, %v1027
        %v1030 = vunpack.c.l.s4 1966171168
        %v1031 = vunpack.c.0.s8 %v1030
        %v1032 = vlaneseq
        %v1033 = vshrl.u32 %v1032, 7
        %v1034 = vsub.s32 %v1031, %v1033
        %v1035 = vrot.slane %v503, %v1034
        %v1036 = vcombine.high %v1035, %v1035
        %v1038 = vunpack.c.l.s4 1966171168
        %v1039 = vunpack.c.0.s8 %v1038
        %v1040 = vlaneseq
        %v1041 = vshrl.u32 %v1040, 7
        %v1042 = vsub.s32 %v1039, %v1041
        %v1043 = vrot.slane %v1035, %v1042
        %v1045 = vunpack.c.l.s4 1966171168
        %v1046 = vunpack.c.0.s8 %v1045
        %v1047 = vlaneseq
        %v1048 = vshrl.u32 %v1047, 7
        %v1049 = vsub.s32 %v1046, %v1048
        %v1050 = vrot.slane %v1036, %v1049
        %v1052 = vunpack.c.l.s4 1966171168
        %v1053 = vunpack.c.0.s8 %v1052
        %v1054 = vlaneseq
        %v1055 = vshrl.u32 %v1054, 7
        %v1056 = vsub.s32 %v1053, %v1055
        %v1057 = vrot.slane %v504, %v1056
        %v1058 = vcombine.high %v1057, %v1057
        %v1060 = vunpack.c.l.s4 1966171168
        %v1061 = vunpack.c.0.s8 %v1060
        %v1062 = vlaneseq
        %v1063 = vshrl.u32 %v1062, 7
        %v1064 = vsub.s32 %v1061, %v1063
        %v1065 = vrot.slane %v1057, %v1064
        %v1067 = vunpack.c.l.s4 1966171168
        %v1068 = vunpack.c.0.s8 %v1067
        %v1069 = vlaneseq
        %v1070 = vshrl.u32 %v1069, 7
        %v1071 = vsub.s32 %v1068, %v1070
        %v1072 = vrot.slane %v1058, %v1071
        %v1073 = vlaneseq
        %v1074 = vshrl.u32 %v1073, 7
        %v1075 = vsub.s32 0, %v1074
        %v1076 = vrot.slane %v727, %v1075
        %v1077 = vlaneseq
        %v1078 = vshrl.u32 %v1077, 7
        %v1079 = vsub.s32 0, %v1078
        %v1080 = vrot.slane %v734, %v1079
        %v1081 = vlaneseq
        %v1082 = vshrl.u32 %v1081, 7
        %v1083 = vsub.s32 0, %v1082
        %v1084 = vrot.slane %v749, %v1083
        %v1085 = vlaneseq
        %v1086 = vshrl.u32 %v1085, 7
        %v1087 = vsub.s32 0, %v1086
        %v1088 = vrot.slane %v756, %v1087
        %v1089 = vlaneseq
        %v1090 = vshrl.u32 %v1089, 7
        %v1091 = vsub.s32 0, %v1090
        %v1092 = vrot.slane %v771, %v1091
        %v1093 = vlaneseq
        %v1094 = vshrl.u32 %v1093, 7
        %v1095 = vsub.s32 0, %v1094
        %v1096 = vrot.slane %v778, %v1095
        %v1097 = vlaneseq
        %v1098 = vshrl.u32 %v1097, 7
        %v1099 = vsub.s32 0, %v1098
        %v1100 = vrot.slane %v793, %v1099
        %v1101 = vlaneseq
        %v1102 = vshrl.u32 %v1101, 7
        %v1103 = vsub.s32 0, %v1102
        %v1104 = vrot.slane %v800, %v1103
        %v1105 = vlaneseq
        %v1106 = vshrl.u32 %v1105, 7
        %v1107 = vsub.s32 0, %v1106
        %v1108 = vrot.slane %v815, %v1107
        %v1109 = vlaneseq
        %v1110 = vshrl.u32 %v1109, 7
        %v1111 = vsub.s32 0, %v1110
        %v1112 = vrot.slane %v822, %v1111
        %v1113 = vlaneseq
        %v1114 = vshrl.u32 %v1113, 7
        %v1115 = vsub.s32 0, %v1114
        %v1116 = vrot.slane %v837, %v1115
        %v1117 = vlaneseq
        %v1118 = vshrl.u32 %v1117, 7
        %v1119 = vsub.s32 0, %v1118
        %v1120 = vrot.slane %v844, %v1119
        %v1121 = vlaneseq
        %v1122 = vshrl.u32 %v1121, 7
        %v1123 = vsub.s32 0, %v1122
        %v1124 = vrot.slane %v859, %v1123
        %v1125 = vlaneseq
        %v1126 = vshrl.u32 %v1125, 7
        %v1127 = vsub.s32 0, %v1126
        %v1128 = vrot.slane %v866, %v1127
        %v1129 = vlaneseq
        %v1130 = vshrl.u32 %v1129, 7
        %v1131 = vsub.s32 0, %v1130
        %v1132 = vrot.slane %v881, %v1131
        %v1133 = vlaneseq
        %v1134 = vshrl.u32 %v1133, 7
        %v1135 = vsub.s32 0, %v1134
        %v1136 = vrot.slane %v888, %v1135
        %v1153 = vlaneseq
        %v1154 = vshrl.u32 %v1153, 7
        %v1155 = vsub.s32 0, %v1154
        %v1156 = vrot.slane %v911, %v1155
        %v1157 = vlaneseq
        %v1158 = vshrl.u32 %v1157, 7
        %v1159 = vsub.s32 0, %v1158
        %v1160 = vrot.slane %v918, %v1159
        %v1161 = vlaneseq
        %v1162 = vshrl.u32 %v1161, 7
        %v1163 = vsub.s32 0, %v1162
        %v1164 = vrot.slane %v933, %v1163
        %v1165 = vlaneseq
        %v1166 = vshrl.u32 %v1165, 7
        %v1167 = vsub.s32 0, %v1166
        %v1168 = vrot.slane %v940, %v1167
        %v1169 = vlaneseq
        %v1170 = vshrl.u32 %v1169, 7
        %v1171 = vsub.s32 0, %v1170
        %v1172 = vrot.slane %v955, %v1171
        %v1173 = vlaneseq
        %v1174 = vshrl.u32 %v1173, 7
        %v1175 = vsub.s32 0, %v1174
        %v1176 = vrot.slane %v962, %v1175
        %v1177 = vlaneseq
        %v1178 = vshrl.u32 %v1177, 7
        %v1179 = vsub.s32 0, %v1178
        %v1180 = vrot.slane %v977, %v1179
        %v1181 = vlaneseq
        %v1182 = vshrl.u32 %v1181, 7
        %v1183 = vsub.s32 0, %v1182
        %v1184 = vrot.slane %v984, %v1183
        %v1185 = vlaneseq
        %v1186 = vshrl.u32 %v1185, 7
        %v1187 = vsub.s32 0, %v1186
        %v1188 = vrot.slane %v999, %v1187
        %v1189 = vlaneseq
        %v1190 = vshrl.u32 %v1189, 7
        %v1191 = vsub.s32 0, %v1190
        %v1192 = vrot.slane %v1006, %v1191
        %v1193 = vlaneseq
        %v1194 = vshrl.u32 %v1193, 7
        %v1195 = vsub.s32 0, %v1194
        %v1196 = vrot.slane %v1021, %v1195
        %v1197 = vlaneseq
        %v1198 = vshrl.u32 %v1197, 7
        %v1199 = vsub.s32 0, %v1198
        %v1200 = vrot.slane %v1028, %v1199
        %v1201 = vlaneseq
        %v1202 = vshrl.u32 %v1201, 7
        %v1203 = vsub.s32 0, %v1202
        %v1204 = vrot.slane %v1043, %v1203
        %v1205 = vlaneseq
        %v1206 = vshrl.u32 %v1205, 7
        %v1207 = vsub.s32 0, %v1206
        %v1208 = vrot.slane %v1050, %v1207
        %v1209 = vlaneseq
        %v1210 = vshrl.u32 %v1209, 7
        %v1211 = vsub.s32 0, %v1210
        %v1212 = vrot.slane %v1065, %v1211
        %v1213 = vlaneseq
        %v1214 = vshrl.u32 %v1213, 7
        %v1215 = vsub.s32 0, %v1214
        %v1216 = vrot.slane %v1072, %v1215
        %vm1233 = vcmask 1040384
        %v1234 = vsel %vm1233, %v527, %v1076
        %v1235 = vsel %vm1233, %v534, %v1080
        %v1236 = vsel %vm1233, %v549, %v1084
        %v1237 = vsel %vm1233, %v556, %v1088
        %v1238 = vsel %vm1233, %v571, %v1092
        %v1239 = vsel %vm1233, %v578, %v1096
        %v1240 = vsel %vm1233, %v593, %v1100
        %v1241 = vsel %vm1233, %v600, %v1104
        %v1242 = vsel %vm1233, %v615, %v1108
        %v1243 = vsel %vm1233, %v622, %v1112
        %v1244 = vsel %vm1233, %v637, %v1116
        %v1245 = vsel %vm1233, %v644, %v1120
        %v1246 = vsel %vm1233, %v659, %v1124
        %v1247 = vsel %vm1233, %v666, %v1128
        %v1248 = vsel %vm1233, %v681, %v1132
        %v1249 = vsel %vm1233, %v688, %v1136
        %vm1250 = vcmask 1041408
        %v1251 = vsel %vm1250, %v1234, %v1156
        %v1252 = vsel %vm1250, %v1235, %v1160
        %v1253 = vsel %vm1250, %v1236, %v1164
        %v1254 = vsel %vm1250, %v1237, %v1168
        %v1255 = vsel %vm1250, %v1238, %v1172
        %v1256 = vsel %vm1250, %v1239, %v1176
        %v1257 = vsel %vm1250, %v1240, %v1180
        %v1258 = vsel %vm1250, %v1241, %v1184
        %v1259 = vsel %vm1250, %v1242, %v1188
        %v1260 = vsel %vm1250, %v1243, %v1192
        %v1261 = vsel %vm1250, %v1244, %v1196
        %v1262 = vsel %vm1250, %v1245, %v1200
        %v1263 = vsel %vm1250, %v1246, %v1204
        %v1264 = vsel %vm1250, %v1247, %v1208
        %v1265 = vsel %vm1250, %v1248, %v1212
        %v1266 = vsel %vm1250, %v1249, %v1216
        %v1267 = vmax.f32 %v1251, 0.0
        %v1268 = vmax.f32 %v1252, 0.0
        %v1269 = vmax.f32 %v1253, 0.0
        %v1270 = vmax.f32 %v1254, 0.0
        %v1271 = vmax.f32 %v1255, 0.0
        %v1272 = vmax.f32 %v1256, 0.0
        %v1273 = vmax.f32 %v1257, 0.0
        %v1274 = vmax.f32 %v1258, 0.0
        %v1275 = vmax.f32 %v1259, 0.0
        %v1276 = vmax.f32 %v1260, 0.0
        %v1277 = vmax.f32 %v1261, 0.0
        %v1278 = vmax.f32 %v1262, 0.0
        %v1279 = vmax.f32 %v1263, 0.0
        %v1280 = vmax.f32 %v1264, 0.0
        %v1281 = vmax.f32 %v1265, 0.0
        %v1282 = vmax.f32 %v1266, 0.0
        %v1283 = vmin.f32 %v1267, 15.0
        %v1284 = vmin.f32 %v1268, 15.0
        %v1285 = vmin.f32 %v1269, 15.0
        %v1286 = vmin.f32 %v1270, 15.0
        %v1287 = vmin.f32 %v1271, 15.0
        %v1288 = vmin.f32 %v1272, 15.0
        %v1289 = vmin.f32 %v1273, 15.0
        %v1290 = vmin.f32 %v1274, 15.0
        %v1291 = vmin.f32 %v1275, 15.0
        %v1292 = vmin.f32 %v1276, 15.0
        %v1293 = vmin.f32 %v1277, 15.0
        %v1294 = vmin.f32 %v1278, 15.0
        %v1295 = vmin.f32 %v1279, 15.0
        %v1296 = vmin.f32 %v1280, 15.0
        %v1297 = vmin.f32 %v1281, 15.0
        %v1298 = vmin.f32 %v1282, 15.0
        %v1299 = vlaneseq
        %v1300 = vshrl.u32 %v1299, 7
        %v1301 = vsub.s32 0, %v1300
        %v1302 = vrot.slane %v1283, %v1301
        %1304 = vbcast.lane.b32.xlu0 %v1302, 256
        %v1305 = vpop.permute.xlu0 %1304
        %s1307 = sor.u32 256, 8
        %1308 = vbcast.lane.b32.xlu0 %v1302, %s1307
        %v1309 = vpop.permute.xlu0 %1308
        %v1310 = vlaneseq
        %v1311 = vshrl.u32 %v1310, 7
        %v1312 = vsub.s32 1, %v1311
        %v1313 = vrot.slane %v1283, %v1312
        %1315 = vbcast.lane.b32.xlu0 %v1313, 256
        %v1316 = vpop.permute.xlu0 %1315
        %s1318 = sor.u32 256, 8
        %1319 = vbcast.lane.b32.xlu0 %v1313, %s1318
        %v1320 = vpop.permute.xlu0 %1319
        %v1321 = vlaneseq
        %v1322 = vshrl.u32 %v1321, 7
        %v1323 = vsub.s32 2, %v1322
        %v1324 = vrot.slane %v1283, %v1323
        %1326 = vbcast.lane.b32.xlu0 %v1324, 256
        %v1327 = vpop.permute.xlu0 %1326
        %s1329 = sor.u32 256, 8
        %1330 = vbcast.lane.b32.xlu0 %v1324, %s1329
        %v1331 = vpop.permute.xlu0 %1330
        %v1332 = vlaneseq
        %v1333 = vshrl.u32 %v1332, 7
        %v1334 = vsub.s32 0, %v1333
        %v1335 = vrot.slane %v1284, %v1334
        %1337 = vbcast.lane.b32.xlu0 %v1335, 256
        %v1338 = vpop.permute.xlu0 %1337
        %s1340 = sor.u32 256, 8
        %1341 = vbcast.lane.b32.xlu0 %v1335, %s1340
        %v1342 = vpop.permute.xlu0 %1341
        %v1343 = vlaneseq
        %v1344 = vshrl.u32 %v1343, 7
        %v1345 = vsub.s32 1, %v1344
        %v1346 = vrot.slane %v1284, %v1345
        %1348 = vbcast.lane.b32.xlu0 %v1346, 256
        %v1349 = vpop.permute.xlu0 %1348
        %s1351 = sor.u32 256, 8
        %1352 = vbcast.lane.b32.xlu0 %v1346, %s1351
        %v1353 = vpop.permute.xlu0 %1352
        %v1354 = vlaneseq
        %v1355 = vshrl.u32 %v1354, 7
        %v1356 = vsub.s32 2, %v1355
        %v1357 = vrot.slane %v1284, %v1356
        %1359 = vbcast.lane.b32.xlu0 %v1357, 256
        %v1360 = vpop.permute.xlu0 %1359
        %s1362 = sor.u32 256, 8
        %1363 = vbcast.lane.b32.xlu0 %v1357, %s1362
        %v1364 = vpop.permute.xlu0 %1363
        %v1365 = vlaneseq
        %v1366 = vshrl.u32 %v1365, 7
        %v1367 = vsub.s32 0, %v1366
        %v1368 = vrot.slane %v1285, %v1367
        %1370 = vbcast.lane.b32.xlu0 %v1368, 256
        %v1371 = vpop.permute.xlu0 %1370
        %s1373 = sor.u32 256, 8
        %1374 = vbcast.lane.b32.xlu0 %v1368, %s1373
        %v1375 = vpop.permute.xlu0 %1374
        %v1376 = vlaneseq
        %v1377 = vshrl.u32 %v1376, 7
        %v1378 = vsub.s32 1, %v1377
        %v1379 = vrot.slane %v1285, %v1378
        %1381 = vbcast.lane.b32.xlu0 %v1379, 256
        %v1382 = vpop.permute.xlu0 %1381
        %s1384 = sor.u32 256, 8
        %1385 = vbcast.lane.b32.xlu0 %v1379, %s1384
        %v1386 = vpop.permute.xlu0 %1385
        %v1387 = vlaneseq
        %v1388 = vshrl.u32 %v1387, 7
        %v1389 = vsub.s32 2, %v1388
        %v1390 = vrot.slane %v1285, %v1389
        %1392 = vbcast.lane.b32.xlu0 %v1390, 256
        %v1393 = vpop.permute.xlu0 %1392
        %s1395 = sor.u32 256, 8
        %1396 = vbcast.lane.b32.xlu0 %v1390, %s1395
        %v1397 = vpop.permute.xlu0 %1396
        %v1398 = vlaneseq
        %v1399 = vshrl.u32 %v1398, 7
        %v1400 = vsub.s32 0, %v1399
        %v1401 = vrot.slane %v1286, %v1400
        %1403 = vbcast.lane.b32.xlu0 %v1401, 256
        %v1404 = vpop.permute.xlu0 %1403
        %s1406 = sor.u32 256, 8
        %1407 = vbcast.lane.b32.xlu0 %v1401, %s1406
        %v1408 = vpop.permute.xlu0 %1407
        %v1409 = vlaneseq
        %v1410 = vshrl.u32 %v1409, 7
        %v1411 = vsub.s32 1, %v1410
        %v1412 = vrot.slane %v1286, %v1411
        %1414 = vbcast.lane.b32.xlu0 %v1412, 256
        %v1415 = vpop.permute.xlu0 %1414
        %s1417 = sor.u32 256, 8
        %1418 = vbcast.lane.b32.xlu0 %v1412, %s1417
        %v1419 = vpop.permute.xlu0 %1418
        %v1420 = vlaneseq
        %v1421 = vshrl.u32 %v1420, 7
        %v1422 = vsub.s32 2, %v1421
        %v1423 = vrot.slane %v1286, %v1422
        %1425 = vbcast.lane.b32.xlu0 %v1423, 256
        %v1426 = vpop.permute.xlu0 %1425
        %s1428 = sor.u32 256, 8
        %1429 = vbcast.lane.b32.xlu0 %v1423, %s1428
        %v1430 = vpop.permute.xlu0 %1429
        %v1431 = vlaneseq
        %v1432 = vshrl.u32 %v1431, 7
        %v1433 = vsub.s32 0, %v1432
        %v1434 = vrot.slane %v1287, %v1433
        %1436 = vbcast.lane.b32.xlu0 %v1434, 256
        %v1437 = vpop.permute.xlu0 %1436
        %s1439 = sor.u32 256, 8
        %1440 = vbcast.lane.b32.xlu0 %v1434, %s1439
        %v1441 = vpop.permute.xlu0 %1440
        %v1442 = vlaneseq
        %v1443 = vshrl.u32 %v1442, 7
        %v1444 = vsub.s32 1, %v1443
        %v1445 = vrot.slane %v1287, %v1444
        %1447 = vbcast.lane.b32.xlu0 %v1445, 256
        %v1448 = vpop.permute.xlu0 %1447
        %s1450 = sor.u32 256, 8
        %1451 = vbcast.lane.b32.xlu0 %v1445, %s1450
        %v1452 = vpop.permute.xlu0 %1451
        %v1453 = vlaneseq
        %v1454 = vshrl.u32 %v1453, 7
        %v1455 = vsub.s32 2, %v1454
        %v1456 = vrot.slane %v1287, %v1455
        %1458 = vbcast.lane.b32.xlu0 %v1456, 256
        %v1459 = vpop.permute.xlu0 %1458
        %s1461 = sor.u32 256, 8
        %1462 = vbcast.lane.b32.xlu0 %v1456, %s1461
        %v1463 = vpop.permute.xlu0 %1462
        %v1464 = vlaneseq
        %v1465 = vshrl.u32 %v1464, 7
        %v1466 = vsub.s32 0, %v1465
        %v1467 = vrot.slane %v1288, %v1466
        %1469 = vbcast.lane.b32.xlu0 %v1467, 256
        %v1470 = vpop.permute.xlu0 %1469
        %s1472 = sor.u32 256, 8
        %1473 = vbcast.lane.b32.xlu0 %v1467, %s1472
        %v1474 = vpop.permute.xlu0 %1473
        %v1475 = vlaneseq
        %v1476 = vshrl.u32 %v1475, 7
        %v1477 = vsub.s32 1, %v1476
        %v1478 = vrot.slane %v1288, %v1477
        %1480 = vbcast.lane.b32.xlu0 %v1478, 256
        %v1481 = vpop.permute.xlu0 %1480
        %s1483 = sor.u32 256, 8
        %1484 = vbcast.lane.b32.xlu0 %v1478, %s1483
        %v1485 = vpop.permute.xlu0 %1484
        %v1486 = vlaneseq
        %v1487 = vshrl.u32 %v1486, 7
        %v1488 = vsub.s32 2, %v1487
        %v1489 = vrot.slane %v1288, %v1488
        %1491 = vbcast.lane.b32.xlu0 %v1489, 256
        %v1492 = vpop.permute.xlu0 %1491
        %s1494 = sor.u32 256, 8
        %1495 = vbcast.lane.b32.xlu0 %v1489, %s1494
        %v1496 = vpop.permute.xlu0 %1495
        %v1497 = vlaneseq
        %v1498 = vshrl.u32 %v1497, 7
        %v1499 = vsub.s32 0, %v1498
        %v1500 = vrot.slane %v1289, %v1499
        %1502 = vbcast.lane.b32.xlu0 %v1500, 256
        %v1503 = vpop.permute.xlu0 %1502
        %s1505 = sor.u32 256, 8
        %1506 = vbcast.lane.b32.xlu0 %v1500, %s1505
        %v1507 = vpop.permute.xlu0 %1506
        %v1508 = vlaneseq
        %v1509 = vshrl.u32 %v1508, 7
        %v1510 = vsub.s32 1, %v1509
        %v1511 = vrot.slane %v1289, %v1510
        %1513 = vbcast.lane.b32.xlu0 %v1511, 256
        %v1514 = vpop.permute.xlu0 %1513
        %s1516 = sor.u32 256, 8
        %1517 = vbcast.lane.b32.xlu0 %v1511, %s1516
        %v1518 = vpop.permute.xlu0 %1517
        %v1519 = vlaneseq
        %v1520 = vshrl.u32 %v1519, 7
        %v1521 = vsub.s32 2, %v1520
        %v1522 = vrot.slane %v1289, %v1521
        %1524 = vbcast.lane.b32.xlu0 %v1522, 256
        %v1525 = vpop.permute.xlu0 %1524
        %s1527 = sor.u32 256, 8
        %1528 = vbcast.lane.b32.xlu0 %v1522, %s1527
        %v1529 = vpop.permute.xlu0 %1528
        %v1530 = vlaneseq
        %v1531 = vshrl.u32 %v1530, 7
        %v1532 = vsub.s32 0, %v1531
        %v1533 = vrot.slane %v1290, %v1532
        %1535 = vbcast.lane.b32.xlu0 %v1533, 256
        %v1536 = vpop.permute.xlu0 %1535
        %s1538 = sor.u32 256, 8
        %1539 = vbcast.lane.b32.xlu0 %v1533, %s1538
        %v1540 = vpop.permute.xlu0 %1539
        %v1541 = vlaneseq
        %v1542 = vshrl.u32 %v1541, 7
        %v1543 = vsub.s32 1, %v1542
        %v1544 = vrot.slane %v1290, %v1543
        %1546 = vbcast.lane.b32.xlu0 %v1544, 256
        %v1547 = vpop.permute.xlu0 %1546
        %s1549 = sor.u32 256, 8
        %1550 = vbcast.lane.b32.xlu0 %v1544, %s1549
        %v1551 = vpop.permute.xlu0 %1550
        %v1552 = vlaneseq
        %v1553 = vshrl.u32 %v1552, 7
        %v1554 = vsub.s32 2, %v1553
        %v1555 = vrot.slane %v1290, %v1554
        %1557 = vbcast.lane.b32.xlu0 %v1555, 256
        %v1558 = vpop.permute.xlu0 %1557
        %s1560 = sor.u32 256, 8
        %1561 = vbcast.lane.b32.xlu0 %v1555, %s1560
        %v1562 = vpop.permute.xlu0 %1561
        %v1563 = vlaneseq
        %v1564 = vshrl.u32 %v1563, 7
        %v1565 = vsub.s32 0, %v1564
        %v1566 = vrot.slane %v1291, %v1565
        %1568 = vbcast.lane.b32.xlu0 %v1566, 256
        %v1569 = vpop.permute.xlu0 %1568
        %s1571 = sor.u32 256, 8
        %1572 = vbcast.lane.b32.xlu0 %v1566, %s1571
        %v1573 = vpop.permute.xlu0 %1572
        %v1574 = vlaneseq
        %v1575 = vshrl.u32 %v1574, 7
        %v1576 = vsub.s32 1, %v1575
        %v1577 = vrot.slane %v1291, %v1576
        %1579 = vbcast.lane.b32.xlu0 %v1577, 256
        %v1580 = vpop.permute.xlu0 %1579
        %s1582 = sor.u32 256, 8
        %1583 = vbcast.lane.b32.xlu0 %v1577, %s1582
        %v1584 = vpop.permute.xlu0 %1583
        %v1585 = vlaneseq
        %v1586 = vshrl.u32 %v1585, 7
        %v1587 = vsub.s32 2, %v1586
        %v1588 = vrot.slane %v1291, %v1587
        %1590 = vbcast.lane.b32.xlu0 %v1588, 256
        %v1591 = vpop.permute.xlu0 %1590
        %s1593 = sor.u32 256, 8
        %1594 = vbcast.lane.b32.xlu0 %v1588, %s1593
        %v1595 = vpop.permute.xlu0 %1594
        %v1596 = vlaneseq
        %v1597 = vshrl.u32 %v1596, 7
        %v1598 = vsub.s32 0, %v1597
        %v1599 = vrot.slane %v1292, %v1598
        %1601 = vbcast.lane.b32.xlu0 %v1599, 256
        %v1602 = vpop.permute.xlu0 %1601
        %s1604 = sor.u32 256, 8
        %1605 = vbcast.lane.b32.xlu0 %v1599, %s1604
        %v1606 = vpop.permute.xlu0 %1605
        %v1607 = vlaneseq
        %v1608 = vshrl.u32 %v1607, 7
        %v1609 = vsub.s32 1, %v1608
        %v1610 = vrot.slane %v1292, %v1609
        %1612 = vbcast.lane.b32.xlu0 %v1610, 256
        %v1613 = vpop.permute.xlu0 %1612
        %s1615 = sor.u32 256, 8
        %1616 = vbcast.lane.b32.xlu0 %v1610, %s1615
        %v1617 = vpop.permute.xlu0 %1616
        %v1618 = vlaneseq
        %v1619 = vshrl.u32 %v1618, 7
        %v1620 = vsub.s32 2, %v1619
        %v1621 = vrot.slane %v1292, %v1620
        %1623 = vbcast.lane.b32.xlu0 %v1621, 256
        %v1624 = vpop.permute.xlu0 %1623
        %s1626 = sor.u32 256, 8
        %1627 = vbcast.lane.b32.xlu0 %v1621, %s1626
        %v1628 = vpop.permute.xlu0 %1627
        %v1629 = vlaneseq
        %v1630 = vshrl.u32 %v1629, 7
        %v1631 = vsub.s32 0, %v1630
        %v1632 = vrot.slane %v1293, %v1631
        %1634 = vbcast.lane.b32.xlu0 %v1632, 256
        %v1635 = vpop.permute.xlu0 %1634
        %s1637 = sor.u32 256, 8
        %1638 = vbcast.lane.b32.xlu0 %v1632, %s1637
        %v1639 = vpop.permute.xlu0 %1638
        %v1640 = vlaneseq
        %v1641 = vshrl.u32 %v1640, 7
        %v1642 = vsub.s32 1, %v1641
        %v1643 = vrot.slane %v1293, %v1642
        %1645 = vbcast.lane.b32.xlu0 %v1643, 256
        %v1646 = vpop.permute.xlu0 %1645
        %s1648 = sor.u32 256, 8
        %1649 = vbcast.lane.b32.xlu0 %v1643, %s1648
        %v1650 = vpop.permute.xlu0 %1649
        %v1651 = vlaneseq
        %v1652 = vshrl.u32 %v1651, 7
        %v1653 = vsub.s32 2, %v1652
        %v1654 = vrot.slane %v1293, %v1653
        %1656 = vbcast.lane.b32.xlu0 %v1654, 256
        %v1657 = vpop.permute.xlu0 %1656
        %s1659 = sor.u32 256, 8
        %1660 = vbcast.lane.b32.xlu0 %v1654, %s1659
        %v1661 = vpop.permute.xlu0 %1660
        %v1662 = vlaneseq
        %v1663 = vshrl.u32 %v1662, 7
        %v1664 = vsub.s32 0, %v1663
        %v1665 = vrot.slane %v1294, %v1664
        %1667 = vbcast.lane.b32.xlu0 %v1665, 256
        %v1668 = vpop.permute.xlu0 %1667
        %s1670 = sor.u32 256, 8
        %1671 = vbcast.lane.b32.xlu0 %v1665, %s1670
        %v1672 = vpop.permute.xlu0 %1671
        %v1673 = vlaneseq
        %v1674 = vshrl.u32 %v1673, 7
        %v1675 = vsub.s32 1, %v1674
        %v1676 = vrot.slane %v1294, %v1675
        %1678 = vbcast.lane.b32.xlu0 %v1676, 256
        %v1679 = vpop.permute.xlu0 %1678
        %s1681 = sor.u32 256, 8
        %1682 = vbcast.lane.b32.xlu0 %v1676, %s1681
        %v1683 = vpop.permute.xlu0 %1682
        %v1684 = vlaneseq
        %v1685 = vshrl.u32 %v1684, 7
        %v1686 = vsub.s32 2, %v1685
        %v1687 = vrot.slane %v1294, %v1686
        %1689 = vbcast.lane.b32.xlu0 %v1687, 256
        %v1690 = vpop.permute.xlu0 %1689
        %s1692 = sor.u32 256, 8
        %1693 = vbcast.lane.b32.xlu0 %v1687, %s1692
        %v1694 = vpop.permute.xlu0 %1693
        %v1695 = vlaneseq
        %v1696 = vshrl.u32 %v1695, 7
        %v1697 = vsub.s32 0, %v1696
        %v1698 = vrot.slane %v1295, %v1697
        %1700 = vbcast.lane.b32.xlu0 %v1698, 256
        %v1701 = vpop.permute.xlu0 %1700
        %s1703 = sor.u32 256, 8
        %1704 = vbcast.lane.b32.xlu0 %v1698, %s1703
        %v1705 = vpop.permute.xlu0 %1704
        %v1706 = vlaneseq
        %v1707 = vshrl.u32 %v1706, 7
        %v1708 = vsub.s32 1, %v1707
        %v1709 = vrot.slane %v1295, %v1708
        %1711 = vbcast.lane.b32.xlu0 %v1709, 256
        %v1712 = vpop.permute.xlu0 %1711
        %s1714 = sor.u32 256, 8
        %1715 = vbcast.lane.b32.xlu0 %v1709, %s1714
        %v1716 = vpop.permute.xlu0 %1715
        %v1717 = vlaneseq
        %v1718 = vshrl.u32 %v1717, 7
        %v1719 = vsub.s32 2, %v1718
        %v1720 = vrot.slane %v1295, %v1719
        %1722 = vbcast.lane.b32.xlu0 %v1720, 256
        %v1723 = vpop.permute.xlu0 %1722
        %s1725 = sor.u32 256, 8
        %1726 = vbcast.lane.b32.xlu0 %v1720, %s1725
        %v1727 = vpop.permute.xlu0 %1726
        %v1728 = vlaneseq
        %v1729 = vshrl.u32 %v1728, 7
        %v1730 = vsub.s32 0, %v1729
        %v1731 = vrot.slane %v1296, %v1730
        %1733 = vbcast.lane.b32.xlu0 %v1731, 256
        %v1734 = vpop.permute.xlu0 %1733
        %s1736 = sor.u32 256, 8
        %1737 = vbcast.lane.b32.xlu0 %v1731, %s1736
        %v1738 = vpop.permute.xlu0 %1737
        %v1739 = vlaneseq
        %v1740 = vshrl.u32 %v1739, 7
        %v1741 = vsub.s32 1, %v1740
        %v1742 = vrot.slane %v1296, %v1741
        %1744 = vbcast.lane.b32.xlu0 %v1742, 256
        %v1745 = vpop.permute.xlu0 %1744
        %s1747 = sor.u32 256, 8
        %1748 = vbcast.lane.b32.xlu0 %v1742, %s1747
        %v1749 = vpop.permute.xlu0 %1748
        %v1750 = vlaneseq
        %v1751 = vshrl.u32 %v1750, 7
        %v1752 = vsub.s32 2, %v1751
        %v1753 = vrot.slane %v1296, %v1752
        %1755 = vbcast.lane.b32.xlu0 %v1753, 256
        %v1756 = vpop.permute.xlu0 %1755
        %s1758 = sor.u32 256, 8
        %1759 = vbcast.lane.b32.xlu0 %v1753, %s1758
        %v1760 = vpop.permute.xlu0 %1759
        %v1761 = vlaneseq
        %v1762 = vshrl.u32 %v1761, 7
        %v1763 = vsub.s32 0, %v1762
        %v1764 = vrot.slane %v1297, %v1763
        %1766 = vbcast.lane.b32.xlu0 %v1764, 256
        %v1767 = vpop.permute.xlu0 %1766
        %s1769 = sor.u32 256, 8
        %1770 = vbcast.lane.b32.xlu0 %v1764, %s1769
        %v1771 = vpop.permute.xlu0 %1770
        %v1772 = vlaneseq
        %v1773 = vshrl.u32 %v1772, 7
        %v1774 = vsub.s32 1, %v1773
        %v1775 = vrot.slane %v1297, %v1774
        %1777 = vbcast.lane.b32.xlu0 %v1775, 256
        %v1778 = vpop.permute.xlu0 %1777
        %s1780 = sor.u32 256, 8
        %1781 = vbcast.lane.b32.xlu0 %v1775, %s1780
        %v1782 = vpop.permute.xlu0 %1781
        %v1783 = vlaneseq
        %v1784 = vshrl.u32 %v1783, 7
        %v1785 = vsub.s32 2, %v1784
        %v1786 = vrot.slane %v1297, %v1785
        %1788 = vbcast.lane.b32.xlu0 %v1786, 256
        %v1789 = vpop.permute.xlu0 %1788
        %s1791 = sor.u32 256, 8
        %1792 = vbcast.lane.b32.xlu0 %v1786, %s1791
        %v1793 = vpop.permute.xlu0 %1792
        %v1794 = vlaneseq
        %v1795 = vshrl.u32 %v1794, 7
        %v1796 = vsub.s32 0, %v1795
        %v1797 = vrot.slane %v1298, %v1796
        %1799 = vbcast.lane.b32.xlu0 %v1797, 256
        %v1800 = vpop.permute.xlu0 %1799
        %s1802 = sor.u32 256, 8
        %1803 = vbcast.lane.b32.xlu0 %v1797, %s1802
        %v1804 = vpop.permute.xlu0 %1803
        %v1805 = vlaneseq
        %v1806 = vshrl.u32 %v1805, 7
        %v1807 = vsub.s32 1, %v1806
        %v1808 = vrot.slane %v1298, %v1807
        %1810 = vbcast.lane.b32.xlu0 %v1808, 256
        %v1811 = vpop.permute.xlu0 %1810
        %s1813 = sor.u32 256, 8
        %1814 = vbcast.lane.b32.xlu0 %v1808, %s1813
        %v1815 = vpop.permute.xlu0 %1814
        %v1816 = vlaneseq
        %v1817 = vshrl.u32 %v1816, 7
        %v1818 = vsub.s32 2, %v1817
        %v1819 = vrot.slane %v1298, %v1818
        %1821 = vbcast.lane.b32.xlu0 %v1819, 256
        %v1822 = vpop.permute.xlu0 %1821
        %s1824 = sor.u32 256, 8
        %1825 = vbcast.lane.b32.xlu0 %v1819, %s1824
        %v1826 = vpop.permute.xlu0 %1825
        %v1827 = vsub.f32 %v480, %v1305
        %v1828 = vsub.f32 %v480, %v1309
        %v1829 = vsub.f32 %v480, %v1316
        %v1830 = vsub.f32 %v480, %v1320
        %v1831 = vsub.f32 %v480, %v1327
        %v1832 = vsub.f32 %v480, %v1331
        %v1833 = vsub.f32 %v480, %v1338
        %v1834 = vsub.f32 %v480, %v1342
        %v1835 = vsub.f32 %v480, %v1349
        %v1836 = vsub.f32 %v480, %v1353
        %v1837 = vsub.f32 %v480, %v1360
        %v1838 = vsub.f32 %v480, %v1364
        %v1839 = vsub.f32 %v480, %v1371
        %v1840 = vsub.f32 %v480, %v1375
        %v1841 = vsub.f32 %v480, %v1382
        %v1842 = vsub.f32 %v480, %v1386
        %v1843 = vsub.f32 %v480, %v1393
        %v1844 = vsub.f32 %v480, %v1397
        %v1845 = vsub.f32 %v480, %v1404
        %v1846 = vsub.f32 %v480, %v1408
        %v1847 = vsub.f32 %v480, %v1415
        %v1848 = vsub.f32 %v480, %v1419
        %v1849 = vsub.f32 %v480, %v1426
        %v1850 = vsub.f32 %v480, %v1430
        %v1851 = vsub.f32 %v480, %v1437
        %v1852 = vsub.f32 %v480, %v1441
        %v1853 = vsub.f32 %v480, %v1448
        %v1854 = vsub.f32 %v480, %v1452
        %v1855 = vsub.f32 %v480, %v1459
        %v1856 = vsub.f32 %v480, %v1463
        %v1857 = vsub.f32 %v480, %v1470
        %v1858 = vsub.f32 %v480, %v1474
        %v1859 = vsub.f32 %v480, %v1481
        %v1860 = vsub.f32 %v480, %v1485
        %v1861 = vsub.f32 %v480, %v1492
        %v1862 = vsub.f32 %v480, %v1496
        %v1863 = vsub.f32 %v480, %v1503
        %v1864 = vsub.f32 %v480, %v1507
        %v1865 = vsub.f32 %v480, %v1514
        %v1866 = vsub.f32 %v480, %v1518
        %v1867 = vsub.f32 %v480, %v1525
        %v1868 = vsub.f32 %v480, %v1529
        %v1869 = vsub.f32 %v480, %v1536
        %v1870 = vsub.f32 %v480, %v1540
        %v1871 = vsub.f32 %v480, %v1547
        %v1872 = vsub.f32 %v480, %v1551
        %v1873 = vsub.f32 %v480, %v1558
        %v1874 = vsub.f32 %v480, %v1562
        %v1875 = vsub.f32 %v480, %v1569
        %v1876 = vsub.f32 %v480, %v1573
        %v1877 = vsub.f32 %v480, %v1580
        %v1878 = vsub.f32 %v480, %v1584
        %v1879 = vsub.f32 %v480, %v1591
        %v1880 = vsub.f32 %v480, %v1595
        %v1881 = vsub.f32 %v480, %v1602
        %v1882 = vsub.f32 %v480, %v1606
        %v1883 = vsub.f32 %v480, %v1613
        %v1884 = vsub.f32 %v480, %v1617
        %v1885 = vsub.f32 %v480, %v1624
        %v1886 = vsub.f32 %v480, %v1628
        %v1887 = vsub.f32 %v480, %v1635
        %v1888 = vsub.f32 %v480, %v1639
        %v1889 = vsub.f32 %v480, %v1646
        %v1890 = vsub.f32 %v480, %v1650
        %v1891 = vsub.f32 %v480, %v1657
        %v1892 = vsub.f32 %v480, %v1661
        %v1893 = vsub.f32 %v480, %v1668
        %v1894 = vsub.f32 %v480, %v1672
        %v1895 = vsub.f32 %v480, %v1679
        %v1896 = vsub.f32 %v480, %v1683
        %v1897 = vsub.f32 %v480, %v1690
        %v1898 = vsub.f32 %v480, %v1694
        %v1899 = vsub.f32 %v480, %v1701
        %v1900 = vsub.f32 %v480, %v1705
        %v1901 = vsub.f32 %v480, %v1712
        %v1902 = vsub.f32 %v480, %v1716
        %v1903 = vsub.f32 %v480, %v1723
        %v1904 = vsub.f32 %v480, %v1727
        %v1905 = vsub.f32 %v480, %v1734
        %v1906 = vsub.f32 %v480, %v1738
        %v1907 = vsub.f32 %v480, %v1745
        %v1908 = vsub.f32 %v480, %v1749
        %v1909 = vsub.f32 %v480, %v1756
        %v1910 = vsub.f32 %v480, %v1760
        %v1911 = vsub.f32 %v480, %v1767
        %v1912 = vsub.f32 %v480, %v1771
        %v1913 = vsub.f32 %v480, %v1778
        %v1914 = vsub.f32 %v480, %v1782
        %v1915 = vsub.f32 %v480, %v1789
        %v1916 = vsub.f32 %v480, %v1793
        %v1917 = vsub.f32 %v480, %v1800
        %v1918 = vsub.f32 %v480, %v1804
        %v1919 = vsub.f32 %v480, %v1811
        %v1920 = vsub.f32 %v480, %v1815
        %v1921 = vsub.f32 %v480, %v1822
        %v1922 = vsub.f32 %v480, %v1826
        %v1923 = vand.u32 2147483647, %v1827
        %v1924 = vand.u32 2147483647, %v1828
        %v1925 = vand.u32 2147483647, %v1829
        %v1926 = vand.u32 2147483647, %v1830
        %v1927 = vand.u32 2147483647, %v1831
        %v1928 = vand.u32 2147483647, %v1832
        %v1929 = vand.u32 2147483647, %v1833
        %v1930 = vand.u32 2147483647, %v1834
        %v1931 = vand.u32 2147483647, %v1835
        %v1932 = vand.u32 2147483647, %v1836
        %v1933 = vand.u32 2147483647, %v1837
        %v1934 = vand.u32 2147483647, %v1838
        %v1935 = vand.u32 2147483647, %v1839
        %v1936 = vand.u32 2147483647, %v1840
        %v1937 = vand.u32 2147483647, %v1841
        %v1938 = vand.u32 2147483647, %v1842
        %v1939 = vand.u32 2147483647, %v1843
        %v1940 = vand.u32 2147483647, %v1844
        %v1941 = vand.u32 2147483647, %v1845
        %v1942 = vand.u32 2147483647, %v1846
        %v1943 = vand.u32 2147483647, %v1847
        %v1944 = vand.u32 2147483647, %v1848
        %v1945 = vand.u32 2147483647, %v1849
        %v1946 = vand.u32 2147483647, %v1850
        %v1947 = vand.u32 2147483647, %v1851
        %v1948 = vand.u32 2147483647, %v1852
        %v1949 = vand.u32 2147483647, %v1853
        %v1950 = vand.u32 2147483647, %v1854
        %v1951 = vand.u32 2147483647, %v1855
        %v1952 = vand.u32 2147483647, %v1856
        %v1953 = vand.u32 2147483647, %v1857
        %v1954 = vand.u32 2147483647, %v1858
        %v1955 = vand.u32 2147483647, %v1859
        %v1956 = vand.u32 2147483647, %v1860
        %v1957 = vand.u32 2147483647, %v1861
        %v1958 = vand.u32 2147483647, %v1862
        %v1959 = vand.u32 2147483647, %v1863
        %v1960 = vand.u32 2147483647, %v1864
        %v1961 = vand.u32 2147483647, %v1865
        %v1962 = vand.u32 2147483647, %v1866
        %v1963 = vand.u32 2147483647, %v1867
        %v1964 = vand.u32 2147483647, %v1868
        %v1965 = vand.u32 2147483647, %v1869
        %v1966 = vand.u32 2147483647, %v1870
        %v1967 = vand.u32 2147483647, %v1871
        %v1968 = vand.u32 2147483647, %v1872
        %v1969 = vand.u32 2147483647, %v1873
        %v1970 = vand.u32 2147483647, %v1874
        %v1971 = vand.u32 2147483647, %v1875
        %v1972 = vand.u32 2147483647, %v1876
        %v1973 = vand.u32 2147483647, %v1877
        %v1974 = vand.u32 2147483647, %v1878
        %v1975 = vand.u32 2147483647, %v1879
        %v1976 = vand.u32 2147483647, %v1880
        %v1977 = vand.u32 2147483647, %v1881
        %v1978 = vand.u32 2147483647, %v1882
        %v1979 = vand.u32 2147483647, %v1883
        %v1980 = vand.u32 2147483647, %v1884
        %v1981 = vand.u32 2147483647, %v1885
        %v1982 = vand.u32 2147483647, %v1886
        %v1983 = vand.u32 2147483647, %v1887
        %v1984 = vand.u32 2147483647, %v1888
        %v1985 = vand.u32 2147483647, %v1889
        %v1986 = vand.u32 2147483647, %v1890
        %v1987 = vand.u32 2147483647, %v1891
        %v1988 = vand.u32 2147483647, %v1892
        %v1989 = vand.u32 2147483647, %v1893
        %v1990 = vand.u32 2147483647, %v1894
        %v1991 = vand.u32 2147483647, %v1895
        %v1992 = vand.u32 2147483647, %v1896
        %v1993 = vand.u32 2147483647, %v1897
        %v1994 = vand.u32 2147483647, %v1898
        %v1995 = vand.u32 2147483647, %v1899
        %v1996 = vand.u32 2147483647, %v1900
        %v1997 = vand.u32 2147483647, %v1901
        %v1998 = vand.u32 2147483647, %v1902
        %v1999 = vand.u32 2147483647, %v1903
        %v2000 = vand.u32 2147483647, %v1904
        %v2001 = vand.u32 2147483647, %v1905
        %v2002 = vand.u32 2147483647, %v1906
        %v2003 = vand.u32 2147483647, %v1907
        %v2004 = vand.u32 2147483647, %v1908
        %v2005 = vand.u32 2147483647, %v1909
        %v2006 = vand.u32 2147483647, %v1910
        %v2007 = vand.u32 2147483647, %v1911
        %v2008 = vand.u32 2147483647, %v1912
        %v2009 = vand.u32 2147483647, %v1913
        %v2010 = vand.u32 2147483647, %v1914
        %v2011 = vand.u32 2147483647, %v1915
        %v2012 = vand.u32 2147483647, %v1916
        %v2013 = vand.u32 2147483647, %v1917
        %v2014 = vand.u32 2147483647, %v1918
        %v2015 = vand.u32 2147483647, %v1919
        %v2016 = vand.u32 2147483647, %v1920
        %v2017 = vand.u32 2147483647, %v1921
        %v2018 = vand.u32 2147483647, %v1922
        %v2019 = vsub.f32 1.0, %v1923
        %v2020 = vsub.f32 1.0, %v1924
        %v2021 = vsub.f32 1.0, %v1925
        %v2022 = vsub.f32 1.0, %v1926
        %v2023 = vsub.f32 1.0, %v1927
        %v2024 = vsub.f32 1.0, %v1928
        %v2025 = vsub.f32 1.0, %v1929
        %v2026 = vsub.f32 1.0, %v1930
        %v2027 = vsub.f32 1.0, %v1931
        %v2028 = vsub.f32 1.0, %v1932
        %v2029 = vsub.f32 1.0, %v1933
        %v2030 = vsub.f32 1.0, %v1934
        %v2031 = vsub.f32 1.0, %v1935
        %v2032 = vsub.f32 1.0, %v1936
        %v2033 = vsub.f32 1.0, %v1937
        %v2034 = vsub.f32 1.0, %v1938
        %v2035 = vsub.f32 1.0, %v1939
        %v2036 = vsub.f32 1.0, %v1940
        %v2037 = vsub.f32 1.0, %v1941
        %v2038 = vsub.f32 1.0, %v1942
        %v2039 = vsub.f32 1.0, %v1943
        %v2040 = vsub.f32 1.0, %v1944
        %v2041 = vsub.f32 1.0, %v1945
        %v2042 = vsub.f32 1.0, %v1946
        %v2043 = vsub.f32 1.0, %v1947
        %v2044 = vsub.f32 1.0, %v1948
        %v2045 = vsub.f32 1.0, %v1949
        %v2046 = vsub.f32 1.0, %v1950
        %v2047 = vsub.f32 1.0, %v1951
        %v2048 = vsub.f32 1.0, %v1952
        %v2049 = vsub.f32 1.0, %v1953
        %v2050 = vsub.f32 1.0, %v1954
        %v2051 = vsub.f32 1.0, %v1955
        %v2052 = vsub.f32 1.0, %v1956
        %v2053 = vsub.f32 1.0, %v1957
        %v2054 = vsub.f32 1.0, %v1958
        %v2055 = vsub.f32 1.0, %v1959
        %v2056 = vsub.f32 1.0, %v1960
        %v2057 = vsub.f32 1.0, %v1961
        %v2058 = vsub.f32 1.0, %v1962
        %v2059 = vsub.f32 1.0, %v1963
        %v2060 = vsub.f32 1.0, %v1964
        %v2061 = vsub.f32 1.0, %v1965
        %v2062 = vsub.f32 1.0, %v1966
        %v2063 = vsub.f32 1.0, %v1967
        %v2064 = vsub.f32 1.0, %v1968
        %v2065 = vsub.f32 1.0, %v1969
        %v2066 = vsub.f32 1.0, %v1970
        %v2067 = vsub.f32 1.0, %v1971
        %v2068 = vsub.f32 1.0, %v1972
        %v2069 = vsub.f32 1.0, %v1973
        %v2070 = vsub.f32 1.0, %v1974
        %v2071 = vsub.f32 1.0, %v1975
        %v2072 = vsub.f32 1.0, %v1976
        %v2073 = vsub.f32 1.0, %v1977
        %v2074 = vsub.f32 1.0, %v1978
        %v2075 = vsub.f32 1.0, %v1979
        %v2076 = vsub.f32 1.0, %v1980
        %v2077 = vsub.f32 1.0, %v1981
        %v2078 = vsub.f32 1.0, %v1982
        %v2079 = vsub.f32 1.0, %v1983
        %v2080 = vsub.f32 1.0, %v1984
        %v2081 = vsub.f32 1.0, %v1985
        %v2082 = vsub.f32 1.0, %v1986
        %v2083 = vsub.f32 1.0, %v1987
        %v2084 = vsub.f32 1.0, %v1988
        %v2085 = vsub.f32 1.0, %v1989
        %v2086 = vsub.f32 1.0, %v1990
        %v2087 = vsub.f32 1.0, %v1991
        %v2088 = vsub.f32 1.0, %v1992
        %v2089 = vsub.f32 1.0, %v1993
        %v2090 = vsub.f32 1.0, %v1994
        %v2091 = vsub.f32 1.0, %v1995
        %v2092 = vsub.f32 1.0, %v1996
        %v2093 = vsub.f32 1.0, %v1997
        %v2094 = vsub.f32 1.0, %v1998
        %v2095 = vsub.f32 1.0, %v1999
        %v2096 = vsub.f32 1.0, %v2000
        %v2097 = vsub.f32 1.0, %v2001
        %v2098 = vsub.f32 1.0, %v2002
        %v2099 = vsub.f32 1.0, %v2003
        %v2100 = vsub.f32 1.0, %v2004
        %v2101 = vsub.f32 1.0, %v2005
        %v2102 = vsub.f32 1.0, %v2006
        %v2103 = vsub.f32 1.0, %v2007
        %v2104 = vsub.f32 1.0, %v2008
        %v2105 = vsub.f32 1.0, %v2009
        %v2106 = vsub.f32 1.0, %v2010
        %v2107 = vsub.f32 1.0, %v2011
        %v2108 = vsub.f32 1.0, %v2012
        %v2109 = vsub.f32 1.0, %v2013
        %v2110 = vsub.f32 1.0, %v2014
        %v2111 = vsub.f32 1.0, %v2015
        %v2112 = vsub.f32 1.0, %v2016
        %v2113 = vsub.f32 1.0, %v2017
        %v2114 = vsub.f32 1.0, %v2018
        %v2115 = vmax.f32 %v2019, 0.0
        %v2116 = vmax.f32 %v2020, 0.0
        %v2117 = vmax.f32 %v2021, 0.0
        %v2118 = vmax.f32 %v2022, 0.0
        %v2119 = vmax.f32 %v2023, 0.0
        %v2120 = vmax.f32 %v2024, 0.0
        %v2121 = vmax.f32 %v2025, 0.0
        %v2122 = vmax.f32 %v2026, 0.0
        %v2123 = vmax.f32 %v2027, 0.0
        %v2124 = vmax.f32 %v2028, 0.0
        %v2125 = vmax.f32 %v2029, 0.0
        %v2126 = vmax.f32 %v2030, 0.0
        %v2127 = vmax.f32 %v2031, 0.0
        %v2128 = vmax.f32 %v2032, 0.0
        %v2129 = vmax.f32 %v2033, 0.0
        %v2130 = vmax.f32 %v2034, 0.0
        %v2131 = vmax.f32 %v2035, 0.0
        %v2132 = vmax.f32 %v2036, 0.0
        %v2133 = vmax.f32 %v2037, 0.0
        %v2134 = vmax.f32 %v2038, 0.0
        %v2135 = vmax.f32 %v2039, 0.0
        %v2136 = vmax.f32 %v2040, 0.0
        %v2137 = vmax.f32 %v2041, 0.0
        %v2138 = vmax.f32 %v2042, 0.0
        %v2139 = vmax.f32 %v2043, 0.0
        %v2140 = vmax.f32 %v2044, 0.0
        %v2141 = vmax.f32 %v2045, 0.0
        %v2142 = vmax.f32 %v2046, 0.0
        %v2143 = vmax.f32 %v2047, 0.0
        %v2144 = vmax.f32 %v2048, 0.0
        %v2145 = vmax.f32 %v2049, 0.0
        %v2146 = vmax.f32 %v2050, 0.0
        %v2147 = vmax.f32 %v2051, 0.0
        %v2148 = vmax.f32 %v2052, 0.0
        %v2149 = vmax.f32 %v2053, 0.0
        %v2150 = vmax.f32 %v2054, 0.0
        %v2151 = vmax.f32 %v2055, 0.0
        %v2152 = vmax.f32 %v2056, 0.0
        %v2153 = vmax.f32 %v2057, 0.0
        %v2154 = vmax.f32 %v2058, 0.0
        %v2155 = vmax.f32 %v2059, 0.0
        %v2156 = vmax.f32 %v2060, 0.0
        %v2157 = vmax.f32 %v2061, 0.0
        %v2158 = vmax.f32 %v2062, 0.0
        %v2159 = vmax.f32 %v2063, 0.0
        %v2160 = vmax.f32 %v2064, 0.0
        %v2161 = vmax.f32 %v2065, 0.0
        %v2162 = vmax.f32 %v2066, 0.0
        %v2163 = vmax.f32 %v2067, 0.0
        %v2164 = vmax.f32 %v2068, 0.0
        %v2165 = vmax.f32 %v2069, 0.0
        %v2166 = vmax.f32 %v2070, 0.0
        %v2167 = vmax.f32 %v2071, 0.0
        %v2168 = vmax.f32 %v2072, 0.0
        %v2169 = vmax.f32 %v2073, 0.0
        %v2170 = vmax.f32 %v2074, 0.0
        %v2171 = vmax.f32 %v2075, 0.0
        %v2172 = vmax.f32 %v2076, 0.0
        %v2173 = vmax.f32 %v2077, 0.0
        %v2174 = vmax.f32 %v2078, 0.0
        %v2175 = vmax.f32 %v2079, 0.0
        %v2176 = vmax.f32 %v2080, 0.0
        %v2177 = vmax.f32 %v2081, 0.0
        %v2178 = vmax.f32 %v2082, 0.0
        %v2179 = vmax.f32 %v2083, 0.0
        %v2180 = vmax.f32 %v2084, 0.0
        %v2181 = vmax.f32 %v2085, 0.0
        %v2182 = vmax.f32 %v2086, 0.0
        %v2183 = vmax.f32 %v2087, 0.0
        %v2184 = vmax.f32 %v2088, 0.0
        %v2185 = vmax.f32 %v2089, 0.0
        %v2186 = vmax.f32 %v2090, 0.0
        %v2187 = vmax.f32 %v2091, 0.0
        %v2188 = vmax.f32 %v2092, 0.0
        %v2189 = vmax.f32 %v2093, 0.0
        %v2190 = vmax.f32 %v2094, 0.0
        %v2191 = vmax.f32 %v2095, 0.0
        %v2192 = vmax.f32 %v2096, 0.0
        %v2193 = vmax.f32 %v2097, 0.0
        %v2194 = vmax.f32 %v2098, 0.0
        %v2195 = vmax.f32 %v2099, 0.0
        %v2196 = vmax.f32 %v2100, 0.0
        %v2197 = vmax.f32 %v2101, 0.0
        %v2198 = vmax.f32 %v2102, 0.0
        %v2199 = vmax.f32 %v2103, 0.0
        %v2200 = vmax.f32 %v2104, 0.0
        %v2201 = vmax.f32 %v2105, 0.0
        %v2202 = vmax.f32 %v2106, 0.0
        %v2203 = vmax.f32 %v2107, 0.0
        %v2204 = vmax.f32 %v2108, 0.0
        %v2205 = vmax.f32 %v2109, 0.0
        %v2206 = vmax.f32 %v2110, 0.0
        %v2207 = vmax.f32 %v2111, 0.0
        %v2208 = vmax.f32 %v2112, 0.0
        %v2209 = vmax.f32 %v2113, 0.0
        %v2210 = vmax.f32 %v2114, 0.0
        %v2211 = vpack.c.bf16 %v2116, %v2115
        %v2212 = vpack.c.bf16 %v2118, %v2117
        %v2213 = vpack.c.bf16 %v2120, %v2119
        %v2214 = vpack.c.bf16 %v2122, %v2121
        %v2215 = vpack.c.bf16 %v2124, %v2123
        %v2216 = vpack.c.bf16 %v2126, %v2125
        %v2217 = vpack.c.bf16 %v2128, %v2127
        %v2218 = vpack.c.bf16 %v2130, %v2129
        %v2219 = vpack.c.bf16 %v2132, %v2131
        %v2220 = vpack.c.bf16 %v2134, %v2133
        %v2221 = vpack.c.bf16 %v2136, %v2135
        %v2222 = vpack.c.bf16 %v2138, %v2137
        %v2223 = vpack.c.bf16 %v2140, %v2139
        %v2224 = vpack.c.bf16 %v2142, %v2141
        %v2225 = vpack.c.bf16 %v2144, %v2143
        %v2226 = vpack.c.bf16 %v2146, %v2145
        %v2227 = vpack.c.bf16 %v2148, %v2147
        %v2228 = vpack.c.bf16 %v2150, %v2149
        %v2229 = vpack.c.bf16 %v2152, %v2151
        %v2230 = vpack.c.bf16 %v2154, %v2153
        %v2231 = vpack.c.bf16 %v2156, %v2155
        %v2232 = vpack.c.bf16 %v2158, %v2157
        %v2233 = vpack.c.bf16 %v2160, %v2159
        %v2234 = vpack.c.bf16 %v2162, %v2161
        %v2235 = vpack.c.bf16 %v2164, %v2163
        %v2236 = vpack.c.bf16 %v2166, %v2165
        %v2237 = vpack.c.bf16 %v2168, %v2167
        %v2238 = vpack.c.bf16 %v2170, %v2169
        %v2239 = vpack.c.bf16 %v2172, %v2171
        %v2240 = vpack.c.bf16 %v2174, %v2173
        %v2241 = vpack.c.bf16 %v2176, %v2175
        %v2242 = vpack.c.bf16 %v2178, %v2177
        %v2243 = vpack.c.bf16 %v2180, %v2179
        %v2244 = vpack.c.bf16 %v2182, %v2181
        %v2245 = vpack.c.bf16 %v2184, %v2183
        %v2246 = vpack.c.bf16 %v2186, %v2185
        %v2247 = vpack.c.bf16 %v2188, %v2187
        %v2248 = vpack.c.bf16 %v2190, %v2189
        %v2249 = vpack.c.bf16 %v2192, %v2191
        %v2250 = vpack.c.bf16 %v2194, %v2193
        %v2251 = vpack.c.bf16 %v2196, %v2195
        %v2252 = vpack.c.bf16 %v2198, %v2197
        %v2253 = vpack.c.bf16 %v2200, %v2199
        %v2254 = vpack.c.bf16 %v2202, %v2201
        %v2255 = vpack.c.bf16 %v2204, %v2203
        %v2256 = vpack.c.bf16 %v2206, %v2205
        %v2257 = vpack.c.bf16 %v2208, %v2207
        %v2258 = vpack.c.bf16 %v2210, %v2209
        %2259 = vxpose.xlu0.c.b16.start [1/8] %v454, 128
        %2260 = vxpose.xlu0.c.b16.cont [2/8] 0, 128
        %2261 = vxpose.xlu0.c.b16.cont [3/8] 0, 128
        %2262 = vxpose.xlu0.c.b16.cont [4/8] 0, 128
        %2263 = vxpose.xlu0.c.b16.cont [5/8] 0, 128
        %2264 = vxpose.xlu0.c.b16.cont [6/8] 0, 128
        %2265 = vxpose.xlu0.c.b16.cont [7/8] 0, 128
        %2266 = vxpose.xlu0.c.b16.end [8/8] 0, 128
        %v2267 = vpop.trf.xlu0
        %v2268 = vpop.trf.xlu0
        %v2269 = vpop.trf.xlu0
        %v2270 = vpop.trf.xlu0
        %v2271 = vpop.trf.xlu0
        %v2272 = vpop.trf.xlu0
        %v2273 = vpop.trf.xlu0
        %v2274 = vpop.trf.xlu0
        %2275 = vxpose.xlu0.c.b16.start [1/8] %v455, 128
        %2276 = vxpose.xlu0.c.b16.cont [2/8] 0, 128
        %2277 = vxpose.xlu0.c.b16.cont [3/8] 0, 128
        %2278 = vxpose.xlu0.c.b16.cont [4/8] 0, 128
        %2279 = vxpose.xlu0.c.b16.cont [5/8] 0, 128
        %2280 = vxpose.xlu0.c.b16.cont [6/8] 0, 128
        %2281 = vxpose.xlu0.c.b16.cont [7/8] 0, 128
        %2282 = vxpose.xlu0.c.b16.end [8/8] 0, 128
        %v2283 = vpop.trf.xlu0
        %v2284 = vpop.trf.xlu0
        %v2285 = vpop.trf.xlu0
        %v2286 = vpop.trf.xlu0
        %v2287 = vpop.trf.xlu0
        %v2288 = vpop.trf.xlu0
        %v2289 = vpop.trf.xlu0
        %v2290 = vpop.trf.xlu0
        %2291 = vxpose.xlu0.c.b16.start [1/8] %v456, 128
        %2292 = vxpose.xlu0.c.b16.cont [2/8] 0, 128
        %2293 = vxpose.xlu0.c.b16.cont [3/8] 0, 128
        %2294 = vxpose.xlu0.c.b16.cont [4/8] 0, 128
        %2295 = vxpose.xlu0.c.b16.cont [5/8] 0, 128
        %2296 = vxpose.xlu0.c.b16.cont [6/8] 0, 128
        %2297 = vxpose.xlu0.c.b16.cont [7/8] 0, 128
        %2298 = vxpose.xlu0.c.b16.end [8/8] 0, 128
        %v2299 = vpop.trf.xlu0
        %v2300 = vpop.trf.xlu0
        %v2301 = vpop.trf.xlu0
        %v2302 = vpop.trf.xlu0
        %v2303 = vpop.trf.xlu0
        %v2304 = vpop.trf.xlu0
        %v2305 = vpop.trf.xlu0
        %v2306 = vpop.trf.xlu0
        %2307 = vxpose.xlu0.c.b16.start [1/8] %v457, 128
        %2308 = vxpose.xlu0.c.b16.cont [2/8] 0, 128
        %2309 = vxpose.xlu0.c.b16.cont [3/8] 0, 128
        %2310 = vxpose.xlu0.c.b16.cont [4/8] 0, 128
        %2311 = vxpose.xlu0.c.b16.cont [5/8] 0, 128
        %2312 = vxpose.xlu0.c.b16.cont [6/8] 0, 128
        %2313 = vxpose.xlu0.c.b16.cont [7/8] 0, 128
        %2314 = vxpose.xlu0.c.b16.end [8/8] 0, 128
        %v2315 = vpop.trf.xlu0
        %v2316 = vpop.trf.xlu0
        %v2317 = vpop.trf.xlu0
        %v2318 = vpop.trf.xlu0
        %v2319 = vpop.trf.xlu0
        %v2320 = vpop.trf.xlu0
        %v2321 = vpop.trf.xlu0
        %v2322 = vpop.trf.xlu0
        %v2325 = vpack.i.b16 %v2283, %v2267
        %v2327 = vshrl.u32 %v2267, 16
        %v2328 = vshrl.u32 %v2283, 16
        %v2329 = vpack.i.b16 %v2328, %v2327
        %v2333 = vpack.i.b16 %v2315, %v2299
        %v2335 = vshrl.u32 %v2299, 16
        %v2336 = vshrl.u32 %v2315, 16
        %v2337 = vpack.i.b16 %v2336, %v2335
        %v2340 = vpack.i.b16 0, 0
        %v2342 = vshrl.u32 0, 16
        %v2343 = vpack.i.b16 %v2342, %v2342
        %v2345 = vcombine.high %v2325, %v2340
        %v2347 = vunpack.c.l.s4 1983009808
        %v2348 = vunpack.c.0.s8 %v2347
        %v2349 = vlaneseq
        %v2350 = vshrl.u32 %v2349, 7
        %v2351 = vsub.s32 %v2348, %v2350
        %v2352 = vrot.slane %v2325, %v2351
        %v2354 = vunpack.c.l.s4 1983009808
        %v2355 = vunpack.c.0.s8 %v2354
        %v2356 = vlaneseq
        %v2357 = vshrl.u32 %v2356, 7
        %v2358 = vsub.s32 %v2355, %v2357
        %v2359 = vrot.slane %v2345, %v2358
        %v2360 = vcombine.high %v2333, %v2340
        %v2362 = vunpack.c.l.s4 1983009808
        %v2363 = vunpack.c.0.s8 %v2362
        %v2364 = vlaneseq
        %v2365 = vshrl.u32 %v2364, 7
        %v2366 = vsub.s32 %v2363, %v2365
        %v2367 = vrot.slane %v2333, %v2366
        %v2369 = vunpack.c.l.s4 1983009808
        %v2370 = vunpack.c.0.s8 %v2369
        %v2371 = vlaneseq
        %v2372 = vshrl.u32 %v2371, 7
        %v2373 = vsub.s32 %v2370, %v2372
        %v2374 = vrot.slane %v2360, %v2373
        %v2375 = vcombine.low %v2352, %v2367
        %v2376 = vcombine.high %v2352, %v2367
        %v2378 = vunpack.c.l.s4 1934713408
        %v2379 = vunpack.c.0.s8 %v2378
        %v2380 = vlaneseq
        %v2381 = vshrl.u32 %v2380, 7
        %v2382 = vsub.s32 %v2379, %v2381
        %v2383 = vrot.slane %v2375, %v2382
        %v2385 = vunpack.c.l.s4 1934713408
        %v2386 = vunpack.c.0.s8 %v2385
        %v2387 = vlaneseq
        %v2388 = vshrl.u32 %v2387, 7
        %v2389 = vsub.s32 %v2386, %v2388
        %v2390 = vrot.slane %v2376, %v2389
        %v2391 = vcombine.low %v2359, %v2374
        %v2392 = vcombine.high %v2359, %v2374
        %v2394 = vunpack.c.l.s4 1934713408
        %v2395 = vunpack.c.0.s8 %v2394
        %v2396 = vlaneseq
        %v2397 = vshrl.u32 %v2396, 7
        %v2398 = vsub.s32 %v2395, %v2397
        %v2399 = vrot.slane %v2391, %v2398
        %v2401 = vunpack.c.l.s4 1934713408
        %v2402 = vunpack.c.0.s8 %v2401
        %v2403 = vlaneseq
        %v2404 = vshrl.u32 %v2403, 7
        %v2405 = vsub.s32 %v2402, %v2404
        %v2406 = vrot.slane %v2392, %v2405
        %v2407 = vcombine.high %v2383, 0
        %v2408 = vcombine.high %v2390, 0
        %v2409 = vcombine.high %v2399, 0
        %v2410 = vcombine.high %v2406, 0
        %v2411 = vcombine.high %v2329, %v2343
        %v2413 = vunpack.c.l.s4 1983009808
        %v2414 = vunpack.c.0.s8 %v2413
        %v2415 = vlaneseq
        %v2416 = vshrl.u32 %v2415, 7
        %v2417 = vsub.s32 %v2414, %v2416
        %v2418 = vrot.slane %v2329, %v2417
        %v2420 = vunpack.c.l.s4 1983009808
        %v2421 = vunpack.c.0.s8 %v2420
        %v2422 = vlaneseq
        %v2423 = vshrl.u32 %v2422, 7
        %v2424 = vsub.s32 %v2421, %v2423
        %v2425 = vrot.slane %v2411, %v2424
        %v2426 = vcombine.high %v2337, %v2343
        %v2428 = vunpack.c.l.s4 1983009808
        %v2429 = vunpack.c.0.s8 %v2428
        %v2430 = vlaneseq
        %v2431 = vshrl.u32 %v2430, 7
        %v2432 = vsub.s32 %v2429, %v2431
        %v2433 = vrot.slane %v2337, %v2432
        %v2435 = vunpack.c.l.s4 1983009808
        %v2436 = vunpack.c.0.s8 %v2435
        %v2437 = vlaneseq
        %v2438 = vshrl.u32 %v2437, 7
        %v2439 = vsub.s32 %v2436, %v2438
        %v2440 = vrot.slane %v2426, %v2439
        %v2441 = vcombine.low %v2418, %v2433
        %v2442 = vcombine.high %v2418, %v2433
        %v2444 = vunpack.c.l.s4 1934713408
        %v2445 = vunpack.c.0.s8 %v2444
        %v2446 = vlaneseq
        %v2447 = vshrl.u32 %v2446, 7
        %v2448 = vsub.s32 %v2445, %v2447
        %v2449 = vrot.slane %v2441, %v2448
        %v2451 = vunpack.c.l.s4 1934713408
        %v2452 = vunpack.c.0.s8 %v2451
        %v2453 = vlaneseq
        %v2454 = vshrl.u32 %v2453, 7
        %v2455 = vsub.s32 %v2452, %v2454
        %v2456 = vrot.slane %v2442, %v2455
        %v2457 = vcombine.low %v2425, %v2440
        %v2458 = vcombine.high %v2425, %v2440
        %v2460 = vunpack.c.l.s4 1934713408
        %v2461 = vunpack.c.0.s8 %v2460
        %v2462 = vlaneseq
        %v2463 = vshrl.u32 %v2462, 7
        %v2464 = vsub.s32 %v2461, %v2463
        %v2465 = vrot.slane %v2457, %v2464
        %v2467 = vunpack.c.l.s4 1934713408
        %v2468 = vunpack.c.0.s8 %v2467
        %v2469 = vlaneseq
        %v2470 = vshrl.u32 %v2469, 7
        %v2471 = vsub.s32 %v2468, %v2470
        %v2472 = vrot.slane %v2458, %v2471
        %v2473 = vcombine.high %v2449, 0
        %v2474 = vcombine.high %v2456, 0
        %v2475 = vcombine.high %v2465, 0
        %v2476 = vcombine.high %v2472, 0
        %2477 = vxpose.xlu0.c.b16.start [1/8] %v2383, 128
        %2478 = vxpose.xlu0.c.b16.cont [2/8] 0, 128
        %2479 = vxpose.xlu0.c.b16.cont [3/8] 0, 128
        %2480 = vxpose.xlu0.c.b16.cont [4/8] 0, 128
        %2481 = vxpose.xlu0.c.b16.cont [5/8] 0, 128
        %2482 = vxpose.xlu0.c.b16.cont [6/8] 0, 128
        %2483 = vxpose.xlu0.c.b16.cont [7/8] 0, 128
        %2484 = vxpose.xlu0.c.b16.end [8/8] 0, 128
        %v2485 = vpop.trf.xlu0
        %v2486 = vpop.trf.xlu0
        %v2487 = vpop.trf.xlu0
        %v2488 = vpop.trf.xlu0
        %v2489 = vpop.trf.xlu0
        %v2490 = vpop.trf.xlu0
        %v2491 = vpop.trf.xlu0
        %v2492 = vpop.trf.xlu0
        %2493 = vxpose.xlu0.c.b16.start [1/8] %v2449, 128
        %2494 = vxpose.xlu0.c.b16.cont [2/8] 0, 128
        %2495 = vxpose.xlu0.c.b16.cont [3/8] 0, 128
        %2496 = vxpose.xlu0.c.b16.cont [4/8] 0, 128
        %2497 = vxpose.xlu0.c.b16.cont [5/8] 0, 128
        %2498 = vxpose.xlu0.c.b16.cont [6/8] 0, 128
        %2499 = vxpose.xlu0.c.b16.cont [7/8] 0, 128
        %2500 = vxpose.xlu0.c.b16.end [8/8] 0, 128
        %v2501 = vpop.trf.xlu0
        %v2502 = vpop.trf.xlu0
        %v2503 = vpop.trf.xlu0
        %v2504 = vpop.trf.xlu0
        %v2505 = vpop.trf.xlu0
        %v2506 = vpop.trf.xlu0
        %v2507 = vpop.trf.xlu0
        %v2508 = vpop.trf.xlu0
        %2509 = vxpose.xlu0.c.b16.start [1/8] %v2407, 128
        %2510 = vxpose.xlu0.c.b16.cont [2/8] 0, 128
        %2511 = vxpose.xlu0.c.b16.cont [3/8] 0, 128
        %2512 = vxpose.xlu0.c.b16.cont [4/8] 0, 128
        %2513 = vxpose.xlu0.c.b16.cont [5/8] 0, 128
        %2514 = vxpose.xlu0.c.b16.cont [6/8] 0, 128
        %2515 = vxpose.xlu0.c.b16.cont [7/8] 0, 128
        %2516 = vxpose.xlu0.c.b16.end [8/8] 0, 128
        %v2517 = vpop.trf.xlu0
        %v2518 = vpop.trf.xlu0
        %v2519 = vpop.trf.xlu0
        %v2520 = vpop.trf.xlu0
        %v2521 = vpop.trf.xlu0
        %v2522 = vpop.trf.xlu0
        %v2523 = vpop.trf.xlu0
        %v2524 = vpop.trf.xlu0
        %2525 = vxpose.xlu0.c.b16.start [1/8] %v2473, 128
        %2526 = vxpose.xlu0.c.b16.cont [2/8] 0, 128
        %2527 = vxpose.xlu0.c.b16.cont [3/8] 0, 128
        %2528 = vxpose.xlu0.c.b16.cont [4/8] 0, 128
        %2529 = vxpose.xlu0.c.b16.cont [5/8] 0, 128
        %2530 = vxpose.xlu0.c.b16.cont [6/8] 0, 128
        %2531 = vxpose.xlu0.c.b16.cont [7/8] 0, 128
        %2532 = vxpose.xlu0.c.b16.end [8/8] 0, 128
        %v2533 = vpop.trf.xlu0
        %v2534 = vpop.trf.xlu0
        %v2535 = vpop.trf.xlu0
        %v2536 = vpop.trf.xlu0
        %v2537 = vpop.trf.xlu0
        %v2538 = vpop.trf.xlu0
        %v2539 = vpop.trf.xlu0
        %v2540 = vpop.trf.xlu0
        %2541 = vxpose.xlu0.c.b16.start [1/8] %v2390, 128
        %2542 = vxpose.xlu0.c.b16.cont [2/8] 0, 128
        %2543 = vxpose.xlu0.c.b16.cont [3/8] 0, 128
        %2544 = vxpose.xlu0.c.b16.cont [4/8] 0, 128
        %2545 = vxpose.xlu0.c.b16.cont [5/8] 0, 128
        %2546 = vxpose.xlu0.c.b16.cont [6/8] 0, 128
        %2547 = vxpose.xlu0.c.b16.cont [7/8] 0, 128
        %2548 = vxpose.xlu0.c.b16.end [8/8] 0, 128
        %v2549 = vpop.trf.xlu0
        %v2550 = vpop.trf.xlu0
        %v2551 = vpop.trf.xlu0
        %v2552 = vpop.trf.xlu0
        %v2553 = vpop.trf.xlu0
        %v2554 = vpop.trf.xlu0
        %v2555 = vpop.trf.xlu0
        %v2556 = vpop.trf.xlu0
        %2557 = vxpose.xlu0.c.b16.start [1/8] %v2456, 128
        %2558 = vxpose.xlu0.c.b16.cont [2/8] 0, 128
        %2559 = vxpose.xlu0.c.b16.cont [3/8] 0, 128
        %2560 = vxpose.xlu0.c.b16.cont [4/8] 0, 128
        %2561 = vxpose.xlu0.c.b16.cont [5/8] 0, 128
        %2562 = vxpose.xlu0.c.b16.cont [6/8] 0, 128
        %2563 = vxpose.xlu0.c.b16.cont [7/8] 0, 128
        %2564 = vxpose.xlu0.c.b16.end [8/8] 0, 128
        %v2565 = vpop.trf.xlu0
        %v2566 = vpop.trf.xlu0
        %v2567 = vpop.trf.xlu0
        %v2568 = vpop.trf.xlu0
        %v2569 = vpop.trf.xlu0
        %v2570 = vpop.trf.xlu0
        %v2571 = vpop.trf.xlu0
        %v2572 = vpop.trf.xlu0
        %2573 = vxpose.xlu0.c.b16.start [1/8] %v2408, 128
        %2574 = vxpose.xlu0.c.b16.cont [2/8] 0, 128
        %2575 = vxpose.xlu0.c.b16.cont [3/8] 0, 128
        %2576 = vxpose.xlu0.c.b16.cont [4/8] 0, 128
        %2577 = vxpose.xlu0.c.b16.cont [5/8] 0, 128
        %2578 = vxpose.xlu0.c.b16.cont [6/8] 0, 128
        %2579 = vxpose.xlu0.c.b16.cont [7/8] 0, 128
        %2580 = vxpose.xlu0.c.b16.end [8/8] 0, 128
        %v2581 = vpop.trf.xlu0
        %v2582 = vpop.trf.xlu0
        %v2583 = vpop.trf.xlu0
        %v2584 = vpop.trf.xlu0
        %v2585 = vpop.trf.xlu0
        %v2586 = vpop.trf.xlu0
        %v2587 = vpop.trf.xlu0
        %v2588 = vpop.trf.xlu0
        %2589 = vxpose.xlu0.c.b16.start [1/8] %v2474, 128
        %2590 = vxpose.xlu0.c.b16.cont [2/8] 0, 128
        %2591 = vxpose.xlu0.c.b16.cont [3/8] 0, 128
        %2592 = vxpose.xlu0.c.b16.cont [4/8] 0, 128
        %2593 = vxpose.xlu0.c.b16.cont [5/8] 0, 128
        %2594 = vxpose.xlu0.c.b16.cont [6/8] 0, 128
        %2595 = vxpose.xlu0.c.b16.cont [7/8] 0, 128
        %2596 = vxpose.xlu0.c.b16.end [8/8] 0, 128
        %v2597 = vpop.trf.xlu0
        %v2598 = vpop.trf.xlu0
        %v2599 = vpop.trf.xlu0
        %v2600 = vpop.trf.xlu0
        %v2601 = vpop.trf.xlu0
        %v2602 = vpop.trf.xlu0
        %v2603 = vpop.trf.xlu0
        %v2604 = vpop.trf.xlu0
        %2605 = vxpose.xlu0.c.b16.start [1/8] %v2399, 128
        %2606 = vxpose.xlu0.c.b16.cont [2/8] 0, 128
        %2607 = vxpose.xlu0.c.b16.cont [3/8] 0, 128
        %2608 = vxpose.xlu0.c.b16.cont [4/8] 0, 128
        %2609 = vxpose.xlu0.c.b16.cont [5/8] 0, 128
        %2610 = vxpose.xlu0.c.b16.cont [6/8] 0, 128
        %2611 = vxpose.xlu0.c.b16.cont [7/8] 0, 128
        %2612 = vxpose.xlu0.c.b16.end [8/8] 0, 128
        %v2613 = vpop.trf.xlu0
        %v2614 = vpop.trf.xlu0
        %v2615 = vpop.trf.xlu0
        %v2616 = vpop.trf.xlu0
        %v2617 = vpop.trf.xlu0
        %v2618 = vpop.trf.xlu0
        %v2619 = vpop.trf.xlu0
        %v2620 = vpop.trf.xlu0
        %2621 = vxpose.xlu0.c.b16.start [1/8] %v2465, 128
        %2622 = vxpose.xlu0.c.b16.cont [2/8] 0, 128
        %2623 = vxpose.xlu0.c.b16.cont [3/8] 0, 128
        %2624 = vxpose.xlu0.c.b16.cont [4/8] 0, 128
        %2625 = vxpose.xlu0.c.b16.cont [5/8] 0, 128
        %2626 = vxpose.xlu0.c.b16.cont [6/8] 0, 128
        %2627 = vxpose.xlu0.c.b16.cont [7/8] 0, 128
        %2628 = vxpose.xlu0.c.b16.end [8/8] 0, 128
        %v2629 = vpop.trf.xlu0
        %v2630 = vpop.trf.xlu0
        %v2631 = vpop.trf.xlu0
        %v2632 = vpop.trf.xlu0
        %v2633 = vpop.trf.xlu0
        %v2634 = vpop.trf.xlu0
        %v2635 = vpop.trf.xlu0
        %v2636 = vpop.trf.xlu0
        %2637 = vxpose.xlu0.c.b16.start [1/8] %v2409, 128
        %2638 = vxpose.xlu0.c.b16.cont [2/8] 0, 128
        %2639 = vxpose.xlu0.c.b16.cont [3/8] 0, 128
        %2640 = vxpose.xlu0.c.b16.cont [4/8] 0, 128
        %2641 = vxpose.xlu0.c.b16.cont [5/8] 0, 128
        %2642 = vxpose.xlu0.c.b16.cont [6/8] 0, 128
        %2643 = vxpose.xlu0.c.b16.cont [7/8] 0, 128
        %2644 = vxpose.xlu0.c.b16.end [8/8] 0, 128
        %v2645 = vpop.trf.xlu0
        %v2646 = vpop.trf.xlu0
        %v2647 = vpop.trf.xlu0
        %v2648 = vpop.trf.xlu0
        %v2649 = vpop.trf.xlu0
        %v2650 = vpop.trf.xlu0
        %v2651 = vpop.trf.xlu0
        %v2652 = vpop.trf.xlu0
        %2653 = vxpose.xlu0.c.b16.start [1/8] %v2475, 128
        %2654 = vxpose.xlu0.c.b16.cont [2/8] 0, 128
        %2655 = vxpose.xlu0.c.b16.cont [3/8] 0, 128
        %2656 = vxpose.xlu0.c.b16.cont [4/8] 0, 128
        %2657 = vxpose.xlu0.c.b16.cont [5/8] 0, 128
        %2658 = vxpose.xlu0.c.b16.cont [6/8] 0, 128
        %2659 = vxpose.xlu0.c.b16.cont [7/8] 0, 128
        %2660 = vxpose.xlu0.c.b16.end [8/8] 0, 128
        %v2661 = vpop.trf.xlu0
        %v2662 = vpop.trf.xlu0
        %v2663 = vpop.trf.xlu0
        %v2664 = vpop.trf.xlu0
        %v2665 = vpop.trf.xlu0
        %v2666 = vpop.trf.xlu0
        %v2667 = vpop.trf.xlu0
        %v2668 = vpop.trf.xlu0
        %2669 = vxpose.xlu0.c.b16.start [1/8] %v2406, 128
        %2670 = vxpose.xlu0.c.b16.cont [2/8] 0, 128
        %2671 = vxpose.xlu0.c.b16.cont [3/8] 0, 128
        %2672 = vxpose.xlu0.c.b16.cont [4/8] 0, 128
        %2673 = vxpose.xlu0.c.b16.cont [5/8] 0, 128
        %2674 = vxpose.xlu0.c.b16.cont [6/8] 0, 128
        %2675 = vxpose.xlu0.c.b16.cont [7/8] 0, 128
        %2676 = vxpose.xlu0.c.b16.end [8/8] 0, 128
        %v2677 = vpop.trf.xlu0
        %v2678 = vpop.trf.xlu0
        %v2679 = vpop.trf.xlu0
        %v2680 = vpop.trf.xlu0
        %v2681 = vpop.trf.xlu0
        %v2682 = vpop.trf.xlu0
        %v2683 = vpop.trf.xlu0
        %v2684 = vpop.trf.xlu0
        %2685 = vxpose.xlu0.c.b16.start [1/8] %v2472, 128
        %2686 = vxpose.xlu0.c.b16.cont [2/8] 0, 128
        %2687 = vxpose.xlu0.c.b16.cont [3/8] 0, 128
        %2688 = vxpose.xlu0.c.b16.cont [4/8] 0, 128
        %2689 = vxpose.xlu0.c.b16.cont [5/8] 0, 128
        %2690 = vxpose.xlu0.c.b16.cont [6/8] 0, 128
        %2691 = vxpose.xlu0.c.b16.cont [7/8] 0, 128
        %2692 = vxpose.xlu0.c.b16.end [8/8] 0, 128
        %v2693 = vpop.trf.xlu0
        %v2694 = vpop.trf.xlu0
        %v2695 = vpop.trf.xlu0
        %v2696 = vpop.trf.xlu0
        %v2697 = vpop.trf.xlu0
        %v2698 = vpop.trf.xlu0
        %v2699 = vpop.trf.xlu0
        %v2700 = vpop.trf.xlu0
        %2701 = vxpose.xlu0.c.b16.start [1/8] %v2410, 128
        %2702 = vxpose.xlu0.c.b16.cont [2/8] 0, 128
        %2703 = vxpose.xlu0.c.b16.cont [3/8] 0, 128
        %2704 = vxpose.xlu0.c.b16.cont [4/8] 0, 128
        %2705 = vxpose.xlu0.c.b16.cont [5/8] 0, 128
        %2706 = vxpose.xlu0.c.b16.cont [6/8] 0, 128
        %2707 = vxpose.xlu0.c.b16.cont [7/8] 0, 128
        %2708 = vxpose.xlu0.c.b16.end [8/8] 0, 128
        %v2709 = vpop.trf.xlu0
        %v2710 = vpop.trf.xlu0
        %v2711 = vpop.trf.xlu0
        %v2712 = vpop.trf.xlu0
        %v2713 = vpop.trf.xlu0
        %v2714 = vpop.trf.xlu0
        %v2715 = vpop.trf.xlu0
        %v2716 = vpop.trf.xlu0
        %2717 = vxpose.xlu0.c.b16.start [1/8] %v2476, 128
        %2718 = vxpose.xlu0.c.b16.cont [2/8] 0, 128
        %2719 = vxpose.xlu0.c.b16.cont [3/8] 0, 128
        %2720 = vxpose.xlu0.c.b16.cont [4/8] 0, 128
        %2721 = vxpose.xlu0.c.b16.cont [5/8] 0, 128
        %2722 = vxpose.xlu0.c.b16.cont [6/8] 0, 128
        %2723 = vxpose.xlu0.c.b16.cont [7/8] 0, 128
        %2724 = vxpose.xlu0.c.b16.end [8/8] 0, 128
        %v2725 = vpop.trf.xlu0
        %v2726 = vpop.trf.xlu0
        %v2727 = vpop.trf.xlu0
        %v2728 = vpop.trf.xlu0
        %v2729 = vpop.trf.xlu0
        %v2730 = vpop.trf.xlu0
        %v2731 = vpop.trf.xlu0
        %v2732 = vpop.trf.xlu0
        %v2733 = vcombine.low %v2485, %v2549
        %v2735 = vunpack.c.l.s4 1983009808
        %v2736 = vunpack.c.0.s8 %v2735
        %v2737 = vlaneseq
        %v2738 = vshrl.u32 %v2737, 7
        %v2739 = vsub.s32 %v2736, %v2738
        %v2740 = vrot.slane %v2733, %v2739
        %v2741 = vcombine.low %v2517, %v2581
        %v2743 = vunpack.c.l.s4 1983009808
        %v2744 = vunpack.c.0.s8 %v2743
        %v2745 = vlaneseq
        %v2746 = vshrl.u32 %v2745, 7
        %v2747 = vsub.s32 %v2744, %v2746
        %v2748 = vrot.slane %v2741, %v2747
        %v2749 = vcombine.low %v2613, %v2677
        %v2751 = vunpack.c.l.s4 1983009808
        %v2752 = vunpack.c.0.s8 %v2751
        %v2753 = vlaneseq
        %v2754 = vshrl.u32 %v2753, 7
        %v2755 = vsub.s32 %v2752, %v2754
        %v2756 = vrot.slane %v2749, %v2755
        %v2757 = vcombine.low %v2645, %v2709
        %v2759 = vunpack.c.l.s4 1983009808
        %v2760 = vunpack.c.0.s8 %v2759
        %v2761 = vlaneseq
        %v2762 = vshrl.u32 %v2761, 7
        %v2763 = vsub.s32 %v2760, %v2762
        %v2764 = vrot.slane %v2757, %v2763
        %v2765 = vcombine.low %v2740, %v2748
        %v2766 = vcombine.high %v2740, %v2748
        %v2768 = vunpack.c.l.s4 1934713408
        %v2769 = vunpack.c.0.s8 %v2768
        %v2770 = vlaneseq
        %v2771 = vshrl.u32 %v2770, 7
        %v2772 = vsub.s32 %v2769, %v2771
        %v2773 = vrot.slane %v2765, %v2772
        %v2775 = vunpack.c.l.s4 1934713408
        %v2776 = vunpack.c.0.s8 %v2775
        %v2777 = vlaneseq
        %v2778 = vshrl.u32 %v2777, 7
        %v2779 = vsub.s32 %v2776, %v2778
        %v2780 = vrot.slane %v2766, %v2779
        %v2781 = vcombine.low %v2756, %v2764
        %v2782 = vcombine.high %v2756, %v2764
        %v2784 = vunpack.c.l.s4 1934713408
        %v2785 = vunpack.c.0.s8 %v2784
        %v2786 = vlaneseq
        %v2787 = vshrl.u32 %v2786, 7
        %v2788 = vsub.s32 %v2785, %v2787
        %v2789 = vrot.slane %v2781, %v2788
        %v2791 = vunpack.c.l.s4 1934713408
        %v2792 = vunpack.c.0.s8 %v2791
        %v2793 = vlaneseq
        %v2794 = vshrl.u32 %v2793, 7
        %v2795 = vsub.s32 %v2792, %v2794
        %v2796 = vrot.slane %v2782, %v2795
        %v2797 = vcombine.low %v2773, %v2789
        %v2798 = vcombine.high %v2773, %v2789
        %v2799 = vcombine.low %v2780, %v2796
        %v2800 = vcombine.high %v2780, %v2796
        %v2801 = vcombine.low %v2501, %v2565
        %v2803 = vunpack.c.l.s4 1983009808
        %v2804 = vunpack.c.0.s8 %v2803
        %v2805 = vlaneseq
        %v2806 = vshrl.u32 %v2805, 7
        %v2807 = vsub.s32 %v2804, %v2806
        %v2808 = vrot.slane %v2801, %v2807
        %v2809 = vcombine.low %v2533, %v2597
        %v2811 = vunpack.c.l.s4 1983009808
        %v2812 = vunpack.c.0.s8 %v2811
        %v2813 = vlaneseq
        %v2814 = vshrl.u32 %v2813, 7
        %v2815 = vsub.s32 %v2812, %v2814
        %v2816 = vrot.slane %v2809, %v2815
        %v2817 = vcombine.low %v2629, %v2693
        %v2819 = vunpack.c.l.s4 1983009808
        %v2820 = vunpack.c.0.s8 %v2819
        %v2821 = vlaneseq
        %v2822 = vshrl.u32 %v2821, 7
        %v2823 = vsub.s32 %v2820, %v2822
        %v2824 = vrot.slane %v2817, %v2823
        %v2825 = vcombine.low %v2661, %v2725
        %v2827 = vunpack.c.l.s4 1983009808
        %v2828 = vunpack.c.0.s8 %v2827
        %v2829 = vlaneseq
        %v2830 = vshrl.u32 %v2829, 7
        %v2831 = vsub.s32 %v2828, %v2830
        %v2832 = vrot.slane %v2825, %v2831
        %v2833 = vcombine.low %v2808, %v2816
        %v2834 = vcombine.high %v2808, %v2816
        %v2836 = vunpack.c.l.s4 1934713408
        %v2837 = vunpack.c.0.s8 %v2836
        %v2838 = vlaneseq
        %v2839 = vshrl.u32 %v2838, 7
        %v2840 = vsub.s32 %v2837, %v2839
        %v2841 = vrot.slane %v2833, %v2840
        %v2843 = vunpack.c.l.s4 1934713408
        %v2844 = vunpack.c.0.s8 %v2843
        %v2845 = vlaneseq
        %v2846 = vshrl.u32 %v2845, 7
        %v2847 = vsub.s32 %v2844, %v2846
        %v2848 = vrot.slane %v2834, %v2847
        %v2849 = vcombine.low %v2824, %v2832
        %v2850 = vcombine.high %v2824, %v2832
        %v2852 = vunpack.c.l.s4 1934713408
        %v2853 = vunpack.c.0.s8 %v2852
        %v2854 = vlaneseq
        %v2855 = vshrl.u32 %v2854, 7
        %v2856 = vsub.s32 %v2853, %v2855
        %v2857 = vrot.slane %v2849, %v2856
        %v2859 = vunpack.c.l.s4 1934713408
        %v2860 = vunpack.c.0.s8 %v2859
        %v2861 = vlaneseq
        %v2862 = vshrl.u32 %v2861, 7
        %v2863 = vsub.s32 %v2860, %v2862
        %v2864 = vrot.slane %v2850, %v2863
        %v2865 = vcombine.low %v2841, %v2857
        %v2866 = vcombine.high %v2841, %v2857
        %v2867 = vcombine.low %v2848, %v2864
        %v2868 = vcombine.high %v2848, %v2864
        %v2871 = vpack.i.b16 %v2865, %v2797
        %v2873 = vshrl.u32 %v2797, 16
        %v2874 = vshrl.u32 %v2865, 16
        %v2875 = vpack.i.b16 %v2874, %v2873
        %v2879 = vpack.i.b16 %v2866, %v2798
        %v2881 = vshrl.u32 %v2798, 16
        %v2882 = vshrl.u32 %v2866, 16
        %v2883 = vpack.i.b16 %v2882, %v2881
        %v2887 = vpack.i.b16 %v2867, %v2799
        %v2889 = vshrl.u32 %v2799, 16
        %v2890 = vshrl.u32 %v2867, 16
        %v2891 = vpack.i.b16 %v2890, %v2889
        %v2895 = vpack.i.b16 %v2868, %v2800
        %v2897 = vshrl.u32 %v2800, 16
        %v2898 = vshrl.u32 %v2868, 16
        %v2899 = vpack.i.b16 %v2898, %v2897
        %v2902 = vsel %vm470, %v2211, 0
        %v2905 = vsel %vm470, %v2212, 0
        %v2908 = vsel %vm470, %v2213, 0
        %v2911 = vsel %vm470, %v2214, 0
        %v2914 = vsel %vm470, %v2215, 0
        %v2917 = vsel %vm470, %v2216, 0
        %2919 = vmatprep.subr.bf16.mxu0 0
        %2920 = vmatpush1.bf16.msra.mxu0 %v2871
        %2921 = vmatprep.subr.bf16.mxu0 0
        %2922 = vmatpush1.bf16.msra.mxu0 0
        %2923 = vmatprep.subr.bf16.mxu0 0
        %2924 = vmatpush1.bf16.msra.mxu0 0
        %2925 = vmatprep.subr.bf16.mxu0 0
        %2926 = vmatpush1.bf16.msra.mxu0 0
        %2927 = vmatprep.subr.bf16.mxu0 0
        %2928 = vmatpush1.bf16.msra.mxu0 0
        %2929 = vmatprep.subr.bf16.mxu0 0
        %2930 = vmatpush1.bf16.msra.mxu0 0
        %2931 = vmatprep.subr.bf16.mxu0 0
        %2932 = vmatpush1.bf16.msra.mxu0 0
        %2933 = vmatprep.subr.bf16.mxu0 0
        %2934 = vmatpush1.bf16.msra.mxu0 0
        %2935 = vmatprep.subr.bf16.mxu0 0
        %2936 = vmatpush1.bf16.msra.mxu0 0
        %2937 = vmatprep.subr.bf16.mxu0 0
        %2938 = vmatpush1.bf16.msra.mxu0 0
        %2939 = vmatprep.subr.bf16.mxu0 0
        %2940 = vmatpush1.bf16.msra.mxu0 0
        %2941 = vmatprep.subr.bf16.mxu0 0
        %2942 = vmatpush1.bf16.msra.mxu0 0
        %2943 = vmatprep.subr.bf16.mxu0 0
        %2944 = vmatpush1.bf16.msra.mxu0 0
        %2945 = vmatprep.subr.bf16.mxu0 0
        %2946 = vmatpush1.bf16.msra.mxu0 0
        %2947 = vmatprep.subr.bf16.mxu0 0
        %2948 = vmatpush1.bf16.msra.mxu0 0
        %2949 = vmatprep.subr.bf16.mxu0 0
        %2950 = vmatpush1.bf16.msra.mxu0 0
        %2951 = vmatprep.mubr.bf16.mxu0 0
        %2952 = vmatmul.mubr.bf16.gmra.mrb[0].mxu0 %v2902
        %v2953 = vpop.f32.mrb[0].mxu0
        %v2954 = vadd.f32 0.0, %v2953
        %v2955 = vpop.f32.mrb[0].mxu0
        %v2956 = vpop.f32.mrb[0].mxu0
        %v2957 = vadd.f32 0.0, %v2956
        %v2958 = vpop.f32.mrb[0].mxu0
        %2959 = vmatprep.mubr.bf16.mxu0 0
        %2960 = vmatmul.mubr.bf16.gmra.mrb[0].mxu0 %v2905
        %v2961 = vpop.f32.mrb[0].mxu0
        %v2962 = vadd.f32 0.0, %v2961
        %v2963 = vpop.f32.mrb[0].mxu0
        %v2964 = vpop.f32.mrb[0].mxu0
        %v2965 = vadd.f32 0.0, %v2964
        %v2966 = vpop.f32.mrb[0].mxu0
        %2967 = vmatprep.mubr.bf16.mxu0 0
        %2968 = vmatmul.mubr.bf16.gmra.mrb[0].mxu0 %v2908
        %v2969 = vpop.f32.mrb[0].mxu0
        %v2970 = vadd.f32 0.0, %v2969
        %v2971 = vpop.f32.mrb[0].mxu0
        %v2972 = vpop.f32.mrb[0].mxu0
        %v2973 = vadd.f32 0.0, %v2972
        %v2974 = vpop.f32.mrb[0].mxu0
        %2975 = vmatprep.mubr.bf16.mxu0 0
        %2976 = vmatmul.mubr.bf16.gmra.mrb[0].mxu0 %v2911
        %v2977 = vpop.f32.mrb[0].mxu0
        %v2978 = vadd.f32 0.0, %v2977
        %v2979 = vpop.f32.mrb[0].mxu0
        %v2980 = vpop.f32.mrb[0].mxu0
        %v2981 = vadd.f32 0.0, %v2980
        %v2982 = vpop.f32.mrb[0].mxu0
        %2983 = vmatprep.mubr.bf16.mxu0 0
        %2984 = vmatmul.mubr.bf16.gmra.mrb[0].mxu0 %v2914
        %v2985 = vpop.f32.mrb[0].mxu0
        %v2986 = vadd.f32 0.0, %v2985
        %v2987 = vpop.f32.mrb[0].mxu0
        %v2988 = vpop.f32.mrb[0].mxu0
        %v2989 = vadd.f32 0.0, %v2988
        %v2990 = vpop.f32.mrb[0].mxu0
        %2991 = vmatprep.mubr.bf16.mxu0 0
        %2992 = vmatmul.mubr.bf16.gmra.mrb[0].mxu0 %v2917
        %v2993 = vpop.f32.mrb[0].mxu0
        %v2994 = vadd.f32 0.0, %v2993
        %v2995 = vpop.f32.mrb[0].mxu0
        %v2996 = vpop.f32.mrb[0].mxu0
        %v2997 = vadd.f32 0.0, %v2996
        %v2998 = vpop.f32.mrb[0].mxu0
        %2999 = vdwg.mxu0
        %v3001 = vsel %vm470, %v2217, 0
        %v3004 = vsel %vm470, %v2218, 0
        %v3007 = vsel %vm470, %v2219, 0
        %v3010 = vsel %vm470, %v2220, 0
        %v3013 = vsel %vm470, %v2221, 0
        %v3016 = vsel %vm470, %v2222, 0
        %3018 = vmatprep.subr.bf16.mxu0 0
        %3019 = vmatpush1.bf16.msra.mxu0 %v2875
        %3020 = vmatprep.subr.bf16.mxu0 0
        %3021 = vmatpush1.bf16.msra.mxu0 0
        %3022 = vmatprep.subr.bf16.mxu0 0
        %3023 = vmatpush1.bf16.msra.mxu0 0
        %3024 = vmatprep.subr.bf16.mxu0 0
        %3025 = vmatpush1.bf16.msra.mxu0 0
        %3026 = vmatprep.subr.bf16.mxu0 0
        %3027 = vmatpush1.bf16.msra.mxu0 0
        %3028 = vmatprep.subr.bf16.mxu0 0
        %3029 = vmatpush1.bf16.msra.mxu0 0
        %3030 = vmatprep.subr.bf16.mxu0 0
        %3031 = vmatpush1.bf16.msra.mxu0 0
        %3032 = vmatprep.subr.bf16.mxu0 0
        %3033 = vmatpush1.bf16.msra.mxu0 0
        %3034 = vmatprep.subr.bf16.mxu0 0
        %3035 = vmatpush1.bf16.msra.mxu0 0
        %3036 = vmatprep.subr.bf16.mxu0 0
        %3037 = vmatpush1.bf16.msra.mxu0 0
        %3038 = vmatprep.subr.bf16.mxu0 0
        %3039 = vmatpush1.bf16.msra.mxu0 0
        %3040 = vmatprep.subr.bf16.mxu0 0
        %3041 = vmatpush1.bf16.msra.mxu0 0
        %3042 = vmatprep.subr.bf16.mxu0 0
        %3043 = vmatpush1.bf16.msra.mxu0 0
        %3044 = vmatprep.subr.bf16.mxu0 0
        %3045 = vmatpush1.bf16.msra.mxu0 0
        %3046 = vmatprep.subr.bf16.mxu0 0
        %3047 = vmatpush1.bf16.msra.mxu0 0
        %3048 = vmatprep.subr.bf16.mxu0 0
        %3049 = vmatpush1.bf16.msra.mxu0 0
        %3050 = vmatprep.mubr.bf16.mxu0 0
        %3051 = vmatmul.mubr.bf16.gmra.mrb[0].mxu0 %v3001
        %v3052 = vpop.f32.mrb[0].mxu0
        %v3053 = vadd.f32 0.0, %v3052
        %v3054 = vpop.f32.mrb[0].mxu0
        %v3055 = vpop.f32.mrb[0].mxu0
        %v3056 = vadd.f32 0.0, %v3055
        %v3057 = vpop.f32.mrb[0].mxu0
        %3058 = vmatprep.mubr.bf16.mxu0 0
        %3059 = vmatmul.mubr.bf16.gmra.mrb[0].mxu0 %v3004
        %v3060 = vpop.f32.mrb[0].mxu0
        %v3061 = vadd.f32 0.0, %v3060
        %v3062 = vpop.f32.mrb[0].mxu0
        %v3063 = vpop.f32.mrb[0].mxu0
        %v3064 = vadd.f32 0.0, %v3063
        %v3065 = vpop.f32.mrb[0].mxu0
        %3066 = vmatprep.mubr.bf16.mxu0 0
        %3067 = vmatmul.mubr.bf16.gmra.mrb[0].mxu0 %v3007
        %v3068 = vpop.f32.mrb[0].mxu0
        %v3069 = vadd.f32 0.0, %v3068
        %v3070 = vpop.f32.mrb[0].mxu0
        %v3071 = vpop.f32.mrb[0].mxu0
        %v3072 = vadd.f32 0.0, %v3071
        %v3073 = vpop.f32.mrb[0].mxu0
        %3074 = vmatprep.mubr.bf16.mxu0 0
        %3075 = vmatmul.mubr.bf16.gmra.mrb[0].mxu0 %v3010
        %v3076 = vpop.f32.mrb[0].mxu0
        %v3077 = vadd.f32 0.0, %v3076
        %v3078 = vpop.f32.mrb[0].mxu0
        %v3079 = vpop.f32.mrb[0].mxu0
        %v3080 = vadd.f32 0.0, %v3079
        %v3081 = vpop.f32.mrb[0].mxu0
        %3082 = vmatprep.mubr.bf16.mxu0 0
        %3083 = vmatmul.mubr.bf16.gmra.mrb[0].mxu0 %v3013
        %v3084 = vpop.f32.mrb[0].mxu0
        %v3085 = vadd.f32 0.0, %v3084
        %v3086 = vpop.f32.mrb[0].mxu0
        %v3087 = vpop.f32.mrb[0].mxu0
        %v3088 = vadd.f32 0.0, %v3087
        %v3089 = vpop.f32.mrb[0].mxu0
        %3090 = vmatprep.mubr.bf16.mxu0 0
        %3091 = vmatmul.mubr.bf16.gmra.mrb[0].mxu0 %v3016
        %v3092 = vpop.f32.mrb[0].mxu0
        %v3093 = vadd.f32 0.0, %v3092
        %v3094 = vpop.f32.mrb[0].mxu0
        %v3095 = vpop.f32.mrb[0].mxu0
        %v3096 = vadd.f32 0.0, %v3095
        %v3097 = vpop.f32.mrb[0].mxu0
        %3098 = vdwg.mxu0
        %v3100 = vsel %vm470, %v2223, 0
        %v3103 = vsel %vm470, %v2224, 0
        %v3106 = vsel %vm470, %v2225, 0
        %v3109 = vsel %vm470, %v2226, 0
        %v3112 = vsel %vm470, %v2227, 0
        %v3115 = vsel %vm470, %v2228, 0
        %3117 = vmatprep.subr.bf16.mxu0 0
        %3118 = vmatpush1.bf16.msra.mxu0 %v2879
        %3119 = vmatprep.subr.bf16.mxu0 0
        %3120 = vmatpush1.bf16.msra.mxu0 0
        %3121 = vmatprep.subr.bf16.mxu0 0
        %3122 = vmatpush1.bf16.msra.mxu0 0
        %3123 = vmatprep.subr.bf16.mxu0 0
        %3124 = vmatpush1.bf16.msra.mxu0 0
        %3125 = vmatprep.subr.bf16.mxu0 0
        %3126 = vmatpush1.bf16.msra.mxu0 0
        %3127 = vmatprep.subr.bf16.mxu0 0
        %3128 = vmatpush1.bf16.msra.mxu0 0
        %3129 = vmatprep.subr.bf16.mxu0 0
        %3130 = vmatpush1.bf16.msra.mxu0 0
        %3131 = vmatprep.subr.bf16.mxu0 0
        %3132 = vmatpush1.bf16.msra.mxu0 0
        %3133 = vmatprep.subr.bf16.mxu0 0
        %3134 = vmatpush1.bf16.msra.mxu0 0
        %3135 = vmatprep.subr.bf16.mxu0 0
        %3136 = vmatpush1.bf16.msra.mxu0 0
        %3137 = vmatprep.subr.bf16.mxu0 0
        %3138 = vmatpush1.bf16.msra.mxu0 0
        %3139 = vmatprep.subr.bf16.mxu0 0
        %3140 = vmatpush1.bf16.msra.mxu0 0
        %3141 = vmatprep.subr.bf16.mxu0 0
        %3142 = vmatpush1.bf16.msra.mxu0 0
        %3143 = vmatprep.subr.bf16.mxu0 0
        %3144 = vmatpush1.bf16.msra.mxu0 0
        %3145 = vmatprep.subr.bf16.mxu0 0
        %3146 = vmatpush1.bf16.msra.mxu0 0
        %3147 = vmatprep.subr.bf16.mxu0 0
        %3148 = vmatpush1.bf16.msra.mxu0 0
        %3149 = vmatprep.mubr.bf16.mxu0 0
        %3150 = vmatmul.mubr.bf16.gmra.mrb[0].mxu0 %v3100
        %v3151 = vpop.f32.mrb[0].mxu0
        %v3152 = vadd.f32 0.0, %v3151
        %v3153 = vpop.f32.mrb[0].mxu0
        %v3154 = vpop.f32.mrb[0].mxu0
        %v3155 = vadd.f32 0.0, %v3154
        %v3156 = vpop.f32.mrb[0].mxu0
        %3157 = vmatprep.mubr.bf16.mxu0 0
        %3158 = vmatmul.mubr.bf16.gmra.mrb[0].mxu0 %v3103
        %v3159 = vpop.f32.mrb[0].mxu0
        %v3160 = vadd.f32 0.0, %v3159
        %v3161 = vpop.f32.mrb[0].mxu0
        %v3162 = vpop.f32.mrb[0].mxu0
        %v3163 = vadd.f32 0.0, %v3162
        %v3164 = vpop.f32.mrb[0].mxu0
        %3165 = vmatprep.mubr.bf16.mxu0 0
        %3166 = vmatmul.mubr.bf16.gmra.mrb[0].mxu0 %v3106
        %v3167 = vpop.f32.mrb[0].mxu0
        %v3168 = vadd.f32 0.0, %v3167
        %v3169 = vpop.f32.mrb[0].mxu0
        %v3170 = vpop.f32.mrb[0].mxu0
        %v3171 = vadd.f32 0.0, %v3170
        %v3172 = vpop.f32.mrb[0].mxu0
        %3173 = vmatprep.mubr.bf16.mxu0 0
        %3174 = vmatmul.mubr.bf16.gmra.mrb[0].mxu0 %v3109
        %v3175 = vpop.f32.mrb[0].mxu0
        %v3176 = vadd.f32 0.0, %v3175
        %v3177 = vpop.f32.mrb[0].mxu0
        %v3178 = vpop.f32.mrb[0].mxu0
        %v3179 = vadd.f32 0.0, %v3178
        %v3180 = vpop.f32.mrb[0].mxu0
        %3181 = vmatprep.mubr.bf16.mxu0 0
        %3182 = vmatmul.mubr.bf16.gmra.mrb[0].mxu0 %v3112
        %v3183 = vpop.f32.mrb[0].mxu0
        %v3184 = vadd.f32 0.0, %v3183
        %v3185 = vpop.f32.mrb[0].mxu0
        %v3186 = vpop.f32.mrb[0].mxu0
        %v3187 = vadd.f32 0.0, %v3186
        %v3188 = vpop.f32.mrb[0].mxu0
        %3189 = vmatprep.mubr.bf16.mxu0 0
        %3190 = vmatmul.mubr.bf16.gmra.mrb[0].mxu0 %v3115
        %v3191 = vpop.f32.mrb[0].mxu0
        %v3192 = vadd.f32 0.0, %v3191
        %v3193 = vpop.f32.mrb[0].mxu0
        %v3194 = vpop.f32.mrb[0].mxu0
        %v3195 = vadd.f32 0.0, %v3194
        %v3196 = vpop.f32.mrb[0].mxu0
        %3197 = vdwg.mxu0
        %v3199 = vsel %vm470, %v2229, 0
        %v3202 = vsel %vm470, %v2230, 0
        %v3205 = vsel %vm470, %v2231, 0
        %v3208 = vsel %vm470, %v2232, 0
        %v3211 = vsel %vm470, %v2233, 0
        %v3214 = vsel %vm470, %v2234, 0
        %3216 = vmatprep.subr.bf16.mxu0 0
        %3217 = vmatpush1.bf16.msra.mxu0 %v2883
        %3218 = vmatprep.subr.bf16.mxu0 0
        %3219 = vmatpush1.bf16.msra.mxu0 0
        %3220 = vmatprep.subr.bf16.mxu0 0
        %3221 = vmatpush1.bf16.msra.mxu0 0
        %3222 = vmatprep.subr.bf16.mxu0 0
        %3223 = vmatpush1.bf16.msra.mxu0 0
        %3224 = vmatprep.subr.bf16.mxu0 0
        %3225 = vmatpush1.bf16.msra.mxu0 0
        %3226 = vmatprep.subr.bf16.mxu0 0
        %3227 = vmatpush1.bf16.msra.mxu0 0
        %3228 = vmatprep.subr.bf16.mxu0 0
        %3229 = vmatpush1.bf16.msra.mxu0 0
        %3230 = vmatprep.subr.bf16.mxu0 0
        %3231 = vmatpush1.bf16.msra.mxu0 0
        %3232 = vmatprep.subr.bf16.mxu0 0
        %3233 = vmatpush1.bf16.msra.mxu0 0
        %3234 = vmatprep.subr.bf16.mxu0 0
        %3235 = vmatpush1.bf16.msra.mxu0 0
        %3236 = vmatprep.subr.bf16.mxu0 0
        %3237 = vmatpush1.bf16.msra.mxu0 0
        %3238 = vmatprep.subr.bf16.mxu0 0
        %3239 = vmatpush1.bf16.msra.mxu0 0
        %3240 = vmatprep.subr.bf16.mxu0 0
        %3241 = vmatpush1.bf16.msra.mxu0 0
        %3242 = vmatprep.subr.bf16.mxu0 0
        %3243 = vmatpush1.bf16.msra.mxu0 0
        %3244 = vmatprep.subr.bf16.mxu0 0
        %3245 = vmatpush1.bf16.msra.mxu0 0
        %3246 = vmatprep.subr.bf16.mxu0 0
        %3247 = vmatpush1.bf16.msra.mxu0 0
        %3248 = vmatprep.mubr.bf16.mxu0 0
        %3249 = vmatmul.mubr.bf16.gmra.mrb[0].mxu0 %v3199
        %v3250 = vpop.f32.mrb[0].mxu0
        %v3251 = vadd.f32 0.0, %v3250
        %v3252 = vpop.f32.mrb[0].mxu0
        %v3253 = vpop.f32.mrb[0].mxu0
        %v3254 = vadd.f32 0.0, %v3253
        %v3255 = vpop.f32.mrb[0].mxu0
        %3256 = vmatprep.mubr.bf16.mxu0 0
        %3257 = vmatmul.mubr.bf16.gmra.mrb[0].mxu0 %v3202
        %v3258 = vpop.f32.mrb[0].mxu0
        %v3259 = vadd.f32 0.0, %v3258
        %v3260 = vpop.f32.mrb[0].mxu0
        %v3261 = vpop.f32.mrb[0].mxu0
        %v3262 = vadd.f32 0.0, %v3261
        %v3263 = vpop.f32.mrb[0].mxu0
        %3264 = vmatprep.mubr.bf16.mxu0 0
        %3265 = vmatmul.mubr.bf16.gmra.mrb[0].mxu0 %v3205
        %v3266 = vpop.f32.mrb[0].mxu0
        %v3267 = vadd.f32 0.0, %v3266
        %v3268 = vpop.f32.mrb[0].mxu0
        %v3269 = vpop.f32.mrb[0].mxu0
        %v3270 = vadd.f32 0.0, %v3269
        %v3271 = vpop.f32.mrb[0].mxu0
        %3272 = vmatprep.mubr.bf16.mxu0 0
        %3273 = vmatmul.mubr.bf16.gmra.mrb[0].mxu0 %v3208
        %v3274 = vpop.f32.mrb[0].mxu0
        %v3275 = vadd.f32 0.0, %v3274
        %v3276 = vpop.f32.mrb[0].mxu0
        %v3277 = vpop.f32.mrb[0].mxu0
        %v3278 = vadd.f32 0.0, %v3277
        %v3279 = vpop.f32.mrb[0].mxu0
        %3280 = vmatprep.mubr.bf16.mxu0 0
        %3281 = vmatmul.mubr.bf16.gmra.mrb[0].mxu0 %v3211
        %v3282 = vpop.f32.mrb[0].mxu0
        %v3283 = vadd.f32 0.0, %v3282
        %v3284 = vpop.f32.mrb[0].mxu0
        %v3285 = vpop.f32.mrb[0].mxu0
        %v3286 = vadd.f32 0.0, %v3285
        %v3287 = vpop.f32.mrb[0].mxu0
        %3288 = vmatprep.mubr.bf16.mxu0 0
        %3289 = vmatmul.mubr.bf16.gmra.mrb[0].mxu0 %v3214
        %v3290 = vpop.f32.mrb[0].mxu0
        %v3291 = vadd.f32 0.0, %v3290
        %v3292 = vpop.f32.mrb[0].mxu0
        %v3293 = vpop.f32.mrb[0].mxu0
        %v3294 = vadd.f32 0.0, %v3293
        %v3295 = vpop.f32.mrb[0].mxu0
        %3296 = vdwg.mxu0
        %v3298 = vsel %vm470, %v2235, 0
        %v3301 = vsel %vm470, %v2236, 0
        %v3304 = vsel %vm470, %v2237, 0
        %v3307 = vsel %vm470, %v2238, 0
        %v3310 = vsel %vm470, %v2239, 0
        %v3313 = vsel %vm470, %v2240, 0
        %3315 = vmatprep.subr.bf16.mxu0 0
        %3316 = vmatpush1.bf16.msra.mxu0 %v2887
        %3317 = vmatprep.subr.bf16.mxu0 0
        %3318 = vmatpush1.bf16.msra.mxu0 0
        %3319 = vmatprep.subr.bf16.mxu0 0
        %3320 = vmatpush1.bf16.msra.mxu0 0
        %3321 = vmatprep.subr.bf16.mxu0 0
        %3322 = vmatpush1.bf16.msra.mxu0 0
        %3323 = vmatprep.subr.bf16.mxu0 0
        %3324 = vmatpush1.bf16.msra.mxu0 0
        %3325 = vmatprep.subr.bf16.mxu0 0
        %3326 = vmatpush1.bf16.msra.mxu0 0
        %3327 = vmatprep.subr.bf16.mxu0 0
        %3328 = vmatpush1.bf16.msra.mxu0 0
        %3329 = vmatprep.subr.bf16.mxu0 0
        %3330 = vmatpush1.bf16.msra.mxu0 0
        %3331 = vmatprep.subr.bf16.mxu0 0
        %3332 = vmatpush1.bf16.msra.mxu0 0
        %3333 = vmatprep.subr.bf16.mxu0 0
        %3334 = vmatpush1.bf16.msra.mxu0 0
        %3335 = vmatprep.subr.bf16.mxu0 0
        %3336 = vmatpush1.bf16.msra.mxu0 0
        %3337 = vmatprep.subr.bf16.mxu0 0
        %3338 = vmatpush1.bf16.msra.mxu0 0
        %3339 = vmatprep.subr.bf16.mxu0 0
        %3340 = vmatpush1.bf16.msra.mxu0 0
        %3341 = vmatprep.subr.bf16.mxu0 0
        %3342 = vmatpush1.bf16.msra.mxu0 0
        %3343 = vmatprep.subr.bf16.mxu0 0
        %3344 = vmatpush1.bf16.msra.mxu0 0
        %3345 = vmatprep.subr.bf16.mxu0 0
        %3346 = vmatpush1.bf16.msra.mxu0 0
        %3347 = vmatprep.mubr.bf16.mxu0 0
        %3348 = vmatmul.mubr.bf16.gmra.mrb[0].mxu0 %v3298
        %v3349 = vpop.f32.mrb[0].mxu0
        %v3350 = vadd.f32 0.0, %v3349
        %v3351 = vpop.f32.mrb[0].mxu0
        %v3352 = vpop.f32.mrb[0].mxu0
        %v3353 = vadd.f32 0.0, %v3352
        %v3354 = vpop.f32.mrb[0].mxu0
        %3355 = vmatprep.mubr.bf16.mxu0 0
        %3356 = vmatmul.mubr.bf16.gmra.mrb[0].mxu0 %v3301
        %v3357 = vpop.f32.mrb[0].mxu0
        %v3358 = vadd.f32 0.0, %v3357
        %v3359 = vpop.f32.mrb[0].mxu0
        %v3360 = vpop.f32.mrb[0].mxu0
        %v3361 = vadd.f32 0.0, %v3360
        %v3362 = vpop.f32.mrb[0].mxu0
        %3363 = vmatprep.mubr.bf16.mxu0 0
        %3364 = vmatmul.mubr.bf16.gmra.mrb[0].mxu0 %v3304
        %v3365 = vpop.f32.mrb[0].mxu0
        %v3366 = vadd.f32 0.0, %v3365
        %v3367 = vpop.f32.mrb[0].mxu0
        %v3368 = vpop.f32.mrb[0].mxu0
        %v3369 = vadd.f32 0.0, %v3368
        %v3370 = vpop.f32.mrb[0].mxu0
        %3371 = vmatprep.mubr.bf16.mxu0 0
        %3372 = vmatmul.mubr.bf16.gmra.mrb[0].mxu0 %v3307
        %v3373 = vpop.f32.mrb[0].mxu0
        %v3374 = vadd.f32 0.0, %v3373
        %v3375 = vpop.f32.mrb[0].mxu0
        %v3376 = vpop.f32.mrb[0].mxu0
        %v3377 = vadd.f32 0.0, %v3376
        %v3378 = vpop.f32.mrb[0].mxu0
        %3379 = vmatprep.mubr.bf16.mxu0 0
        %3380 = vmatmul.mubr.bf16.gmra.mrb[0].mxu0 %v3310
        %v3381 = vpop.f32.mrb[0].mxu0
        %v3382 = vadd.f32 0.0, %v3381
        %v3383 = vpop.f32.mrb[0].mxu0
        %v3384 = vpop.f32.mrb[0].mxu0
        %v3385 = vadd.f32 0.0, %v3384
        %v3386 = vpop.f32.mrb[0].mxu0
        %3387 = vmatprep.mubr.bf16.mxu0 0
        %3388 = vmatmul.mubr.bf16.gmra.mrb[0].mxu0 %v3313
        %v3389 = vpop.f32.mrb[0].mxu0
        %v3390 = vadd.f32 0.0, %v3389
        %v3391 = vpop.f32.mrb[0].mxu0
        %v3392 = vpop.f32.mrb[0].mxu0
        %v3393 = vadd.f32 0.0, %v3392
        %v3394 = vpop.f32.mrb[0].mxu0
        %3395 = vdwg.mxu0
        %v3397 = vsel %vm470, %v2241, 0
        %v3400 = vsel %vm470, %v2242, 0
        %v3403 = vsel %vm470, %v2243, 0
        %v3406 = vsel %vm470, %v2244, 0
        %v3409 = vsel %vm470, %v2245, 0
        %v3412 = vsel %vm470, %v2246, 0
        %3414 = vmatprep.subr.bf16.mxu0 0
        %3415 = vmatpush1.bf16.msra.mxu0 %v2891
        %3416 = vmatprep.subr.bf16.mxu0 0
        %3417 = vmatpush1.bf16.msra.mxu0 0
        %3418 = vmatprep.subr.bf16.mxu0 0
        %3419 = vmatpush1.bf16.msra.mxu0 0
        %3420 = vmatprep.subr.bf16.mxu0 0
        %3421 = vmatpush1.bf16.msra.mxu0 0
        %3422 = vmatprep.subr.bf16.mxu0 0
        %3423 = vmatpush1.bf16.msra.mxu0 0
        %3424 = vmatprep.subr.bf16.mxu0 0
        %3425 = vmatpush1.bf16.msra.mxu0 0
        %3426 = vmatprep.subr.bf16.mxu0 0
        %3427 = vmatpush1.bf16.msra.mxu0 0
        %3428 = vmatprep.subr.bf16.mxu0 0
        %3429 = vmatpush1.bf16.msra.mxu0 0
        %3430 = vmatprep.subr.bf16.mxu0 0
        %3431 = vmatpush1.bf16.msra.mxu0 0
        %3432 = vmatprep.subr.bf16.mxu0 0
        %3433 = vmatpush1.bf16.msra.mxu0 0
        %3434 = vmatprep.subr.bf16.mxu0 0
        %3435 = vmatpush1.bf16.msra.mxu0 0
        %3436 = vmatprep.subr.bf16.mxu0 0
        %3437 = vmatpush1.bf16.msra.mxu0 0
        %3438 = vmatprep.subr.bf16.mxu0 0
        %3439 = vmatpush1.bf16.msra.mxu0 0
        %3440 = vmatprep.subr.bf16.mxu0 0
        %3441 = vmatpush1.bf16.msra.mxu0 0
        %3442 = vmatprep.subr.bf16.mxu0 0
        %3443 = vmatpush1.bf16.msra.mxu0 0
        %3444 = vmatprep.subr.bf16.mxu0 0
        %3445 = vmatpush1.bf16.msra.mxu0 0
        %3446 = vmatprep.mubr.bf16.mxu0 0
        %3447 = vmatmul.mubr.bf16.gmra.mrb[0].mxu0 %v3397
        %v3448 = vpop.f32.mrb[0].mxu0
        %v3449 = vadd.f32 0.0, %v3448
        %v3450 = vpop.f32.mrb[0].mxu0
        %v3451 = vpop.f32.mrb[0].mxu0
        %v3452 = vadd.f32 0.0, %v3451
        %v3453 = vpop.f32.mrb[0].mxu0
        %3454 = vmatprep.mubr.bf16.mxu0 0
        %3455 = vmatmul.mubr.bf16.gmra.mrb[0].mxu0 %v3400
        %v3456 = vpop.f32.mrb[0].mxu0
        %v3457 = vadd.f32 0.0, %v3456
        %v3458 = vpop.f32.mrb[0].mxu0
        %v3459 = vpop.f32.mrb[0].mxu0
        %v3460 = vadd.f32 0.0, %v3459
        %v3461 = vpop.f32.mrb[0].mxu0
        %3462 = vmatprep.mubr.bf16.mxu0 0
        %3463 = vmatmul.mubr.bf16.gmra.mrb[0].mxu0 %v3403
        %v3464 = vpop.f32.mrb[0].mxu0
        %v3465 = vadd.f32 0.0, %v3464
        %v3466 = vpop.f32.mrb[0].mxu0
        %v3467 = vpop.f32.mrb[0].mxu0
        %v3468 = vadd.f32 0.0, %v3467
        %v3469 = vpop.f32.mrb[0].mxu0
        %3470 = vmatprep.mubr.bf16.mxu0 0
        %3471 = vmatmul.mubr.bf16.gmra.mrb[0].mxu0 %v3406
        %v3472 = vpop.f32.mrb[0].mxu0
        %v3473 = vadd.f32 0.0, %v3472
        %v3474 = vpop.f32.mrb[0].mxu0
        %v3475 = vpop.f32.mrb[0].mxu0
        %v3476 = vadd.f32 0.0, %v3475
        %v3477 = vpop.f32.mrb[0].mxu0
        %3478 = vmatprep.mubr.bf16.mxu0 0
        %3479 = vmatmul.mubr.bf16.gmra.mrb[0].mxu0 %v3409
        %v3480 = vpop.f32.mrb[0].mxu0
        %v3481 = vadd.f32 0.0, %v3480
        %v3482 = vpop.f32.mrb[0].mxu0
        %v3483 = vpop.f32.mrb[0].mxu0
        %v3484 = vadd.f32 0.0, %v3483
        %v3485 = vpop.f32.mrb[0].mxu0
        %3486 = vmatprep.mubr.bf16.mxu0 0
        %3487 = vmatmul.mubr.bf16.gmra.mrb[0].mxu0 %v3412
        %v3488 = vpop.f32.mrb[0].mxu0
        %v3489 = vadd.f32 0.0, %v3488
        %v3490 = vpop.f32.mrb[0].mxu0
        %v3491 = vpop.f32.mrb[0].mxu0
        %v3492 = vadd.f32 0.0, %v3491
        %v3493 = vpop.f32.mrb[0].mxu0
        %3494 = vdwg.mxu0
        %v3496 = vsel %vm470, %v2247, 0
        %v3499 = vsel %vm470, %v2248, 0
        %v3502 = vsel %vm470, %v2249, 0
        %v3505 = vsel %vm470, %v2250, 0
        %v3508 = vsel %vm470, %v2251, 0
        %v3511 = vsel %vm470, %v2252, 0
        %3513 = vmatprep.subr.bf16.mxu0 0
        %3514 = vmatpush1.bf16.msra.mxu0 %v2895
        %3515 = vmatprep.subr.bf16.mxu0 0
        %3516 = vmatpush1.bf16.msra.mxu0 0
        %3517 = vmatprep.subr.bf16.mxu0 0
        %3518 = vmatpush1.bf16.msra.mxu0 0
        %3519 = vmatprep.subr.bf16.mxu0 0
        %3520 = vmatpush1.bf16.msra.mxu0 0
        %3521 = vmatprep.subr.bf16.mxu0 0
        %3522 = vmatpush1.bf16.msra.mxu0 0
        %3523 = vmatprep.subr.bf16.mxu0 0
        %3524 = vmatpush1.bf16.msra.mxu0 0
        %3525 = vmatprep.subr.bf16.mxu0 0
        %3526 = vmatpush1.bf16.msra.mxu0 0
        %3527 = vmatprep.subr.bf16.mxu0 0
        %3528 = vmatpush1.bf16.msra.mxu0 0
        %3529 = vmatprep.subr.bf16.mxu0 0
        %3530 = vmatpush1.bf16.msra.mxu0 0
        %3531 = vmatprep.subr.bf16.mxu0 0
        %3532 = vmatpush1.bf16.msra.mxu0 0
        %3533 = vmatprep.subr.bf16.mxu0 0
        %3534 = vmatpush1.bf16.msra.mxu0 0
        %3535 = vmatprep.subr.bf16.mxu0 0
        %3536 = vmatpush1.bf16.msra.mxu0 0
        %3537 = vmatprep.subr.bf16.mxu0 0
        %3538 = vmatpush1.bf16.msra.mxu0 0
        %3539 = vmatprep.subr.bf16.mxu0 0
        %3540 = vmatpush1.bf16.msra.mxu0 0
        %3541 = vmatprep.subr.bf16.mxu0 0
        %3542 = vmatpush1.bf16.msra.mxu0 0
        %3543 = vmatprep.subr.bf16.mxu0 0
        %3544 = vmatpush1.bf16.msra.mxu0 0
        %3545 = vmatprep.mubr.bf16.mxu0 0
        %3546 = vmatmul.mubr.bf16.gmra.mrb[0].mxu0 %v3496
        %v3547 = vpop.f32.mrb[0].mxu0
        %v3548 = vadd.f32 0.0, %v3547
        %v3549 = vpop.f32.mrb[0].mxu0
        %v3550 = vpop.f32.mrb[0].mxu0
        %v3551 = vadd.f32 0.0, %v3550
        %v3552 = vpop.f32.mrb[0].mxu0
        %3553 = vmatprep.mubr.bf16.mxu0 0
        %3554 = vmatmul.mubr.bf16.gmra.mrb[0].mxu0 %v3499
        %v3555 = vpop.f32.mrb[0].mxu0
        %v3556 = vadd.f32 0.0, %v3555
        %v3557 = vpop.f32.mrb[0].mxu0
        %v3558 = vpop.f32.mrb[0].mxu0
        %v3559 = vadd.f32 0.0, %v3558
        %v3560 = vpop.f32.mrb[0].mxu0
        %3561 = vmatprep.mubr.bf16.mxu0 0
        %3562 = vmatmul.mubr.bf16.gmra.mrb[0].mxu0 %v3502
        %v3563 = vpop.f32.mrb[0].mxu0
        %v3564 = vadd.f32 0.0, %v3563
        %v3565 = vpop.f32.mrb[0].mxu0
        %v3566 = vpop.f32.mrb[0].mxu0
        %v3567 = vadd.f32 0.0, %v3566
        %v3568 = vpop.f32.mrb[0].mxu0
        %3569 = vmatprep.mubr.bf16.mxu0 0
        %3570 = vmatmul.mubr.bf16.gmra.mrb[0].mxu0 %v3505
        %v3571 = vpop.f32.mrb[0].mxu0
        %v3572 = vadd.f32 0.0, %v3571
        %v3573 = vpop.f32.mrb[0].mxu0
        %v3574 = vpop.f32.mrb[0].mxu0
        %v3575 = vadd.f32 0.0, %v3574
        %v3576 = vpop.f32.mrb[0].mxu0
        %3577 = vmatprep.mubr.bf16.mxu0 0
        %3578 = vmatmul.mubr.bf16.gmra.mrb[0].mxu0 %v3508
        %v3579 = vpop.f32.mrb[0].mxu0
        %v3580 = vadd.f32 0.0, %v3579
        %v3581 = vpop.f32.mrb[0].mxu0
        %v3582 = vpop.f32.mrb[0].mxu0
        %v3583 = vadd.f32 0.0, %v3582
        %v3584 = vpop.f32.mrb[0].mxu0
        %3585 = vmatprep.mubr.bf16.mxu0 0
        %3586 = vmatmul.mubr.bf16.gmra.mrb[0].mxu0 %v3511
        %v3587 = vpop.f32.mrb[0].mxu0
        %v3588 = vadd.f32 0.0, %v3587
        %v3589 = vpop.f32.mrb[0].mxu0
        %v3590 = vpop.f32.mrb[0].mxu0
        %v3591 = vadd.f32 0.0, %v3590
        %v3592 = vpop.f32.mrb[0].mxu0
        %3593 = vdwg.mxu0
        %v3595 = vsel %vm470, %v2253, 0
        %v3598 = vsel %vm470, %v2254, 0
        %v3601 = vsel %vm470, %v2255, 0
        %v3604 = vsel %vm470, %v2256, 0
        %v3607 = vsel %vm470, %v2257, 0
        %v3610 = vsel %vm470, %v2258, 0
        %3612 = vmatprep.subr.bf16.mxu0 0
        %3613 = vmatpush1.bf16.msra.mxu0 %v2899
        %3614 = vmatprep.subr.bf16.mxu0 0
        %3615 = vmatpush1.bf16.msra.mxu0 0
        %3616 = vmatprep.subr.bf16.mxu0 0
        %3617 = vmatpush1.bf16.msra.mxu0 0
        %3618 = vmatprep.subr.bf16.mxu0 0
        %3619 = vmatpush1.bf16.msra.mxu0 0
        %3620 = vmatprep.subr.bf16.mxu0 0
        %3621 = vmatpush1.bf16.msra.mxu0 0
        %3622 = vmatprep.subr.bf16.mxu0 0
        %3623 = vmatpush1.bf16.msra.mxu0 0
        %3624 = vmatprep.subr.bf16.mxu0 0
        %3625 = vmatpush1.bf16.msra.mxu0 0
        %3626 = vmatprep.subr.bf16.mxu0 0
        %3627 = vmatpush1.bf16.msra.mxu0 0
        %3628 = vmatprep.subr.bf16.mxu0 0
        %3629 = vmatpush1.bf16.msra.mxu0 0
        %3630 = vmatprep.subr.bf16.mxu0 0
        %3631 = vmatpush1.bf16.msra.mxu0 0
        %3632 = vmatprep.subr.bf16.mxu0 0
        %3633 = vmatpush1.bf16.msra.mxu0 0
        %3634 = vmatprep.subr.bf16.mxu0 0
        %3635 = vmatpush1.bf16.msra.mxu0 0
        %3636 = vmatprep.subr.bf16.mxu0 0
        %3637 = vmatpush1.bf16.msra.mxu0 0
        %3638 = vmatprep.subr.bf16.mxu0 0
        %3639 = vmatpush1.bf16.msra.mxu0 0
        %3640 = vmatprep.subr.bf16.mxu0 0
        %3641 = vmatpush1.bf16.msra.mxu0 0
        %3642 = vmatprep.subr.bf16.mxu0 0
        %3643 = vmatpush1.bf16.msra.mxu0 0
        %3644 = vmatprep.mubr.bf16.mxu0 0
        %3645 = vmatmul.mubr.bf16.gmra.mrb[0].mxu0 %v3595
        %v3646 = vpop.f32.mrb[0].mxu0
        %v3647 = vadd.f32 0.0, %v3646
        %v3648 = vpop.f32.mrb[0].mxu0
        %v3649 = vpop.f32.mrb[0].mxu0
        %v3650 = vadd.f32 0.0, %v3649
        %v3651 = vpop.f32.mrb[0].mxu0
        %3652 = vmatprep.mubr.bf16.mxu0 0
        %3653 = vmatmul.mubr.bf16.gmra.mrb[0].mxu0 %v3598
        %v3654 = vpop.f32.mrb[0].mxu0
        %v3655 = vadd.f32 0.0, %v3654
        %v3656 = vpop.f32.mrb[0].mxu0
        %v3657 = vpop.f32.mrb[0].mxu0
        %v3658 = vadd.f32 0.0, %v3657
        %v3659 = vpop.f32.mrb[0].mxu0
        %3660 = vmatprep.mubr.bf16.mxu0 0
        %3661 = vmatmul.mubr.bf16.gmra.mrb[0].mxu0 %v3601
        %v3662 = vpop.f32.mrb[0].mxu0
        %v3663 = vadd.f32 0.0, %v3662
        %v3664 = vpop.f32.mrb[0].mxu0
        %v3665 = vpop.f32.mrb[0].mxu0
        %v3666 = vadd.f32 0.0, %v3665
        %v3667 = vpop.f32.mrb[0].mxu0
        %3668 = vmatprep.mubr.bf16.mxu0 0
        %3669 = vmatmul.mubr.bf16.gmra.mrb[0].mxu0 %v3604
        %v3670 = vpop.f32.mrb[0].mxu0
        %v3671 = vadd.f32 0.0, %v3670
        %v3672 = vpop.f32.mrb[0].mxu0
        %v3673 = vpop.f32.mrb[0].mxu0
        %v3674 = vadd.f32 0.0, %v3673
        %v3675 = vpop.f32.mrb[0].mxu0
        %3676 = vmatprep.mubr.bf16.mxu0 0
        %3677 = vmatmul.mubr.bf16.gmra.mrb[0].mxu0 %v3607
        %v3678 = vpop.f32.mrb[0].mxu0
        %v3679 = vadd.f32 0.0, %v3678
        %v3680 = vpop.f32.mrb[0].mxu0
        %v3681 = vpop.f32.mrb[0].mxu0
        %v3682 = vadd.f32 0.0, %v3681
        %v3683 = vpop.f32.mrb[0].mxu0
        %3684 = vmatprep.mubr.bf16.mxu0 0
        %3685 = vmatmul.mubr.bf16.gmra.mrb[0].mxu0 %v3610
        %v3686 = vpop.f32.mrb[0].mxu0
        %v3687 = vadd.f32 0.0, %v3686
        %v3688 = vpop.f32.mrb[0].mxu0
        %v3689 = vpop.f32.mrb[0].mxu0
        %v3690 = vadd.f32 0.0, %v3689
        %v3691 = vpop.f32.mrb[0].mxu0
        %3692 = vdwg.mxu0
        %3693 = vxpose.xlu0.b32.start [1/16] %v2954, 128
        %3694 = vxpose.xlu0.b32.cont [2/16] %v2957, 128
        %3695 = vxpose.xlu0.b32.cont [3/16] 0.0, 128
        %3696 = vxpose.xlu0.b32.cont [4/16] 0.0, 128
        %3697 = vxpose.xlu0.b32.cont [5/16] 0.0, 128
        %3698 = vxpose.xlu0.b32.cont [6/16] 0.0, 128
        %3699 = vxpose.xlu0.b32.cont [7/16] 0.0, 128
        %3700 = vxpose.xlu0.b32.cont [8/16] 0.0, 128
        %3701 = vxpose.xlu0.b32.cont [9/16] 0.0, 128
        %3702 = vxpose.xlu0.b32.cont [10/16] 0.0, 128
        %3703 = vxpose.xlu0.b32.cont [11/16] 0.0, 128
        %3704 = vxpose.xlu0.b32.cont [12/16] 0.0, 128
        %3705 = vxpose.xlu0.b32.cont [13/16] 0.0, 128
        %3706 = vxpose.xlu0.b32.cont [14/16] 0.0, 128
        %3707 = vxpose.xlu0.b32.cont [15/16] 0.0, 128
        %3708 = vxpose.xlu0.b32.end [16/16] 0.0, 128
        %v3709 = vpop.trf.xlu0
        %v3710 = vpop.trf.xlu0
        %v3711 = vpop.trf.xlu0
        %v3712 = vpop.trf.xlu0
        %v3713 = vpop.trf.xlu0
        %v3714 = vpop.trf.xlu0
        %v3715 = vpop.trf.xlu0
        %v3716 = vpop.trf.xlu0
        %v3717 = vpop.trf.xlu0
        %v3718 = vpop.trf.xlu0
        %v3719 = vpop.trf.xlu0
        %v3720 = vpop.trf.xlu0
        %v3721 = vpop.trf.xlu0
        %v3722 = vpop.trf.xlu0
        %v3723 = vpop.trf.xlu0
        %v3724 = vpop.trf.xlu0
        %3725 = vxpose.xlu0.b32.start [1/16] %v2962, 128
        %3726 = vxpose.xlu0.b32.cont [2/16] %v2965, 128
        %3727 = vxpose.xlu0.b32.cont [3/16] 0.0, 128
        %3728 = vxpose.xlu0.b32.cont [4/16] 0.0, 128
        %3729 = vxpose.xlu0.b32.cont [5/16] 0.0, 128
        %3730 = vxpose.xlu0.b32.cont [6/16] 0.0, 128
        %3731 = vxpose.xlu0.b32.cont [7/16] 0.0, 128
        %3732 = vxpose.xlu0.b32.cont [8/16] 0.0, 128
        %3733 = vxpose.xlu0.b32.cont [9/16] 0.0, 128
        %3734 = vxpose.xlu0.b32.cont [10/16] 0.0, 128
        %3735 = vxpose.xlu0.b32.cont [11/16] 0.0, 128
        %3736 = vxpose.xlu0.b32.cont [12/16] 0.0, 128
        %3737 = vxpose.xlu0.b32.cont [13/16] 0.0, 128
        %3738 = vxpose.xlu0.b32.cont [14/16] 0.0, 128
        %3739 = vxpose.xlu0.b32.cont [15/16] 0.0, 128
        %3740 = vxpose.xlu0.b32.end [16/16] 0.0, 128
        %v3741 = vpop.trf.xlu0
        %v3742 = vpop.trf.xlu0
        %v3743 = vpop.trf.xlu0
        %v3744 = vpop.trf.xlu0
        %v3745 = vpop.trf.xlu0
        %v3746 = vpop.trf.xlu0
        %v3747 = vpop.trf.xlu0
        %v3748 = vpop.trf.xlu0
        %v3749 = vpop.trf.xlu0
        %v3750 = vpop.trf.xlu0
        %v3751 = vpop.trf.xlu0
        %v3752 = vpop.trf.xlu0
        %v3753 = vpop.trf.xlu0
        %v3754 = vpop.trf.xlu0
        %v3755 = vpop.trf.xlu0
        %v3756 = vpop.trf.xlu0
        %3757 = vxpose.xlu0.b32.start [1/16] %v2970, 128
        %3758 = vxpose.xlu0.b32.cont [2/16] %v2973, 128
        %3759 = vxpose.xlu0.b32.cont [3/16] 0.0, 128
        %3760 = vxpose.xlu0.b32.cont [4/16] 0.0, 128
        %3761 = vxpose.xlu0.b32.cont [5/16] 0.0, 128
        %3762 = vxpose.xlu0.b32.cont [6/16] 0.0, 128
        %3763 = vxpose.xlu0.b32.cont [7/16] 0.0, 128
        %3764 = vxpose.xlu0.b32.cont [8/16] 0.0, 128
        %3765 = vxpose.xlu0.b32.cont [9/16] 0.0, 128
        %3766 = vxpose.xlu0.b32.cont [10/16] 0.0, 128
        %3767 = vxpose.xlu0.b32.cont [11/16] 0.0, 128
        %3768 = vxpose.xlu0.b32.cont [12/16] 0.0, 128
        %3769 = vxpose.xlu0.b32.cont [13/16] 0.0, 128
        %3770 = vxpose.xlu0.b32.cont [14/16] 0.0, 128
        %3771 = vxpose.xlu0.b32.cont [15/16] 0.0, 128
        %3772 = vxpose.xlu0.b32.end [16/16] 0.0, 128
        %v3773 = vpop.trf.xlu0
        %v3774 = vpop.trf.xlu0
        %v3775 = vpop.trf.xlu0
        %v3776 = vpop.trf.xlu0
        %v3777 = vpop.trf.xlu0
        %v3778 = vpop.trf.xlu0
        %v3779 = vpop.trf.xlu0
        %v3780 = vpop.trf.xlu0
        %v3781 = vpop.trf.xlu0
        %v3782 = vpop.trf.xlu0
        %v3783 = vpop.trf.xlu0
        %v3784 = vpop.trf.xlu0
        %v3785 = vpop.trf.xlu0
        %v3786 = vpop.trf.xlu0
        %v3787 = vpop.trf.xlu0
        %v3788 = vpop.trf.xlu0
        %3789 = vxpose.xlu0.b32.start [1/16] %v2978, 128
        %3790 = vxpose.xlu0.b32.cont [2/16] %v2981, 128
        %3791 = vxpose.xlu0.b32.cont [3/16] 0.0, 128
        %3792 = vxpose.xlu0.b32.cont [4/16] 0.0, 128
        %3793 = vxpose.xlu0.b32.cont [5/16] 0.0, 128
        %3794 = vxpose.xlu0.b32.cont [6/16] 0.0, 128
        %3795 = vxpose.xlu0.b32.cont [7/16] 0.0, 128
        %3796 = vxpose.xlu0.b32.cont [8/16] 0.0, 128
        %3797 = vxpose.xlu0.b32.cont [9/16] 0.0, 128
        %3798 = vxpose.xlu0.b32.cont [10/16] 0.0, 128
        %3799 = vxpose.xlu0.b32.cont [11/16] 0.0, 128
        %3800 = vxpose.xlu0.b32.cont [12/16] 0.0, 128
        %3801 = vxpose.xlu0.b32.cont [13/16] 0.0, 128
        %3802 = vxpose.xlu0.b32.cont [14/16] 0.0, 128
        %3803 = vxpose.xlu0.b32.cont [15/16] 0.0, 128
        %3804 = vxpose.xlu0.b32.end [16/16] 0.0, 128
        %v3805 = vpop.trf.xlu0
        %v3806 = vpop.trf.xlu0
        %v3807 = vpop.trf.xlu0
        %v3808 = vpop.trf.xlu0
        %v3809 = vpop.trf.xlu0
        %v3810 = vpop.trf.xlu0
        %v3811 = vpop.trf.xlu0
        %v3812 = vpop.trf.xlu0
        %v3813 = vpop.trf.xlu0
        %v3814 = vpop.trf.xlu0
        %v3815 = vpop.trf.xlu0
        %v3816 = vpop.trf.xlu0
        %v3817 = vpop.trf.xlu0
        %v3818 = vpop.trf.xlu0
        %v3819 = vpop.trf.xlu0
        %v3820 = vpop.trf.xlu0
        %3821 = vxpose.xlu0.b32.start [1/16] %v2986, 128
        %3822 = vxpose.xlu0.b32.cont [2/16] %v2989, 128
        %3823 = vxpose.xlu0.b32.cont [3/16] 0.0, 128
        %3824 = vxpose.xlu0.b32.cont [4/16] 0.0, 128
        %3825 = vxpose.xlu0.b32.cont [5/16] 0.0, 128
        %3826 = vxpose.xlu0.b32.cont [6/16] 0.0, 128
        %3827 = vxpose.xlu0.b32.cont [7/16] 0.0, 128
        %3828 = vxpose.xlu0.b32.cont [8/16] 0.0, 128
        %3829 = vxpose.xlu0.b32.cont [9/16] 0.0, 128
        %3830 = vxpose.xlu0.b32.cont [10/16] 0.0, 128
        %3831 = vxpose.xlu0.b32.cont [11/16] 0.0, 128
        %3832 = vxpose.xlu0.b32.cont [12/16] 0.0, 128
        %3833 = vxpose.xlu0.b32.cont [13/16] 0.0, 128
        %3834 = vxpose.xlu0.b32.cont [14/16] 0.0, 128
        %3835 = vxpose.xlu0.b32.cont [15/16] 0.0, 128
        %3836 = vxpose.xlu0.b32.end [16/16] 0.0, 128
        %v3837 = vpop.trf.xlu0
        %v3838 = vpop.trf.xlu0
        %v3839 = vpop.trf.xlu0
        %v3840 = vpop.trf.xlu0
        %v3841 = vpop.trf.xlu0
        %v3842 = vpop.trf.xlu0
        %v3843 = vpop.trf.xlu0
        %v3844 = vpop.trf.xlu0
        %v3845 = vpop.trf.xlu0
        %v3846 = vpop.trf.xlu0
        %v3847 = vpop.trf.xlu0
        %v3848 = vpop.trf.xlu0
        %v3849 = vpop.trf.xlu0
        %v3850 = vpop.trf.xlu0
        %v3851 = vpop.trf.xlu0
        %v3852 = vpop.trf.xlu0
        %3853 = vxpose.xlu0.b32.start [1/16] %v2994, 128
        %3854 = vxpose.xlu0.b32.cont [2/16] %v2997, 128
        %3855 = vxpose.xlu0.b32.cont [3/16] 0.0, 128
        %3856 = vxpose.xlu0.b32.cont [4/16] 0.0, 128
        %3857 = vxpose.xlu0.b32.cont [5/16] 0.0, 128
        %3858 = vxpose.xlu0.b32.cont [6/16] 0.0, 128
        %3859 = vxpose.xlu0.b32.cont [7/16] 0.0, 128
        %3860 = vxpose.xlu0.b32.cont [8/16] 0.0, 128
        %3861 = vxpose.xlu0.b32.cont [9/16] 0.0, 128
        %3862 = vxpose.xlu0.b32.cont [10/16] 0.0, 128
        %3863 = vxpose.xlu0.b32.cont [11/16] 0.0, 128
        %3864 = vxpose.xlu0.b32.cont [12/16] 0.0, 128
        %3865 = vxpose.xlu0.b32.cont [13/16] 0.0, 128
        %3866 = vxpose.xlu0.b32.cont [14/16] 0.0, 128
        %3867 = vxpose.xlu0.b32.cont [15/16] 0.0, 128
        %3868 = vxpose.xlu0.b32.end [16/16] 0.0, 128
        %v3869 = vpop.trf.xlu0
        %v3870 = vpop.trf.xlu0
        %v3871 = vpop.trf.xlu0
        %v3872 = vpop.trf.xlu0
        %v3873 = vpop.trf.xlu0
        %v3874 = vpop.trf.xlu0
        %v3875 = vpop.trf.xlu0
        %v3876 = vpop.trf.xlu0
        %v3877 = vpop.trf.xlu0
        %v3878 = vpop.trf.xlu0
        %v3879 = vpop.trf.xlu0
        %v3880 = vpop.trf.xlu0
        %v3881 = vpop.trf.xlu0
        %v3882 = vpop.trf.xlu0
        %v3883 = vpop.trf.xlu0
        %v3884 = vpop.trf.xlu0
        %3885 = vxpose.xlu0.b32.start [1/16] %v3053, 128
        %3886 = vxpose.xlu0.b32.cont [2/16] %v3056, 128
        %3887 = vxpose.xlu0.b32.cont [3/16] 0.0, 128
        %3888 = vxpose.xlu0.b32.cont [4/16] 0.0, 128
        %3889 = vxpose.xlu0.b32.cont [5/16] 0.0, 128
        %3890 = vxpose.xlu0.b32.cont [6/16] 0.0, 128
        %3891 = vxpose.xlu0.b32.cont [7/16] 0.0, 128
        %3892 = vxpose.xlu0.b32.cont [8/16] 0.0, 128
        %3893 = vxpose.xlu0.b32.cont [9/16] 0.0, 128
        %3894 = vxpose.xlu0.b32.cont [10/16] 0.0, 128
        %3895 = vxpose.xlu0.b32.cont [11/16] 0.0, 128
        %3896 = vxpose.xlu0.b32.cont [12/16] 0.0, 128
        %3897 = vxpose.xlu0.b32.cont [13/16] 0.0, 128
        %3898 = vxpose.xlu0.b32.cont [14/16] 0.0, 128
        %3899 = vxpose.xlu0.b32.cont [15/16] 0.0, 128
        %3900 = vxpose.xlu0.b32.end [16/16] 0.0, 128
        %v3901 = vpop.trf.xlu0
        %v3902 = vpop.trf.xlu0
        %v3903 = vpop.trf.xlu0
        %v3904 = vpop.trf.xlu0
        %v3905 = vpop.trf.xlu0
        %v3906 = vpop.trf.xlu0
        %v3907 = vpop.trf.xlu0
        %v3908 = vpop.trf.xlu0
        %v3909 = vpop.trf.xlu0
        %v3910 = vpop.trf.xlu0
        %v3911 = vpop.trf.xlu0
        %v3912 = vpop.trf.xlu0
        %v3913 = vpop.trf.xlu0
        %v3914 = vpop.trf.xlu0
        %v3915 = vpop.trf.xlu0
        %v3916 = vpop.trf.xlu0
        %3917 = vxpose.xlu0.b32.start [1/16] %v3061, 128
        %3918 = vxpose.xlu0.b32.cont [2/16] %v3064, 128
        %3919 = vxpose.xlu0.b32.cont [3/16] 0.0, 128
        %3920 = vxpose.xlu0.b32.cont [4/16] 0.0, 128
        %3921 = vxpose.xlu0.b32.cont [5/16] 0.0, 128
        %3922 = vxpose.xlu0.b32.cont [6/16] 0.0, 128
        %3923 = vxpose.xlu0.b32.cont [7/16] 0.0, 128
        %3924 = vxpose.xlu0.b32.cont [8/16] 0.0, 128
        %3925 = vxpose.xlu0.b32.cont [9/16] 0.0, 128
        %3926 = vxpose.xlu0.b32.cont [10/16] 0.0, 128
        %3927 = vxpose.xlu0.b32.cont [11/16] 0.0, 128
        %3928 = vxpose.xlu0.b32.cont [12/16] 0.0, 128
        %3929 = vxpose.xlu0.b32.cont [13/16] 0.0, 128
        %3930 = vxpose.xlu0.b32.cont [14/16] 0.0, 128
        %3931 = vxpose.xlu0.b32.cont [15/16] 0.0, 128
        %3932 = vxpose.xlu0.b32.end [16/16] 0.0, 128
        %v3933 = vpop.trf.xlu0
        %v3934 = vpop.trf.xlu0
        %v3935 = vpop.trf.xlu0
        %v3936 = vpop.trf.xlu0
        %v3937 = vpop.trf.xlu0
        %v3938 = vpop.trf.xlu0
        %v3939 = vpop.trf.xlu0
        %v3940 = vpop.trf.xlu0
        %v3941 = vpop.trf.xlu0
        %v3942 = vpop.trf.xlu0
        %v3943 = vpop.trf.xlu0
        %v3944 = vpop.trf.xlu0
        %v3945 = vpop.trf.xlu0
        %v3946 = vpop.trf.xlu0
        %v3947 = vpop.trf.xlu0
        %v3948 = vpop.trf.xlu0
        %3949 = vxpose.xlu0.b32.start [1/16] %v3069, 128
        %3950 = vxpose.xlu0.b32.cont [2/16] %v3072, 128
        %3951 = vxpose.xlu0.b32.cont [3/16] 0.0, 128
        %3952 = vxpose.xlu0.b32.cont [4/16] 0.0, 128
        %3953 = vxpose.xlu0.b32.cont [5/16] 0.0, 128
        %3954 = vxpose.xlu0.b32.cont [6/16] 0.0, 128
        %3955 = vxpose.xlu0.b32.cont [7/16] 0.0, 128
        %3956 = vxpose.xlu0.b32.cont [8/16] 0.0, 128
        %3957 = vxpose.xlu0.b32.cont [9/16] 0.0, 128
        %3958 = vxpose.xlu0.b32.cont [10/16] 0.0, 128
        %3959 = vxpose.xlu0.b32.cont [11/16] 0.0, 128
        %3960 = vxpose.xlu0.b32.cont [12/16] 0.0, 128
        %3961 = vxpose.xlu0.b32.cont [13/16] 0.0, 128
        %3962 = vxpose.xlu0.b32.cont [14/16] 0.0, 128
        %3963 = vxpose.xlu0.b32.cont [15/16] 0.0, 128
        %3964 = vxpose.xlu0.b32.end [16/16] 0.0, 128
        %v3965 = vpop.trf.xlu0
        %v3966 = vpop.trf.xlu0
        %v3967 = vpop.trf.xlu0
        %v3968 = vpop.trf.xlu0
        %v3969 = vpop.trf.xlu0
        %v3970 = vpop.trf.xlu0
        %v3971 = vpop.trf.xlu0
        %v3972 = vpop.trf.xlu0
        %v3973 = vpop.trf.xlu0
        %v3974 = vpop.trf.xlu0
        %v3975 = vpop.trf.xlu0
        %v3976 = vpop.trf.xlu0
        %v3977 = vpop.trf.xlu0
        %v3978 = vpop.trf.xlu0
        %v3979 = vpop.trf.xlu0
        %v3980 = vpop.trf.xlu0
        %3981 = vxpose.xlu0.b32.start [1/16] %v3077, 128
        %3982 = vxpose.xlu0.b32.cont [2/16] %v3080, 128
        %3983 = vxpose.xlu0.b32.cont [3/16] 0.0, 128
        %3984 = vxpose.xlu0.b32.cont [4/16] 0.0, 128
        %3985 = vxpose.xlu0.b32.cont [5/16] 0.0, 128
        %3986 = vxpose.xlu0.b32.cont [6/16] 0.0, 128
        %3987 = vxpose.xlu0.b32.cont [7/16] 0.0, 128
        %3988 = vxpose.xlu0.b32.cont [8/16] 0.0, 128
        %3989 = vxpose.xlu0.b32.cont [9/16] 0.0, 128
        %3990 = vxpose.xlu0.b32.cont [10/16] 0.0, 128
        %3991 = vxpose.xlu0.b32.cont [11/16] 0.0, 128
        %3992 = vxpose.xlu0.b32.cont [12/16] 0.0, 128
        %3993 = vxpose.xlu0.b32.cont [13/16] 0.0, 128
        %3994 = vxpose.xlu0.b32.cont [14/16] 0.0, 128
        %3995 = vxpose.xlu0.b32.cont [15/16] 0.0, 128
        %3996 = vxpose.xlu0.b32.end [16/16] 0.0, 128
        %v3997 = vpop.trf.xlu0
        %v3998 = vpop.trf.xlu0
        %v3999 = vpop.trf.xlu0
        %v4000 = vpop.trf.xlu0
        %v4001 = vpop.trf.xlu0
        %v4002 = vpop.trf.xlu0
        %v4003 = vpop.trf.xlu0
        %v4004 = vpop.trf.xlu0
        %v4005 = vpop.trf.xlu0
        %v4006 = vpop.trf.xlu0
        %v4007 = vpop.trf.xlu0
        %v4008 = vpop.trf.xlu0
        %v4009 = vpop.trf.xlu0
        %v4010 = vpop.trf.xlu0
        %v4011 = vpop.trf.xlu0
        %v4012 = vpop.trf.xlu0
        %4013 = vxpose.xlu0.b32.start [1/16] %v3085, 128
        %4014 = vxpose.xlu0.b32.cont [2/16] %v3088, 128
        %4015 = vxpose.xlu0.b32.cont [3/16] 0.0, 128
        %4016 = vxpose.xlu0.b32.cont [4/16] 0.0, 128
        %4017 = vxpose.xlu0.b32.cont [5/16] 0.0, 128
        %4018 = vxpose.xlu0.b32.cont [6/16] 0.0, 128
        %4019 = vxpose.xlu0.b32.cont [7/16] 0.0, 128
        %4020 = vxpose.xlu0.b32.cont [8/16] 0.0, 128
        %4021 = vxpose.xlu0.b32.cont [9/16] 0.0, 128
        %4022 = vxpose.xlu0.b32.cont [10/16] 0.0, 128
        %4023 = vxpose.xlu0.b32.cont [11/16] 0.0, 128
        %4024 = vxpose.xlu0.b32.cont [12/16] 0.0, 128
        %4025 = vxpose.xlu0.b32.cont [13/16] 0.0, 128
        %4026 = vxpose.xlu0.b32.cont [14/16] 0.0, 128
        %4027 = vxpose.xlu0.b32.cont [15/16] 0.0, 128
        %4028 = vxpose.xlu0.b32.end [16/16] 0.0, 128
        %v4029 = vpop.trf.xlu0
        %v4030 = vpop.trf.xlu0
        %v4031 = vpop.trf.xlu0
        %v4032 = vpop.trf.xlu0
        %v4033 = vpop.trf.xlu0
        %v4034 = vpop.trf.xlu0
        %v4035 = vpop.trf.xlu0
        %v4036 = vpop.trf.xlu0
        %v4037 = vpop.trf.xlu0
        %v4038 = vpop.trf.xlu0
        %v4039 = vpop.trf.xlu0
        %v4040 = vpop.trf.xlu0
        %v4041 = vpop.trf.xlu0
        %v4042 = vpop.trf.xlu0
        %v4043 = vpop.trf.xlu0
        %v4044 = vpop.trf.xlu0
        %4045 = vxpose.xlu0.b32.start [1/16] %v3093, 128
        %4046 = vxpose.xlu0.b32.cont [2/16] %v3096, 128
        %4047 = vxpose.xlu0.b32.cont [3/16] 0.0, 128
        %4048 = vxpose.xlu0.b32.cont [4/16] 0.0, 128
        %4049 = vxpose.xlu0.b32.cont [5/16] 0.0, 128
        %4050 = vxpose.xlu0.b32.cont [6/16] 0.0, 128
        %4051 = vxpose.xlu0.b32.cont [7/16] 0.0, 128
        %4052 = vxpose.xlu0.b32.cont [8/16] 0.0, 128
        %4053 = vxpose.xlu0.b32.cont [9/16] 0.0, 128
        %4054 = vxpose.xlu0.b32.cont [10/16] 0.0, 128
        %4055 = vxpose.xlu0.b32.cont [11/16] 0.0, 128
        %4056 = vxpose.xlu0.b32.cont [12/16] 0.0, 128
        %4057 = vxpose.xlu0.b32.cont [13/16] 0.0, 128
        %4058 = vxpose.xlu0.b32.cont [14/16] 0.0, 128
        %4059 = vxpose.xlu0.b32.cont [15/16] 0.0, 128
        %4060 = vxpose.xlu0.b32.end [16/16] 0.0, 128
        %v4061 = vpop.trf.xlu0
        %v4062 = vpop.trf.xlu0
        %v4063 = vpop.trf.xlu0
        %v4064 = vpop.trf.xlu0
        %v4065 = vpop.trf.xlu0
        %v4066 = vpop.trf.xlu0
        %v4067 = vpop.trf.xlu0
        %v4068 = vpop.trf.xlu0
        %v4069 = vpop.trf.xlu0
        %v4070 = vpop.trf.xlu0
        %v4071 = vpop.trf.xlu0
        %v4072 = vpop.trf.xlu0
        %v4073 = vpop.trf.xlu0
        %v4074 = vpop.trf.xlu0
        %v4075 = vpop.trf.xlu0
        %v4076 = vpop.trf.xlu0
        %4077 = vxpose.xlu0.b32.start [1/16] %v3152, 128
        %4078 = vxpose.xlu0.b32.cont [2/16] %v3155, 128
        %4079 = vxpose.xlu0.b32.cont [3/16] 0.0, 128
        %4080 = vxpose.xlu0.b32.cont [4/16] 0.0, 128
        %4081 = vxpose.xlu0.b32.cont [5/16] 0.0, 128
        %4082 = vxpose.xlu0.b32.cont [6/16] 0.0, 128
        %4083 = vxpose.xlu0.b32.cont [7/16] 0.0, 128
        %4084 = vxpose.xlu0.b32.cont [8/16] 0.0, 128
        %4085 = vxpose.xlu0.b32.cont [9/16] 0.0, 128
        %4086 = vxpose.xlu0.b32.cont [10/16] 0.0, 128
        %4087 = vxpose.xlu0.b32.cont [11/16] 0.0, 128
        %4088 = vxpose.xlu0.b32.cont [12/16] 0.0, 128
        %4089 = vxpose.xlu0.b32.cont [13/16] 0.0, 128
        %4090 = vxpose.xlu0.b32.cont [14/16] 0.0, 128
        %4091 = vxpose.xlu0.b32.cont [15/16] 0.0, 128
        %4092 = vxpose.xlu0.b32.end [16/16] 0.0, 128
        %v4093 = vpop.trf.xlu0
        %v4094 = vpop.trf.xlu0
        %v4095 = vpop.trf.xlu0
        %v4096 = vpop.trf.xlu0
        %v4097 = vpop.trf.xlu0
        %v4098 = vpop.trf.xlu0
        %v4099 = vpop.trf.xlu0
        %v4100 = vpop.trf.xlu0
        %v4101 = vpop.trf.xlu0
        %v4102 = vpop.trf.xlu0
        %v4103 = vpop.trf.xlu0
        %v4104 = vpop.trf.xlu0
        %v4105 = vpop.trf.xlu0
        %v4106 = vpop.trf.xlu0
        %v4107 = vpop.trf.xlu0
        %v4108 = vpop.trf.xlu0
        %4109 = vxpose.xlu0.b32.start [1/16] %v3160, 128
        %4110 = vxpose.xlu0.b32.cont [2/16] %v3163, 128
        %4111 = vxpose.xlu0.b32.cont [3/16] 0.0, 128
        %4112 = vxpose.xlu0.b32.cont [4/16] 0.0, 128
        %4113 = vxpose.xlu0.b32.cont [5/16] 0.0, 128
        %4114 = vxpose.xlu0.b32.cont [6/16] 0.0, 128
        %4115 = vxpose.xlu0.b32.cont [7/16] 0.0, 128
        %4116 = vxpose.xlu0.b32.cont [8/16] 0.0, 128
        %4117 = vxpose.xlu0.b32.cont [9/16] 0.0, 128
        %4118 = vxpose.xlu0.b32.cont [10/16] 0.0, 128
        %4119 = vxpose.xlu0.b32.cont [11/16] 0.0, 128
        %4120 = vxpose.xlu0.b32.cont [12/16] 0.0, 128
        %4121 = vxpose.xlu0.b32.cont [13/16] 0.0, 128
        %4122 = vxpose.xlu0.b32.cont [14/16] 0.0, 128
        %4123 = vxpose.xlu0.b32.cont [15/16] 0.0, 128
        %4124 = vxpose.xlu0.b32.end [16/16] 0.0, 128
        %v4125 = vpop.trf.xlu0
        %v4126 = vpop.trf.xlu0
        %v4127 = vpop.trf.xlu0
        %v4128 = vpop.trf.xlu0
        %v4129 = vpop.trf.xlu0
        %v4130 = vpop.trf.xlu0
        %v4131 = vpop.trf.xlu0
        %v4132 = vpop.trf.xlu0
        %v4133 = vpop.trf.xlu0
        %v4134 = vpop.trf.xlu0
        %v4135 = vpop.trf.xlu0
        %v4136 = vpop.trf.xlu0
        %v4137 = vpop.trf.xlu0
        %v4138 = vpop.trf.xlu0
        %v4139 = vpop.trf.xlu0
        %v4140 = vpop.trf.xlu0
        %4141 = vxpose.xlu0.b32.start [1/16] %v3168, 128
        %4142 = vxpose.xlu0.b32.cont [2/16] %v3171, 128
        %4143 = vxpose.xlu0.b32.cont [3/16] 0.0, 128
        %4144 = vxpose.xlu0.b32.cont [4/16] 0.0, 128
        %4145 = vxpose.xlu0.b32.cont [5/16] 0.0, 128
        %4146 = vxpose.xlu0.b32.cont [6/16] 0.0, 128
        %4147 = vxpose.xlu0.b32.cont [7/16] 0.0, 128
        %4148 = vxpose.xlu0.b32.cont [8/16] 0.0, 128
        %4149 = vxpose.xlu0.b32.cont [9/16] 0.0, 128
        %4150 = vxpose.xlu0.b32.cont [10/16] 0.0, 128
        %4151 = vxpose.xlu0.b32.cont [11/16] 0.0, 128
        %4152 = vxpose.xlu0.b32.cont [12/16] 0.0, 128
        %4153 = vxpose.xlu0.b32.cont [13/16] 0.0, 128
        %4154 = vxpose.xlu0.b32.cont [14/16] 0.0, 128
        %4155 = vxpose.xlu0.b32.cont [15/16] 0.0, 128
        %4156 = vxpose.xlu0.b32.end [16/16] 0.0, 128
        %v4157 = vpop.trf.xlu0
        %v4158 = vpop.trf.xlu0
        %v4159 = vpop.trf.xlu0
        %v4160 = vpop.trf.xlu0
        %v4161 = vpop.trf.xlu0
        %v4162 = vpop.trf.xlu0
        %v4163 = vpop.trf.xlu0
        %v4164 = vpop.trf.xlu0
        %v4165 = vpop.trf.xlu0
        %v4166 = vpop.trf.xlu0
        %v4167 = vpop.trf.xlu0
        %v4168 = vpop.trf.xlu0
        %v4169 = vpop.trf.xlu0
        %v4170 = vpop.trf.xlu0
        %v4171 = vpop.trf.xlu0
        %v4172 = vpop.trf.xlu0
        %4173 = vxpose.xlu0.b32.start [1/16] %v3176, 128
        %4174 = vxpose.xlu0.b32.cont [2/16] %v3179, 128
        %4175 = vxpose.xlu0.b32.cont [3/16] 0.0, 128
        %4176 = vxpose.xlu0.b32.cont [4/16] 0.0, 128
        %4177 = vxpose.xlu0.b32.cont [5/16] 0.0, 128
        %4178 = vxpose.xlu0.b32.cont [6/16] 0.0, 128
        %4179 = vxpose.xlu0.b32.cont [7/16] 0.0, 128
        %4180 = vxpose.xlu0.b32.cont [8/16] 0.0, 128
        %4181 = vxpose.xlu0.b32.cont [9/16] 0.0, 128
        %4182 = vxpose.xlu0.b32.cont [10/16] 0.0, 128
        %4183 = vxpose.xlu0.b32.cont [11/16] 0.0, 128
        %4184 = vxpose.xlu0.b32.cont [12/16] 0.0, 128
        %4185 = vxpose.xlu0.b32.cont [13/16] 0.0, 128
        %4186 = vxpose.xlu0.b32.cont [14/16] 0.0, 128
        %4187 = vxpose.xlu0.b32.cont [15/16] 0.0, 128
        %4188 = vxpose.xlu0.b32.end [16/16] 0.0, 128
        %v4189 = vpop.trf.xlu0
        %v4190 = vpop.trf.xlu0
        %v4191 = vpop.trf.xlu0
        %v4192 = vpop.trf.xlu0
        %v4193 = vpop.trf.xlu0
        %v4194 = vpop.trf.xlu0
        %v4195 = vpop.trf.xlu0
        %v4196 = vpop.trf.xlu0
        %v4197 = vpop.trf.xlu0
        %v4198 = vpop.trf.xlu0
        %v4199 = vpop.trf.xlu0
        %v4200 = vpop.trf.xlu0
        %v4201 = vpop.trf.xlu0
        %v4202 = vpop.trf.xlu0
        %v4203 = vpop.trf.xlu0
        %v4204 = vpop.trf.xlu0
        %4205 = vxpose.xlu0.b32.start [1/16] %v3184, 128
        %4206 = vxpose.xlu0.b32.cont [2/16] %v3187, 128
        %4207 = vxpose.xlu0.b32.cont [3/16] 0.0, 128
        %4208 = vxpose.xlu0.b32.cont [4/16] 0.0, 128
        %4209 = vxpose.xlu0.b32.cont [5/16] 0.0, 128
        %4210 = vxpose.xlu0.b32.cont [6/16] 0.0, 128
        %4211 = vxpose.xlu0.b32.cont [7/16] 0.0, 128
        %4212 = vxpose.xlu0.b32.cont [8/16] 0.0, 128
        %4213 = vxpose.xlu0.b32.cont [9/16] 0.0, 128
        %4214 = vxpose.xlu0.b32.cont [10/16] 0.0, 128
        %4215 = vxpose.xlu0.b32.cont [11/16] 0.0, 128
        %4216 = vxpose.xlu0.b32.cont [12/16] 0.0, 128
        %4217 = vxpose.xlu0.b32.cont [13/16] 0.0, 128
        %4218 = vxpose.xlu0.b32.cont [14/16] 0.0, 128
        %4219 = vxpose.xlu0.b32.cont [15/16] 0.0, 128
        %4220 = vxpose.xlu0.b32.end [16/16] 0.0, 128
        %v4221 = vpop.trf.xlu0
        %v4222 = vpop.trf.xlu0
        %v4223 = vpop.trf.xlu0
        %v4224 = vpop.trf.xlu0
        %v4225 = vpop.trf.xlu0
        %v4226 = vpop.trf.xlu0
        %v4227 = vpop.trf.xlu0
        %v4228 = vpop.trf.xlu0
        %v4229 = vpop.trf.xlu0
        %v4230 = vpop.trf.xlu0
        %v4231 = vpop.trf.xlu0
        %v4232 = vpop.trf.xlu0
        %v4233 = vpop.trf.xlu0
        %v4234 = vpop.trf.xlu0
        %v4235 = vpop.trf.xlu0
        %v4236 = vpop.trf.xlu0
        %4237 = vxpose.xlu0.b32.start [1/16] %v3192, 128
        %4238 = vxpose.xlu0.b32.cont [2/16] %v3195, 128
        %4239 = vxpose.xlu0.b32.cont [3/16] 0.0, 128
        %4240 = vxpose.xlu0.b32.cont [4/16] 0.0, 128
        %4241 = vxpose.xlu0.b32.cont [5/16] 0.0, 128
        %4242 = vxpose.xlu0.b32.cont [6/16] 0.0, 128
        %4243 = vxpose.xlu0.b32.cont [7/16] 0.0, 128
        %4244 = vxpose.xlu0.b32.cont [8/16] 0.0, 128
        %4245 = vxpose.xlu0.b32.cont [9/16] 0.0, 128
        %4246 = vxpose.xlu0.b32.cont [10/16] 0.0, 128
        %4247 = vxpose.xlu0.b32.cont [11/16] 0.0, 128
        %4248 = vxpose.xlu0.b32.cont [12/16] 0.0, 128
        %4249 = vxpose.xlu0.b32.cont [13/16] 0.0, 128
        %4250 = vxpose.xlu0.b32.cont [14/16] 0.0, 128
        %4251 = vxpose.xlu0.b32.cont [15/16] 0.0, 128
        %4252 = vxpose.xlu0.b32.end [16/16] 0.0, 128
        %v4253 = vpop.trf.xlu0
        %v4254 = vpop.trf.xlu0
        %v4255 = vpop.trf.xlu0
        %v4256 = vpop.trf.xlu0
        %v4257 = vpop.trf.xlu0
        %v4258 = vpop.trf.xlu0
        %v4259 = vpop.trf.xlu0
        %v4260 = vpop.trf.xlu0
        %v4261 = vpop.trf.xlu0
        %v4262 = vpop.trf.xlu0
        %v4263 = vpop.trf.xlu0
        %v4264 = vpop.trf.xlu0
        %v4265 = vpop.trf.xlu0
        %v4266 = vpop.trf.xlu0
        %v4267 = vpop.trf.xlu0
        %v4268 = vpop.trf.xlu0
        %4269 = vxpose.xlu0.b32.start [1/16] %v3251, 128
        %4270 = vxpose.xlu0.b32.cont [2/16] %v3254, 128
        %4271 = vxpose.xlu0.b32.cont [3/16] 0.0, 128
        %4272 = vxpose.xlu0.b32.cont [4/16] 0.0, 128
        %4273 = vxpose.xlu0.b32.cont [5/16] 0.0, 128
        %4274 = vxpose.xlu0.b32.cont [6/16] 0.0, 128
        %4275 = vxpose.xlu0.b32.cont [7/16] 0.0, 128
        %4276 = vxpose.xlu0.b32.cont [8/16] 0.0, 128
        %4277 = vxpose.xlu0.b32.cont [9/16] 0.0, 128
        %4278 = vxpose.xlu0.b32.cont [10/16] 0.0, 128
        %4279 = vxpose.xlu0.b32.cont [11/16] 0.0, 128
        %4280 = vxpose.xlu0.b32.cont [12/16] 0.0, 128
        %4281 = vxpose.xlu0.b32.cont [13/16] 0.0, 128
        %4282 = vxpose.xlu0.b32.cont [14/16] 0.0, 128
        %4283 = vxpose.xlu0.b32.cont [15/16] 0.0, 128
        %4284 = vxpose.xlu0.b32.end [16/16] 0.0, 128
        %v4285 = vpop.trf.xlu0
        %v4286 = vpop.trf.xlu0
        %v4287 = vpop.trf.xlu0
        %v4288 = vpop.trf.xlu0
        %v4289 = vpop.trf.xlu0
        %v4290 = vpop.trf.xlu0
        %v4291 = vpop.trf.xlu0
        %v4292 = vpop.trf.xlu0
        %v4293 = vpop.trf.xlu0
        %v4294 = vpop.trf.xlu0
        %v4295 = vpop.trf.xlu0
        %v4296 = vpop.trf.xlu0
        %v4297 = vpop.trf.xlu0
        %v4298 = vpop.trf.xlu0
        %v4299 = vpop.trf.xlu0
        %v4300 = vpop.trf.xlu0
        %4301 = vxpose.xlu0.b32.start [1/16] %v3259, 128
        %4302 = vxpose.xlu0.b32.cont [2/16] %v3262, 128
        %4303 = vxpose.xlu0.b32.cont [3/16] 0.0, 128
        %4304 = vxpose.xlu0.b32.cont [4/16] 0.0, 128
        %4305 = vxpose.xlu0.b32.cont [5/16] 0.0, 128
        %4306 = vxpose.xlu0.b32.cont [6/16] 0.0, 128
        %4307 = vxpose.xlu0.b32.cont [7/16] 0.0, 128
        %4308 = vxpose.xlu0.b32.cont [8/16] 0.0, 128
        %4309 = vxpose.xlu0.b32.cont [9/16] 0.0, 128
        %4310 = vxpose.xlu0.b32.cont [10/16] 0.0, 128
        %4311 = vxpose.xlu0.b32.cont [11/16] 0.0, 128
        %4312 = vxpose.xlu0.b32.cont [12/16] 0.0, 128
        %4313 = vxpose.xlu0.b32.cont [13/16] 0.0, 128
        %4314 = vxpose.xlu0.b32.cont [14/16] 0.0, 128
        %4315 = vxpose.xlu0.b32.cont [15/16] 0.0, 128
        %4316 = vxpose.xlu0.b32.end [16/16] 0.0, 128
        %v4317 = vpop.trf.xlu0
        %v4318 = vpop.trf.xlu0
        %v4319 = vpop.trf.xlu0
        %v4320 = vpop.trf.xlu0
        %v4321 = vpop.trf.xlu0
        %v4322 = vpop.trf.xlu0
        %v4323 = vpop.trf.xlu0
        %v4324 = vpop.trf.xlu0
        %v4325 = vpop.trf.xlu0
        %v4326 = vpop.trf.xlu0
        %v4327 = vpop.trf.xlu0
        %v4328 = vpop.trf.xlu0
        %v4329 = vpop.trf.xlu0
        %v4330 = vpop.trf.xlu0
        %v4331 = vpop.trf.xlu0
        %v4332 = vpop.trf.xlu0
        %4333 = vxpose.xlu0.b32.start [1/16] %v3267, 128
        %4334 = vxpose.xlu0.b32.cont [2/16] %v3270, 128
        %4335 = vxpose.xlu0.b32.cont [3/16] 0.0, 128
        %4336 = vxpose.xlu0.b32.cont [4/16] 0.0, 128
        %4337 = vxpose.xlu0.b32.cont [5/16] 0.0, 128
        %4338 = vxpose.xlu0.b32.cont [6/16] 0.0, 128
        %4339 = vxpose.xlu0.b32.cont [7/16] 0.0, 128
        %4340 = vxpose.xlu0.b32.cont [8/16] 0.0, 128
        %4341 = vxpose.xlu0.b32.cont [9/16] 0.0, 128
        %4342 = vxpose.xlu0.b32.cont [10/16] 0.0, 128
        %4343 = vxpose.xlu0.b32.cont [11/16] 0.0, 128
        %4344 = vxpose.xlu0.b32.cont [12/16] 0.0, 128
        %4345 = vxpose.xlu0.b32.cont [13/16] 0.0, 128
        %4346 = vxpose.xlu0.b32.cont [14/16] 0.0, 128
        %4347 = vxpose.xlu0.b32.cont [15/16] 0.0, 128
        %4348 = vxpose.xlu0.b32.end [16/16] 0.0, 128
        %v4349 = vpop.trf.xlu0
        %v4350 = vpop.trf.xlu0
        %v4351 = vpop.trf.xlu0
        %v4352 = vpop.trf.xlu0
        %v4353 = vpop.trf.xlu0
        %v4354 = vpop.trf.xlu0
        %v4355 = vpop.trf.xlu0
        %v4356 = vpop.trf.xlu0
        %v4357 = vpop.trf.xlu0
        %v4358 = vpop.trf.xlu0
        %v4359 = vpop.trf.xlu0
        %v4360 = vpop.trf.xlu0
        %v4361 = vpop.trf.xlu0
        %v4362 = vpop.trf.xlu0
        %v4363 = vpop.trf.xlu0
        %v4364 = vpop.trf.xlu0
        %4365 = vxpose.xlu0.b32.start [1/16] %v3275, 128
        %4366 = vxpose.xlu0.b32.cont [2/16] %v3278, 128
        %4367 = vxpose.xlu0.b32.cont [3/16] 0.0, 128
        %4368 = vxpose.xlu0.b32.cont [4/16] 0.0, 128
        %4369 = vxpose.xlu0.b32.cont [5/16] 0.0, 128
        %4370 = vxpose.xlu0.b32.cont [6/16] 0.0, 128
        %4371 = vxpose.xlu0.b32.cont [7/16] 0.0, 128
        %4372 = vxpose.xlu0.b32.cont [8/16] 0.0, 128
        %4373 = vxpose.xlu0.b32.cont [9/16] 0.0, 128
        %4374 = vxpose.xlu0.b32.cont [10/16] 0.0, 128
        %4375 = vxpose.xlu0.b32.cont [11/16] 0.0, 128
        %4376 = vxpose.xlu0.b32.cont [12/16] 0.0, 128
        %4377 = vxpose.xlu0.b32.cont [13/16] 0.0, 128
        %4378 = vxpose.xlu0.b32.cont [14/16] 0.0, 128
        %4379 = vxpose.xlu0.b32.cont [15/16] 0.0, 128
        %4380 = vxpose.xlu0.b32.end [16/16] 0.0, 128
        %v4381 = vpop.trf.xlu0
        %v4382 = vpop.trf.xlu0
        %v4383 = vpop.trf.xlu0
        %v4384 = vpop.trf.xlu0
        %v4385 = vpop.trf.xlu0
        %v4386 = vpop.trf.xlu0
        %v4387 = vpop.trf.xlu0
        %v4388 = vpop.trf.xlu0
        %v4389 = vpop.trf.xlu0
        %v4390 = vpop.trf.xlu0
        %v4391 = vpop.trf.xlu0
        %v4392 = vpop.trf.xlu0
        %v4393 = vpop.trf.xlu0
        %v4394 = vpop.trf.xlu0
        %v4395 = vpop.trf.xlu0
        %v4396 = vpop.trf.xlu0
        %4397 = vxpose.xlu0.b32.start [1/16] %v3283, 128
        %4398 = vxpose.xlu0.b32.cont [2/16] %v3286, 128
        %4399 = vxpose.xlu0.b32.cont [3/16] 0.0, 128
        %4400 = vxpose.xlu0.b32.cont [4/16] 0.0, 128
        %4401 = vxpose.xlu0.b32.cont [5/16] 0.0, 128
        %4402 = vxpose.xlu0.b32.cont [6/16] 0.0, 128
        %4403 = vxpose.xlu0.b32.cont [7/16] 0.0, 128
        %4404 = vxpose.xlu0.b32.cont [8/16] 0.0, 128
        %4405 = vxpose.xlu0.b32.cont [9/16] 0.0, 128
        %4406 = vxpose.xlu0.b32.cont [10/16] 0.0, 128
        %4407 = vxpose.xlu0.b32.cont [11/16] 0.0, 128
        %4408 = vxpose.xlu0.b32.cont [12/16] 0.0, 128
        %4409 = vxpose.xlu0.b32.cont [13/16] 0.0, 128
        %4410 = vxpose.xlu0.b32.cont [14/16] 0.0, 128
        %4411 = vxpose.xlu0.b32.cont [15/16] 0.0, 128
        %4412 = vxpose.xlu0.b32.end [16/16] 0.0, 128
        %v4413 = vpop.trf.xlu0
        %v4414 = vpop.trf.xlu0
        %v4415 = vpop.trf.xlu0
        %v4416 = vpop.trf.xlu0
        %v4417 = vpop.trf.xlu0
        %v4418 = vpop.trf.xlu0
        %v4419 = vpop.trf.xlu0
        %v4420 = vpop.trf.xlu0
        %v4421 = vpop.trf.xlu0
        %v4422 = vpop.trf.xlu0
        %v4423 = vpop.trf.xlu0
        %v4424 = vpop.trf.xlu0
        %v4425 = vpop.trf.xlu0
        %v4426 = vpop.trf.xlu0
        %v4427 = vpop.trf.xlu0
        %v4428 = vpop.trf.xlu0
        %4429 = vxpose.xlu0.b32.start [1/16] %v3291, 128
        %4430 = vxpose.xlu0.b32.cont [2/16] %v3294, 128
        %4431 = vxpose.xlu0.b32.cont [3/16] 0.0, 128
        %4432 = vxpose.xlu0.b32.cont [4/16] 0.0, 128
        %4433 = vxpose.xlu0.b32.cont [5/16] 0.0, 128
        %4434 = vxpose.xlu0.b32.cont [6/16] 0.0, 128
        %4435 = vxpose.xlu0.b32.cont [7/16] 0.0, 128
        %4436 = vxpose.xlu0.b32.cont [8/16] 0.0, 128
        %4437 = vxpose.xlu0.b32.cont [9/16] 0.0, 128
        %4438 = vxpose.xlu0.b32.cont [10/16] 0.0, 128
        %4439 = vxpose.xlu0.b32.cont [11/16] 0.0, 128
        %4440 = vxpose.xlu0.b32.cont [12/16] 0.0, 128
        %4441 = vxpose.xlu0.b32.cont [13/16] 0.0, 128
        %4442 = vxpose.xlu0.b32.cont [14/16] 0.0, 128
        %4443 = vxpose.xlu0.b32.cont [15/16] 0.0, 128
        %4444 = vxpose.xlu0.b32.end [16/16] 0.0, 128
        %v4445 = vpop.trf.xlu0
        %v4446 = vpop.trf.xlu0
        %v4447 = vpop.trf.xlu0
        %v4448 = vpop.trf.xlu0
        %v4449 = vpop.trf.xlu0
        %v4450 = vpop.trf.xlu0
        %v4451 = vpop.trf.xlu0
        %v4452 = vpop.trf.xlu0
        %v4453 = vpop.trf.xlu0
        %v4454 = vpop.trf.xlu0
        %v4455 = vpop.trf.xlu0
        %v4456 = vpop.trf.xlu0
        %v4457 = vpop.trf.xlu0
        %v4458 = vpop.trf.xlu0
        %v4459 = vpop.trf.xlu0
        %v4460 = vpop.trf.xlu0
        %4461 = vxpose.xlu0.b32.start [1/16] %v3350, 128
        %4462 = vxpose.xlu0.b32.cont [2/16] %v3353, 128
        %4463 = vxpose.xlu0.b32.cont [3/16] 0.0, 128
        %4464 = vxpose.xlu0.b32.cont [4/16] 0.0, 128
        %4465 = vxpose.xlu0.b32.cont [5/16] 0.0, 128
        %4466 = vxpose.xlu0.b32.cont [6/16] 0.0, 128
        %4467 = vxpose.xlu0.b32.cont [7/16] 0.0, 128
        %4468 = vxpose.xlu0.b32.cont [8/16] 0.0, 128
        %4469 = vxpose.xlu0.b32.cont [9/16] 0.0, 128
        %4470 = vxpose.xlu0.b32.cont [10/16] 0.0, 128
        %4471 = vxpose.xlu0.b32.cont [11/16] 0.0, 128
        %4472 = vxpose.xlu0.b32.cont [12/16] 0.0, 128
        %4473 = vxpose.xlu0.b32.cont [13/16] 0.0, 128
        %4474 = vxpose.xlu0.b32.cont [14/16] 0.0, 128
        %4475 = vxpose.xlu0.b32.cont [15/16] 0.0, 128
        %4476 = vxpose.xlu0.b32.end [16/16] 0.0, 128
        %v4477 = vpop.trf.xlu0
        %v4478 = vpop.trf.xlu0
        %v4479 = vpop.trf.xlu0
        %v4480 = vpop.trf.xlu0
        %v4481 = vpop.trf.xlu0
        %v4482 = vpop.trf.xlu0
        %v4483 = vpop.trf.xlu0
        %v4484 = vpop.trf.xlu0
        %v4485 = vpop.trf.xlu0
        %v4486 = vpop.trf.xlu0
        %v4487 = vpop.trf.xlu0
        %v4488 = vpop.trf.xlu0
        %v4489 = vpop.trf.xlu0
        %v4490 = vpop.trf.xlu0
        %v4491 = vpop.trf.xlu0
        %v4492 = vpop.trf.xlu0
        %4493 = vxpose.xlu0.b32.start [1/16] %v3358, 128
        %4494 = vxpose.xlu0.b32.cont [2/16] %v3361, 128
        %4495 = vxpose.xlu0.b32.cont [3/16] 0.0, 128
        %4496 = vxpose.xlu0.b32.cont [4/16] 0.0, 128
        %4497 = vxpose.xlu0.b32.cont [5/16] 0.0, 128
        %4498 = vxpose.xlu0.b32.cont [6/16] 0.0, 128
        %4499 = vxpose.xlu0.b32.cont [7/16] 0.0, 128
        %4500 = vxpose.xlu0.b32.cont [8/16] 0.0, 128
        %4501 = vxpose.xlu0.b32.cont [9/16] 0.0, 128
        %4502 = vxpose.xlu0.b32.cont [10/16] 0.0, 128
        %4503 = vxpose.xlu0.b32.cont [11/16] 0.0, 128
        %4504 = vxpose.xlu0.b32.cont [12/16] 0.0, 128
        %4505 = vxpose.xlu0.b32.cont [13/16] 0.0, 128
        %4506 = vxpose.xlu0.b32.cont [14/16] 0.0, 128
        %4507 = vxpose.xlu0.b32.cont [15/16] 0.0, 128
        %4508 = vxpose.xlu0.b32.end [16/16] 0.0, 128
        %v4509 = vpop.trf.xlu0
        %v4510 = vpop.trf.xlu0
        %v4511 = vpop.trf.xlu0
        %v4512 = vpop.trf.xlu0
        %v4513 = vpop.trf.xlu0
        %v4514 = vpop.trf.xlu0
        %v4515 = vpop.trf.xlu0
        %v4516 = vpop.trf.xlu0
        %v4517 = vpop.trf.xlu0
        %v4518 = vpop.trf.xlu0
        %v4519 = vpop.trf.xlu0
        %v4520 = vpop.trf.xlu0
        %v4521 = vpop.trf.xlu0
        %v4522 = vpop.trf.xlu0
        %v4523 = vpop.trf.xlu0
        %v4524 = vpop.trf.xlu0
        %4525 = vxpose.xlu0.b32.start [1/16] %v3366, 128
        %4526 = vxpose.xlu0.b32.cont [2/16] %v3369, 128
        %4527 = vxpose.xlu0.b32.cont [3/16] 0.0, 128
        %4528 = vxpose.xlu0.b32.cont [4/16] 0.0, 128
        %4529 = vxpose.xlu0.b32.cont [5/16] 0.0, 128
        %4530 = vxpose.xlu0.b32.cont [6/16] 0.0, 128
        %4531 = vxpose.xlu0.b32.cont [7/16] 0.0, 128
        %4532 = vxpose.xlu0.b32.cont [8/16] 0.0, 128
        %4533 = vxpose.xlu0.b32.cont [9/16] 0.0, 128
        %4534 = vxpose.xlu0.b32.cont [10/16] 0.0, 128
        %4535 = vxpose.xlu0.b32.cont [11/16] 0.0, 128
        %4536 = vxpose.xlu0.b32.cont [12/16] 0.0, 128
        %4537 = vxpose.xlu0.b32.cont [13/16] 0.0, 128
        %4538 = vxpose.xlu0.b32.cont [14/16] 0.0, 128
        %4539 = vxpose.xlu0.b32.cont [15/16] 0.0, 128
        %4540 = vxpose.xlu0.b32.end [16/16] 0.0, 128
        %v4541 = vpop.trf.xlu0
        %v4542 = vpop.trf.xlu0
        %v4543 = vpop.trf.xlu0
        %v4544 = vpop.trf.xlu0
        %v4545 = vpop.trf.xlu0
        %v4546 = vpop.trf.xlu0
        %v4547 = vpop.trf.xlu0
        %v4548 = vpop.trf.xlu0
        %v4549 = vpop.trf.xlu0
        %v4550 = vpop.trf.xlu0
        %v4551 = vpop.trf.xlu0
        %v4552 = vpop.trf.xlu0
        %v4553 = vpop.trf.xlu0
        %v4554 = vpop.trf.xlu0
        %v4555 = vpop.trf.xlu0
        %v4556 = vpop.trf.xlu0
        %4557 = vxpose.xlu0.b32.start [1/16] %v3374, 128
        %4558 = vxpose.xlu0.b32.cont [2/16] %v3377, 128
        %4559 = vxpose.xlu0.b32.cont [3/16] 0.0, 128
        %4560 = vxpose.xlu0.b32.cont [4/16] 0.0, 128
        %4561 = vxpose.xlu0.b32.cont [5/16] 0.0, 128
        %4562 = vxpose.xlu0.b32.cont [6/16] 0.0, 128
        %4563 = vxpose.xlu0.b32.cont [7/16] 0.0, 128
        %4564 = vxpose.xlu0.b32.cont [8/16] 0.0, 128
        %4565 = vxpose.xlu0.b32.cont [9/16] 0.0, 128
        %4566 = vxpose.xlu0.b32.cont [10/16] 0.0, 128
        %4567 = vxpose.xlu0.b32.cont [11/16] 0.0, 128
        %4568 = vxpose.xlu0.b32.cont [12/16] 0.0, 128
        %4569 = vxpose.xlu0.b32.cont [13/16] 0.0, 128
        %4570 = vxpose.xlu0.b32.cont [14/16] 0.0, 128
        %4571 = vxpose.xlu0.b32.cont [15/16] 0.0, 128
        %4572 = vxpose.xlu0.b32.end [16/16] 0.0, 128
        %v4573 = vpop.trf.xlu0
        %v4574 = vpop.trf.xlu0
        %v4575 = vpop.trf.xlu0
        %v4576 = vpop.trf.xlu0
        %v4577 = vpop.trf.xlu0
        %v4578 = vpop.trf.xlu0
        %v4579 = vpop.trf.xlu0
        %v4580 = vpop.trf.xlu0
        %v4581 = vpop.trf.xlu0
        %v4582 = vpop.trf.xlu0
        %v4583 = vpop.trf.xlu0
        %v4584 = vpop.trf.xlu0
        %v4585 = vpop.trf.xlu0
        %v4586 = vpop.trf.xlu0
        %v4587 = vpop.trf.xlu0
        %v4588 = vpop.trf.xlu0
        %4589 = vxpose.xlu0.b32.start [1/16] %v3382, 128
        %4590 = vxpose.xlu0.b32.cont [2/16] %v3385, 128
        %4591 = vxpose.xlu0.b32.cont [3/16] 0.0, 128
        %4592 = vxpose.xlu0.b32.cont [4/16] 0.0, 128
        %4593 = vxpose.xlu0.b32.cont [5/16] 0.0, 128
        %4594 = vxpose.xlu0.b32.cont [6/16] 0.0, 128
        %4595 = vxpose.xlu0.b32.cont [7/16] 0.0, 128
        %4596 = vxpose.xlu0.b32.cont [8/16] 0.0, 128
        %4597 = vxpose.xlu0.b32.cont [9/16] 0.0, 128
        %4598 = vxpose.xlu0.b32.cont [10/16] 0.0, 128
        %4599 = vxpose.xlu0.b32.cont [11/16] 0.0, 128
        %4600 = vxpose.xlu0.b32.cont [12/16] 0.0, 128
        %4601 = vxpose.xlu0.b32.cont [13/16] 0.0, 128
        %4602 = vxpose.xlu0.b32.cont [14/16] 0.0, 128
        %4603 = vxpose.xlu0.b32.cont [15/16] 0.0, 128
        %4604 = vxpose.xlu0.b32.end [16/16] 0.0, 128
        %v4605 = vpop.trf.xlu0
        %v4606 = vpop.trf.xlu0
        %v4607 = vpop.trf.xlu0
        %v4608 = vpop.trf.xlu0
        %v4609 = vpop.trf.xlu0
        %v4610 = vpop.trf.xlu0
        %v4611 = vpop.trf.xlu0
        %v4612 = vpop.trf.xlu0
        %v4613 = vpop.trf.xlu0
        %v4614 = vpop.trf.xlu0
        %v4615 = vpop.trf.xlu0
        %v4616 = vpop.trf.xlu0
        %v4617 = vpop.trf.xlu0
        %v4618 = vpop.trf.xlu0
        %v4619 = vpop.trf.xlu0
        %v4620 = vpop.trf.xlu0
        %4621 = vxpose.xlu0.b32.start [1/16] %v3390, 128
        %4622 = vxpose.xlu0.b32.cont [2/16] %v3393, 128
        %4623 = vxpose.xlu0.b32.cont [3/16] 0.0, 128
        %4624 = vxpose.xlu0.b32.cont [4/16] 0.0, 128
        %4625 = vxpose.xlu0.b32.cont [5/16] 0.0, 128
        %4626 = vxpose.xlu0.b32.cont [6/16] 0.0, 128
        %4627 = vxpose.xlu0.b32.cont [7/16] 0.0, 128
        %4628 = vxpose.xlu0.b32.cont [8/16] 0.0, 128
        %4629 = vxpose.xlu0.b32.cont [9/16] 0.0, 128
        %4630 = vxpose.xlu0.b32.cont [10/16] 0.0, 128
        %4631 = vxpose.xlu0.b32.cont [11/16] 0.0, 128
        %4632 = vxpose.xlu0.b32.cont [12/16] 0.0, 128
        %4633 = vxpose.xlu0.b32.cont [13/16] 0.0, 128
        %4634 = vxpose.xlu0.b32.cont [14/16] 0.0, 128
        %4635 = vxpose.xlu0.b32.cont [15/16] 0.0, 128
        %4636 = vxpose.xlu0.b32.end [16/16] 0.0, 128
        %v4637 = vpop.trf.xlu0
        %v4638 = vpop.trf.xlu0
        %v4639 = vpop.trf.xlu0
        %v4640 = vpop.trf.xlu0
        %v4641 = vpop.trf.xlu0
        %v4642 = vpop.trf.xlu0
        %v4643 = vpop.trf.xlu0
        %v4644 = vpop.trf.xlu0
        %v4645 = vpop.trf.xlu0
        %v4646 = vpop.trf.xlu0
        %v4647 = vpop.trf.xlu0
        %v4648 = vpop.trf.xlu0
        %v4649 = vpop.trf.xlu0
        %v4650 = vpop.trf.xlu0
        %v4651 = vpop.trf.xlu0
        %v4652 = vpop.trf.xlu0
        %4653 = vxpose.xlu0.b32.start [1/16] %v3449, 128
        %4654 = vxpose.xlu0.b32.cont [2/16] %v3452, 128
        %4655 = vxpose.xlu0.b32.cont [3/16] 0.0, 128
        %4656 = vxpose.xlu0.b32.cont [4/16] 0.0, 128
        %4657 = vxpose.xlu0.b32.cont [5/16] 0.0, 128
        %4658 = vxpose.xlu0.b32.cont [6/16] 0.0, 128
        %4659 = vxpose.xlu0.b32.cont [7/16] 0.0, 128
        %4660 = vxpose.xlu0.b32.cont [8/16] 0.0, 128
        %4661 = vxpose.xlu0.b32.cont [9/16] 0.0, 128
        %4662 = vxpose.xlu0.b32.cont [10/16] 0.0, 128
        %4663 = vxpose.xlu0.b32.cont [11/16] 0.0, 128
        %4664 = vxpose.xlu0.b32.cont [12/16] 0.0, 128
        %4665 = vxpose.xlu0.b32.cont [13/16] 0.0, 128
        %4666 = vxpose.xlu0.b32.cont [14/16] 0.0, 128
        %4667 = vxpose.xlu0.b32.cont [15/16] 0.0, 128
        %4668 = vxpose.xlu0.b32.end [16/16] 0.0, 128
        %v4669 = vpop.trf.xlu0
        %v4670 = vpop.trf.xlu0
        %v4671 = vpop.trf.xlu0
        %v4672 = vpop.trf.xlu0
        %v4673 = vpop.trf.xlu0
        %v4674 = vpop.trf.xlu0
        %v4675 = vpop.trf.xlu0
        %v4676 = vpop.trf.xlu0
        %v4677 = vpop.trf.xlu0
        %v4678 = vpop.trf.xlu0
        %v4679 = vpop.trf.xlu0
        %v4680 = vpop.trf.xlu0
        %v4681 = vpop.trf.xlu0
        %v4682 = vpop.trf.xlu0
        %v4683 = vpop.trf.xlu0
        %v4684 = vpop.trf.xlu0
        %4685 = vxpose.xlu0.b32.start [1/16] %v3457, 128
        %4686 = vxpose.xlu0.b32.cont [2/16] %v3460, 128
        %4687 = vxpose.xlu0.b32.cont [3/16] 0.0, 128
        %4688 = vxpose.xlu0.b32.cont [4/16] 0.0, 128
        %4689 = vxpose.xlu0.b32.cont [5/16] 0.0, 128
        %4690 = vxpose.xlu0.b32.cont [6/16] 0.0, 128
        %4691 = vxpose.xlu0.b32.cont [7/16] 0.0, 128
        %4692 = vxpose.xlu0.b32.cont [8/16] 0.0, 128
        %4693 = vxpose.xlu0.b32.cont [9/16] 0.0, 128
        %4694 = vxpose.xlu0.b32.cont [10/16] 0.0, 128
        %4695 = vxpose.xlu0.b32.cont [11/16] 0.0, 128
        %4696 = vxpose.xlu0.b32.cont [12/16] 0.0, 128
        %4697 = vxpose.xlu0.b32.cont [13/16] 0.0, 128
        %4698 = vxpose.xlu0.b32.cont [14/16] 0.0, 128
        %4699 = vxpose.xlu0.b32.cont [15/16] 0.0, 128
        %4700 = vxpose.xlu0.b32.end [16/16] 0.0, 128
        %v4701 = vpop.trf.xlu0
        %v4702 = vpop.trf.xlu0
        %v4703 = vpop.trf.xlu0
        %v4704 = vpop.trf.xlu0
        %v4705 = vpop.trf.xlu0
        %v4706 = vpop.trf.xlu0
        %v4707 = vpop.trf.xlu0
        %v4708 = vpop.trf.xlu0
        %v4709 = vpop.trf.xlu0
        %v4710 = vpop.trf.xlu0
        %v4711 = vpop.trf.xlu0
        %v4712 = vpop.trf.xlu0
        %v4713 = vpop.trf.xlu0
        %v4714 = vpop.trf.xlu0
        %v4715 = vpop.trf.xlu0
        %v4716 = vpop.trf.xlu0
        %4717 = vxpose.xlu0.b32.start [1/16] %v3465, 128
        %4718 = vxpose.xlu0.b32.cont [2/16] %v3468, 128
        %4719 = vxpose.xlu0.b32.cont [3/16] 0.0, 128
        %4720 = vxpose.xlu0.b32.cont [4/16] 0.0, 128
        %4721 = vxpose.xlu0.b32.cont [5/16] 0.0, 128
        %4722 = vxpose.xlu0.b32.cont [6/16] 0.0, 128
        %4723 = vxpose.xlu0.b32.cont [7/16] 0.0, 128
        %4724 = vxpose.xlu0.b32.cont [8/16] 0.0, 128
        %4725 = vxpose.xlu0.b32.cont [9/16] 0.0, 128
        %4726 = vxpose.xlu0.b32.cont [10/16] 0.0, 128
        %4727 = vxpose.xlu0.b32.cont [11/16] 0.0, 128
        %4728 = vxpose.xlu0.b32.cont [12/16] 0.0, 128
        %4729 = vxpose.xlu0.b32.cont [13/16] 0.0, 128
        %4730 = vxpose.xlu0.b32.cont [14/16] 0.0, 128
        %4731 = vxpose.xlu0.b32.cont [15/16] 0.0, 128
        %4732 = vxpose.xlu0.b32.end [16/16] 0.0, 128
        %v4733 = vpop.trf.xlu0
        %v4734 = vpop.trf.xlu0
        %v4735 = vpop.trf.xlu0
        %v4736 = vpop.trf.xlu0
        %v4737 = vpop.trf.xlu0
        %v4738 = vpop.trf.xlu0
        %v4739 = vpop.trf.xlu0
        %v4740 = vpop.trf.xlu0
        %v4741 = vpop.trf.xlu0
        %v4742 = vpop.trf.xlu0
        %v4743 = vpop.trf.xlu0
        %v4744 = vpop.trf.xlu0
        %v4745 = vpop.trf.xlu0
        %v4746 = vpop.trf.xlu0
        %v4747 = vpop.trf.xlu0
        %v4748 = vpop.trf.xlu0
        %4749 = vxpose.xlu0.b32.start [1/16] %v3473, 128
        %4750 = vxpose.xlu0.b32.cont [2/16] %v3476, 128
        %4751 = vxpose.xlu0.b32.cont [3/16] 0.0, 128
        %4752 = vxpose.xlu0.b32.cont [4/16] 0.0, 128
        %4753 = vxpose.xlu0.b32.cont [5/16] 0.0, 128
        %4754 = vxpose.xlu0.b32.cont [6/16] 0.0, 128
        %4755 = vxpose.xlu0.b32.cont [7/16] 0.0, 128
        %4756 = vxpose.xlu0.b32.cont [8/16] 0.0, 128
        %4757 = vxpose.xlu0.b32.cont [9/16] 0.0, 128
        %4758 = vxpose.xlu0.b32.cont [10/16] 0.0, 128
        %4759 = vxpose.xlu0.b32.cont [11/16] 0.0, 128
        %4760 = vxpose.xlu0.b32.cont [12/16] 0.0, 128
        %4761 = vxpose.xlu0.b32.cont [13/16] 0.0, 128
        %4762 = vxpose.xlu0.b32.cont [14/16] 0.0, 128
        %4763 = vxpose.xlu0.b32.cont [15/16] 0.0, 128
        %4764 = vxpose.xlu0.b32.end [16/16] 0.0, 128
        %v4765 = vpop.trf.xlu0
        %v4766 = vpop.trf.xlu0
        %v4767 = vpop.trf.xlu0
        %v4768 = vpop.trf.xlu0
        %v4769 = vpop.trf.xlu0
        %v4770 = vpop.trf.xlu0
        %v4771 = vpop.trf.xlu0
        %v4772 = vpop.trf.xlu0
        %v4773 = vpop.trf.xlu0
        %v4774 = vpop.trf.xlu0
        %v4775 = vpop.trf.xlu0
        %v4776 = vpop.trf.xlu0
        %v4777 = vpop.trf.xlu0
        %v4778 = vpop.trf.xlu0
        %v4779 = vpop.trf.xlu0
        %v4780 = vpop.trf.xlu0
        %4781 = vxpose.xlu0.b32.start [1/16] %v3481, 128
        %4782 = vxpose.xlu0.b32.cont [2/16] %v3484, 128
        %4783 = vxpose.xlu0.b32.cont [3/16] 0.0, 128
        %4784 = vxpose.xlu0.b32.cont [4/16] 0.0, 128
        %4785 = vxpose.xlu0.b32.cont [5/16] 0.0, 128
        %4786 = vxpose.xlu0.b32.cont [6/16] 0.0, 128
        %4787 = vxpose.xlu0.b32.cont [7/16] 0.0, 128
        %4788 = vxpose.xlu0.b32.cont [8/16] 0.0, 128
        %4789 = vxpose.xlu0.b32.cont [9/16] 0.0, 128
        %4790 = vxpose.xlu0.b32.cont [10/16] 0.0, 128
        %4791 = vxpose.xlu0.b32.cont [11/16] 0.0, 128
        %4792 = vxpose.xlu0.b32.cont [12/16] 0.0, 128
        %4793 = vxpose.xlu0.b32.cont [13/16] 0.0, 128
        %4794 = vxpose.xlu0.b32.cont [14/16] 0.0, 128
        %4795 = vxpose.xlu0.b32.cont [15/16] 0.0, 128
        %4796 = vxpose.xlu0.b32.end [16/16] 0.0, 128
        %v4797 = vpop.trf.xlu0
        %v4798 = vpop.trf.xlu0
        %v4799 = vpop.trf.xlu0
        %v4800 = vpop.trf.xlu0
        %v4801 = vpop.trf.xlu0
        %v4802 = vpop.trf.xlu0
        %v4803 = vpop.trf.xlu0
        %v4804 = vpop.trf.xlu0
        %v4805 = vpop.trf.xlu0
        %v4806 = vpop.trf.xlu0
        %v4807 = vpop.trf.xlu0
        %v4808 = vpop.trf.xlu0
        %v4809 = vpop.trf.xlu0
        %v4810 = vpop.trf.xlu0
        %v4811 = vpop.trf.xlu0
        %v4812 = vpop.trf.xlu0
        %4813 = vxpose.xlu0.b32.start [1/16] %v3489, 128
        %4814 = vxpose.xlu0.b32.cont [2/16] %v3492, 128
        %4815 = vxpose.xlu0.b32.cont [3/16] 0.0, 128
        %4816 = vxpose.xlu0.b32.cont [4/16] 0.0, 128
        %4817 = vxpose.xlu0.b32.cont [5/16] 0.0, 128
        %4818 = vxpose.xlu0.b32.cont [6/16] 0.0, 128
        %4819 = vxpose.xlu0.b32.cont [7/16] 0.0, 128
        %4820 = vxpose.xlu0.b32.cont [8/16] 0.0, 128
        %4821 = vxpose.xlu0.b32.cont [9/16] 0.0, 128
        %4822 = vxpose.xlu0.b32.cont [10/16] 0.0, 128
        %4823 = vxpose.xlu0.b32.cont [11/16] 0.0, 128
        %4824 = vxpose.xlu0.b32.cont [12/16] 0.0, 128
        %4825 = vxpose.xlu0.b32.cont [13/16] 0.0, 128
        %4826 = vxpose.xlu0.b32.cont [14/16] 0.0, 128
        %4827 = vxpose.xlu0.b32.cont [15/16] 0.0, 128
        %4828 = vxpose.xlu0.b32.end [16/16] 0.0, 128
        %v4829 = vpop.trf.xlu0
        %v4830 = vpop.trf.xlu0
        %v4831 = vpop.trf.xlu0
        %v4832 = vpop.trf.xlu0
        %v4833 = vpop.trf.xlu0
        %v4834 = vpop.trf.xlu0
        %v4835 = vpop.trf.xlu0
        %v4836 = vpop.trf.xlu0
        %v4837 = vpop.trf.xlu0
        %v4838 = vpop.trf.xlu0
        %v4839 = vpop.trf.xlu0
        %v4840 = vpop.trf.xlu0
        %v4841 = vpop.trf.xlu0
        %v4842 = vpop.trf.xlu0
        %v4843 = vpop.trf.xlu0
        %v4844 = vpop.trf.xlu0
        %4845 = vxpose.xlu0.b32.start [1/16] %v3548, 128
        %4846 = vxpose.xlu0.b32.cont [2/16] %v3551, 128
        %4847 = vxpose.xlu0.b32.cont [3/16] 0.0, 128
        %4848 = vxpose.xlu0.b32.cont [4/16] 0.0, 128
        %4849 = vxpose.xlu0.b32.cont [5/16] 0.0, 128
        %4850 = vxpose.xlu0.b32.cont [6/16] 0.0, 128
        %4851 = vxpose.xlu0.b32.cont [7/16] 0.0, 128
        %4852 = vxpose.xlu0.b32.cont [8/16] 0.0, 128
        %4853 = vxpose.xlu0.b32.cont [9/16] 0.0, 128
        %4854 = vxpose.xlu0.b32.cont [10/16] 0.0, 128
        %4855 = vxpose.xlu0.b32.cont [11/16] 0.0, 128
        %4856 = vxpose.xlu0.b32.cont [12/16] 0.0, 128
        %4857 = vxpose.xlu0.b32.cont [13/16] 0.0, 128
        %4858 = vxpose.xlu0.b32.cont [14/16] 0.0, 128
        %4859 = vxpose.xlu0.b32.cont [15/16] 0.0, 128
        %4860 = vxpose.xlu0.b32.end [16/16] 0.0, 128
        %v4861 = vpop.trf.xlu0
        %v4862 = vpop.trf.xlu0
        %v4863 = vpop.trf.xlu0
        %v4864 = vpop.trf.xlu0
        %v4865 = vpop.trf.xlu0
        %v4866 = vpop.trf.xlu0
        %v4867 = vpop.trf.xlu0
        %v4868 = vpop.trf.xlu0
        %v4869 = vpop.trf.xlu0
        %v4870 = vpop.trf.xlu0
        %v4871 = vpop.trf.xlu0
        %v4872 = vpop.trf.xlu0
        %v4873 = vpop.trf.xlu0
        %v4874 = vpop.trf.xlu0
        %v4875 = vpop.trf.xlu0
        %v4876 = vpop.trf.xlu0
        %4877 = vxpose.xlu0.b32.start [1/16] %v3556, 128
        %4878 = vxpose.xlu0.b32.cont [2/16] %v3559, 128
        %4879 = vxpose.xlu0.b32.cont [3/16] 0.0, 128
        %4880 = vxpose.xlu0.b32.cont [4/16] 0.0, 128
        %4881 = vxpose.xlu0.b32.cont [5/16] 0.0, 128
        %4882 = vxpose.xlu0.b32.cont [6/16] 0.0, 128
        %4883 = vxpose.xlu0.b32.cont [7/16] 0.0, 128
        %4884 = vxpose.xlu0.b32.cont [8/16] 0.0, 128
        %4885 = vxpose.xlu0.b32.cont [9/16] 0.0, 128
        %4886 = vxpose.xlu0.b32.cont [10/16] 0.0, 128
        %4887 = vxpose.xlu0.b32.cont [11/16] 0.0, 128
        %4888 = vxpose.xlu0.b32.cont [12/16] 0.0, 128
        %4889 = vxpose.xlu0.b32.cont [13/16] 0.0, 128
        %4890 = vxpose.xlu0.b32.cont [14/16] 0.0, 128
        %4891 = vxpose.xlu0.b32.cont [15/16] 0.0, 128
        %4892 = vxpose.xlu0.b32.end [16/16] 0.0, 128
        %v4893 = vpop.trf.xlu0
        %v4894 = vpop.trf.xlu0
        %v4895 = vpop.trf.xlu0
        %v4896 = vpop.trf.xlu0
        %v4897 = vpop.trf.xlu0
        %v4898 = vpop.trf.xlu0
        %v4899 = vpop.trf.xlu0
        %v4900 = vpop.trf.xlu0
        %v4901 = vpop.trf.xlu0
        %v4902 = vpop.trf.xlu0
        %v4903 = vpop.trf.xlu0
        %v4904 = vpop.trf.xlu0
        %v4905 = vpop.trf.xlu0
        %v4906 = vpop.trf.xlu0
        %v4907 = vpop.trf.xlu0
        %v4908 = vpop.trf.xlu0
        %4909 = vxpose.xlu0.b32.start [1/16] %v3564, 128
        %4910 = vxpose.xlu0.b32.cont [2/16] %v3567, 128
        %4911 = vxpose.xlu0.b32.cont [3/16] 0.0, 128
        %4912 = vxpose.xlu0.b32.cont [4/16] 0.0, 128
        %4913 = vxpose.xlu0.b32.cont [5/16] 0.0, 128
        %4914 = vxpose.xlu0.b32.cont [6/16] 0.0, 128
        %4915 = vxpose.xlu0.b32.cont [7/16] 0.0, 128
        %4916 = vxpose.xlu0.b32.cont [8/16] 0.0, 128
        %4917 = vxpose.xlu0.b32.cont [9/16] 0.0, 128
        %4918 = vxpose.xlu0.b32.cont [10/16] 0.0, 128
        %4919 = vxpose.xlu0.b32.cont [11/16] 0.0, 128
        %4920 = vxpose.xlu0.b32.cont [12/16] 0.0, 128
        %4921 = vxpose.xlu0.b32.cont [13/16] 0.0, 128
        %4922 = vxpose.xlu0.b32.cont [14/16] 0.0, 128
        %4923 = vxpose.xlu0.b32.cont [15/16] 0.0, 128
        %4924 = vxpose.xlu0.b32.end [16/16] 0.0, 128
        %v4925 = vpop.trf.xlu0
        %v4926 = vpop.trf.xlu0
        %v4927 = vpop.trf.xlu0
        %v4928 = vpop.trf.xlu0
        %v4929 = vpop.trf.xlu0
        %v4930 = vpop.trf.xlu0
        %v4931 = vpop.trf.xlu0
        %v4932 = vpop.trf.xlu0
        %v4933 = vpop.trf.xlu0
        %v4934 = vpop.trf.xlu0
        %v4935 = vpop.trf.xlu0
        %v4936 = vpop.trf.xlu0
        %v4937 = vpop.trf.xlu0
        %v4938 = vpop.trf.xlu0
        %v4939 = vpop.trf.xlu0
        %v4940 = vpop.trf.xlu0
        %4941 = vxpose.xlu0.b32.start [1/16] %v3572, 128
        %4942 = vxpose.xlu0.b32.cont [2/16] %v3575, 128
        %4943 = vxpose.xlu0.b32.cont [3/16] 0.0, 128
        %4944 = vxpose.xlu0.b32.cont [4/16] 0.0, 128
        %4945 = vxpose.xlu0.b32.cont [5/16] 0.0, 128
        %4946 = vxpose.xlu0.b32.cont [6/16] 0.0, 128
        %4947 = vxpose.xlu0.b32.cont [7/16] 0.0, 128
        %4948 = vxpose.xlu0.b32.cont [8/16] 0.0, 128
        %4949 = vxpose.xlu0.b32.cont [9/16] 0.0, 128
        %4950 = vxpose.xlu0.b32.cont [10/16] 0.0, 128
        %4951 = vxpose.xlu0.b32.cont [11/16] 0.0, 128
        %4952 = vxpose.xlu0.b32.cont [12/16] 0.0, 128
        %4953 = vxpose.xlu0.b32.cont [13/16] 0.0, 128
        %4954 = vxpose.xlu0.b32.cont [14/16] 0.0, 128
        %4955 = vxpose.xlu0.b32.cont [15/16] 0.0, 128
        %4956 = vxpose.xlu0.b32.end [16/16] 0.0, 128
        %v4957 = vpop.trf.xlu0
        %v4958 = vpop.trf.xlu0
        %v4959 = vpop.trf.xlu0
        %v4960 = vpop.trf.xlu0
        %v4961 = vpop.trf.xlu0
        %v4962 = vpop.trf.xlu0
        %v4963 = vpop.trf.xlu0
        %v4964 = vpop.trf.xlu0
        %v4965 = vpop.trf.xlu0
        %v4966 = vpop.trf.xlu0
        %v4967 = vpop.trf.xlu0
        %v4968 = vpop.trf.xlu0
        %v4969 = vpop.trf.xlu0
        %v4970 = vpop.trf.xlu0
        %v4971 = vpop.trf.xlu0
        %v4972 = vpop.trf.xlu0
        %4973 = vxpose.xlu0.b32.start [1/16] %v3580, 128
        %4974 = vxpose.xlu0.b32.cont [2/16] %v3583, 128
        %4975 = vxpose.xlu0.b32.cont [3/16] 0.0, 128
        %4976 = vxpose.xlu0.b32.cont [4/16] 0.0, 128
        %4977 = vxpose.xlu0.b32.cont [5/16] 0.0, 128
        %4978 = vxpose.xlu0.b32.cont [6/16] 0.0, 128
        %4979 = vxpose.xlu0.b32.cont [7/16] 0.0, 128
        %4980 = vxpose.xlu0.b32.cont [8/16] 0.0, 128
        %4981 = vxpose.xlu0.b32.cont [9/16] 0.0, 128
        %4982 = vxpose.xlu0.b32.cont [10/16] 0.0, 128
        %4983 = vxpose.xlu0.b32.cont [11/16] 0.0, 128
        %4984 = vxpose.xlu0.b32.cont [12/16] 0.0, 128
        %4985 = vxpose.xlu0.b32.cont [13/16] 0.0, 128
        %4986 = vxpose.xlu0.b32.cont [14/16] 0.0, 128
        %4987 = vxpose.xlu0.b32.cont [15/16] 0.0, 128
        %4988 = vxpose.xlu0.b32.end [16/16] 0.0, 128
        %v4989 = vpop.trf.xlu0
        %v4990 = vpop.trf.xlu0
        %v4991 = vpop.trf.xlu0
        %v4992 = vpop.trf.xlu0
        %v4993 = vpop.trf.xlu0
        %v4994 = vpop.trf.xlu0
        %v4995 = vpop.trf.xlu0
        %v4996 = vpop.trf.xlu0
        %v4997 = vpop.trf.xlu0
        %v4998 = vpop.trf.xlu0
        %v4999 = vpop.trf.xlu0
        %v5000 = vpop.trf.xlu0
        %v5001 = vpop.trf.xlu0
        %v5002 = vpop.trf.xlu0
        %v5003 = vpop.trf.xlu0
        %v5004 = vpop.trf.xlu0
        %5005 = vxpose.xlu0.b32.start [1/16] %v3588, 128
        %5006 = vxpose.xlu0.b32.cont [2/16] %v3591, 128
        %5007 = vxpose.xlu0.b32.cont [3/16] 0.0, 128
        %5008 = vxpose.xlu0.b32.cont [4/16] 0.0, 128
        %5009 = vxpose.xlu0.b32.cont [5/16] 0.0, 128
        %5010 = vxpose.xlu0.b32.cont [6/16] 0.0, 128
        %5011 = vxpose.xlu0.b32.cont [7/16] 0.0, 128
        %5012 = vxpose.xlu0.b32.cont [8/16] 0.0, 128
        %5013 = vxpose.xlu0.b32.cont [9/16] 0.0, 128
        %5014 = vxpose.xlu0.b32.cont [10/16] 0.0, 128
        %5015 = vxpose.xlu0.b32.cont [11/16] 0.0, 128
        %5016 = vxpose.xlu0.b32.cont [12/16] 0.0, 128
        %5017 = vxpose.xlu0.b32.cont [13/16] 0.0, 128
        %5018 = vxpose.xlu0.b32.cont [14/16] 0.0, 128
        %5019 = vxpose.xlu0.b32.cont [15/16] 0.0, 128
        %5020 = vxpose.xlu0.b32.end [16/16] 0.0, 128
        %v5021 = vpop.trf.xlu0
        %v5022 = vpop.trf.xlu0
        %v5023 = vpop.trf.xlu0
        %v5024 = vpop.trf.xlu0
        %v5025 = vpop.trf.xlu0
        %v5026 = vpop.trf.xlu0
        %v5027 = vpop.trf.xlu0
        %v5028 = vpop.trf.xlu0
        %v5029 = vpop.trf.xlu0
        %v5030 = vpop.trf.xlu0
        %v5031 = vpop.trf.xlu0
        %v5032 = vpop.trf.xlu0
        %v5033 = vpop.trf.xlu0
        %v5034 = vpop.trf.xlu0
        %v5035 = vpop.trf.xlu0
        %v5036 = vpop.trf.xlu0
        %5037 = vxpose.xlu0.b32.start [1/16] %v3647, 128
        %5038 = vxpose.xlu0.b32.cont [2/16] %v3650, 128
        %5039 = vxpose.xlu0.b32.cont [3/16] 0.0, 128
        %5040 = vxpose.xlu0.b32.cont [4/16] 0.0, 128
        %5041 = vxpose.xlu0.b32.cont [5/16] 0.0, 128
        %5042 = vxpose.xlu0.b32.cont [6/16] 0.0, 128
        %5043 = vxpose.xlu0.b32.cont [7/16] 0.0, 128
        %5044 = vxpose.xlu0.b32.cont [8/16] 0.0, 128
        %5045 = vxpose.xlu0.b32.cont [9/16] 0.0, 128
        %5046 = vxpose.xlu0.b32.cont [10/16] 0.0, 128
        %5047 = vxpose.xlu0.b32.cont [11/16] 0.0, 128
        %5048 = vxpose.xlu0.b32.cont [12/16] 0.0, 128
        %5049 = vxpose.xlu0.b32.cont [13/16] 0.0, 128
        %5050 = vxpose.xlu0.b32.cont [14/16] 0.0, 128
        %5051 = vxpose.xlu0.b32.cont [15/16] 0.0, 128
        %5052 = vxpose.xlu0.b32.end [16/16] 0.0, 128
        %v5053 = vpop.trf.xlu0
        %v5054 = vpop.trf.xlu0
        %v5055 = vpop.trf.xlu0
        %v5056 = vpop.trf.xlu0
        %v5057 = vpop.trf.xlu0
        %v5058 = vpop.trf.xlu0
        %v5059 = vpop.trf.xlu0
        %v5060 = vpop.trf.xlu0
        %v5061 = vpop.trf.xlu0
        %v5062 = vpop.trf.xlu0
        %v5063 = vpop.trf.xlu0
        %v5064 = vpop.trf.xlu0
        %v5065 = vpop.trf.xlu0
        %v5066 = vpop.trf.xlu0
        %v5067 = vpop.trf.xlu0
        %v5068 = vpop.trf.xlu0
        %5069 = vxpose.xlu0.b32.start [1/16] %v3655, 128
        %5070 = vxpose.xlu0.b32.cont [2/16] %v3658, 128
        %5071 = vxpose.xlu0.b32.cont [3/16] 0.0, 128
        %5072 = vxpose.xlu0.b32.cont [4/16] 0.0, 128
        %5073 = vxpose.xlu0.b32.cont [5/16] 0.0, 128
        %5074 = vxpose.xlu0.b32.cont [6/16] 0.0, 128
        %5075 = vxpose.xlu0.b32.cont [7/16] 0.0, 128
        %5076 = vxpose.xlu0.b32.cont [8/16] 0.0, 128
        %5077 = vxpose.xlu0.b32.cont [9/16] 0.0, 128
        %5078 = vxpose.xlu0.b32.cont [10/16] 0.0, 128
        %5079 = vxpose.xlu0.b32.cont [11/16] 0.0, 128
        %5080 = vxpose.xlu0.b32.cont [12/16] 0.0, 128
        %5081 = vxpose.xlu0.b32.cont [13/16] 0.0, 128
        %5082 = vxpose.xlu0.b32.cont [14/16] 0.0, 128
        %5083 = vxpose.xlu0.b32.cont [15/16] 0.0, 128
        %5084 = vxpose.xlu0.b32.end [16/16] 0.0, 128
        %v5085 = vpop.trf.xlu0
        %v5086 = vpop.trf.xlu0
        %v5087 = vpop.trf.xlu0
        %v5088 = vpop.trf.xlu0
        %v5089 = vpop.trf.xlu0
        %v5090 = vpop.trf.xlu0
        %v5091 = vpop.trf.xlu0
        %v5092 = vpop.trf.xlu0
        %v5093 = vpop.trf.xlu0
        %v5094 = vpop.trf.xlu0
        %v5095 = vpop.trf.xlu0
        %v5096 = vpop.trf.xlu0
        %v5097 = vpop.trf.xlu0
        %v5098 = vpop.trf.xlu0
        %v5099 = vpop.trf.xlu0
        %v5100 = vpop.trf.xlu0
        %5101 = vxpose.xlu0.b32.start [1/16] %v3663, 128
        %5102 = vxpose.xlu0.b32.cont [2/16] %v3666, 128
        %5103 = vxpose.xlu0.b32.cont [3/16] 0.0, 128
        %5104 = vxpose.xlu0.b32.cont [4/16] 0.0, 128
        %5105 = vxpose.xlu0.b32.cont [5/16] 0.0, 128
        %5106 = vxpose.xlu0.b32.cont [6/16] 0.0, 128
        %5107 = vxpose.xlu0.b32.cont [7/16] 0.0, 128
        %5108 = vxpose.xlu0.b32.cont [8/16] 0.0, 128
        %5109 = vxpose.xlu0.b32.cont [9/16] 0.0, 128
        %5110 = vxpose.xlu0.b32.cont [10/16] 0.0, 128
        %5111 = vxpose.xlu0.b32.cont [11/16] 0.0, 128
        %5112 = vxpose.xlu0.b32.cont [12/16] 0.0, 128
        %5113 = vxpose.xlu0.b32.cont [13/16] 0.0, 128
        %5114 = vxpose.xlu0.b32.cont [14/16] 0.0, 128
        %5115 = vxpose.xlu0.b32.cont [15/16] 0.0, 128
        %5116 = vxpose.xlu0.b32.end [16/16] 0.0, 128
        %v5117 = vpop.trf.xlu0
        %v5118 = vpop.trf.xlu0
        %v5119 = vpop.trf.xlu0
        %v5120 = vpop.trf.xlu0
        %v5121 = vpop.trf.xlu0
        %v5122 = vpop.trf.xlu0
        %v5123 = vpop.trf.xlu0
        %v5124 = vpop.trf.xlu0
        %v5125 = vpop.trf.xlu0
        %v5126 = vpop.trf.xlu0
        %v5127 = vpop.trf.xlu0
        %v5128 = vpop.trf.xlu0
        %v5129 = vpop.trf.xlu0
        %v5130 = vpop.trf.xlu0
        %v5131 = vpop.trf.xlu0
        %v5132 = vpop.trf.xlu0
        %5133 = vxpose.xlu0.b32.start [1/16] %v3671, 128
        %5134 = vxpose.xlu0.b32.cont [2/16] %v3674, 128
        %5135 = vxpose.xlu0.b32.cont [3/16] 0.0, 128
        %5136 = vxpose.xlu0.b32.cont [4/16] 0.0, 128
        %5137 = vxpose.xlu0.b32.cont [5/16] 0.0, 128
        %5138 = vxpose.xlu0.b32.cont [6/16] 0.0, 128
        %5139 = vxpose.xlu0.b32.cont [7/16] 0.0, 128
        %5140 = vxpose.xlu0.b32.cont [8/16] 0.0, 128
        %5141 = vxpose.xlu0.b32.cont [9/16] 0.0, 128
        %5142 = vxpose.xlu0.b32.cont [10/16] 0.0, 128
        %5143 = vxpose.xlu0.b32.cont [11/16] 0.0, 128
        %5144 = vxpose.xlu0.b32.cont [12/16] 0.0, 128
        %5145 = vxpose.xlu0.b32.cont [13/16] 0.0, 128
        %5146 = vxpose.xlu0.b32.cont [14/16] 0.0, 128
        %5147 = vxpose.xlu0.b32.cont [15/16] 0.0, 128
        %5148 = vxpose.xlu0.b32.end [16/16] 0.0, 128
        %v5149 = vpop.trf.xlu0
        %v5150 = vpop.trf.xlu0
        %v5151 = vpop.trf.xlu0
        %v5152 = vpop.trf.xlu0
        %v5153 = vpop.trf.xlu0
        %v5154 = vpop.trf.xlu0
        %v5155 = vpop.trf.xlu0
        %v5156 = vpop.trf.xlu0
        %v5157 = vpop.trf.xlu0
        %v5158 = vpop.trf.xlu0
        %v5159 = vpop.trf.xlu0
        %v5160 = vpop.trf.xlu0
        %v5161 = vpop.trf.xlu0
        %v5162 = vpop.trf.xlu0
        %v5163 = vpop.trf.xlu0
        %v5164 = vpop.trf.xlu0
        %5165 = vxpose.xlu0.b32.start [1/16] %v3679, 128
        %5166 = vxpose.xlu0.b32.cont [2/16] %v3682, 128
        %5167 = vxpose.xlu0.b32.cont [3/16] 0.0, 128
        %5168 = vxpose.xlu0.b32.cont [4/16] 0.0, 128
        %5169 = vxpose.xlu0.b32.cont [5/16] 0.0, 128
        %5170 = vxpose.xlu0.b32.cont [6/16] 0.0, 128
        %5171 = vxpose.xlu0.b32.cont [7/16] 0.0, 128
        %5172 = vxpose.xlu0.b32.cont [8/16] 0.0, 128
        %5173 = vxpose.xlu0.b32.cont [9/16] 0.0, 128
        %5174 = vxpose.xlu0.b32.cont [10/16] 0.0, 128
        %5175 = vxpose.xlu0.b32.cont [11/16] 0.0, 128
        %5176 = vxpose.xlu0.b32.cont [12/16] 0.0, 128
        %5177 = vxpose.xlu0.b32.cont [13/16] 0.0, 128
        %5178 = vxpose.xlu0.b32.cont [14/16] 0.0, 128
        %5179 = vxpose.xlu0.b32.cont [15/16] 0.0, 128
        %5180 = vxpose.xlu0.b32.end [16/16] 0.0, 128
        %v5181 = vpop.trf.xlu0
        %v5182 = vpop.trf.xlu0
        %v5183 = vpop.trf.xlu0
        %v5184 = vpop.trf.xlu0
        %v5185 = vpop.trf.xlu0
        %v5186 = vpop.trf.xlu0
        %v5187 = vpop.trf.xlu0
        %v5188 = vpop.trf.xlu0
        %v5189 = vpop.trf.xlu0
        %v5190 = vpop.trf.xlu0
        %v5191 = vpop.trf.xlu0
        %v5192 = vpop.trf.xlu0
        %v5193 = vpop.trf.xlu0
        %v5194 = vpop.trf.xlu0
        %v5195 = vpop.trf.xlu0
        %v5196 = vpop.trf.xlu0
        %5197 = vxpose.xlu0.b32.start [1/16] %v3687, 128
        %5198 = vxpose.xlu0.b32.cont [2/16] %v3690, 128
        %5199 = vxpose.xlu0.b32.cont [3/16] 0.0, 128
        %5200 = vxpose.xlu0.b32.cont [4/16] 0.0, 128
        %5201 = vxpose.xlu0.b32.cont [5/16] 0.0, 128
        %5202 = vxpose.xlu0.b32.cont [6/16] 0.0, 128
        %5203 = vxpose.xlu0.b32.cont [7/16] 0.0, 128
        %5204 = vxpose.xlu0.b32.cont [8/16] 0.0, 128
        %5205 = vxpose.xlu0.b32.cont [9/16] 0.0, 128
        %5206 = vxpose.xlu0.b32.cont [10/16] 0.0, 128
        %5207 = vxpose.xlu0.b32.cont [11/16] 0.0, 128
        %5208 = vxpose.xlu0.b32.cont [12/16] 0.0, 128
        %5209 = vxpose.xlu0.b32.cont [13/16] 0.0, 128
        %5210 = vxpose.xlu0.b32.cont [14/16] 0.0, 128
        %5211 = vxpose.xlu0.b32.cont [15/16] 0.0, 128
        %5212 = vxpose.xlu0.b32.end [16/16] 0.0, 128
        %v5213 = vpop.trf.xlu0
        %v5214 = vpop.trf.xlu0
        %v5215 = vpop.trf.xlu0
        %v5216 = vpop.trf.xlu0
        %v5217 = vpop.trf.xlu0
        %v5218 = vpop.trf.xlu0
        %v5219 = vpop.trf.xlu0
        %v5220 = vpop.trf.xlu0
        %v5221 = vpop.trf.xlu0
        %v5222 = vpop.trf.xlu0
        %v5223 = vpop.trf.xlu0
        %v5224 = vpop.trf.xlu0
        %v5225 = vpop.trf.xlu0
        %v5226 = vpop.trf.xlu0
        %v5227 = vpop.trf.xlu0
        %v5228 = vpop.trf.xlu0
        %v5229 = vcombine.low %v3709, %v3773
        %v5231 = vunpack.c.l.s4 1983009808
        %v5232 = vunpack.c.0.s8 %v5231
        %v5233 = vlaneseq
        %v5234 = vshrl.u32 %v5233, 7
        %v5235 = vsub.s32 %v5232, %v5234
        %v5236 = vrot.slane %v5229, %v5235
        %v5237 = vcombine.low %v3741, %v3805
        %v5239 = vunpack.c.l.s4 1983009808
        %v5240 = vunpack.c.0.s8 %v5239
        %v5241 = vlaneseq
        %v5242 = vshrl.u32 %v5241, 7
        %v5243 = vsub.s32 %v5240, %v5242
        %v5244 = vrot.slane %v5237, %v5243
        %v5246 = vunpack.c.l.s4 1983009808
        %v5247 = vunpack.c.0.s8 %v5246
        %v5248 = vlaneseq
        %v5249 = vshrl.u32 %v5248, 7
        %v5250 = vsub.s32 %v5247, %v5249
        %v5251 = vrot.slane %v3837, %v5250
        %v5253 = vunpack.c.l.s4 1983009808
        %v5254 = vunpack.c.0.s8 %v5253
        %v5255 = vlaneseq
        %v5256 = vshrl.u32 %v5255, 7
        %v5257 = vsub.s32 %v5254, %v5256
        %v5258 = vrot.slane %v3869, %v5257
        %v5259 = vcombine.low %v5236, %v5244
        %v5260 = vcombine.high %v5236, %v5244
        %v5262 = vunpack.c.l.s4 1934713408
        %v5263 = vunpack.c.0.s8 %v5262
        %v5264 = vlaneseq
        %v5265 = vshrl.u32 %v5264, 7
        %v5266 = vsub.s32 %v5263, %v5265
        %v5267 = vrot.slane %v5259, %v5266
        %v5269 = vunpack.c.l.s4 1934713408
        %v5270 = vunpack.c.0.s8 %v5269
        %v5271 = vlaneseq
        %v5272 = vshrl.u32 %v5271, 7
        %v5273 = vsub.s32 %v5270, %v5272
        %v5274 = vrot.slane %v5260, %v5273
        %v5275 = vcombine.low %v5251, %v5258
        %v5276 = vcombine.high %v5251, %v5258
        %v5278 = vunpack.c.l.s4 1934713408
        %v5279 = vunpack.c.0.s8 %v5278
        %v5280 = vlaneseq
        %v5281 = vshrl.u32 %v5280, 7
        %v5282 = vsub.s32 %v5279, %v5281
        %v5283 = vrot.slane %v5275, %v5282
        %v5285 = vunpack.c.l.s4 1934713408
        %v5286 = vunpack.c.0.s8 %v5285
        %v5287 = vlaneseq
        %v5288 = vshrl.u32 %v5287, 7
        %v5289 = vsub.s32 %v5286, %v5288
        %v5290 = vrot.slane %v5276, %v5289
        %v5291 = vcombine.low %v5267, %v5283
        %v5292 = vcombine.high %v5267, %v5283
        %v5293 = vcombine.low %v5274, %v5290
        %v5294 = vcombine.high %v5274, %v5290
        %v5295 = vcombine.low %v3901, %v3965
        %v5297 = vunpack.c.l.s4 1983009808
        %v5298 = vunpack.c.0.s8 %v5297
        %v5299 = vlaneseq
        %v5300 = vshrl.u32 %v5299, 7
        %v5301 = vsub.s32 %v5298, %v5300
        %v5302 = vrot.slane %v5295, %v5301
        %v5303 = vcombine.low %v3933, %v3997
        %v5305 = vunpack.c.l.s4 1983009808
        %v5306 = vunpack.c.0.s8 %v5305
        %v5307 = vlaneseq
        %v5308 = vshrl.u32 %v5307, 7
        %v5309 = vsub.s32 %v5306, %v5308
        %v5310 = vrot.slane %v5303, %v5309
        %v5312 = vunpack.c.l.s4 1983009808
        %v5313 = vunpack.c.0.s8 %v5312
        %v5314 = vlaneseq
        %v5315 = vshrl.u32 %v5314, 7
        %v5316 = vsub.s32 %v5313, %v5315
        %v5317 = vrot.slane %v4029, %v5316
        %v5319 = vunpack.c.l.s4 1983009808
        %v5320 = vunpack.c.0.s8 %v5319
        %v5321 = vlaneseq
        %v5322 = vshrl.u32 %v5321, 7
        %v5323 = vsub.s32 %v5320, %v5322
        %v5324 = vrot.slane %v4061, %v5323
        %v5325 = vcombine.low %v5302, %v5310
        %v5326 = vcombine.high %v5302, %v5310
        %v5328 = vunpack.c.l.s4 1934713408
        %v5329 = vunpack.c.0.s8 %v5328
        %v5330 = vlaneseq
        %v5331 = vshrl.u32 %v5330, 7
        %v5332 = vsub.s32 %v5329, %v5331
        %v5333 = vrot.slane %v5325, %v5332
        %v5335 = vunpack.c.l.s4 1934713408
        %v5336 = vunpack.c.0.s8 %v5335
        %v5337 = vlaneseq
        %v5338 = vshrl.u32 %v5337, 7
        %v5339 = vsub.s32 %v5336, %v5338
        %v5340 = vrot.slane %v5326, %v5339
        %v5341 = vcombine.low %v5317, %v5324
        %v5342 = vcombine.high %v5317, %v5324
        %v5344 = vunpack.c.l.s4 1934713408
        %v5345 = vunpack.c.0.s8 %v5344
        %v5346 = vlaneseq
        %v5347 = vshrl.u32 %v5346, 7
        %v5348 = vsub.s32 %v5345, %v5347
        %v5349 = vrot.slane %v5341, %v5348
        %v5351 = vunpack.c.l.s4 1934713408
        %v5352 = vunpack.c.0.s8 %v5351
        %v5353 = vlaneseq
        %v5354 = vshrl.u32 %v5353, 7
        %v5355 = vsub.s32 %v5352, %v5354
        %v5356 = vrot.slane %v5342, %v5355
        %v5357 = vcombine.low %v5333, %v5349
        %v5358 = vcombine.high %v5333, %v5349
        %v5359 = vcombine.low %v5340, %v5356
        %v5360 = vcombine.high %v5340, %v5356
        %v5361 = vcombine.low %v4093, %v4157
        %v5363 = vunpack.c.l.s4 1983009808
        %v5364 = vunpack.c.0.s8 %v5363
        %v5365 = vlaneseq
        %v5366 = vshrl.u32 %v5365, 7
        %v5367 = vsub.s32 %v5364, %v5366
        %v5368 = vrot.slane %v5361, %v5367
        %v5369 = vcombine.low %v4125, %v4189
        %v5371 = vunpack.c.l.s4 1983009808
        %v5372 = vunpack.c.0.s8 %v5371
        %v5373 = vlaneseq
        %v5374 = vshrl.u32 %v5373, 7
        %v5375 = vsub.s32 %v5372, %v5374
        %v5376 = vrot.slane %v5369, %v5375
        %v5378 = vunpack.c.l.s4 1983009808
        %v5379 = vunpack.c.0.s8 %v5378
        %v5380 = vlaneseq
        %v5381 = vshrl.u32 %v5380, 7
        %v5382 = vsub.s32 %v5379, %v5381
        %v5383 = vrot.slane %v4221, %v5382
        %v5385 = vunpack.c.l.s4 1983009808
        %v5386 = vunpack.c.0.s8 %v5385
        %v5387 = vlaneseq
        %v5388 = vshrl.u32 %v5387, 7
        %v5389 = vsub.s32 %v5386, %v5388
        %v5390 = vrot.slane %v4253, %v5389
        %v5391 = vcombine.low %v5368, %v5376
        %v5392 = vcombine.high %v5368, %v5376
        %v5394 = vunpack.c.l.s4 1934713408
        %v5395 = vunpack.c.0.s8 %v5394
        %v5396 = vlaneseq
        %v5397 = vshrl.u32 %v5396, 7
        %v5398 = vsub.s32 %v5395, %v5397
        %v5399 = vrot.slane %v5391, %v5398
        %v5401 = vunpack.c.l.s4 1934713408
        %v5402 = vunpack.c.0.s8 %v5401
        %v5403 = vlaneseq
        %v5404 = vshrl.u32 %v5403, 7
        %v5405 = vsub.s32 %v5402, %v5404
        %v5406 = vrot.slane %v5392, %v5405
        %v5407 = vcombine.low %v5383, %v5390
        %v5408 = vcombine.high %v5383, %v5390
        %v5410 = vunpack.c.l.s4 1934713408
        %v5411 = vunpack.c.0.s8 %v5410
        %v5412 = vlaneseq
        %v5413 = vshrl.u32 %v5412, 7
        %v5414 = vsub.s32 %v5411, %v5413
        %v5415 = vrot.slane %v5407, %v5414
        %v5417 = vunpack.c.l.s4 1934713408
        %v5418 = vunpack.c.0.s8 %v5417
        %v5419 = vlaneseq
        %v5420 = vshrl.u32 %v5419, 7
        %v5421 = vsub.s32 %v5418, %v5420
        %v5422 = vrot.slane %v5408, %v5421
        %v5423 = vcombine.low %v5399, %v5415
        %v5424 = vcombine.high %v5399, %v5415
        %v5425 = vcombine.low %v5406, %v5422
        %v5426 = vcombine.high %v5406, %v5422
        %v5427 = vcombine.low %v4285, %v4349
        %v5429 = vunpack.c.l.s4 1983009808
        %v5430 = vunpack.c.0.s8 %v5429
        %v5431 = vlaneseq
        %v5432 = vshrl.u32 %v5431, 7
        %v5433 = vsub.s32 %v5430, %v5432
        %v5434 = vrot.slane %v5427, %v5433
        %v5435 = vcombine.low %v4317, %v4381
        %v5437 = vunpack.c.l.s4 1983009808
        %v5438 = vunpack.c.0.s8 %v5437
        %v5439 = vlaneseq
        %v5440 = vshrl.u32 %v5439, 7
        %v5441 = vsub.s32 %v5438, %v5440
        %v5442 = vrot.slane %v5435, %v5441
        %v5444 = vunpack.c.l.s4 1983009808
        %v5445 = vunpack.c.0.s8 %v5444
        %v5446 = vlaneseq
        %v5447 = vshrl.u32 %v5446, 7
        %v5448 = vsub.s32 %v5445, %v5447
        %v5449 = vrot.slane %v4413, %v5448
        %v5451 = vunpack.c.l.s4 1983009808
        %v5452 = vunpack.c.0.s8 %v5451
        %v5453 = vlaneseq
        %v5454 = vshrl.u32 %v5453, 7
        %v5455 = vsub.s32 %v5452, %v5454
        %v5456 = vrot.slane %v4445, %v5455
        %v5457 = vcombine.low %v5434, %v5442
        %v5458 = vcombine.high %v5434, %v5442
        %v5460 = vunpack.c.l.s4 1934713408
        %v5461 = vunpack.c.0.s8 %v5460
        %v5462 = vlaneseq
        %v5463 = vshrl.u32 %v5462, 7
        %v5464 = vsub.s32 %v5461, %v5463
        %v5465 = vrot.slane %v5457, %v5464
        %v5467 = vunpack.c.l.s4 1934713408
        %v5468 = vunpack.c.0.s8 %v5467
        %v5469 = vlaneseq
        %v5470 = vshrl.u32 %v5469, 7
        %v5471 = vsub.s32 %v5468, %v5470
        %v5472 = vrot.slane %v5458, %v5471
        %v5473 = vcombine.low %v5449, %v5456
        %v5474 = vcombine.high %v5449, %v5456
        %v5476 = vunpack.c.l.s4 1934713408
        %v5477 = vunpack.c.0.s8 %v5476
        %v5478 = vlaneseq
        %v5479 = vshrl.u32 %v5478, 7
        %v5480 = vsub.s32 %v5477, %v5479
        %v5481 = vrot.slane %v5473, %v5480
        %v5483 = vunpack.c.l.s4 1934713408
        %v5484 = vunpack.c.0.s8 %v5483
        %v5485 = vlaneseq
        %v5486 = vshrl.u32 %v5485, 7
        %v5487 = vsub.s32 %v5484, %v5486
        %v5488 = vrot.slane %v5474, %v5487
        %v5489 = vcombine.low %v5465, %v5481
        %v5490 = vcombine.high %v5465, %v5481
        %v5491 = vcombine.low %v5472, %v5488
        %v5492 = vcombine.high %v5472, %v5488
        %v5493 = vcombine.low %v4477, %v4541
        %v5495 = vunpack.c.l.s4 1983009808
        %v5496 = vunpack.c.0.s8 %v5495
        %v5497 = vlaneseq
        %v5498 = vshrl.u32 %v5497, 7
        %v5499 = vsub.s32 %v5496, %v5498
        %v5500 = vrot.slane %v5493, %v5499
        %v5501 = vcombine.low %v4509, %v4573
        %v5503 = vunpack.c.l.s4 1983009808
        %v5504 = vunpack.c.0.s8 %v5503
        %v5505 = vlaneseq
        %v5506 = vshrl.u32 %v5505, 7
        %v5507 = vsub.s32 %v5504, %v5506
        %v5508 = vrot.slane %v5501, %v5507
        %v5510 = vunpack.c.l.s4 1983009808
        %v5511 = vunpack.c.0.s8 %v5510
        %v5512 = vlaneseq
        %v5513 = vshrl.u32 %v5512, 7
        %v5514 = vsub.s32 %v5511, %v5513
        %v5515 = vrot.slane %v4605, %v5514
        %v5517 = vunpack.c.l.s4 1983009808
        %v5518 = vunpack.c.0.s8 %v5517
        %v5519 = vlaneseq
        %v5520 = vshrl.u32 %v5519, 7
        %v5521 = vsub.s32 %v5518, %v5520
        %v5522 = vrot.slane %v4637, %v5521
        %v5523 = vcombine.low %v5500, %v5508
        %v5524 = vcombine.high %v5500, %v5508
        %v5526 = vunpack.c.l.s4 1934713408
        %v5527 = vunpack.c.0.s8 %v5526
        %v5528 = vlaneseq
        %v5529 = vshrl.u32 %v5528, 7
        %v5530 = vsub.s32 %v5527, %v5529
        %v5531 = vrot.slane %v5523, %v5530
        %v5533 = vunpack.c.l.s4 1934713408
        %v5534 = vunpack.c.0.s8 %v5533
        %v5535 = vlaneseq
        %v5536 = vshrl.u32 %v5535, 7
        %v5537 = vsub.s32 %v5534, %v5536
        %v5538 = vrot.slane %v5524, %v5537
        %v5539 = vcombine.low %v5515, %v5522
        %v5540 = vcombine.high %v5515, %v5522
        %v5542 = vunpack.c.l.s4 1934713408
        %v5543 = vunpack.c.0.s8 %v5542
        %v5544 = vlaneseq
        %v5545 = vshrl.u32 %v5544, 7
        %v5546 = vsub.s32 %v5543, %v5545
        %v5547 = vrot.slane %v5539, %v5546
        %v5549 = vunpack.c.l.s4 1934713408
        %v5550 = vunpack.c.0.s8 %v5549
        %v5551 = vlaneseq
        %v5552 = vshrl.u32 %v5551, 7
        %v5553 = vsub.s32 %v5550, %v5552
        %v5554 = vrot.slane %v5540, %v5553
        %v5555 = vcombine.low %v5531, %v5547
        %v5556 = vcombine.high %v5531, %v5547
        %v5557 = vcombine.low %v5538, %v5554
        %v5558 = vcombine.high %v5538, %v5554
        %v5559 = vcombine.low %v4669, %v4733
        %v5561 = vunpack.c.l.s4 1983009808
        %v5562 = vunpack.c.0.s8 %v5561
        %v5563 = vlaneseq
        %v5564 = vshrl.u32 %v5563, 7
        %v5565 = vsub.s32 %v5562, %v5564
        %v5566 = vrot.slane %v5559, %v5565
        %v5567 = vcombine.low %v4701, %v4765
        %v5569 = vunpack.c.l.s4 1983009808
        %v5570 = vunpack.c.0.s8 %v5569
        %v5571 = vlaneseq
        %v5572 = vshrl.u32 %v5571, 7
        %v5573 = vsub.s32 %v5570, %v5572
        %v5574 = vrot.slane %v5567, %v5573
        %v5576 = vunpack.c.l.s4 1983009808
        %v5577 = vunpack.c.0.s8 %v5576
        %v5578 = vlaneseq
        %v5579 = vshrl.u32 %v5578, 7
        %v5580 = vsub.s32 %v5577, %v5579
        %v5581 = vrot.slane %v4797, %v5580
        %v5583 = vunpack.c.l.s4 1983009808
        %v5584 = vunpack.c.0.s8 %v5583
        %v5585 = vlaneseq
        %v5586 = vshrl.u32 %v5585, 7
        %v5587 = vsub.s32 %v5584, %v5586
        %v5588 = vrot.slane %v4829, %v5587
        %v5589 = vcombine.low %v5566, %v5574
        %v5590 = vcombine.high %v5566, %v5574
        %v5592 = vunpack.c.l.s4 1934713408
        %v5593 = vunpack.c.0.s8 %v5592
        %v5594 = vlaneseq
        %v5595 = vshrl.u32 %v5594, 7
        %v5596 = vsub.s32 %v5593, %v5595
        %v5597 = vrot.slane %v5589, %v5596
        %v5599 = vunpack.c.l.s4 1934713408
        %v5600 = vunpack.c.0.s8 %v5599
        %v5601 = vlaneseq
        %v5602 = vshrl.u32 %v5601, 7
        %v5603 = vsub.s32 %v5600, %v5602
        %v5604 = vrot.slane %v5590, %v5603
        %v5605 = vcombine.low %v5581, %v5588
        %v5606 = vcombine.high %v5581, %v5588
        %v5608 = vunpack.c.l.s4 1934713408
        %v5609 = vunpack.c.0.s8 %v5608
        %v5610 = vlaneseq
        %v5611 = vshrl.u32 %v5610, 7
        %v5612 = vsub.s32 %v5609, %v5611
        %v5613 = vrot.slane %v5605, %v5612
        %v5615 = vunpack.c.l.s4 1934713408
        %v5616 = vunpack.c.0.s8 %v5615
        %v5617 = vlaneseq
        %v5618 = vshrl.u32 %v5617, 7
        %v5619 = vsub.s32 %v5616, %v5618
        %v5620 = vrot.slane %v5606, %v5619
        %v5621 = vcombine.low %v5597, %v5613
        %v5622 = vcombine.high %v5597, %v5613
        %v5623 = vcombine.low %v5604, %v5620
        %v5624 = vcombine.high %v5604, %v5620
        %v5625 = vcombine.low %v4861, %v4925
        %v5627 = vunpack.c.l.s4 1983009808
        %v5628 = vunpack.c.0.s8 %v5627
        %v5629 = vlaneseq
        %v5630 = vshrl.u32 %v5629, 7
        %v5631 = vsub.s32 %v5628, %v5630
        %v5632 = vrot.slane %v5625, %v5631
        %v5633 = vcombine.low %v4893, %v4957
        %v5635 = vunpack.c.l.s4 1983009808
        %v5636 = vunpack.c.0.s8 %v5635
        %v5637 = vlaneseq
        %v5638 = vshrl.u32 %v5637, 7
        %v5639 = vsub.s32 %v5636, %v5638
        %v5640 = vrot.slane %v5633, %v5639
        %v5642 = vunpack.c.l.s4 1983009808
        %v5643 = vunpack.c.0.s8 %v5642
        %v5644 = vlaneseq
        %v5645 = vshrl.u32 %v5644, 7
        %v5646 = vsub.s32 %v5643, %v5645
        %v5647 = vrot.slane %v4989, %v5646
        %v5649 = vunpack.c.l.s4 1983009808
        %v5650 = vunpack.c.0.s8 %v5649
        %v5651 = vlaneseq
        %v5652 = vshrl.u32 %v5651, 7
        %v5653 = vsub.s32 %v5650, %v5652
        %v5654 = vrot.slane %v5021, %v5653
        %v5655 = vcombine.low %v5632, %v5640
        %v5656 = vcombine.high %v5632, %v5640
        %v5658 = vunpack.c.l.s4 1934713408
        %v5659 = vunpack.c.0.s8 %v5658
        %v5660 = vlaneseq
        %v5661 = vshrl.u32 %v5660, 7
        %v5662 = vsub.s32 %v5659, %v5661
        %v5663 = vrot.slane %v5655, %v5662
        %v5665 = vunpack.c.l.s4 1934713408
        %v5666 = vunpack.c.0.s8 %v5665
        %v5667 = vlaneseq
        %v5668 = vshrl.u32 %v5667, 7
        %v5669 = vsub.s32 %v5666, %v5668
        %v5670 = vrot.slane %v5656, %v5669
        %v5671 = vcombine.low %v5647, %v5654
        %v5672 = vcombine.high %v5647, %v5654
        %v5674 = vunpack.c.l.s4 1934713408
        %v5675 = vunpack.c.0.s8 %v5674
        %v5676 = vlaneseq
        %v5677 = vshrl.u32 %v5676, 7
        %v5678 = vsub.s32 %v5675, %v5677
        %v5679 = vrot.slane %v5671, %v5678
        %v5681 = vunpack.c.l.s4 1934713408
        %v5682 = vunpack.c.0.s8 %v5681
        %v5683 = vlaneseq
        %v5684 = vshrl.u32 %v5683, 7
        %v5685 = vsub.s32 %v5682, %v5684
        %v5686 = vrot.slane %v5672, %v5685
        %v5687 = vcombine.low %v5663, %v5679
        %v5688 = vcombine.high %v5663, %v5679
        %v5689 = vcombine.low %v5670, %v5686
        %v5690 = vcombine.high %v5670, %v5686
        %v5691 = vcombine.low %v5053, %v5117
        %v5693 = vunpack.c.l.s4 1983009808
        %v5694 = vunpack.c.0.s8 %v5693
        %v5695 = vlaneseq
        %v5696 = vshrl.u32 %v5695, 7
        %v5697 = vsub.s32 %v5694, %v5696
        %v5698 = vrot.slane %v5691, %v5697
        %v5699 = vcombine.low %v5085, %v5149
        %v5701 = vunpack.c.l.s4 1983009808
        %v5702 = vunpack.c.0.s8 %v5701
        %v5703 = vlaneseq
        %v5704 = vshrl.u32 %v5703, 7
        %v5705 = vsub.s32 %v5702, %v5704
        %v5706 = vrot.slane %v5699, %v5705
        %v5708 = vunpack.c.l.s4 1983009808
        %v5709 = vunpack.c.0.s8 %v5708
        %v5710 = vlaneseq
        %v5711 = vshrl.u32 %v5710, 7
        %v5712 = vsub.s32 %v5709, %v5711
        %v5713 = vrot.slane %v5181, %v5712
        %v5715 = vunpack.c.l.s4 1983009808
        %v5716 = vunpack.c.0.s8 %v5715
        %v5717 = vlaneseq
        %v5718 = vshrl.u32 %v5717, 7
        %v5719 = vsub.s32 %v5716, %v5718
        %v5720 = vrot.slane %v5213, %v5719
        %v5721 = vcombine.low %v5698, %v5706
        %v5722 = vcombine.high %v5698, %v5706
        %v5724 = vunpack.c.l.s4 1934713408
        %v5725 = vunpack.c.0.s8 %v5724
        %v5726 = vlaneseq
        %v5727 = vshrl.u32 %v5726, 7
        %v5728 = vsub.s32 %v5725, %v5727
        %v5729 = vrot.slane %v5721, %v5728
        %v5731 = vunpack.c.l.s4 1934713408
        %v5732 = vunpack.c.0.s8 %v5731
        %v5733 = vlaneseq
        %v5734 = vshrl.u32 %v5733, 7
        %v5735 = vsub.s32 %v5732, %v5734
        %v5736 = vrot.slane %v5722, %v5735
        %v5737 = vcombine.low %v5713, %v5720
        %v5738 = vcombine.high %v5713, %v5720
        %v5740 = vunpack.c.l.s4 1934713408
        %v5741 = vunpack.c.0.s8 %v5740
        %v5742 = vlaneseq
        %v5743 = vshrl.u32 %v5742, 7
        %v5744 = vsub.s32 %v5741, %v5743
        %v5745 = vrot.slane %v5737, %v5744
        %v5747 = vunpack.c.l.s4 1934713408
        %v5748 = vunpack.c.0.s8 %v5747
        %v5749 = vlaneseq
        %v5750 = vshrl.u32 %v5749, 7
        %v5751 = vsub.s32 %v5748, %v5750
        %v5752 = vrot.slane %v5738, %v5751
        %v5753 = vcombine.low %v5729, %v5745
        %v5754 = vcombine.high %v5729, %v5745
        %v5755 = vcombine.low %v5736, %v5752
        %v5756 = vcombine.high %v5736, %v5752
        %v5761 = vcombine.high %v450, %v450
        %v5763 = vunpack.c.l.s4 1966171168
        %v5764 = vunpack.c.0.s8 %v5763
        %v5765 = vlaneseq
        %v5766 = vshrl.u32 %v5765, 7
        %v5767 = vsub.s32 %v5764, %v5766
        %v5768 = vrot.slane %v450, %v5767
        %v5770 = vunpack.c.l.s4 1966171168
        %v5771 = vunpack.c.0.s8 %v5770
        %v5772 = vlaneseq
        %v5773 = vshrl.u32 %v5772, 7
        %v5774 = vsub.s32 %v5771, %v5773
        %v5775 = vrot.slane %v5761, %v5774
        %v5776 = vcombine.high %v5768, %v5768
        %v5777 = vcombine.high %v5775, %v5775
        %v5779 = vunpack.c.l.s4 1966171168
        %v5780 = vunpack.c.0.s8 %v5779
        %v5781 = vlaneseq
        %v5782 = vshrl.u32 %v5781, 7
        %v5783 = vsub.s32 %v5780, %v5782
        %v5784 = vrot.slane %v5768, %v5783
        %v5786 = vunpack.c.l.s4 1966171168
        %v5787 = vunpack.c.0.s8 %v5786
        %v5788 = vlaneseq
        %v5789 = vshrl.u32 %v5788, 7
        %v5790 = vsub.s32 %v5787, %v5789
        %v5791 = vrot.slane %v5775, %v5790
        %v5793 = vunpack.c.l.s4 1966171168
        %v5794 = vunpack.c.0.s8 %v5793
        %v5795 = vlaneseq
        %v5796 = vshrl.u32 %v5795, 7
        %v5797 = vsub.s32 %v5794, %v5796
        %v5798 = vrot.slane %v5776, %v5797
        %v5800 = vunpack.c.l.s4 1966171168
        %v5801 = vunpack.c.0.s8 %v5800
        %v5802 = vlaneseq
        %v5803 = vshrl.u32 %v5802, 7
        %v5804 = vsub.s32 %v5801, %v5803
        %v5805 = vrot.slane %v5777, %v5804
        %v5806 = vcombine.high %v5784, %v5784
        %v5807 = vcombine.high %v5791, %v5791
        %v5808 = vcombine.high %v5798, %v5798
        %v5809 = vcombine.high %v5805, %v5805
        %v5810 = vcombine.high %v451, %v451
        %v5812 = vunpack.c.l.s4 1966171168
        %v5813 = vunpack.c.0.s8 %v5812
        %v5814 = vlaneseq
        %v5815 = vshrl.u32 %v5814, 7
        %v5816 = vsub.s32 %v5813, %v5815
        %v5817 = vrot.slane %v451, %v5816
        %v5819 = vunpack.c.l.s4 1966171168
        %v5820 = vunpack.c.0.s8 %v5819
        %v5821 = vlaneseq
        %v5822 = vshrl.u32 %v5821, 7
        %v5823 = vsub.s32 %v5820, %v5822
        %v5824 = vrot.slane %v5810, %v5823
        %v5825 = vcombine.high %v5817, %v5817
        %v5826 = vcombine.high %v5824, %v5824
        %v5828 = vunpack.c.l.s4 1966171168
        %v5829 = vunpack.c.0.s8 %v5828
        %v5830 = vlaneseq
        %v5831 = vshrl.u32 %v5830, 7
        %v5832 = vsub.s32 %v5829, %v5831
        %v5833 = vrot.slane %v5817, %v5832
        %v5835 = vunpack.c.l.s4 1966171168
        %v5836 = vunpack.c.0.s8 %v5835
        %v5837 = vlaneseq
        %v5838 = vshrl.u32 %v5837, 7
        %v5839 = vsub.s32 %v5836, %v5838
        %v5840 = vrot.slane %v5824, %v5839
        %v5842 = vunpack.c.l.s4 1966171168
        %v5843 = vunpack.c.0.s8 %v5842
        %v5844 = vlaneseq
        %v5845 = vshrl.u32 %v5844, 7
        %v5846 = vsub.s32 %v5843, %v5845
        %v5847 = vrot.slane %v5825, %v5846
        %v5849 = vunpack.c.l.s4 1966171168
        %v5850 = vunpack.c.0.s8 %v5849
        %v5851 = vlaneseq
        %v5852 = vshrl.u32 %v5851, 7
        %v5853 = vsub.s32 %v5850, %v5852
        %v5854 = vrot.slane %v5826, %v5853
        %v5855 = vcombine.high %v5833, %v5833
        %v5856 = vcombine.high %v5840, %v5840
        %v5857 = vcombine.high %v5847, %v5847
        %v5858 = vcombine.high %v5854, %v5854
        %v5859 = vcombine.high %v452, %v452
        %v5861 = vunpack.c.l.s4 1966171168
        %v5862 = vunpack.c.0.s8 %v5861
        %v5863 = vlaneseq
        %v5864 = vshrl.u32 %v5863, 7
        %v5865 = vsub.s32 %v5862, %v5864
        %v5866 = vrot.slane %v452, %v5865
        %v5868 = vunpack.c.l.s4 1966171168
        %v5869 = vunpack.c.0.s8 %v5868
        %v5870 = vlaneseq
        %v5871 = vshrl.u32 %v5870, 7
        %v5872 = vsub.s32 %v5869, %v5871
        %v5873 = vrot.slane %v5859, %v5872
        %v5874 = vcombine.high %v5866, %v5866
        %v5875 = vcombine.high %v5873, %v5873
        %v5877 = vunpack.c.l.s4 1966171168
        %v5878 = vunpack.c.0.s8 %v5877
        %v5879 = vlaneseq
        %v5880 = vshrl.u32 %v5879, 7
        %v5881 = vsub.s32 %v5878, %v5880
        %v5882 = vrot.slane %v5866, %v5881
        %v5884 = vunpack.c.l.s4 1966171168
        %v5885 = vunpack.c.0.s8 %v5884
        %v5886 = vlaneseq
        %v5887 = vshrl.u32 %v5886, 7
        %v5888 = vsub.s32 %v5885, %v5887
        %v5889 = vrot.slane %v5873, %v5888
        %v5891 = vunpack.c.l.s4 1966171168
        %v5892 = vunpack.c.0.s8 %v5891
        %v5893 = vlaneseq
        %v5894 = vshrl.u32 %v5893, 7
        %v5895 = vsub.s32 %v5892, %v5894
        %v5896 = vrot.slane %v5874, %v5895
        %v5898 = vunpack.c.l.s4 1966171168
        %v5899 = vunpack.c.0.s8 %v5898
        %v5900 = vlaneseq
        %v5901 = vshrl.u32 %v5900, 7
        %v5902 = vsub.s32 %v5899, %v5901
        %v5903 = vrot.slane %v5875, %v5902
        %v5904 = vcombine.high %v5882, %v5882
        %v5905 = vcombine.high %v5889, %v5889
        %v5906 = vcombine.high %v5896, %v5896
        %v5907 = vcombine.high %v5903, %v5903
        %v5908 = vcombine.high %v453, %v453
        %v5910 = vunpack.c.l.s4 1966171168
        %v5911 = vunpack.c.0.s8 %v5910
        %v5912 = vlaneseq
        %v5913 = vshrl.u32 %v5912, 7
        %v5914 = vsub.s32 %v5911, %v5913
        %v5915 = vrot.slane %v453, %v5914
        %v5917 = vunpack.c.l.s4 1966171168
        %v5918 = vunpack.c.0.s8 %v5917
        %v5919 = vlaneseq
        %v5920 = vshrl.u32 %v5919, 7
        %v5921 = vsub.s32 %v5918, %v5920
        %v5922 = vrot.slane %v5908, %v5921
        %v5923 = vcombine.high %v5915, %v5915
        %v5924 = vcombine.high %v5922, %v5922
        %v5926 = vunpack.c.l.s4 1966171168
        %v5927 = vunpack.c.0.s8 %v5926
        %v5928 = vlaneseq
        %v5929 = vshrl.u32 %v5928, 7
        %v5930 = vsub.s32 %v5927, %v5929
        %v5931 = vrot.slane %v5915, %v5930
        %v5933 = vunpack.c.l.s4 1966171168
        %v5934 = vunpack.c.0.s8 %v5933
        %v5935 = vlaneseq
        %v5936 = vshrl.u32 %v5935, 7
        %v5937 = vsub.s32 %v5934, %v5936
        %v5938 = vrot.slane %v5922, %v5937
        %v5940 = vunpack.c.l.s4 1966171168
        %v5941 = vunpack.c.0.s8 %v5940
        %v5942 = vlaneseq
        %v5943 = vshrl.u32 %v5942, 7
        %v5944 = vsub.s32 %v5941, %v5943
        %v5945 = vrot.slane %v5923, %v5944
        %v5947 = vunpack.c.l.s4 1966171168
        %v5948 = vunpack.c.0.s8 %v5947
        %v5949 = vlaneseq
        %v5950 = vshrl.u32 %v5949, 7
        %v5951 = vsub.s32 %v5948, %v5950
        %v5952 = vrot.slane %v5924, %v5951
        %v5953 = vcombine.high %v5931, %v5931
        %v5954 = vcombine.high %v5938, %v5938
        %v5955 = vcombine.high %v5945, %v5945
        %v5956 = vcombine.high %v5952, %v5952
        %v5957 = vlaneseq
        %v5958 = vshrl.u32 %v5957, 7
        %v5959 = vsub.s32 0, %v5958
        %v5960 = vrot.slane %v5784, %v5959
        %v5961 = vlaneseq
        %v5962 = vshrl.u32 %v5961, 7
        %v5963 = vsub.s32 0, %v5962
        %v5964 = vrot.slane %v5798, %v5963
        %v5965 = vlaneseq
        %v5966 = vshrl.u32 %v5965, 7
        %v5967 = vsub.s32 0, %v5966
        %v5968 = vrot.slane %v5806, %v5967
        %v5969 = vlaneseq
        %v5970 = vshrl.u32 %v5969, 7
        %v5971 = vsub.s32 0, %v5970
        %v5972 = vrot.slane %v5808, %v5971
        %v5973 = vlaneseq
        %v5974 = vshrl.u32 %v5973, 7
        %v5975 = vsub.s32 0, %v5974
        %v5976 = vrot.slane %v5791, %v5975
        %v5977 = vlaneseq
        %v5978 = vshrl.u32 %v5977, 7
        %v5979 = vsub.s32 0, %v5978
        %v5980 = vrot.slane %v5805, %v5979
        %v5981 = vlaneseq
        %v5982 = vshrl.u32 %v5981, 7
        %v5983 = vsub.s32 0, %v5982
        %v5984 = vrot.slane %v5807, %v5983
        %v5985 = vlaneseq
        %v5986 = vshrl.u32 %v5985, 7
        %v5987 = vsub.s32 0, %v5986
        %v5988 = vrot.slane %v5809, %v5987
        %v5989 = vlaneseq
        %v5990 = vshrl.u32 %v5989, 7
        %v5991 = vsub.s32 0, %v5990
        %v5992 = vrot.slane %v5833, %v5991
        %v5993 = vlaneseq
        %v5994 = vshrl.u32 %v5993, 7
        %v5995 = vsub.s32 0, %v5994
        %v5996 = vrot.slane %v5847, %v5995
        %v5997 = vlaneseq
        %v5998 = vshrl.u32 %v5997, 7
        %v5999 = vsub.s32 0, %v5998
        %v6000 = vrot.slane %v5855, %v5999
        %v6001 = vlaneseq
        %v6002 = vshrl.u32 %v6001, 7
        %v6003 = vsub.s32 0, %v6002
        %v6004 = vrot.slane %v5857, %v6003
        %v6005 = vlaneseq
        %v6006 = vshrl.u32 %v6005, 7
        %v6007 = vsub.s32 0, %v6006
        %v6008 = vrot.slane %v5840, %v6007
        %v6009 = vlaneseq
        %v6010 = vshrl.u32 %v6009, 7
        %v6011 = vsub.s32 0, %v6010
        %v6012 = vrot.slane %v5854, %v6011
        %v6013 = vlaneseq
        %v6014 = vshrl.u32 %v6013, 7
        %v6015 = vsub.s32 0, %v6014
        %v6016 = vrot.slane %v5856, %v6015
        %v6017 = vlaneseq
        %v6018 = vshrl.u32 %v6017, 7
        %v6019 = vsub.s32 0, %v6018
        %v6020 = vrot.slane %v5858, %v6019
        %v6021 = vlaneseq
        %v6022 = vshrl.u32 %v6021, 7
        %v6023 = vsub.s32 0, %v6022
        %v6024 = vrot.slane %v5882, %v6023
        %v6025 = vlaneseq
        %v6026 = vshrl.u32 %v6025, 7
        %v6027 = vsub.s32 0, %v6026
        %v6028 = vrot.slane %v5896, %v6027
        %v6029 = vlaneseq
        %v6030 = vshrl.u32 %v6029, 7
        %v6031 = vsub.s32 0, %v6030
        %v6032 = vrot.slane %v5904, %v6031
        %v6033 = vlaneseq
        %v6034 = vshrl.u32 %v6033, 7
        %v6035 = vsub.s32 0, %v6034
        %v6036 = vrot.slane %v5906, %v6035
        %v6037 = vlaneseq
        %v6038 = vshrl.u32 %v6037, 7
        %v6039 = vsub.s32 0, %v6038
        %v6040 = vrot.slane %v5889, %v6039
        %v6041 = vlaneseq
        %v6042 = vshrl.u32 %v6041, 7
        %v6043 = vsub.s32 0, %v6042
        %v6044 = vrot.slane %v5903, %v6043
        %v6045 = vlaneseq
        %v6046 = vshrl.u32 %v6045, 7
        %v6047 = vsub.s32 0, %v6046
        %v6048 = vrot.slane %v5905, %v6047
        %v6049 = vlaneseq
        %v6050 = vshrl.u32 %v6049, 7
        %v6051 = vsub.s32 0, %v6050
        %v6052 = vrot.slane %v5907, %v6051
        %v6053 = vlaneseq
        %v6054 = vshrl.u32 %v6053, 7
        %v6055 = vsub.s32 0, %v6054
        %v6056 = vrot.slane %v5931, %v6055
        %v6057 = vlaneseq
        %v6058 = vshrl.u32 %v6057, 7
        %v6059 = vsub.s32 0, %v6058
        %v6060 = vrot.slane %v5945, %v6059
        %v6061 = vlaneseq
        %v6062 = vshrl.u32 %v6061, 7
        %v6063 = vsub.s32 0, %v6062
        %v6064 = vrot.slane %v5953, %v6063
        %v6065 = vlaneseq
        %v6066 = vshrl.u32 %v6065, 7
        %v6067 = vsub.s32 0, %v6066
        %v6068 = vrot.slane %v5955, %v6067
        %v6069 = vlaneseq
        %v6070 = vshrl.u32 %v6069, 7
        %v6071 = vsub.s32 0, %v6070
        %v6072 = vrot.slane %v5938, %v6071
        %v6073 = vlaneseq
        %v6074 = vshrl.u32 %v6073, 7
        %v6075 = vsub.s32 0, %v6074
        %v6076 = vrot.slane %v5952, %v6075
        %v6077 = vlaneseq
        %v6078 = vshrl.u32 %v6077, 7
        %v6079 = vsub.s32 0, %v6078
        %v6080 = vrot.slane %v5954, %v6079
        %v6081 = vlaneseq
        %v6082 = vshrl.u32 %v6081, 7
        %v6083 = vsub.s32 0, %v6082
        %v6084 = vrot.slane %v5956, %v6083
        %v6117 = vsub.f32 %v5960, %v5291
        %v6118 = vsub.f32 %v5964, %v5357
        %v6119 = vsub.f32 %v5968, %v5423
        %v6120 = vsub.f32 %v5972, %v5489
        %v6121 = vsub.f32 %v5976, %v5555
        %v6122 = vsub.f32 %v5980, %v5621
        %v6123 = vsub.f32 %v5984, %v5687
        %v6124 = vsub.f32 %v5988, %v5753
        %v6125 = vsub.f32 %v5992, %v5292
        %v6126 = vsub.f32 %v5996, %v5358
        %v6127 = vsub.f32 %v6000, %v5424
        %v6128 = vsub.f32 %v6004, %v5490
        %v6129 = vsub.f32 %v6008, %v5556
        %v6130 = vsub.f32 %v6012, %v5622
        %v6131 = vsub.f32 %v6016, %v5688
        %v6132 = vsub.f32 %v6020, %v5754
        %v6133 = vsub.f32 %v6024, %v5293
        %v6134 = vsub.f32 %v6028, %v5359
        %v6135 = vsub.f32 %v6032, %v5425
        %v6136 = vsub.f32 %v6036, %v5491
        %v6137 = vsub.f32 %v6040, %v5557
        %v6138 = vsub.f32 %v6044, %v5623
        %v6139 = vsub.f32 %v6048, %v5689
        %v6140 = vsub.f32 %v6052, %v5755
        %v6141 = vsub.f32 %v6056, %v5294
        %v6142 = vsub.f32 %v6060, %v5360
        %v6143 = vsub.f32 %v6064, %v5426
        %v6144 = vsub.f32 %v6068, %v5492
        %v6145 = vsub.f32 %v6072, %v5558
        %v6146 = vsub.f32 %v6076, %v5624
        %v6147 = vsub.f32 %v6080, %v5690
        %v6148 = vsub.f32 %v6084, %v5756
        %v6149 = vand.u32 2147483647, %v6117
        %v6150 = vand.u32 2147483647, %v6118
        %v6151 = vand.u32 2147483647, %v6119
        %v6152 = vand.u32 2147483647, %v6120
        %v6153 = vand.u32 2147483647, %v6121
        %v6154 = vand.u32 2147483647, %v6122
        %v6155 = vand.u32 2147483647, %v6123
        %v6156 = vand.u32 2147483647, %v6124
        %v6157 = vand.u32 2147483647, %v6125
        %v6158 = vand.u32 2147483647, %v6126
        %v6159 = vand.u32 2147483647, %v6127
        %v6160 = vand.u32 2147483647, %v6128
        %v6161 = vand.u32 2147483647, %v6129
        %v6162 = vand.u32 2147483647, %v6130
        %v6163 = vand.u32 2147483647, %v6131
        %v6164 = vand.u32 2147483647, %v6132
        %v6165 = vand.u32 2147483647, %v6133
        %v6166 = vand.u32 2147483647, %v6134
        %v6167 = vand.u32 2147483647, %v6135
        %v6168 = vand.u32 2147483647, %v6136
        %v6169 = vand.u32 2147483647, %v6137
        %v6170 = vand.u32 2147483647, %v6138
        %v6171 = vand.u32 2147483647, %v6139
        %v6172 = vand.u32 2147483647, %v6140
        %v6173 = vand.u32 2147483647, %v6141
        %v6174 = vand.u32 2147483647, %v6142
        %v6175 = vand.u32 2147483647, %v6143
        %v6176 = vand.u32 2147483647, %v6144
        %v6177 = vand.u32 2147483647, %v6145
        %v6178 = vand.u32 2147483647, %v6146
        %v6179 = vand.u32 2147483647, %v6147
        %v6180 = vand.u32 2147483647, %v6148
        %vm6181 = vcmask 128000
        %v6182 = vsel %vm6181, %v6149, 0.0
        %v6183 = vsel %vm6181, %v6157, 0.0
        %v6184 = vadd.f32 %v6182, %v6183
        %v6185 = vsel %vm6181, %v6165, 0.0
        %v6186 = vadd.f32 %v6184, %v6185
        %v6187 = vsel %vm6181, %v6173, 0.0
        %v6188 = vadd.f32 %v6186, %v6187
        %v6189 = vsel %vm6181, %v6150, 0.0
        %v6190 = vsel %vm6181, %v6158, 0.0
        %v6191 = vadd.f32 %v6189, %v6190
        %v6192 = vsel %vm6181, %v6166, 0.0
        %v6193 = vadd.f32 %v6191, %v6192
        %v6194 = vsel %vm6181, %v6174, 0.0
        %v6195 = vadd.f32 %v6193, %v6194
        %v6196 = vsel %vm6181, %v6151, 0.0
        %v6197 = vsel %vm6181, %v6159, 0.0
        %v6198 = vadd.f32 %v6196, %v6197
        %v6199 = vsel %vm6181, %v6167, 0.0
        %v6200 = vadd.f32 %v6198, %v6199
        %v6201 = vsel %vm6181, %v6175, 0.0
        %v6202 = vadd.f32 %v6200, %v6201
        %v6203 = vsel %vm6181, %v6152, 0.0
        %v6204 = vsel %vm6181, %v6160, 0.0
        %v6205 = vadd.f32 %v6203, %v6204
        %v6206 = vsel %vm6181, %v6168, 0.0
        %v6207 = vadd.f32 %v6205, %v6206
        %v6208 = vsel %vm6181, %v6176, 0.0
        %v6209 = vadd.f32 %v6207, %v6208
        %v6210 = vsel %vm6181, %v6153, 0.0
        %v6211 = vsel %vm6181, %v6161, 0.0
        %v6212 = vadd.f32 %v6210, %v6211
        %v6213 = vsel %vm6181, %v6169, 0.0
        %v6214 = vadd.f32 %v6212, %v6213
        %v6215 = vsel %vm6181, %v6177, 0.0
        %v6216 = vadd.f32 %v6214, %v6215
        %v6217 = vsel %vm6181, %v6154, 0.0
        %v6218 = vsel %vm6181, %v6162, 0.0
        %v6219 = vadd.f32 %v6217, %v6218
        %v6220 = vsel %vm6181, %v6170, 0.0
        %v6221 = vadd.f32 %v6219, %v6220
        %v6222 = vsel %vm6181, %v6178, 0.0
        %v6223 = vadd.f32 %v6221, %v6222
        %v6224 = vsel %vm6181, %v6155, 0.0
        %v6225 = vsel %vm6181, %v6163, 0.0
        %v6226 = vadd.f32 %v6224, %v6225
        %v6227 = vsel %vm6181, %v6171, 0.0
        %v6228 = vadd.f32 %v6226, %v6227
        %v6229 = vsel %vm6181, %v6179, 0.0
        %v6230 = vadd.f32 %v6228, %v6229
        %v6231 = vsel %vm6181, %v6156, 0.0
        %v6232 = vsel %vm6181, %v6164, 0.0
        %v6233 = vadd.f32 %v6231, %v6232
        %v6234 = vsel %vm6181, %v6172, 0.0
        %v6235 = vadd.f32 %v6233, %v6234
        %v6236 = vsel %vm6181, %v6180, 0.0
        %v6237 = vadd.f32 %v6235, %v6236
        %v6239 = vcombine.high %v477, %v477
        %v6241 = vunpack.c.l.s4 1966171168
        %v6242 = vunpack.c.0.s8 %v6241
        %v6243 = vlaneseq
        %v6244 = vshrl.u32 %v6243, 7
        %v6245 = vsub.s32 %v6242, %v6244
        %v6246 = vrot.slane %v477, %v6245
        %v6248 = vunpack.c.l.s4 1966171168
        %v6249 = vunpack.c.0.s8 %v6248
        %v6250 = vlaneseq
        %v6251 = vshrl.u32 %v6250, 7
        %v6252 = vsub.s32 %v6249, %v6251
        %v6253 = vrot.slane %v6239, %v6252
        %v6254 = vcombine.high %v6246, %v6246
        %v6255 = vcombine.high %v6253, %v6253
        %v6257 = vunpack.c.l.s4 1966171168
        %v6258 = vunpack.c.0.s8 %v6257
        %v6259 = vlaneseq
        %v6260 = vshrl.u32 %v6259, 7
        %v6261 = vsub.s32 %v6258, %v6260
        %v6262 = vrot.slane %v6246, %v6261
        %v6264 = vunpack.c.l.s4 1966171168
        %v6265 = vunpack.c.0.s8 %v6264
        %v6266 = vlaneseq
        %v6267 = vshrl.u32 %v6266, 7
        %v6268 = vsub.s32 %v6265, %v6267
        %v6269 = vrot.slane %v6253, %v6268
        %v6271 = vunpack.c.l.s4 1966171168
        %v6272 = vunpack.c.0.s8 %v6271
        %v6273 = vlaneseq
        %v6274 = vshrl.u32 %v6273, 7
        %v6275 = vsub.s32 %v6272, %v6274
        %v6276 = vrot.slane %v6254, %v6275
        %v6278 = vunpack.c.l.s4 1966171168
        %v6279 = vunpack.c.0.s8 %v6278
        %v6280 = vlaneseq
        %v6281 = vshrl.u32 %v6280, 7
        %v6282 = vsub.s32 %v6279, %v6281
        %v6283 = vrot.slane %v6255, %v6282
        %v6284 = vcombine.high %v6262, %v6262
        %v6285 = vcombine.high %v6269, %v6269
        %v6286 = vcombine.high %v6276, %v6276
        %v6287 = vcombine.high %v6283, %v6283
        %v6304 = vrot.slane %v6188, 7
        %v6305 = vrot.slane %v6195, 7
        %v6306 = vrot.slane %v6202, 7
        %v6307 = vrot.slane %v6209, 7
        %v6308 = vrot.slane %v6216, 7
        %v6309 = vrot.slane %v6223, 7
        %v6310 = vrot.slane %v6230, 7
        %v6311 = vrot.slane %v6237, 7
        %v6320 = vlaneseq
        %v6321 = vshrl.u32 %v6320, 7
        %v6322 = vsub.s32 0, %v6321
        %v6323 = vrot.slane %v6262, %v6322
        %v6324 = vlaneseq
        %v6325 = vshrl.u32 %v6324, 7
        %v6326 = vsub.s32 0, %v6325
        %v6327 = vrot.slane %v6276, %v6326
        %v6328 = vlaneseq
        %v6329 = vshrl.u32 %v6328, 7
        %v6330 = vsub.s32 0, %v6329
        %v6331 = vrot.slane %v6284, %v6330
        %v6332 = vlaneseq
        %v6333 = vshrl.u32 %v6332, 7
        %v6334 = vsub.s32 0, %v6333
        %v6335 = vrot.slane %v6286, %v6334
        %v6336 = vlaneseq
        %v6337 = vshrl.u32 %v6336, 7
        %v6338 = vsub.s32 0, %v6337
        %v6339 = vrot.slane %v6269, %v6338
        %v6340 = vlaneseq
        %v6341 = vshrl.u32 %v6340, 7
        %v6342 = vsub.s32 0, %v6341
        %v6343 = vrot.slane %v6283, %v6342
        %v6344 = vlaneseq
        %v6345 = vshrl.u32 %v6344, 7
        %v6346 = vsub.s32 0, %v6345
        %v6347 = vrot.slane %v6285, %v6346
        %v6348 = vlaneseq
        %v6349 = vshrl.u32 %v6348, 7
        %v6350 = vsub.s32 0, %v6349
        %v6351 = vrot.slane %v6287, %v6350
        %v6360 = vrot.slane %v6188, 6
        %v6361 = vrot.slane %v6195, 6
        %v6362 = vrot.slane %v6202, 6
        %v6363 = vrot.slane %v6209, 6
        %v6364 = vrot.slane %v6216, 6
        %v6365 = vrot.slane %v6223, 6
        %v6366 = vrot.slane %v6230, 6
        %v6367 = vrot.slane %v6237, 6
        %v6376 = vsel %vm1233, %v6262, %v6304
        %v6377 = vsel %vm1233, %v6276, %v6305
        %v6378 = vsel %vm1233, %v6284, %v6306
        %v6379 = vsel %vm1233, %v6286, %v6307
        %v6380 = vsel %vm1233, %v6269, %v6308
        %v6381 = vsel %vm1233, %v6283, %v6309
        %v6382 = vsel %vm1233, %v6285, %v6310
        %v6383 = vsel %vm1233, %v6287, %v6311
        %vm6384 = vcmask 1043456
        %v6385 = vsel %vm6384, %v6376, %v6323
        %v6386 = vsel %vm6384, %v6377, %v6327
        %v6387 = vsel %vm6384, %v6378, %v6331
        %v6388 = vsel %vm6384, %v6379, %v6335
        %v6389 = vsel %vm6384, %v6380, %v6339
        %v6390 = vsel %vm6384, %v6381, %v6343
        %v6391 = vsel %vm6384, %v6382, %v6347
        %v6392 = vsel %vm6384, %v6383, %v6351
        %vm6393 = vcmask 1044480
        %v6394 = vsel %vm6393, %v6385, %v6360
        %v6395 = vsel %vm6393, %v6386, %v6361
        %v6396 = vsel %vm6393, %v6387, %v6362
        %v6397 = vsel %vm6393, %v6388, %v6363
        %v6398 = vsel %vm6393, %v6389, %v6364
        %v6399 = vsel %vm6393, %v6390, %v6365
        %v6400 = vsel %vm6393, %v6391, %v6366
        %v6401 = vsel %vm6393, %v6392, %v6367
        %v6402 = vpack.c.bf16 %v6395, %v6394
        %v6403 = vpack.c.bf16 %v6397, %v6396
        %v6404 = vpack.c.bf16 %v6399, %v6398
        %v6405 = vpack.c.bf16 %v6401, %v6400
        %v6406 = vld [vmem:[%s3] sm:$0xf]
        %v6407 = vld [vmem:[%s3 + $0x4] sm:$0xf]
        %v6408 = vld [vmem:[%s3 + $0x8] sm:$0xf]
        %v6409 = vld [vmem:[%s3 + $0xc] sm:$0xf]
        %v6410 = vld [vmem:[%s3 + $0x10] sm:$0xf]
        %v6411 = vld [vmem:[%s3 + $0x14] sm:$0xf]
        %v6412 = vld [vmem:[%s3 + $0x18] sm:$0xf]
        %v6413 = vld [vmem:[%s3 + $0x1c] sm:$0xf]
        %v6416 = vunpack.c.l.b16 %v6406
        %v6417 = vunpack.c.l.b16 %v6407
        %v6418 = vpack.c.b16 %v6417, %v6416
        %v6421 = vsel %vm470, %v6402, 0
        %v6424 = vsel %vm470, %v6403, 0
        %v6427 = vsel %vm470, %v6404, 0
        %v6430 = vsel %vm470, %v6405, 0
        %6432 = vmatprep.subr.bf16.mxu0 0
        %6433 = vmatpush1.bf16.msra.mxu0 %v6418
        %6434 = vmatprep.subr.bf16.mxu0 0
        %6435 = vmatpush1.bf16.msra.mxu0 0
        %6436 = vmatprep.subr.bf16.mxu0 0
        %6437 = vmatpush1.bf16.msra.mxu0 0
        %6438 = vmatprep.subr.bf16.mxu0 0
        %6439 = vmatpush1.bf16.msra.mxu0 0
        %6440 = vmatprep.subr.bf16.mxu0 0
        %6441 = vmatpush1.bf16.msra.mxu0 0
        %6442 = vmatprep.subr.bf16.mxu0 0
        %6443 = vmatpush1.bf16.msra.mxu0 0
        %6444 = vmatprep.subr.bf16.mxu0 0
        %6445 = vmatpush1.bf16.msra.mxu0 0
        %6446 = vmatprep.subr.bf16.mxu0 0
        %6447 = vmatpush1.bf16.msra.mxu0 0
        %6448 = vmatprep.subr.bf16.mxu0 0
        %6449 = vmatpush1.bf16.msra.mxu0 0
        %6450 = vmatprep.subr.bf16.mxu0 0
        %6451 = vmatpush1.bf16.msra.mxu0 0
        %6452 = vmatprep.subr.bf16.mxu0 0
        %6453 = vmatpush1.bf16.msra.mxu0 0
        %6454 = vmatprep.subr.bf16.mxu0 0
        %6455 = vmatpush1.bf16.msra.mxu0 0
        %6456 = vmatprep.subr.bf16.mxu0 0
        %6457 = vmatpush1.bf16.msra.mxu0 0
        %6458 = vmatprep.subr.bf16.mxu0 0
        %6459 = vmatpush1.bf16.msra.mxu0 0
        %6460 = vmatprep.subr.bf16.mxu0 0
        %6461 = vmatpush1.bf16.msra.mxu0 0
        %6462 = vmatprep.subr.bf16.mxu0 0
        %6463 = vmatpush1.bf16.msra.mxu0 0
        %6464 = vmatprep.mubr.bf16.mxu0 0
        %6465 = vmatmul.mubr.bf16.gmra.mrb[0].mxu0 %v6421
        %v6466 = vpop.f32.mrb[0].mxu0
        %v6467 = vadd.f32 0.0, %v6466
        %v6468 = vpop.f32.mrb[0].mxu0
        %v6469 = vpop.f32.mrb[0].mxu0
        %v6470 = vadd.f32 0.0, %v6469
        %v6471 = vpop.f32.mrb[0].mxu0
        %6472 = vmatprep.mubr.bf16.mxu0 0
        %6473 = vmatmul.mubr.bf16.gmra.mrb[0].mxu0 %v6424
        %v6474 = vpop.f32.mrb[0].mxu0
        %v6475 = vadd.f32 0.0, %v6474
        %v6476 = vpop.f32.mrb[0].mxu0
        %v6477 = vpop.f32.mrb[0].mxu0
        %v6478 = vadd.f32 0.0, %v6477
        %v6479 = vpop.f32.mrb[0].mxu0
        %6480 = vmatprep.mubr.bf16.mxu0 0
        %6481 = vmatmul.mubr.bf16.gmra.mrb[0].mxu0 %v6427
        %v6482 = vpop.f32.mrb[0].mxu0
        %v6483 = vadd.f32 0.0, %v6482
        %v6484 = vpop.f32.mrb[0].mxu0
        %v6485 = vpop.f32.mrb[0].mxu0
        %v6486 = vadd.f32 0.0, %v6485
        %v6487 = vpop.f32.mrb[0].mxu0
        %6488 = vmatprep.mubr.bf16.mxu0 0
        %6489 = vmatmul.mubr.bf16.gmra.mrb[0].mxu0 %v6430
        %v6490 = vpop.f32.mrb[0].mxu0
        %v6491 = vadd.f32 0.0, %v6490
        %v6492 = vpop.f32.mrb[0].mxu0
        %v6493 = vpop.f32.mrb[0].mxu0
        %v6494 = vadd.f32 0.0, %v6493
        %v6495 = vpop.f32.mrb[0].mxu0
        %6496 = vdwg.mxu0
        %v6497 = vpack.c.bf16 %v6470, %v6467
        %v6498 = vpack.c.bf16 %v6478, %v6475
        %v6499 = vpack.c.bf16 %v6486, %v6483
        %v6500 = vpack.c.bf16 %v6494, %v6491
        %v6503 = vunpack.c.l.b16 %v6408
        %v6504 = vunpack.c.l.b16 %v6409
        %v6505 = vpack.c.b16 %v6504, %v6503
        %6507 = vmatprep.subr.bf16.mxu0 0
        %6508 = vmatpush1.bf16.msra.mxu0 %v6505
        %6509 = vmatprep.subr.bf16.mxu0 0
        %6510 = vmatpush1.bf16.msra.mxu0 0
        %6511 = vmatprep.subr.bf16.mxu0 0
        %6512 = vmatpush1.bf16.msra.mxu0 0
        %6513 = vmatprep.subr.bf16.mxu0 0
        %6514 = vmatpush1.bf16.msra.mxu0 0
        %6515 = vmatprep.subr.bf16.mxu0 0
        %6516 = vmatpush1.bf16.msra.mxu0 0
        %6517 = vmatprep.subr.bf16.mxu0 0
        %6518 = vmatpush1.bf16.msra.mxu0 0
        %6519 = vmatprep.subr.bf16.mxu0 0
        %6520 = vmatpush1.bf16.msra.mxu0 0
        %6521 = vmatprep.subr.bf16.mxu0 0
        %6522 = vmatpush1.bf16.msra.mxu0 0
        %6523 = vmatprep.subr.bf16.mxu0 0
        %6524 = vmatpush1.bf16.msra.mxu0 0
        %6525 = vmatprep.subr.bf16.mxu0 0
        %6526 = vmatpush1.bf16.msra.mxu0 0
        %6527 = vmatprep.subr.bf16.mxu0 0
        %6528 = vmatpush1.bf16.msra.mxu0 0
        %6529 = vmatprep.subr.bf16.mxu0 0
        %6530 = vmatpush1.bf16.msra.mxu0 0
        %6531 = vmatprep.subr.bf16.mxu0 0
        %6532 = vmatpush1.bf16.msra.mxu0 0
        %6533 = vmatprep.subr.bf16.mxu0 0
        %6534 = vmatpush1.bf16.msra.mxu0 0
        %6535 = vmatprep.subr.bf16.mxu0 0
        %6536 = vmatpush1.bf16.msra.mxu0 0
        %6537 = vmatprep.subr.bf16.mxu0 0
        %6538 = vmatpush1.bf16.msra.mxu0 0
        %6539 = vmatprep.mubr.bf16.mxu0 0
        %6540 = vmatmul.mubr.bf16.gmra.mrb[0].mxu0 %v6421
        %v6541 = vpop.f32.mrb[0].mxu0
        %v6542 = vadd.f32 0.0, %v6541
        %v6543 = vpop.f32.mrb[0].mxu0
        %v6544 = vpop.f32.mrb[0].mxu0
        %v6545 = vadd.f32 0.0, %v6544
        %v6546 = vpop.f32.mrb[0].mxu0
        %6547 = vmatprep.mubr.bf16.mxu0 0
        %6548 = vmatmul.mubr.bf16.gmra.mrb[0].mxu0 %v6424
        %v6549 = vpop.f32.mrb[0].mxu0
        %v6550 = vadd.f32 0.0, %v6549
        %v6551 = vpop.f32.mrb[0].mxu0
        %v6552 = vpop.f32.mrb[0].mxu0
        %v6553 = vadd.f32 0.0, %v6552
        %v6554 = vpop.f32.mrb[0].mxu0
        %6555 = vmatprep.mubr.bf16.mxu0 0
        %6556 = vmatmul.mubr.bf16.gmra.mrb[0].mxu0 %v6427
        %v6557 = vpop.f32.mrb[0].mxu0
        %v6558 = vadd.f32 0.0, %v6557
        %v6559 = vpop.f32.mrb[0].mxu0
        %v6560 = vpop.f32.mrb[0].mxu0
        %v6561 = vadd.f32 0.0, %v6560
        %v6562 = vpop.f32.mrb[0].mxu0
        %6563 = vmatprep.mubr.bf16.mxu0 0
        %6564 = vmatmul.mubr.bf16.gmra.mrb[0].mxu0 %v6430
        %v6565 = vpop.f32.mrb[0].mxu0
        %v6566 = vadd.f32 0.0, %v6565
        %v6567 = vpop.f32.mrb[0].mxu0
        %v6568 = vpop.f32.mrb[0].mxu0
        %v6569 = vadd.f32 0.0, %v6568
        %v6570 = vpop.f32.mrb[0].mxu0
        %6571 = vdwg.mxu0
        %v6572 = vpack.c.bf16 %v6545, %v6542
        %v6573 = vpack.c.bf16 %v6553, %v6550
        %v6574 = vpack.c.bf16 %v6561, %v6558
        %v6575 = vpack.c.bf16 %v6569, %v6566
        %v6578 = vunpack.c.l.b16 %v6410
        %v6579 = vunpack.c.l.b16 %v6411
        %v6580 = vpack.c.b16 %v6579, %v6578
        %6582 = vmatprep.subr.bf16.mxu0 0
        %6583 = vmatpush1.bf16.msra.mxu0 %v6580
        %6584 = vmatprep.subr.bf16.mxu0 0
        %6585 = vmatpush1.bf16.msra.mxu0 0
        %6586 = vmatprep.subr.bf16.mxu0 0
        %6587 = vmatpush1.bf16.msra.mxu0 0
        %6588 = vmatprep.subr.bf16.mxu0 0
        %6589 = vmatpush1.bf16.msra.mxu0 0
        %6590 = vmatprep.subr.bf16.mxu0 0
        %6591 = vmatpush1.bf16.msra.mxu0 0
        %6592 = vmatprep.subr.bf16.mxu0 0
        %6593 = vmatpush1.bf16.msra.mxu0 0
        %6594 = vmatprep.subr.bf16.mxu0 0
        %6595 = vmatpush1.bf16.msra.mxu0 0
        %6596 = vmatprep.subr.bf16.mxu0 0
        %6597 = vmatpush1.bf16.msra.mxu0 0
        %6598 = vmatprep.subr.bf16.mxu0 0
        %6599 = vmatpush1.bf16.msra.mxu0 0
        %6600 = vmatprep.subr.bf16.mxu0 0
        %6601 = vmatpush1.bf16.msra.mxu0 0
        %6602 = vmatprep.subr.bf16.mxu0 0
        %6603 = vmatpush1.bf16.msra.mxu0 0
        %6604 = vmatprep.subr.bf16.mxu0 0
        %6605 = vmatpush1.bf16.msra.mxu0 0
        %6606 = vmatprep.subr.bf16.mxu0 0
        %6607 = vmatpush1.bf16.msra.mxu0 0
        %6608 = vmatprep.subr.bf16.mxu0 0
        %6609 = vmatpush1.bf16.msra.mxu0 0
        %6610 = vmatprep.subr.bf16.mxu0 0
        %6611 = vmatpush1.bf16.msra.mxu0 0
        %6612 = vmatprep.subr.bf16.mxu0 0
        %6613 = vmatpush1.bf16.msra.mxu0 0
        %6614 = vmatprep.mubr.bf16.mxu0 0
        %6615 = vmatmul.mubr.bf16.gmra.mrb[0].mxu0 %v6421
        %v6616 = vpop.f32.mrb[0].mxu0
        %v6617 = vadd.f32 0.0, %v6616
        %v6618 = vpop.f32.mrb[0].mxu0
        %v6619 = vpop.f32.mrb[0].mxu0
        %v6620 = vadd.f32 0.0, %v6619
        %v6621 = vpop.f32.mrb[0].mxu0
        %6622 = vmatprep.mubr.bf16.mxu0 0
        %6623 = vmatmul.mubr.bf16.gmra.mrb[0].mxu0 %v6424
        %v6624 = vpop.f32.mrb[0].mxu0
        %v6625 = vadd.f32 0.0, %v6624
        %v6626 = vpop.f32.mrb[0].mxu0
        %v6627 = vpop.f32.mrb[0].mxu0
        %v6628 = vadd.f32 0.0, %v6627
        %v6629 = vpop.f32.mrb[0].mxu0
        %6630 = vmatprep.mubr.bf16.mxu0 0
        %6631 = vmatmul.mubr.bf16.gmra.mrb[0].mxu0 %v6427
        %v6632 = vpop.f32.mrb[0].mxu0
        %v6633 = vadd.f32 0.0, %v6632
        %v6634 = vpop.f32.mrb[0].mxu0
        %v6635 = vpop.f32.mrb[0].mxu0
        %v6636 = vadd.f32 0.0, %v6635
        %v6637 = vpop.f32.mrb[0].mxu0
        %6638 = vmatprep.mubr.bf16.mxu0 0
        %6639 = vmatmul.mubr.bf16.gmra.mrb[0].mxu0 %v6430
        %v6640 = vpop.f32.mrb[0].mxu0
        %v6641 = vadd.f32 0.0, %v6640
        %v6642 = vpop.f32.mrb[0].mxu0
        %v6643 = vpop.f32.mrb[0].mxu0
        %v6644 = vadd.f32 0.0, %v6643
        %v6645 = vpop.f32.mrb[0].mxu0
        %6646 = vdwg.mxu0
        %v6647 = vpack.c.bf16 %v6620, %v6617
        %v6648 = vpack.c.bf16 %v6628, %v6625
        %v6649 = vpack.c.bf16 %v6636, %v6633
        %v6650 = vpack.c.bf16 %v6644, %v6641
        %v6653 = vunpack.c.l.b16 %v6412
        %v6654 = vunpack.c.l.b16 %v6413
        %v6655 = vpack.c.b16 %v6654, %v6653
        %6657 = vmatprep.subr.bf16.mxu0 0
        %6658 = vmatpush1.bf16.msra.mxu0 %v6655
        %6659 = vmatprep.subr.bf16.mxu0 0
        %6660 = vmatpush1.bf16.msra.mxu0 0
        %6661 = vmatprep.subr.bf16.mxu0 0
        %6662 = vmatpush1.bf16.msra.mxu0 0
        %6663 = vmatprep.subr.bf16.mxu0 0
        %6664 = vmatpush1.bf16.msra.mxu0 0
        %6665 = vmatprep.subr.bf16.mxu0 0
        %6666 = vmatpush1.bf16.msra.mxu0 0
        %6667 = vmatprep.subr.bf16.mxu0 0
        %6668 = vmatpush1.bf16.msra.mxu0 0
        %6669 = vmatprep.subr.bf16.mxu0 0
        %6670 = vmatpush1.bf16.msra.mxu0 0
        %6671 = vmatprep.subr.bf16.mxu0 0
        %6672 = vmatpush1.bf16.msra.mxu0 0
        %6673 = vmatprep.subr.bf16.mxu0 0
        %6674 = vmatpush1.bf16.msra.mxu0 0
        %6675 = vmatprep.subr.bf16.mxu0 0
        %6676 = vmatpush1.bf16.msra.mxu0 0
        %6677 = vmatprep.subr.bf16.mxu0 0
        %6678 = vmatpush1.bf16.msra.mxu0 0
        %6679 = vmatprep.subr.bf16.mxu0 0
        %6680 = vmatpush1.bf16.msra.mxu0 0
        %6681 = vmatprep.subr.bf16.mxu0 0
        %6682 = vmatpush1.bf16.msra.mxu0 0
        %6683 = vmatprep.subr.bf16.mxu0 0
        %6684 = vmatpush1.bf16.msra.mxu0 0
        %6685 = vmatprep.subr.bf16.mxu0 0
        %6686 = vmatpush1.bf16.msra.mxu0 0
        %6687 = vmatprep.subr.bf16.mxu0 0
        %6688 = vmatpush1.bf16.msra.mxu0 0
        %6689 = vmatprep.mubr.bf16.mxu0 0
        %6690 = vmatmul.mubr.bf16.gmra.mrb[0].mxu0 %v6421
        %v6691 = vpop.f32.mrb[0].mxu0
        %v6692 = vadd.f32 0.0, %v6691
        %v6693 = vpop.f32.mrb[0].mxu0
        %v6694 = vpop.f32.mrb[0].mxu0
        %v6695 = vadd.f32 0.0, %v6694
        %v6696 = vpop.f32.mrb[0].mxu0
        %6697 = vmatprep.mubr.bf16.mxu0 0
        %6698 = vmatmul.mubr.bf16.gmra.mrb[0].mxu0 %v6424
        %v6699 = vpop.f32.mrb[0].mxu0
        %v6700 = vadd.f32 0.0, %v6699
        %v6701 = vpop.f32.mrb[0].mxu0
        %v6702 = vpop.f32.mrb[0].mxu0
        %v6703 = vadd.f32 0.0, %v6702
        %v6704 = vpop.f32.mrb[0].mxu0
        %6705 = vmatprep.mubr.bf16.mxu0 0
        %6706 = vmatmul.mubr.bf16.gmra.mrb[0].mxu0 %v6427
        %v6707 = vpop.f32.mrb[0].mxu0
        %v6708 = vadd.f32 0.0, %v6707
        %v6709 = vpop.f32.mrb[0].mxu0
        %v6710 = vpop.f32.mrb[0].mxu0
        %v6711 = vadd.f32 0.0, %v6710
        %v6712 = vpop.f32.mrb[0].mxu0
        %6713 = vmatprep.mubr.bf16.mxu0 0
        %6714 = vmatmul.mubr.bf16.gmra.mrb[0].mxu0 %v6430
        %v6715 = vpop.f32.mrb[0].mxu0
        %v6716 = vadd.f32 0.0, %v6715
        %v6717 = vpop.f32.mrb[0].mxu0
        %v6718 = vpop.f32.mrb[0].mxu0
        %v6719 = vadd.f32 0.0, %v6718
        %v6720 = vpop.f32.mrb[0].mxu0
        %6721 = vdwg.mxu0
        %v6722 = vpack.c.bf16 %v6695, %v6692
        %v6723 = vpack.c.bf16 %v6703, %v6700
        %v6724 = vpack.c.bf16 %v6711, %v6708
        %v6725 = vpack.c.bf16 %v6719, %v6716
        %v6726 = vld [vmem:[%s4] sm:$0xf]
        %v6727 = vld [vmem:[%s4 + $0x4] sm:$0xf]
        %v6728 = vld [vmem:[%s4 + $0x8] sm:$0xf]
        %v6729 = vld [vmem:[%s4 + $0xc] sm:$0xf]
        %v6730 = vld [vmem:[%s4 + $0x10] sm:$0xf]
        %v6731 = vld [vmem:[%s4 + $0x14] sm:$0xf]
        %v6732 = vld [vmem:[%s4 + $0x18] sm:$0xf]
        %v6733 = vld [vmem:[%s4 + $0x1c] sm:$0xf]
        %v6734 = vld [vmem:[%s4 + $0x20] sm:$0xf]
        %v6735 = vld [vmem:[%s4 + $0x24] sm:$0xf]
        %v6736 = vld [vmem:[%s4 + $0x28] sm:$0xf]
        %v6737 = vld [vmem:[%s4 + $0x2c] sm:$0xf]
        %v6738 = vld [vmem:[%s4 + $0x30] sm:$0xf]
        %v6739 = vld [vmem:[%s4 + $0x34] sm:$0xf]
        %v6740 = vld [vmem:[%s4 + $0x38] sm:$0xf]
        %v6741 = vld [vmem:[%s4 + $0x3c] sm:$0xf]
        %v6742 = vld [vmem:[%s5] sm:$0x1]
        %v6744 = vlaneseq
        %v6745 = vshrl.u32 %v6744, 7
        %v6746 = vsub.s32 0, %v6745
        %v6747 = vrot.slane %v6742, %v6746
        %6748 = vxpose.xlu0.c.b16.start [1/8] %v6497, 128
        %6749 = vxpose.xlu0.c.b16.cont [2/8] %v6498, 128
        %6750 = vxpose.xlu0.c.b16.cont [3/8] %v6572, 128
        %6751 = vxpose.xlu0.c.b16.cont [4/8] %v6573, 128
        %6752 = vxpose.xlu0.c.b16.cont [5/8] %v6647, 128
        %6753 = vxpose.xlu0.c.b16.cont [6/8] %v6648, 128
        %6754 = vxpose.xlu0.c.b16.cont [7/8] %v6722, 128
        %6755 = vxpose.xlu0.c.b16.end [8/8] %v6723, 128
        %v6756 = vpop.trf.xlu0
        %v6757 = vpop.trf.xlu0
        %v6758 = vpop.trf.xlu0
        %v6759 = vpop.trf.xlu0
        %v6760 = vpop.trf.xlu0
        %v6761 = vpop.trf.xlu0
        %v6762 = vpop.trf.xlu0
        %v6763 = vpop.trf.xlu0
        %6764 = vxpose.xlu0.c.b16.start [1/8] %v6499, 128
        %6765 = vxpose.xlu0.c.b16.cont [2/8] %v6500, 128
        %6766 = vxpose.xlu0.c.b16.cont [3/8] %v6574, 128
        %6767 = vxpose.xlu0.c.b16.cont [4/8] %v6575, 128
        %6768 = vxpose.xlu0.c.b16.cont [5/8] %v6649, 128
        %6769 = vxpose.xlu0.c.b16.cont [6/8] %v6650, 128
        %6770 = vxpose.xlu0.c.b16.cont [7/8] %v6724, 128
        %6771 = vxpose.xlu0.c.b16.end [8/8] %v6725, 128
        %v6772 = vpop.trf.xlu0
        %v6773 = vpop.trf.xlu0
        %v6774 = vpop.trf.xlu0
        %v6775 = vpop.trf.xlu0
        %v6776 = vpop.trf.xlu0
        %v6777 = vpop.trf.xlu0
        %v6778 = vpop.trf.xlu0
        %v6779 = vpop.trf.xlu0
        %v6782 = vcombine.low %v6756, %v6772
        %v6784 = vunpack.c.l.s4 1983009808
        %v6785 = vunpack.c.0.s8 %v6784
        %v6786 = vlaneseq
        %v6787 = vshrl.u32 %v6786, 7
        %v6788 = vsub.s32 %v6785, %v6787
        %v6789 = vrot.slane %v6782, %v6788
        %v6807 = vunpack.c.l.b16 %v6726
        %v6808 = vunpack.c.l.b16 %v6727
        %v6809 = vunpack.c.l.b16 %v6728
        %v6810 = vunpack.c.l.b16 %v6729
        %v6811 = vunpack.c.l.b16 %v6730
        %v6812 = vunpack.c.l.b16 %v6731
        %v6813 = vunpack.c.l.b16 %v6732
        %v6814 = vunpack.c.l.b16 %v6733
        %v6815 = vunpack.c.l.b16 %v6734
        %v6816 = vunpack.c.l.b16 %v6735
        %v6817 = vunpack.c.l.b16 %v6736
        %v6818 = vunpack.c.l.b16 %v6737
        %v6819 = vunpack.c.l.b16 %v6738
        %v6820 = vunpack.c.l.b16 %v6739
        %v6821 = vunpack.c.l.b16 %v6740
        %v6822 = vunpack.c.l.b16 %v6741
        %v6823 = vpack.c.b16 %v6808, %v6807
        %v6824 = vpack.c.b16 %v6810, %v6809
        %v6825 = vpack.c.b16 %v6812, %v6811
        %v6826 = vpack.c.b16 %v6814, %v6813
        %v6827 = vpack.c.b16 %v6816, %v6815
        %v6828 = vpack.c.b16 %v6818, %v6817
        %v6829 = vpack.c.b16 %v6820, %v6819
        %v6830 = vpack.c.b16 %v6822, %v6821
        %v6839 = vcombine.low %v6747, %v6747
        %6841 = vmatprep.subr.bf16.mxu0 0
        %6842 = vmatpush1.bf16.msra.mxu0 %v6823
        %6843 = vmatprep.subr.bf16.mxu0 0
        %6844 = vmatpush1.bf16.msra.mxu0 %v6824
        %6845 = vmatprep.subr.bf16.mxu0 0
        %6846 = vmatpush1.bf16.msra.mxu0 %v6825
        %6847 = vmatprep.subr.bf16.mxu0 0
        %6848 = vmatpush1.bf16.msra.mxu0 %v6826
        %6849 = vmatprep.subr.bf16.mxu0 0
        %6850 = vmatpush1.bf16.msra.mxu0 %v6827
        %6851 = vmatprep.subr.bf16.mxu0 0
        %6852 = vmatpush1.bf16.msra.mxu0 %v6828
        %6853 = vmatprep.subr.bf16.mxu0 0
        %6854 = vmatpush1.bf16.msra.mxu0 %v6829
        %6855 = vmatprep.subr.bf16.mxu0 0
        %6856 = vmatpush1.bf16.msra.mxu0 %v6830
        %6857 = vmatprep.subr.bf16.mxu0 0
        %6858 = vmatpush1.bf16.msra.mxu0 0
        %6859 = vmatprep.subr.bf16.mxu0 0
        %6860 = vmatpush1.bf16.msra.mxu0 0
        %6861 = vmatprep.subr.bf16.mxu0 0
        %6862 = vmatpush1.bf16.msra.mxu0 0
        %6863 = vmatprep.subr.bf16.mxu0 0
        %6864 = vmatpush1.bf16.msra.mxu0 0
        %6865 = vmatprep.subr.bf16.mxu0 0
        %6866 = vmatpush1.bf16.msra.mxu0 0
        %6867 = vmatprep.subr.bf16.mxu0 0
        %6868 = vmatpush1.bf16.msra.mxu0 0
        %6869 = vmatprep.subr.bf16.mxu0 0
        %6870 = vmatpush1.bf16.msra.mxu0 0
        %6871 = vmatprep.subr.bf16.mxu0 0
        %6872 = vmatpush1.bf16.msra.mxu0 0
        %6873 = vmatprep.mubr.bf16.mxu0 0
        %6874 = vmatmul.mubr.bf16.gmra.mrb[0].mxu0 %v6789
        %v6875 = vpop.f32.mrb[0].mxu0
        %v6876 = vadd.f32 %v6839, %v6875
        %v6877 = vpop.f32.mrb[0].mxu0
        %v6878 = vpop.f32.mrb[0].mxu0
        %v6879 = vpop.f32.mrb[0].mxu0
        %6880 = vdwg.mxu0
        %v6882 = vcombine.high %v6876, %v6876
        %vm6884 = vcmp.gt.f32.partialorder %v6876, 0.0
        %vm6885 = vcmp.gt.f32.partialorder %v6882, 0.0
        %v6886 = vmul.f32 %v6876, 0.2
        %v6887 = vmul.f32 %v6882, 0.2
        %v6888 = vsel %vm6884, %v6876, %v6886
        %v6889 = vsel %vm6885, %v6882, %v6887
        %vm6890 = vcmask 257024
        %6891 = vst.msk [vmem:[%s443] sm:$0xf] %vm6890, %v6888
        %6892 = vst.msk [vmem:[%s443 + $0x4] sm:$0xf] %vm6890, %v6889
        %s6893 = smul.u32 2, %s22
        %p6894 = scmp.lt.s32.totalorder %s21, 1
        %s6895 = scalar_select %p6894, %s21, 1
        %p6896 = scmp.lt.s32.totalorder %s6893, 3
        %s6897 = scalar_select %p6896, %s6893, 3
        %s6898 = smul.addr %s6895, 4
        %s6899 = sadd.s32 %s6897, %s6898
        %s6900 = smul.addr %s6899, 4
        %s6901 = scalar_lea.vmem %s6, %s6900
        // Predicated region
        $region127: #{leval_prop_forward.2} parent=117 // pred_check
          %p6902 = pneg %p196
        $region128: #{leval_prop_forward.2} parent=117 // pred_check_branch
          %6904 = sbr.rel (%p6902) target = $region130
        $region129: #{leval_prop_forward.2} parent=117 // pred_region
          %s6905 = smul.u32 2, %s22
        $region130: #{leval_prop_forward.2} parent=117 // pred_fallthru
          _
      $region118: #{leval_prop_forward.2} parent=5 // pred_fallthru
        _
      %p6906 = scmp.le.s32.totalorder 2, %s12
      // Predicated region
      $region131: #{leval_prop_forward.2} parent=5 // pred_check
        %p6907 = pneg %p6906
      $region132: #{leval_prop_forward.2} parent=5 // pred_check_branch
        %6909 = sbr.rel (%p6907) target = $region134
      $region133: #{leval_prop_forward.2} parent=5 // pred_region
        %s6910 = ssub.s32 %s12, 2
        // Predicated region
        $region135: #{leval_prop_forward.2} parent=133 // pred_check
          %p6911 = pneg %p202
        $region136: #{leval_prop_forward.2} parent=133 // pred_check_branch
          %6913 = sbr.rel (%p6911) target = $region138
        $region137: #{leval_prop_forward.2} parent=133 // pred_region
          %s6914 = smul.u32 2, %s24
          %p6915 = scmp.lt.s32.totalorder %s23, 1
          %s6916 = scalar_select %p6915, %s23, 1
          %p6917 = scmp.lt.s32.totalorder %s6914, 3
          %s6918 = scalar_select %p6917, %s6914, 3
          %s6919 = smul.addr %s6916, 4
          %s6920 = sadd.s32 %s6918, %s6919
          %s6921 = smul.addr %s6920, 4
          %s6922 = scalar_lea.vmem %s6, %s6921
        $region138: #{leval_prop_forward.2} parent=133 // pred_fallthru
          _
      $region134: #{leval_prop_forward.2} parent=5 // pred_fallthru
        _
    $region6: #{leval_prop_forward.2} parent=1 // loop_footer
      %s16 = sadd.s32 1, %s12
    $region7: #{leval_prop_forward.2} parent=1 // loop_footer_branch
      %11 = sbr.rel target = $region3
    $region8: #{leval_prop_forward.2} parent=1 // loop_exit
      _

// kernel: leval_prop_forward.3
$region0: #{leval_prop_forward.3}
  #allocation0 [shape = 'u32[]', space=smem, size = 0x4, offset = 0x4, fixed_abs, tag = 'smem constant byte address 0x4 - core index']
  #allocation1 [shape = 'u32[144,128]{1,0:T(1,128)}', space=vmem, size = 0x12000, scoped, tag = 'internal scratch']
  #allocation2 [shape = 'bf16[6,6,64]{2,1,0:T(8,128)(2,1)}', space=vmem, size = 0x3000, scoped, tag = 'scratch operand']
  #allocation3 [shape = 'f32[6,6,32]{2,1,0:T(8,128)}', space=vmem, size = 0x6000, scoped, tag = 'scratch operand']
  #allocation4 [shape = 'f32[6,6,32]{2,1,0:T(8,128)}', space=vmem, size = 0x6000, scoped, tag = 'scratch operand']
  %s0 = inlined_call_operand.vmem [shape: f32[2,4,4,32], index: 0, kind: input, shape index: {}]
  %s1 = inlined_call_operand.vmem [shape: f32[2,4,4,32], index: 1, kind: input, shape index: {}]
  %s2 = inlined_call_operand.vmem [shape: bf16[576,32], index: 2, kind: input, shape index: {}]
  %s3 = inlined_call_operand.vmem [shape: f32[1,32], index: 3, kind: input, shape index: {}]
  %s4 = inlined_call_operand.vmem [shape: bf16[288,32], index: 4, kind: input, shape index: {}]
  %s5 = inlined_call_operand.vmem [shape: f32[1,32], index: 5, kind: input, shape index: {}]
  %s6 = inlined_call_operand.vmem [shape: bf16[288,32], index: 6, kind: input, shape index: {}]
  %s7 = inlined_call_operand.vmem [shape: f32[1,32], index: 7, kind: input, shape index: {}]
  %s8 = inlined_call_operand.vmem [shape: bf16[288,32], index: 8, kind: input, shape index: {}]
  %s9 = inlined_call_operand.vmem [shape: f32[1,32], index: 9, kind: input, shape index: {}]
  %s10 = inlined_call_operand.vmem [shape: bf16[288,32], index: 10, kind: input, shape index: {}]
  %s11 = inlined_call_operand.vmem [shape: f32[1,32], index: 11, kind: input, shape index: {}]
  %s12 = inlined_call_operand.vmem [shape: bf16[288,34], index: 12, kind: input, shape index: {}]
  %s13 = inlined_call_operand.vmem [shape: f32[1,34], index: 13, kind: input, shape index: {}]
  %s14 = inlined_call_operand.vmem [shape: f32[2,4,4,34], index: 14, kind: output, shape index: {}]
  %s15 = sld [smem:[#allocation0]]
  $region89: #{leval_prop_forward.3} parent=0
    _
  %s17 = ssub.s32 1, %s15
  %s18 = scalar_select 0, %s17, %s15
  loop: start=0, step=1, limit=4
  $region2: #{leval_prop_forward.3} parent=0 // loop_pre_header
    _
  $region3: #{leval_prop_forward.3} parent=0 // loop_header
    %s20 = sphi 0, %s24
    %p21 = scmp.ge.s32.totalorder %s20, 4
    %s30 = sphi 0, %s32
    %s33 = sphi 0, %s30
    %s34 = sphi 0, %s33
    %s50 = sphi 0, %s34
    %s56 = sphi 0, %s58
    %s59 = sphi 0, %s56
    %s60 = sphi 0, %s59
    %s76 = sphi 0, %s60
    %s80 = sphi 0, %s80
    %s82 = sphi 0, %s80
    %s83 = sphi 0, %s82
    %s97 = sphi 0, %s83
    %s101 = sphi 0, %s101
    %s103 = sphi 0, %s101
    %s104 = sphi 0, %s103
    %s118 = sphi 0, %s104
    %s122 = sphi 0, %s122
    %s124 = sphi 0, %s122
    %s125 = sphi 0, %s124
    %s139 = sphi 0, %s125
    %s143 = sphi 0, %s143
    %s145 = sphi 0, %s143
    %s146 = sphi 0, %s145
    %s160 = sphi 0, %s146
    %s164 = sphi 0, %s164
    %s166 = sphi 0, %s164
    %s167 = sphi 0, %s166
    %s181 = sphi 0, %s167
    %s185 = sphi 0, %s185
    %s187 = sphi 0, %s185
    %s188 = sphi 0, %s187
    %s202 = sphi 0, %s188
    %s206 = sphi 0, %s206
    %s208 = sphi 0, %s206
    %s209 = sphi 0, %s208
    %s223 = sphi 0, %s209
    %s227 = sphi 0, %s227
    %s229 = sphi 0, %s227
    %s230 = sphi 0, %s229
    %s244 = sphi 0, %s230
    %s248 = sphi 0, %s248
    %s250 = sphi 0, %s248
    %s251 = sphi 0, %s250
    %s265 = sphi 0, %s251
    %s269 = sphi 0, %s269
    %s271 = sphi 0, %s269
    %s272 = sphi 0, %s271
    %s286 = sphi 0, %s272
    %s290 = sphi 0, %s290
    %s292 = sphi 0, %s290
    %s293 = sphi 0, %s292
    %s307 = sphi 0, %s293
    %s311 = sphi 0, %s311
    %s313 = sphi 0, %s311
    %s314 = sphi 0, %s313
    %s328 = sphi 0, %s314
    %s334 = sphi 0, %s336
    %s337 = sphi 0, %s334
    %s338 = sphi 0, %s337
    %s354 = sphi 0, %s338
  $region4: #{leval_prop_forward.3} parent=0 // loop_header_branch
    %23 = sbr.rel (%p21) target = $region8
  $region5: #{leval_prop_forward.3} parent=0 // loop_body
    %s25 = ssub.s32 %s20, 1
    %s26 = ssub.s32 %s20, 2
    %s27 = sadd.s32 %s20, 1
    %s28 = ssub.s32 %s20, %s27
    %p29 = scmp.eq.s32.totalorder %s28, 0
    %s31 = sadd.s32 %s30, 1
    %s32 = scalar_select %p29, %s30, %s31
    %p35 = pneg %p29
    %p36 = scmp.eq.s32.totalorder %s20, 1
    %p37 = por %p35, %p36
    %p38 = scmp.ne.s32.totalorder %s30, %s33
    %p39 = scmp.eq.s32.totalorder %s20, 0
    %p40 = por %p38, %p39
    %p41 = scmp.ne.s32.totalorder %s30, %s33
    %p42 = scmp.eq.s32.totalorder %s25, 1
    %p43 = por %p41, %p42
    %p44 = scmp.ne.s32.totalorder %s33, %s34
    %p45 = scmp.eq.s32.totalorder %s25, 0
    %p46 = por %p44, %p45
    %p47 = scmp.ne.s32.totalorder %s33, %s34
    %p48 = scmp.eq.s32.totalorder %s26, 1
    %p49 = por %p47, %p48
    %p51 = scmp.ne.s32.totalorder %s34, %s50
    %p52 = scmp.eq.s32.totalorder %s26, 0
    %p53 = por %p51, %p52
    %s54 = ssub.s32 %s20, %s27
    %p55 = scmp.eq.s32.totalorder %s54, 0
    %s57 = sadd.s32 %s56, 1
    %s58 = scalar_select %p55, %s56, %s57
    %p61 = pneg %p55
    %p62 = scmp.eq.s32.totalorder %s20, 1
    %p63 = por %p61, %p62
    %p64 = scmp.ne.s32.totalorder %s56, %s59
    %p65 = scmp.eq.s32.totalorder %s20, 0
    %p66 = por %p64, %p65
    %p67 = scmp.ne.s32.totalorder %s56, %s59
    %p68 = scmp.eq.s32.totalorder %s25, 1
    %p69 = por %p67, %p68
    %p70 = scmp.ne.s32.totalorder %s59, %s60
    %p71 = scmp.eq.s32.totalorder %s25, 0
    %p72 = por %p70, %p71
    %p73 = scmp.ne.s32.totalorder %s59, %s60
    %p74 = scmp.eq.s32.totalorder %s26, 1
    %p75 = por %p73, %p74
    %p77 = scmp.ne.s32.totalorder %s60, %s76
    %p78 = scmp.eq.s32.totalorder %s26, 0
    %p79 = por %p77, %p78
    %s81 = sadd.s32 %s80, 1
    %p84 = scmp.eq.s32.totalorder %s20, 1
    %p85 = scmp.ne.s32.totalorder %s80, %s82
    %p86 = scmp.eq.s32.totalorder %s20, 0
    %p87 = por %p85, %p86
    %p88 = scmp.ne.s32.totalorder %s80, %s82
    %p89 = scmp.eq.s32.totalorder %s25, 1
    %p90 = por %p88, %p89
    %p91 = scmp.ne.s32.totalorder %s82, %s83
    %p92 = scmp.eq.s32.totalorder %s25, 0
    %p93 = por %p91, %p92
    %p94 = scmp.ne.s32.totalorder %s82, %s83
    %p95 = scmp.eq.s32.totalorder %s26, 1
    %p96 = por %p94, %p95
    %p98 = scmp.ne.s32.totalorder %s83, %s97
    %p99 = scmp.eq.s32.totalorder %s26, 0
    %p100 = por %p98, %p99
    %s102 = sadd.s32 %s101, 1
    %p105 = scmp.eq.s32.totalorder %s20, 1
    %p106 = scmp.ne.s32.totalorder %s101, %s103
    %p107 = scmp.eq.s32.totalorder %s20, 0
    %p108 = por %p106, %p107
    %p109 = scmp.ne.s32.totalorder %s101, %s103
    %p110 = scmp.eq.s32.totalorder %s25, 1
    %p111 = por %p109, %p110
    %p112 = scmp.ne.s32.totalorder %s103, %s104
    %p113 = scmp.eq.s32.totalorder %s25, 0
    %p114 = por %p112, %p113
    %p115 = scmp.ne.s32.totalorder %s103, %s104
    %p116 = scmp.eq.s32.totalorder %s26, 1
    %p117 = por %p115, %p116
    %p119 = scmp.ne.s32.totalorder %s104, %s118
    %p120 = scmp.eq.s32.totalorder %s26, 0
    %p121 = por %p119, %p120
    %s123 = sadd.s32 %s122, 1
    %p126 = scmp.eq.s32.totalorder %s20, 1
    %p127 = scmp.ne.s32.totalorder %s122, %s124
    %p128 = scmp.eq.s32.totalorder %s20, 0
    %p129 = por %p127, %p128
    %p130 = scmp.ne.s32.totalorder %s122, %s124
    %p131 = scmp.eq.s32.totalorder %s25, 1
    %p132 = por %p130, %p131
    %p133 = scmp.ne.s32.totalorder %s124, %s125
    %p134 = scmp.eq.s32.totalorder %s25, 0
    %p135 = por %p133, %p134
    %p136 = scmp.ne.s32.totalorder %s124, %s125
    %p137 = scmp.eq.s32.totalorder %s26, 1
    %p138 = por %p136, %p137
    %p140 = scmp.ne.s32.totalorder %s125, %s139
    %p141 = scmp.eq.s32.totalorder %s26, 0
    %p142 = por %p140, %p141
    %s144 = sadd.s32 %s143, 1
    %p147 = scmp.eq.s32.totalorder %s20, 1
    %p148 = scmp.ne.s32.totalorder %s143, %s145
    %p149 = scmp.eq.s32.totalorder %s20, 0
    %p150 = por %p148, %p149
    %p151 = scmp.ne.s32.totalorder %s143, %s145
    %p152 = scmp.eq.s32.totalorder %s25, 1
    %p153 = por %p151, %p152
    %p154 = scmp.ne.s32.totalorder %s145, %s146
    %p155 = scmp.eq.s32.totalorder %s25, 0
    %p156 = por %p154, %p155
    %p157 = scmp.ne.s32.totalorder %s145, %s146
    %p158 = scmp.eq.s32.totalorder %s26, 1
    %p159 = por %p157, %p158
    %p161 = scmp.ne.s32.totalorder %s146, %s160
    %p162 = scmp.eq.s32.totalorder %s26, 0
    %p163 = por %p161, %p162
    %s165 = sadd.s32 %s164, 1
    %p168 = scmp.eq.s32.totalorder %s20, 1
    %p169 = scmp.ne.s32.totalorder %s164, %s166
    %p170 = scmp.eq.s32.totalorder %s20, 0
    %p171 = por %p169, %p170
    %p172 = scmp.ne.s32.totalorder %s164, %s166
    %p173 = scmp.eq.s32.totalorder %s25, 1
    %p174 = por %p172, %p173
    %p175 = scmp.ne.s32.totalorder %s166, %s167
    %p176 = scmp.eq.s32.totalorder %s25, 0
    %p177 = por %p175, %p176
    %p178 = scmp.ne.s32.totalorder %s166, %s167
    %p179 = scmp.eq.s32.totalorder %s26, 1
    %p180 = por %p178, %p179
    %p182 = scmp.ne.s32.totalorder %s167, %s181
    %p183 = scmp.eq.s32.totalorder %s26, 0
    %p184 = por %p182, %p183
    %s186 = sadd.s32 %s185, 1
    %p189 = scmp.eq.s32.totalorder %s20, 1
    %p190 = scmp.ne.s32.totalorder %s185, %s187
    %p191 = scmp.eq.s32.totalorder %s20, 0
    %p192 = por %p190, %p191
    %p193 = scmp.ne.s32.totalorder %s185, %s187
    %p194 = scmp.eq.s32.totalorder %s25, 1
    %p195 = por %p193, %p194
    %p196 = scmp.ne.s32.totalorder %s187, %s188
    %p197 = scmp.eq.s32.totalorder %s25, 0
    %p198 = por %p196, %p197
    %p199 = scmp.ne.s32.totalorder %s187, %s188
    %p200 = scmp.eq.s32.totalorder %s26, 1
    %p201 = por %p199, %p200
    %p203 = scmp.ne.s32.totalorder %s188, %s202
    %p204 = scmp.eq.s32.totalorder %s26, 0
    %p205 = por %p203, %p204
    %s207 = sadd.s32 %s206, 1
    %p210 = scmp.eq.s32.totalorder %s20, 1
    %p211 = scmp.ne.s32.totalorder %s206, %s208
    %p212 = scmp.eq.s32.totalorder %s20, 0
    %p213 = por %p211, %p212
    %p214 = scmp.ne.s32.totalorder %s206, %s208
    %p215 = scmp.eq.s32.totalorder %s25, 1
    %p216 = por %p214, %p215
    %p217 = scmp.ne.s32.totalorder %s208, %s209
    %p218 = scmp.eq.s32.totalorder %s25, 0
    %p219 = por %p217, %p218
    %p220 = scmp.ne.s32.totalorder %s208, %s209
    %p221 = scmp.eq.s32.totalorder %s26, 1
    %p222 = por %p220, %p221
    %p224 = scmp.ne.s32.totalorder %s209, %s223
    %p225 = scmp.eq.s32.totalorder %s26, 0
    %p226 = por %p224, %p225
    %s228 = sadd.s32 %s227, 1
    %p231 = scmp.eq.s32.totalorder %s20, 1
    %p232 = scmp.ne.s32.totalorder %s227, %s229
    %p233 = scmp.eq.s32.totalorder %s20, 0
    %p234 = por %p232, %p233
    %p235 = scmp.ne.s32.totalorder %s227, %s229
    %p236 = scmp.eq.s32.totalorder %s25, 1
    %p237 = por %p235, %p236
    %p238 = scmp.ne.s32.totalorder %s229, %s230
    %p239 = scmp.eq.s32.totalorder %s25, 0
    %p240 = por %p238, %p239
    %p241 = scmp.ne.s32.totalorder %s229, %s230
    %p242 = scmp.eq.s32.totalorder %s26, 1
    %p243 = por %p241, %p242
    %p245 = scmp.ne.s32.totalorder %s230, %s244
    %p246 = scmp.eq.s32.totalorder %s26, 0
    %p247 = por %p245, %p246
    %s249 = sadd.s32 %s248, 1
    %p252 = scmp.eq.s32.totalorder %s20, 1
    %p253 = scmp.ne.s32.totalorder %s248, %s250
    %p254 = scmp.eq.s32.totalorder %s20, 0
    %p255 = por %p253, %p254
    %p256 = scmp.ne.s32.totalorder %s248, %s250
    %p257 = scmp.eq.s32.totalorder %s25, 1
    %p258 = por %p256, %p257
    %p259 = scmp.ne.s32.totalorder %s250, %s251
    %p260 = scmp.eq.s32.totalorder %s25, 0
    %p261 = por %p259, %p260
    %p262 = scmp.ne.s32.totalorder %s250, %s251
    %p263 = scmp.eq.s32.totalorder %s26, 1
    %p264 = por %p262, %p263
    %p266 = scmp.ne.s32.totalorder %s251, %s265
    %p267 = scmp.eq.s32.totalorder %s26, 0
    %p268 = por %p266, %p267
    %s270 = sadd.s32 %s269, 1
    %p273 = scmp.eq.s32.totalorder %s20, 1
    %p274 = scmp.ne.s32.totalorder %s269, %s271
    %p275 = scmp.eq.s32.totalorder %s20, 0
    %p276 = por %p274, %p275
    %p277 = scmp.ne.s32.totalorder %s269, %s271
    %p278 = scmp.eq.s32.totalorder %s25, 1
    %p279 = por %p277, %p278
    %p280 = scmp.ne.s32.totalorder %s271, %s272
    %p281 = scmp.eq.s32.totalorder %s25, 0
    %p282 = por %p280, %p281
    %p283 = scmp.ne.s32.totalorder %s271, %s272
    %p284 = scmp.eq.s32.totalorder %s26, 1
    %p285 = por %p283, %p284
    %p287 = scmp.ne.s32.totalorder %s272, %s286
    %p288 = scmp.eq.s32.totalorder %s26, 0
    %p289 = por %p287, %p288
    %s291 = sadd.s32 %s290, 1
    %p294 = scmp.eq.s32.totalorder %s20, 1
    %p295 = scmp.ne.s32.totalorder %s290, %s292
    %p296 = scmp.eq.s32.totalorder %s20, 0
    %p297 = por %p295, %p296
    %p298 = scmp.ne.s32.totalorder %s290, %s292
    %p299 = scmp.eq.s32.totalorder %s25, 1
    %p300 = por %p298, %p299
    %p301 = scmp.ne.s32.totalorder %s292, %s293
    %p302 = scmp.eq.s32.totalorder %s25, 0
    %p303 = por %p301, %p302
    %p304 = scmp.ne.s32.totalorder %s292, %s293
    %p305 = scmp.eq.s32.totalorder %s26, 1
    %p306 = por %p304, %p305
    %p308 = scmp.ne.s32.totalorder %s293, %s307
    %p309 = scmp.eq.s32.totalorder %s26, 0
    %p310 = por %p308, %p309
    %s312 = sadd.s32 %s311, 1
    %p315 = scmp.eq.s32.totalorder %s20, 1
    %p316 = scmp.ne.s32.totalorder %s311, %s313
    %p317 = scmp.eq.s32.totalorder %s20, 0
    %p318 = por %p316, %p317
    %p319 = scmp.ne.s32.totalorder %s311, %s313
    %p320 = scmp.eq.s32.totalorder %s25, 1
    %p321 = por %p319, %p320
    %p322 = scmp.ne.s32.totalorder %s313, %s314
    %p323 = scmp.eq.s32.totalorder %s25, 0
    %p324 = por %p322, %p323
    %p325 = scmp.ne.s32.totalorder %s313, %s314
    %p326 = scmp.eq.s32.totalorder %s26, 1
    %p327 = por %p325, %p326
    %p329 = scmp.ne.s32.totalorder %s314, %s328
    %p330 = scmp.eq.s32.totalorder %s26, 0
    %p331 = por %p329, %p330
    %s332 = ssub.s32 %s20, %s27
    %p333 = scmp.eq.s32.totalorder %s332, 0
    %s335 = sadd.s32 %s334, 1
    %s336 = scalar_select %p333, %s334, %s335
    %p339 = pneg %p333
    %p340 = scmp.eq.s32.totalorder %s20, 1
    %p341 = por %p339, %p340
    %p342 = scmp.ne.s32.totalorder %s334, %s337
    %p343 = scmp.eq.s32.totalorder %s20, 0
    %p344 = por %p342, %p343
    %p345 = scmp.ne.s32.totalorder %s334, %s337
    %p346 = scmp.eq.s32.totalorder %s25, 1
    %p347 = por %p345, %p346
    %p348 = scmp.ne.s32.totalorder %s337, %s338
    %p349 = scmp.eq.s32.totalorder %s25, 0
    %p350 = por %p348, %p349
    %p351 = scmp.ne.s32.totalorder %s337, %s338
    %p352 = scmp.eq.s32.totalorder %s26, 1
    %p353 = por %p351, %p352
    %p355 = scmp.ne.s32.totalorder %s338, %s354
    %p356 = scmp.eq.s32.totalorder %s26, 0
    %p357 = por %p355, %p356
    %p358 = scmp.le.s32.totalorder 1, %s20
    %p359 = scmp.lt.s32.totalorder %s20, 3
    %p360 = pnand %p358, %p359
    %p361 = pneg %p360
    // Predicated region
    $region9: #{leval_prop_forward.3} parent=5 // pred_check
      _
    $region10: #{leval_prop_forward.3} parent=5 // pred_check_branch
      %363 = sbr.rel (%p360) target = $region12
    $region11: #{leval_prop_forward.3} parent=5 // pred_region
      %s364 = ssub.s32 %s20, 1
      // Predicated region
      $region13: #{leval_prop_forward.3} parent=11 // pred_check
        %p365 = pneg %p93
      $region14: #{leval_prop_forward.3} parent=11 // pred_check_branch
        %367 = sbr.rel (%p365) target = $region16
      $region15: #{leval_prop_forward.3} parent=11 // pred_region
        _
      $region16: #{leval_prop_forward.3} parent=11 // pred_fallthru
        _
      // Predicated region
      $region17: #{leval_prop_forward.3} parent=11 // pred_check
        %p368 = pneg %p114
      $region18: #{leval_prop_forward.3} parent=11 // pred_check_branch
        %370 = sbr.rel (%p368) target = $region20
      $region19: #{leval_prop_forward.3} parent=11 // pred_region
        _
      $region20: #{leval_prop_forward.3} parent=11 // pred_fallthru
        _
      // Predicated region
      $region21: #{leval_prop_forward.3} parent=11 // pred_check
        %p371 = pneg %p135
      $region22: #{leval_prop_forward.3} parent=11 // pred_check_branch
        %373 = sbr.rel (%p371) target = $region24
      $region23: #{leval_prop_forward.3} parent=11 // pred_region
        _
      $region24: #{leval_prop_forward.3} parent=11 // pred_fallthru
        _
      // Predicated region
      $region25: #{leval_prop_forward.3} parent=11 // pred_check
        %p374 = pneg %p156
      $region26: #{leval_prop_forward.3} parent=11 // pred_check_branch
        %376 = sbr.rel (%p374) target = $region28
      $region27: #{leval_prop_forward.3} parent=11 // pred_region
        _
      $region28: #{leval_prop_forward.3} parent=11 // pred_fallthru
        _
      // Predicated region
      $region29: #{leval_prop_forward.3} parent=11 // pred_check
        %p377 = pneg %p177
      $region30: #{leval_prop_forward.3} parent=11 // pred_check_branch
        %379 = sbr.rel (%p377) target = $region32
      $region31: #{leval_prop_forward.3} parent=11 // pred_region
        _
      $region32: #{leval_prop_forward.3} parent=11 // pred_fallthru
        _
      // Predicated region
      $region33: #{leval_prop_forward.3} parent=11 // pred_check
        %p380 = pneg %p198
      $region34: #{leval_prop_forward.3} parent=11 // pred_check_branch
        %382 = sbr.rel (%p380) target = $region36
      $region35: #{leval_prop_forward.3} parent=11 // pred_region
        _
      $region36: #{leval_prop_forward.3} parent=11 // pred_fallthru
        _
      // Predicated region
      $region37: #{leval_prop_forward.3} parent=11 // pred_check
        %p383 = pneg %p219
      $region38: #{leval_prop_forward.3} parent=11 // pred_check_branch
        %385 = sbr.rel (%p383) target = $region40
      $region39: #{leval_prop_forward.3} parent=11 // pred_region
        _
      $region40: #{leval_prop_forward.3} parent=11 // pred_fallthru
        _
      // Predicated region
      $region41: #{leval_prop_forward.3} parent=11 // pred_check
        %p386 = pneg %p240
      $region42: #{leval_prop_forward.3} parent=11 // pred_check_branch
        %388 = sbr.rel (%p386) target = $region44
      $region43: #{leval_prop_forward.3} parent=11 // pred_region
        _
      $region44: #{leval_prop_forward.3} parent=11 // pred_fallthru
        _
      // Predicated region
      $region45: #{leval_prop_forward.3} parent=11 // pred_check
        %p389 = pneg %p261
      $region46: #{leval_prop_forward.3} parent=11 // pred_check_branch
        %391 = sbr.rel (%p389) target = $region48
      $region47: #{leval_prop_forward.3} parent=11 // pred_region
        _
      $region48: #{leval_prop_forward.3} parent=11 // pred_fallthru
        _
      // Predicated region
      $region49: #{leval_prop_forward.3} parent=11 // pred_check
        %p392 = pneg %p282
      $region50: #{leval_prop_forward.3} parent=11 // pred_check_branch
        %394 = sbr.rel (%p392) target = $region52
      $region51: #{leval_prop_forward.3} parent=11 // pred_region
        _
      $region52: #{leval_prop_forward.3} parent=11 // pred_fallthru
        _
      // Predicated region
      $region53: #{leval_prop_forward.3} parent=11 // pred_check
        %p395 = pneg %p303
      $region54: #{leval_prop_forward.3} parent=11 // pred_check_branch
        %397 = sbr.rel (%p395) target = $region56
      $region55: #{leval_prop_forward.3} parent=11 // pred_region
        _
      $region56: #{leval_prop_forward.3} parent=11 // pred_fallthru
        _
      // Predicated region
      $region57: #{leval_prop_forward.3} parent=11 // pred_check
        %p398 = pneg %p324
      $region58: #{leval_prop_forward.3} parent=11 // pred_check_branch
        %400 = sbr.rel (%p398) target = $region60
      $region59: #{leval_prop_forward.3} parent=11 // pred_region
        _
      $region60: #{leval_prop_forward.3} parent=11 // pred_fallthru
        _
    $region12: #{leval_prop_forward.3} parent=5 // pred_fallthru
      _
    %p401 = scmp.lt.s32.totalorder %s20, 2
    // Predicated region
    $region61: #{leval_prop_forward.3} parent=5 // pred_check
      %p402 = pneg %p401
    $region62: #{leval_prop_forward.3} parent=5 // pred_check_branch
      %404 = sbr.rel (%p402) target = $region64
    $region63: #{leval_prop_forward.3} parent=5 // pred_region
      // Predicated region
      $region65: #{leval_prop_forward.3} parent=63 // pred_check
        %p405 = pneg %p40
      $region66: #{leval_prop_forward.3} parent=63 // pred_check_branch
        %407 = sbr.rel (%p405) target = $region68
      $region67: #{leval_prop_forward.3} parent=63 // pred_region
        %p408 = scmp.lt.s32.totalorder %s20, 1
        %s409 = scalar_select %p408, %s20, 1
        %s410 = smul.addr %s409, 4
        %s411 = smul.addr %s410, 4
        %s412 = scalar_lea.vmem %s0, %s411
      $region68: #{leval_prop_forward.3} parent=63 // pred_fallthru
        _
      // Predicated region
      $region69: #{leval_prop_forward.3} parent=63 // pred_check
        %p413 = pneg %p66
      $region70: #{leval_prop_forward.3} parent=63 // pred_check_branch
        %415 = sbr.rel (%p413) target = $region72
      $region71: #{leval_prop_forward.3} parent=63 // pred_region
        %p416 = scmp.lt.s32.totalorder %s20, 1
        %s417 = scalar_select %p416, %s20, 1
        %s418 = smul.addr %s417, 4
        %s419 = smul.addr %s418, 4
        %s420 = scalar_lea.vmem %s1, %s419
      $region72: #{leval_prop_forward.3} parent=63 // pred_fallthru
        _
    $region64: #{leval_prop_forward.3} parent=5 // pred_fallthru
      _
    %p421 = scmp.le.s32.totalorder 1, %s20
    %p422 = scmp.lt.s32.totalorder %s20, 3
    %p423 = pnand %p421, %p422
    %p424 = pneg %p423
    // Predicated region
    $region73: #{leval_prop_forward.3} parent=5 // pred_check
      _
    $region74: #{leval_prop_forward.3} parent=5 // pred_check_branch
      %426 = sbr.rel (%p423) target = $region76
    $region75: #{leval_prop_forward.3} parent=5 // pred_region
      %s427 = ssub.s32 %s20, 1
      %p428 = scmp.lt.s32.totalorder %s25, 1
      %s429 = scalar_select %p428, %s25, 1
      %s430 = smul.addr %s429, 4
      %s431 = smul.addr %s430, 4
      %s432 = scalar_lea.vmem %s0, %s431
      %p433 = pneg %p46
      %p434 = pneg %p43
      %p435 = scmp.lt.s32.totalorder %s25, 1
      %s436 = scalar_select %p435, %s25, 1
      %s437 = smul.addr %s436, 4
      %s438 = smul.addr %s437, 4
      %s439 = scalar_lea.vmem %s1, %s438
      %p440 = pneg %p72
      %p441 = pneg %p69
      %p442 = pneg %p93
      %p443 = pneg %p90
      %p444 = pneg %p114
      %p445 = pneg %p111
      %p446 = pneg %p135
      %p447 = pneg %p132
      %p448 = pneg %p156
      %p449 = pneg %p153
      %p450 = pneg %p177
      %p451 = pneg %p174
      %p452 = pneg %p198
      %p453 = pneg %p195
      %p454 = pneg %p219
      %p455 = pneg %p216
      %p456 = pneg %p240
      %p457 = pneg %p237
      %p458 = pneg %p261
      %p459 = pneg %p258
      %p460 = pneg %p282
      %p461 = pneg %p279
      %p462 = pneg %p303
      %p463 = pneg %p300
      %p464 = pneg %p324
      %p465 = pneg %p321
      %p466 = pneg %p350
      %p467 = pneg %p347
      %p468 = scmp.lt.s32.totalorder %s25, 1
      %s469 = scalar_select %p468, %s25, 1
      %s470 = smul.addr %s469, 4
      %s471 = smul.addr %s470, 4
      %s472 = scalar_lea.vmem %s14, %s471
      %p473 = scmp.lt.s32.totalorder %s25, 1
      %s474 = scalar_select %p473, %s25, 1
      %s475 = smul.addr %s474, 4
      %s476 = smul.addr %s475, 4
      %s477 = scalar_lea.vmem %s0, %s476
      %p478 = scmp.lt.s32.totalorder %s25, 1
      %s479 = scalar_select %p478, %s25, 1
      %s480 = smul.addr %s479, 4
      %s481 = smul.addr %s480, 4
      %s482 = scalar_lea.vmem %s1, %s481
      %p483 = scmp.lt.s32.totalorder %s25, 1
      %s484 = scalar_select %p483, %s25, 1
      %s485 = smul.addr %s484, 4
      %s486 = smul.addr %s485, 4
      %s487 = scalar_lea.vmem %s14, %s486
      %vm489 = vcmask 518144
      %490 = vst.msk [vmem:[#allocation2] sm:$0x7] %vm489, 0
      %s491 = scalar_lea.vmem [#allocation2], 20
      %492 = vst.msk [vmem:[%s491] sm:$0x7] %vm489, 0
      %vm493 = vcmask 516096
      %vm494 = vsmask.f32 256
      %vm495 = vmand %vm493, %vm494
      %v496 = vld [vmem:[#allocation2] sm:$0x1]
      %v497 = vsel %vm495, 0, %v496
      %498 = vst [vmem:[#allocation2] sm:$0x1] %v497
      %v499 = vld [vmem:[#allocation2 + $0x4] sm:$0x1]
      %v500 = vsel %vm495, 0, %v499
      %501 = vst [vmem:[#allocation2 + $0x4] sm:$0x1] %v500
      %v502 = vld [vmem:[#allocation2 + $0x8] sm:$0x1]
      %v503 = vsel %vm495, 0, %v502
      %504 = vst [vmem:[#allocation2 + $0x8] sm:$0x1] %v503
      %v505 = vld [vmem:[#allocation2 + $0xc] sm:$0x1]
      %v506 = vsel %vm495, 0, %v505
      %507 = vst [vmem:[#allocation2 + $0xc] sm:$0x1] %v506
      %v508 = vld [vmem:[#allocation2 + $0x10] sm:$0x1]
      %v509 = vsel %vm495, 0, %v508
      %510 = vst [vmem:[#allocation2 + $0x10] sm:$0x1] %v509
      %v511 = vld [vmem:[#allocation2 + $0x14] sm:$0x1]
      %v512 = vsel %vm495, 0, %v511
      %513 = vst [vmem:[#allocation2 + $0x14] sm:$0x1] %v512
      %vm514 = vcmask 518146
      %vm515 = vsmask.f32 7946
      %vm516 = vmand %vm514, %vm515
      %v517 = vld [vmem:[#allocation2] sm:$0x4]
      %v518 = vsel %vm516, 0, %v517
      %519 = vst [vmem:[#allocation2] sm:$0x4] %v518
      %v520 = vld [vmem:[#allocation2 + $0x4] sm:$0x4]
      %v521 = vsel %vm516, 0, %v520
      %522 = vst [vmem:[#allocation2 + $0x4] sm:$0x4] %v521
      %v523 = vld [vmem:[#allocation2 + $0x8] sm:$0x4]
      %v524 = vsel %vm516, 0, %v523
      %525 = vst [vmem:[#allocation2 + $0x8] sm:$0x4] %v524
      %v526 = vld [vmem:[#allocation2 + $0xc] sm:$0x4]
      %v527 = vsel %vm516, 0, %v526
      %528 = vst [vmem:[#allocation2 + $0xc] sm:$0x4] %v527
      %v529 = vld [vmem:[#allocation2 + $0x10] sm:$0x4]
      %v530 = vsel %vm516, 0, %v529
      %531 = vst [vmem:[#allocation2 + $0x10] sm:$0x4] %v530
      %v532 = vld [vmem:[#allocation2 + $0x14] sm:$0x4]
      %v533 = vsel %vm516, 0, %v532
      %534 = vst [vmem:[#allocation2 + $0x14] sm:$0x4] %v533
      %vm535 = vcmask 259072
      %536 = vst.msk [vmem:[#allocation3] sm:$0x3f] %vm535, 0.0
      %s537 = scalar_lea.vmem [#allocation3], 40
      %538 = vst.msk [vmem:[%s537] sm:$0x3f] %vm535, 0.0
      %vm539 = vcmask 253952
      %540 = vst.msk [vmem:[#allocation3] sm:$0x1] %vm539, 0.0
      %541 = vst.msk [vmem:[#allocation3 + $0x8] sm:$0x1] %vm539, 0.0
      %542 = vst.msk [vmem:[#allocation3 + $0x10] sm:$0x1] %vm539, 0.0
      %543 = vst.msk [vmem:[#allocation3 + $0x18] sm:$0x1] %vm539, 0.0
      %544 = vst.msk [vmem:[#allocation3 + $0x20] sm:$0x1] %vm539, 0.0
      %545 = vst.msk [vmem:[#allocation3 + $0x28] sm:$0x1] %vm539, 0.0
      %546 = vst.msk [vmem:[#allocation3 + $0x5] sm:$0x1] %vm539, 0.0
      %547 = vst.msk [vmem:[#allocation3 + $0xd] sm:$0x1] %vm539, 0.0
      %548 = vst.msk [vmem:[#allocation3 + $0x15] sm:$0x1] %vm539, 0.0
      %549 = vst.msk [vmem:[#allocation3 + $0x1d] sm:$0x1] %vm539, 0.0
      %550 = vst.msk [vmem:[#allocation3 + $0x25] sm:$0x1] %vm539, 0.0
      %551 = vst.msk [vmem:[#allocation3 + $0x2d] sm:$0x1] %vm539, 0.0
      %552 = vst.msk [vmem:[#allocation4] sm:$0x3f] %vm535, 0.0
      %s553 = scalar_lea.vmem [#allocation4], 40
      %554 = vst.msk [vmem:[%s553] sm:$0x3f] %vm535, 0.0
      %555 = vst.msk [vmem:[#allocation4] sm:$0x1] %vm539, 0.0
      %556 = vst.msk [vmem:[#allocation4 + $0x8] sm:$0x1] %vm539, 0.0
      %557 = vst.msk [vmem:[#allocation4 + $0x10] sm:$0x1] %vm539, 0.0
      %558 = vst.msk [vmem:[#allocation4 + $0x18] sm:$0x1] %vm539, 0.0
      %559 = vst.msk [vmem:[#allocation4 + $0x20] sm:$0x1] %vm539, 0.0
      %560 = vst.msk [vmem:[#allocation4 + $0x28] sm:$0x1] %vm539, 0.0
      %561 = vst.msk [vmem:[#allocation4 + $0x5] sm:$0x1] %vm539, 0.0
      %562 = vst.msk [vmem:[#allocation4 + $0xd] sm:$0x1] %vm539, 0.0
      %563 = vst.msk [vmem:[#allocation4 + $0x15] sm:$0x1] %vm539, 0.0
      %564 = vst.msk [vmem:[#allocation4 + $0x1d] sm:$0x1] %vm539, 0.0
      %565 = vst.msk [vmem:[#allocation4 + $0x25] sm:$0x1] %vm539, 0.0
      %566 = vst.msk [vmem:[#allocation4 + $0x2d] sm:$0x1] %vm539, 0.0
      %v567 = vld [vmem:[%s477] sm:$0xf]
      %v568 = vld [vmem:[%s477 + $0x4] sm:$0xf]
      %v569 = vld [vmem:[%s477 + $0x8] sm:$0xf]
      %v570 = vld [vmem:[%s477 + $0xc] sm:$0xf]
      %v571 = vld [vmem:[%s482] sm:$0xf]
      %v572 = vld [vmem:[%s482 + $0x4] sm:$0xf]
      %v573 = vld [vmem:[%s482 + $0x8] sm:$0xf]
      %v574 = vld [vmem:[%s482 + $0xc] sm:$0xf]
      %579 = vrot.lane.b32.xlu0 %v571, 32
      %v580 = vpop.permute.xlu0 %579
      %581 = vrot.lane.b32.xlu0 %v572, 32
      %v582 = vpop.permute.xlu0 %581
      %583 = vrot.lane.b32.xlu0 %v573, 32
      %v584 = vpop.permute.xlu0 %583
      %585 = vrot.lane.b32.xlu0 %v574, 32
      %v586 = vpop.permute.xlu0 %585
      %vm591 = vcmask 261120
      %v592 = vsel %vm591, %v567, %v580
      %v593 = vsel %vm591, %v568, %v582
      %v594 = vsel %vm591, %v569, %v584
      %v595 = vsel %vm591, %v570, %v586
      %v596 = vpack.c.bf16 %v592, %v592
      %v597 = vpack.c.bf16 %v593, %v593
      %v598 = vpack.c.bf16 %v594, %v594
      %v599 = vpack.c.bf16 %v595, %v595
      %v604 = vunpack.c.l.b16 %v596
      %v605 = vunpack.c.l.b16 %v597
      %v606 = vunpack.c.l.b16 %v598
      %v607 = vunpack.c.l.b16 %v599
      %v608 = vpack.c.b16 %v604, %v604
      %v609 = vpack.c.b16 %v605, %v605
      %v610 = vpack.c.b16 %v606, %v606
      %v611 = vpack.c.b16 %v607, %v607
      %v613 = vshrl.u32 %v608, 16
      %v615 = vrot.slane %v613, 7
      %v616 = vshll.u32 %v608, 16
      %v618 = vor.u32 %v615, %v616
      %v620 = vshrl.u32 %v609, 16
      %v622 = vrot.slane %v620, 7
      %v623 = vshll.u32 %v609, 16
      %v625 = vor.u32 %v622, %v623
      %v627 = vshrl.u32 %v610, 16
      %v629 = vrot.slane %v627, 7
      %v630 = vshll.u32 %v610, 16
      %v632 = vor.u32 %v629, %v630
      %v634 = vshrl.u32 %v611, 16
      %v636 = vrot.slane %v634, 7
      %v637 = vshll.u32 %v611, 16
      %v639 = vor.u32 %v636, %v637
      %s644 = scalar_lea.vmem [#allocation2], 4
      %vm645 = vcmask 518144
      %vm646 = vsmask.f32 2306
      %vm647 = vmand %vm645, %vm646
      %v648 = vld [vmem:[%s644] sm:$0x7]
      %v649 = vsel %vm647, %v618, %v648
      %650 = vst [vmem:[%s644] sm:$0x7] %v649
      %v651 = vld [vmem:[%s644 + $0x4] sm:$0x7]
      %v652 = vsel %vm647, %v625, %v651
      %653 = vst [vmem:[%s644 + $0x4] sm:$0x7] %v652
      %v654 = vld [vmem:[%s644 + $0x8] sm:$0x7]
      %v655 = vsel %vm647, %v632, %v654
      %656 = vst [vmem:[%s644 + $0x8] sm:$0x7] %v655
      %v657 = vld [vmem:[%s644 + $0xc] sm:$0x7]
      %v658 = vsel %vm647, %v639, %v657
      %659 = vst [vmem:[%s644 + $0xc] sm:$0x7] %v658
      %v660 = vld [vmem:[%s2] sm:$0xf]
      %v661 = vld [vmem:[%s2 + $0x4] sm:$0xf]
      %v662 = vld [vmem:[%s2 + $0x8] sm:$0xf]
      %v663 = vld [vmem:[%s2 + $0xc] sm:$0xf]
      %v664 = vld [vmem:[%s2 + $0x10] sm:$0xf]
      %v665 = vld [vmem:[%s2 + $0x14] sm:$0xf]
      %v666 = vld [vmem:[%s2 + $0x18] sm:$0xf]
      %v667 = vld [vmem:[%s2 + $0x1c] sm:$0xf]
      %v668 = vld [vmem:[%s2 + $0x20] sm:$0xf]
      %v669 = vld [vmem:[%s2 + $0x24] sm:$0xf]
      %v670 = vld [vmem:[%s2 + $0x28] sm:$0xf]
      %v671 = vld [vmem:[%s2 + $0x2c] sm:$0xf]
      %v672 = vld [vmem:[%s2 + $0x30] sm:$0xf]
      %v673 = vld [vmem:[%s2 + $0x34] sm:$0xf]
      %v674 = vld [vmem:[%s2 + $0x38] sm:$0xf]
      %v675 = vld [vmem:[%s2 + $0x3c] sm:$0xf]
      %v676 = vld [vmem:[%s2 + $0x40] sm:$0xf]
      %v677 = vld [vmem:[%s2 + $0x44] sm:$0xf]
      %v678 = vld [vmem:[%s2 + $0x48] sm:$0xf]
      %v679 = vld [vmem:[%s2 + $0x4c] sm:$0xf]
      %v680 = vld [vmem:[%s2 + $0x50] sm:$0xf]
      %v681 = vld [vmem:[%s2 + $0x54] sm:$0xf]
      %v682 = vld [vmem:[%s2 + $0x58] sm:$0xf]
      %v683 = vld [vmem:[%s2 + $0x5c] sm:$0xf]
      %v684 = vld [vmem:[%s2 + $0x60] sm:$0xf]
      %v685 = vld [vmem:[%s2 + $0x64] sm:$0xf]
      %v686 = vld [vmem:[%s2 + $0x68] sm:$0xf]
      %v687 = vld [vmem:[%s2 + $0x6c] sm:$0xf]
      %v688 = vld [vmem:[%s2 + $0x70] sm:$0xf]
      %v689 = vld [vmem:[%s2 + $0x74] sm:$0xf]
      %v690 = vld [vmem:[%s2 + $0x78] sm:$0xf]
      %v691 = vld [vmem:[%s2 + $0x7c] sm:$0xf]
      %v692 = vld [vmem:[%s2 + $0x80] sm:$0xf]
      %v693 = vld [vmem:[%s2 + $0x84] sm:$0xf]
      %v694 = vld [vmem:[%s2 + $0x88] sm:$0xf]
      %v695 = vld [vmem:[%s2 + $0x8c] sm:$0xf]
      %v696 = vld [vmem:[%s2 + $0x90] sm:$0xf]
      %v697 = vld [vmem:[%s2 + $0x94] sm:$0xf]
      %v698 = vld [vmem:[%s2 + $0x98] sm:$0xf]
      %v699 = vld [vmem:[%s2 + $0x9c] sm:$0xf]
      %v700 = vld [vmem:[%s2 + $0xa0] sm:$0xf]
      %v701 = vld [vmem:[%s2 + $0xa4] sm:$0xf]
      %v702 = vld [vmem:[%s2 + $0xa8] sm:$0xf]
      %v703 = vld [vmem:[%s2 + $0xac] sm:$0xf]
      %v704 = vld [vmem:[%s2 + $0xb0] sm:$0xf]
      %v705 = vld [vmem:[%s2 + $0xb4] sm:$0xf]
      %v706 = vld [vmem:[%s2 + $0xb8] sm:$0xf]
      %v707 = vld [vmem:[%s2 + $0xbc] sm:$0xf]
      %v708 = vld [vmem:[%s2 + $0xc0] sm:$0xf]
      %v709 = vld [vmem:[%s2 + $0xc4] sm:$0xf]
      %v710 = vld [vmem:[%s2 + $0xc8] sm:$0xf]
      %v711 = vld [vmem:[%s2 + $0xcc] sm:$0xf]
      %v712 = vld [vmem:[%s2 + $0xd0] sm:$0xf]
      %v713 = vld [vmem:[%s2 + $0xd4] sm:$0xf]
      %v714 = vld [vmem:[%s2 + $0xd8] sm:$0xf]
      %v715 = vld [vmem:[%s2 + $0xdc] sm:$0xf]
      %v716 = vld [vmem:[%s2 + $0xe0] sm:$0xf]
      %v717 = vld [vmem:[%s2 + $0xe4] sm:$0xf]
      %v718 = vld [vmem:[%s2 + $0xe8] sm:$0xf]
      %v719 = vld [vmem:[%s2 + $0xec] sm:$0xf]
      %v720 = vld [vmem:[%s2 + $0xf0] sm:$0xf]
      %v721 = vld [vmem:[%s2 + $0xf4] sm:$0xf]
      %v722 = vld [vmem:[%s2 + $0xf8] sm:$0xf]
      %v723 = vld [vmem:[%s2 + $0xfc] sm:$0xf]
      %v724 = vld [vmem:[%s2 + $0x100] sm:$0xf]
      %v725 = vld [vmem:[%s2 + $0x104] sm:$0xf]
      %v726 = vld [vmem:[%s2 + $0x108] sm:$0xf]
      %v727 = vld [vmem:[%s2 + $0x10c] sm:$0xf]
      %v728 = vld [vmem:[%s2 + $0x110] sm:$0xf]
      %v729 = vld [vmem:[%s2 + $0x114] sm:$0xf]
      %v730 = vld [vmem:[%s2 + $0x118] sm:$0xf]
      %v731 = vld [vmem:[%s2 + $0x11c] sm:$0xf]
      %v732 = vld [vmem:[%s3] sm:$0x1]
      %v733 = vld [vmem:[#allocation2] sm:$0x3]
      %v734 = vld [vmem:[#allocation2 + $0x4] sm:$0x3]
      %v735 = vld [vmem:[#allocation2 + $0x8] sm:$0x3]
      %v736 = vld [vmem:[#allocation2 + $0xc] sm:$0x3]
      %v737 = vld [vmem:[#allocation2] sm:$0x7]
      %v738 = vld [vmem:[#allocation2 + $0x4] sm:$0x7]
      %v739 = vld [vmem:[#allocation2 + $0x8] sm:$0x7]
      %v740 = vld [vmem:[#allocation2 + $0xc] sm:$0x7]
      %v741 = vld [vmem:[#allocation2] sm:$0x6]
      %v742 = vld [vmem:[#allocation2 + $0x4] sm:$0x6]
      %v743 = vld [vmem:[#allocation2 + $0x8] sm:$0x6]
      %v744 = vld [vmem:[#allocation2 + $0xc] sm:$0x6]
      %s745 = sadd.s32 0, 1
      %s746 = smul.addr %s745, 4
      %s747 = scalar_lea.vmem [#allocation2], %s746
      %v748 = vld [vmem:[%s747] sm:$0x3]
      %v749 = vld [vmem:[%s747 + $0x4] sm:$0x3]
      %v750 = vld [vmem:[%s747 + $0x8] sm:$0x3]
      %v751 = vld [vmem:[%s747 + $0xc] sm:$0x3]
      %v752 = vld [vmem:[%s747] sm:$0x7]
      %v753 = vld [vmem:[%s747 + $0x4] sm:$0x7]
      %v754 = vld [vmem:[%s747 + $0x8] sm:$0x7]
      %v755 = vld [vmem:[%s747 + $0xc] sm:$0x7]
      %v756 = vld [vmem:[%s747] sm:$0x6]
      %v757 = vld [vmem:[%s747 + $0x4] sm:$0x6]
      %v758 = vld [vmem:[%s747 + $0x8] sm:$0x6]
      %v759 = vld [vmem:[%s747 + $0xc] sm:$0x6]
      %s760 = sadd.s32 0, 2
      %s761 = smul.addr %s760, 4
      %s762 = scalar_lea.vmem [#allocation2], %s761
      %v763 = vld [vmem:[%s762] sm:$0x3]
      %v764 = vld [vmem:[%s762 + $0x4] sm:$0x3]
      %v765 = vld [vmem:[%s762 + $0x8] sm:$0x3]
      %v766 = vld [vmem:[%s762 + $0xc] sm:$0x3]
      %v767 = vld [vmem:[%s762] sm:$0x7]
      %v768 = vld [vmem:[%s762 + $0x4] sm:$0x7]
      %v769 = vld [vmem:[%s762 + $0x8] sm:$0x7]
      %v770 = vld [vmem:[%s762 + $0xc] sm:$0x7]
      %v771 = vld [vmem:[%s762] sm:$0x6]
      %v772 = vld [vmem:[%s762 + $0x4] sm:$0x6]
      %v773 = vld [vmem:[%s762 + $0x8] sm:$0x6]
      %v774 = vld [vmem:[%s762 + $0xc] sm:$0x6]
      %v779 = vunpack.c.l.b16 %v737
      %v780 = vunpack.c.l.b16 %v738
      %v781 = vunpack.c.l.b16 %v739
      %v782 = vunpack.c.l.b16 %v740
      %v783 = vpack.c.b16 %v779, %v779
      %v784 = vpack.c.b16 %v780, %v780
      %v785 = vpack.c.b16 %v781, %v781
      %v786 = vpack.c.b16 %v782, %v782
      %v788 = vshrl.u32 %v783, 16
      %v790 = vshll.u32 %v783, 16
      %v792 = vrot.slane %v790, 1
      %v793 = vor.u32 %v788, %v792
      %v795 = vshrl.u32 %v784, 16
      %v797 = vshll.u32 %v784, 16
      %v799 = vrot.slane %v797, 1
      %v800 = vor.u32 %v795, %v799
      %v802 = vshrl.u32 %v785, 16
      %v804 = vshll.u32 %v785, 16
      %v806 = vrot.slane %v804, 1
      %v807 = vor.u32 %v802, %v806
      %v809 = vshrl.u32 %v786, 16
      %v811 = vshll.u32 %v786, 16
      %v813 = vrot.slane %v811, 1
      %v814 = vor.u32 %v809, %v813
      %815 = vrot.lane.b32.xlu0 %v793, 64
      %v816 = vpop.permute.xlu0 %815
      %817 = vrot.lane.b32.xlu0 %v800, 64
      %v818 = vpop.permute.xlu0 %817
      %819 = vrot.lane.b32.xlu0 %v807, 64
      %v820 = vpop.permute.xlu0 %819
      %821 = vrot.lane.b32.xlu0 %v814, 64
      %v822 = vpop.permute.xlu0 %821
      %v827 = vunpack.c.l.b16 %v741
      %v828 = vunpack.c.l.b16 %v742
      %v829 = vunpack.c.l.b16 %v743
      %v830 = vunpack.c.l.b16 %v744
      %v831 = vpack.c.b16 %v827, %v827
      %v832 = vpack.c.b16 %v828, %v828
      %v833 = vpack.c.b16 %v829, %v829
      %v834 = vpack.c.b16 %v830, %v830
      %v835 = vrot.slane %v831, 1
      %v836 = vrot.slane %v832, 1
      %v837 = vrot.slane %v833, 1
      %v838 = vrot.slane %v834, 1
      %v843 = vunpack.c.l.b16 %v748
      %v844 = vunpack.c.l.b16 %v749
      %v845 = vunpack.c.l.b16 %v750
      %v846 = vunpack.c.l.b16 %v751
      %v847 = vpack.c.b16 %v843, %v843
      %v848 = vpack.c.b16 %v844, %v844
      %v849 = vpack.c.b16 %v845, %v845
      %v850 = vpack.c.b16 %v846, %v846
      %851 = vrot.lane.b32.xlu0 %v847, 64
      %v852 = vpop.permute.xlu0 %851
      %853 = vrot.lane.b32.xlu0 %v848, 64
      %v854 = vpop.permute.xlu0 %853
      %855 = vrot.lane.b32.xlu0 %v849, 64
      %v856 = vpop.permute.xlu0 %855
      %857 = vrot.lane.b32.xlu0 %v850, 64
      %v858 = vpop.permute.xlu0 %857
      %v863 = vunpack.c.l.b16 %v752
      %v864 = vunpack.c.l.b16 %v753
      %v865 = vunpack.c.l.b16 %v754
      %v866 = vunpack.c.l.b16 %v755
      %v867 = vpack.c.b16 %v863, %v863
      %v868 = vpack.c.b16 %v864, %v864
      %v869 = vpack.c.b16 %v865, %v865
      %v870 = vpack.c.b16 %v866, %v866
      %v872 = vshrl.u32 %v867, 16
      %v874 = vshll.u32 %v867, 16
      %v876 = vrot.slane %v874, 1
      %v877 = vor.u32 %v872, %v876
      %v879 = vshrl.u32 %v868, 16
      %v881 = vshll.u32 %v868, 16
      %v883 = vrot.slane %v881, 1
      %v884 = vor.u32 %v879, %v883
      %v886 = vshrl.u32 %v869, 16
      %v888 = vshll.u32 %v869, 16
      %v890 = vrot.slane %v888, 1
      %v891 = vor.u32 %v886, %v890
      %v893 = vshrl.u32 %v870, 16
      %v895 = vshll.u32 %v870, 16
      %v897 = vrot.slane %v895, 1
      %v898 = vor.u32 %v893, %v897
      %v903 = vunpack.c.l.b16 %v756
      %v904 = vunpack.c.l.b16 %v757
      %v905 = vunpack.c.l.b16 %v758
      %v906 = vunpack.c.l.b16 %v759
      %v907 = vpack.c.b16 %v903, %v903
      %v908 = vpack.c.b16 %v904, %v904
      %v909 = vpack.c.b16 %v905, %v905
      %v910 = vpack.c.b16 %v906, %v906
      %v911 = vrot.slane %v907, 1
      %v912 = vrot.slane %v908, 1
      %v913 = vrot.slane %v909, 1
      %v914 = vrot.slane %v910, 1
      %915 = vrot.lane.b32.xlu0 %v911, 64
      %v916 = vpop.permute.xlu0 %915
      %917 = vrot.lane.b32.xlu0 %v912, 64
      %v918 = vpop.permute.xlu0 %917
      %919 = vrot.lane.b32.xlu0 %v913, 64
      %v920 = vpop.permute.xlu0 %919
      %921 = vrot.lane.b32.xlu0 %v914, 64
      %v922 = vpop.permute.xlu0 %921
      %v927 = vunpack.c.l.b16 %v767
      %v928 = vunpack.c.l.b16 %v768
      %v929 = vunpack.c.l.b16 %v769
      %v930 = vunpack.c.l.b16 %v770
      %v931 = vpack.c.b16 %v927, %v927
      %v932 = vpack.c.b16 %v928, %v928
      %v933 = vpack.c.b16 %v929, %v929
      %v934 = vpack.c.b16 %v930, %v930
      %v936 = vshrl.u32 %v931, 16
      %v938 = vshll.u32 %v931, 16
      %v940 = vrot.slane %v938, 1
      %v941 = vor.u32 %v936, %v940
      %v943 = vshrl.u32 %v932, 16
      %v945 = vshll.u32 %v932, 16
      %v947 = vrot.slane %v945, 1
      %v948 = vor.u32 %v943, %v947
      %v950 = vshrl.u32 %v933, 16
      %v952 = vshll.u32 %v933, 16
      %v954 = vrot.slane %v952, 1
      %v955 = vor.u32 %v950, %v954
      %v957 = vshrl.u32 %v934, 16
      %v959 = vshll.u32 %v934, 16
      %v961 = vrot.slane %v959, 1
      %v962 = vor.u32 %v957, %v961
      %963 = vrot.lane.b32.xlu0 %v941, 64
      %v964 = vpop.permute.xlu0 %963
      %965 = vrot.lane.b32.xlu0 %v948, 64
      %v966 = vpop.permute.xlu0 %965
      %967 = vrot.lane.b32.xlu0 %v955, 64
      %v968 = vpop.permute.xlu0 %967
      %969 = vrot.lane.b32.xlu0 %v962, 64
      %v970 = vpop.permute.xlu0 %969
      %v975 = vunpack.c.l.b16 %v771
      %v976 = vunpack.c.l.b16 %v772
      %v977 = vunpack.c.l.b16 %v773
      %v978 = vunpack.c.l.b16 %v774
      %v979 = vpack.c.b16 %v975, %v975
      %v980 = vpack.c.b16 %v976, %v976
      %v981 = vpack.c.b16 %v977, %v977
      %v982 = vpack.c.b16 %v978, %v978
      %v983 = vrot.slane %v979, 1
      %v984 = vrot.slane %v980, 1
      %v985 = vrot.slane %v981, 1
      %v986 = vrot.slane %v982, 1
      %vm987 = vcmask 523264
      %v990 = vsel %vm987, %v733, %v816
      %v993 = vsel %vm987, %v734, %v818
      %v996 = vsel %vm987, %v735, %v820
      %v999 = vsel %vm987, %v736, %v822
      %v1002 = vsel %vm987, %v835, %v852
      %v1005 = vsel %vm987, %v836, %v854
      %v1008 = vsel %vm987, %v837, %v856
      %v1011 = vsel %vm987, %v838, %v858
      %v1014 = vsel %vm987, %v877, %v916
      %v1017 = vsel %vm987, %v884, %v918
      %v1020 = vsel %vm987, %v891, %v920
      %v1023 = vsel %vm987, %v898, %v922
      %v1026 = vsel %vm987, %v763, %v964
      %v1029 = vsel %vm987, %v764, %v966
      %v1032 = vsel %vm987, %v765, %v968
      %v1035 = vsel %vm987, %v766, %v970
      %v1037 = vlaneseq
      %v1038 = vshrl.u32 %v1037, 7
      %v1039 = vsub.s32 0, %v1038
      %v1040 = vrot.slane %v732, %v1039
      %v1057 = vcombine.low %v990, %v1002
      %v1058 = vcombine.low %v1014, %v1026
      %v1060 = vunpack.c.l.s4 1983009808
      %v1061 = vunpack.c.0.s8 %v1060
      %v1062 = vlaneseq
      %v1063 = vshrl.u32 %v1062, 7
      %v1064 = vsub.s32 %v1061, %v1063
      %v1065 = vrot.slane %v1057, %v1064
      %v1067 = vunpack.c.l.s4 1983009808
      %v1068 = vunpack.c.0.s8 %v1067
      %v1069 = vlaneseq
      %v1070 = vshrl.u32 %v1069, 7
      %v1071 = vsub.s32 %v1068, %v1070
      %v1072 = vrot.slane %v1058, %v1071
      %v1073 = vcombine.low %v1065, %v1072
      %v1075 = vunpack.c.l.s4 1983009808
      %v1076 = vunpack.c.0.s8 %v1075
      %v1077 = vlaneseq
      %v1078 = vshrl.u32 %v1077, 7
      %v1079 = vsub.s32 %v1076, %v1078
      %v1080 = vrot.slane %v983, %v1079
      %v1081 = vcombine.low %v993, %v1005
      %v1082 = vcombine.low %v1017, %v1029
      %v1084 = vunpack.c.l.s4 1983009808
      %v1085 = vunpack.c.0.s8 %v1084
      %v1086 = vlaneseq
      %v1087 = vshrl.u32 %v1086, 7
      %v1088 = vsub.s32 %v1085, %v1087
      %v1089 = vrot.slane %v1081, %v1088
      %v1091 = vunpack.c.l.s4 1983009808
      %v1092 = vunpack.c.0.s8 %v1091
      %v1093 = vlaneseq
      %v1094 = vshrl.u32 %v1093, 7
      %v1095 = vsub.s32 %v1092, %v1094
      %v1096 = vrot.slane %v1082, %v1095
      %v1097 = vcombine.low %v1089, %v1096
      %v1099 = vunpack.c.l.s4 1983009808
      %v1100 = vunpack.c.0.s8 %v1099
      %v1101 = vlaneseq
      %v1102 = vshrl.u32 %v1101, 7
      %v1103 = vsub.s32 %v1100, %v1102
      %v1104 = vrot.slane %v984, %v1103
      %v1105 = vcombine.low %v996, %v1008
      %v1106 = vcombine.low %v1020, %v1032
      %v1108 = vunpack.c.l.s4 1983009808
      %v1109 = vunpack.c.0.s8 %v1108
      %v1110 = vlaneseq
      %v1111 = vshrl.u32 %v1110, 7
      %v1112 = vsub.s32 %v1109, %v1111
      %v1113 = vrot.slane %v1105, %v1112
      %v1115 = vunpack.c.l.s4 1983009808
      %v1116 = vunpack.c.0.s8 %v1115
      %v1117 = vlaneseq
      %v1118 = vshrl.u32 %v1117, 7
      %v1119 = vsub.s32 %v1116, %v1118
      %v1120 = vrot.slane %v1106, %v1119
      %v1121 = vcombine.low %v1113, %v1120
      %v1123 = vunpack.c.l.s4 1983009808
      %v1124 = vunpack.c.0.s8 %v1123
      %v1125 = vlaneseq
      %v1126 = vshrl.u32 %v1125, 7
      %v1127 = vsub.s32 %v1124, %v1126
      %v1128 = vrot.slane %v985, %v1127
      %v1129 = vcombine.low %v999, %v1011
      %v1130 = vcombine.low %v1023, %v1035
      %v1132 = vunpack.c.l.s4 1983009808
      %v1133 = vunpack.c.0.s8 %v1132
      %v1134 = vlaneseq
      %v1135 = vshrl.u32 %v1134, 7
      %v1136 = vsub.s32 %v1133, %v1135
      %v1137 = vrot.slane %v1129, %v1136
      %v1139 = vunpack.c.l.s4 1983009808
      %v1140 = vunpack.c.0.s8 %v1139
      %v1141 = vlaneseq
      %v1142 = vshrl.u32 %v1141, 7
      %v1143 = vsub.s32 %v1140, %v1142
      %v1144 = vrot.slane %v1130, %v1143
      %v1145 = vcombine.low %v1137, %v1144
      %v1147 = vunpack.c.l.s4 1983009808
      %v1148 = vunpack.c.0.s8 %v1147
      %v1149 = vlaneseq
      %v1150 = vshrl.u32 %v1149, 7
      %v1151 = vsub.s32 %v1148, %v1150
      %v1152 = vrot.slane %v986, %v1151
      %v1153 = vcombine.low %v1073, %v1097
      %v1154 = vcombine.high %v1073, %v1097
      %v1155 = vcombine.low %v1121, %v1145
      %v1156 = vcombine.high %v1121, %v1145
      %v1158 = vunpack.c.l.s4 1983009808
      %v1159 = vunpack.c.0.s8 %v1158
      %v1160 = vlaneseq
      %v1161 = vshrl.u32 %v1160, 7
      %v1162 = vsub.s32 %v1159, %v1161
      %v1163 = vrot.slane %v1153, %v1162
      %v1165 = vunpack.c.l.s4 1983009808
      %v1166 = vunpack.c.0.s8 %v1165
      %v1167 = vlaneseq
      %v1168 = vshrl.u32 %v1167, 7
      %v1169 = vsub.s32 %v1166, %v1168
      %v1170 = vrot.slane %v1154, %v1169
      %v1172 = vunpack.c.l.s4 1983009808
      %v1173 = vunpack.c.0.s8 %v1172
      %v1174 = vlaneseq
      %v1175 = vshrl.u32 %v1174, 7
      %v1176 = vsub.s32 %v1173, %v1175
      %v1177 = vrot.slane %v1155, %v1176
      %v1179 = vunpack.c.l.s4 1983009808
      %v1180 = vunpack.c.0.s8 %v1179
      %v1181 = vlaneseq
      %v1182 = vshrl.u32 %v1181, 7
      %v1183 = vsub.s32 %v1180, %v1182
      %v1184 = vrot.slane %v1156, %v1183
      %v1185 = vcombine.low %v1163, %v1177
      %v1186 = vcombine.high %v1163, %v1177
      %v1187 = vcombine.low %v1170, %v1184
      %v1188 = vcombine.high %v1170, %v1184
      %v1189 = vcombine.low %v1080, %v1104
      %v1190 = vcombine.low %v1128, %v1152
      %v1192 = vunpack.c.l.s4 1983009808
      %v1193 = vunpack.c.0.s8 %v1192
      %v1194 = vlaneseq
      %v1195 = vshrl.u32 %v1194, 7
      %v1196 = vsub.s32 %v1193, %v1195
      %v1197 = vrot.slane %v1189, %v1196
      %v1199 = vunpack.c.l.s4 1983009808
      %v1200 = vunpack.c.0.s8 %v1199
      %v1201 = vlaneseq
      %v1202 = vshrl.u32 %v1201, 7
      %v1203 = vsub.s32 %v1200, %v1202
      %v1204 = vrot.slane %v1190, %v1203
      %v1205 = vcombine.low %v1197, %v1204
      %v1282 = vunpack.c.l.b16 %v660
      %v1283 = vunpack.c.l.b16 %v661
      %v1284 = vunpack.c.l.b16 %v662
      %v1285 = vunpack.c.l.b16 %v663
      %v1286 = vunpack.c.l.b16 %v664
      %v1287 = vunpack.c.l.b16 %v665
      %v1288 = vunpack.c.l.b16 %v666
      %v1289 = vunpack.c.l.b16 %v667
      %v1290 = vunpack.c.l.b16 %v668
      %v1291 = vunpack.c.l.b16 %v669
      %v1292 = vunpack.c.l.b16 %v670
      %v1293 = vunpack.c.l.b16 %v671
      %v1294 = vunpack.c.l.b16 %v672
      %v1295 = vunpack.c.l.b16 %v673
      %v1296 = vunpack.c.l.b16 %v674
      %v1297 = vunpack.c.l.b16 %v675
      %v1298 = vunpack.c.l.b16 %v676
      %v1299 = vunpack.c.l.b16 %v677
      %v1300 = vunpack.c.l.b16 %v678
      %v1301 = vunpack.c.l.b16 %v679
      %v1302 = vunpack.c.l.b16 %v680
      %v1303 = vunpack.c.l.b16 %v681
      %v1304 = vunpack.c.l.b16 %v682
      %v1305 = vunpack.c.l.b16 %v683
      %v1306 = vunpack.c.l.b16 %v684
      %v1307 = vunpack.c.l.b16 %v685
      %v1308 = vunpack.c.l.b16 %v686
      %v1309 = vunpack.c.l.b16 %v687
      %v1310 = vunpack.c.l.b16 %v688
      %v1311 = vunpack.c.l.b16 %v689
      %v1312 = vunpack.c.l.b16 %v690
      %v1313 = vunpack.c.l.b16 %v691
      %v1314 = vunpack.c.l.b16 %v692
      %v1315 = vunpack.c.l.b16 %v693
      %v1316 = vunpack.c.l.b16 %v694
      %v1317 = vunpack.c.l.b16 %v695
      %v1318 = vunpack.c.l.b16 %v696
      %v1319 = vunpack.c.l.b16 %v697
      %v1320 = vunpack.c.l.b16 %v698
      %v1321 = vunpack.c.l.b16 %v699
      %v1322 = vunpack.c.l.b16 %v700
      %v1323 = vunpack.c.l.b16 %v701
      %v1324 = vunpack.c.l.b16 %v702
      %v1325 = vunpack.c.l.b16 %v703
      %v1326 = vunpack.c.l.b16 %v704
      %v1327 = vunpack.c.l.b16 %v705
      %v1328 = vunpack.c.l.b16 %v706
      %v1329 = vunpack.c.l.b16 %v707
      %v1330 = vunpack.c.l.b16 %v708
      %v1331 = vunpack.c.l.b16 %v709
      %v1332 = vunpack.c.l.b16 %v710
      %v1333 = vunpack.c.l.b16 %v711
      %v1334 = vunpack.c.l.b16 %v712
      %v1335 = vunpack.c.l.b16 %v713
      %v1336 = vunpack.c.l.b16 %v714
      %v1337 = vunpack.c.l.b16 %v715
      %v1338 = vunpack.c.l.b16 %v716
      %v1339 = vunpack.c.l.b16 %v717
      %v1340 = vunpack.c.l.b16 %v718
      %v1341 = vunpack.c.l.b16 %v719
      %v1342 = vunpack.c.l.b16 %v720
      %v1343 = vunpack.c.l.b16 %v721
      %v1344 = vunpack.c.l.b16 %v722
      %v1345 = vunpack.c.l.b16 %v723
      %v1346 = vunpack.c.l.b16 %v724
      %v1347 = vunpack.c.l.b16 %v725
      %v1348 = vunpack.c.l.b16 %v726
      %v1349 = vunpack.c.l.b16 %v727
      %v1350 = vunpack.c.l.b16 %v728
      %v1351 = vunpack.c.l.b16 %v729
      %v1352 = vunpack.c.l.b16 %v730
      %v1353 = vunpack.c.l.b16 %v731
      %v1354 = vpack.c.b16 %v1283, %v1282
      %v1355 = vpack.c.b16 %v1285, %v1284
      %v1356 = vpack.c.b16 %v1287, %v1286
      %v1357 = vpack.c.b16 %v1289, %v1288
      %v1358 = vpack.c.b16 %v1291, %v1290
      %v1359 = vpack.c.b16 %v1293, %v1292
      %v1360 = vpack.c.b16 %v1295, %v1294
      %v1361 = vpack.c.b16 %v1297, %v1296
      %v1362 = vpack.c.b16 %v1299, %v1298
      %v1363 = vpack.c.b16 %v1301, %v1300
      %v1364 = vpack.c.b16 %v1303, %v1302
      %v1365 = vpack.c.b16 %v1305, %v1304
      %v1366 = vpack.c.b16 %v1307, %v1306
      %v1367 = vpack.c.b16 %v1309, %v1308
      %v1368 = vpack.c.b16 %v1311, %v1310
      %v1369 = vpack.c.b16 %v1313, %v1312
      %v1370 = vpack.c.b16 %v1315, %v1314
      %v1371 = vpack.c.b16 %v1317, %v1316
      %v1372 = vpack.c.b16 %v1319, %v1318
      %v1373 = vpack.c.b16 %v1321, %v1320
      %v1374 = vpack.c.b16 %v1323, %v1322
      %v1375 = vpack.c.b16 %v1325, %v1324
      %v1376 = vpack.c.b16 %v1327, %v1326
      %v1377 = vpack.c.b16 %v1329, %v1328
      %v1378 = vpack.c.b16 %v1331, %v1330
      %v1379 = vpack.c.b16 %v1333, %v1332
      %v1380 = vpack.c.b16 %v1335, %v1334
      %v1381 = vpack.c.b16 %v1337, %v1336
      %v1382 = vpack.c.b16 %v1339, %v1338
      %v1383 = vpack.c.b16 %v1341, %v1340
      %v1384 = vpack.c.b16 %v1343, %v1342
      %v1385 = vpack.c.b16 %v1345, %v1344
      %v1386 = vpack.c.b16 %v1347, %v1346
      %v1387 = vpack.c.b16 %v1349, %v1348
      %v1388 = vpack.c.b16 %v1351, %v1350
      %v1389 = vpack.c.b16 %v1353, %v1352
      %v1426 = vcombine.low %v1040, %v1040
      %v1429 = vsel %vm987, %v1205, 0
      %1431 = vmatprep.subr.bf16.mxu0 0
      %1432 = vmatpush1.bf16.msra.mxu0 %v1354
      %1433 = vmatprep.subr.bf16.mxu0 0
      %1434 = vmatpush1.bf16.msra.mxu0 %v1355
      %1435 = vmatprep.subr.bf16.mxu0 0
      %1436 = vmatpush1.bf16.msra.mxu0 %v1356
      %1437 = vmatprep.subr.bf16.mxu0 0
      %1438 = vmatpush1.bf16.msra.mxu0 %v1357
      %1439 = vmatprep.subr.bf16.mxu0 0
      %1440 = vmatpush1.bf16.msra.mxu0 %v1358
      %1441 = vmatprep.subr.bf16.mxu0 0
      %1442 = vmatpush1.bf16.msra.mxu0 %v1359
      %1443 = vmatprep.subr.bf16.mxu0 0
      %1444 = vmatpush1.bf16.msra.mxu0 %v1360
      %1445 = vmatprep.subr.bf16.mxu0 0
      %1446 = vmatpush1.bf16.msra.mxu0 %v1361
      %1447 = vmatprep.subr.bf16.mxu0 0
      %1448 = vmatpush1.bf16.msra.mxu0 %v1362
      %1449 = vmatprep.subr.bf16.mxu0 0
      %1450 = vmatpush1.bf16.msra.mxu0 %v1363
      %1451 = vmatprep.subr.bf16.mxu0 0
      %1452 = vmatpush1.bf16.msra.mxu0 %v1364
      %1453 = vmatprep.subr.bf16.mxu0 0
      %1454 = vmatpush1.bf16.msra.mxu0 %v1365
      %1455 = vmatprep.subr.bf16.mxu0 0
      %1456 = vmatpush1.bf16.msra.mxu0 %v1366
      %1457 = vmatprep.subr.bf16.mxu0 0
      %1458 = vmatpush1.bf16.msra.mxu0 %v1367
      %1459 = vmatprep.subr.bf16.mxu0 0
      %1460 = vmatpush1.bf16.msra.mxu0 %v1368
      %1461 = vmatprep.subr.bf16.mxu0 0
      %1462 = vmatpush1.bf16.msra.mxu0 %v1369
      %1463 = vmatprep.mubr.bf16.mxu0 %v1186
      %1464 = vmatmul.mubr.bf16.gmra.mrb[0].mxu0 %v1185
      %v1465 = vpop.f32.mrb[0].mxu0
      %v1466 = vadd.f32 %v1426, %v1465
      %v1467 = vpop.f32.mrb[0].mxu0
      %v1468 = vpop.f32.mrb[0].mxu0
      %v1469 = vadd.f32 %v1426, %v1468
      %v1470 = vpop.f32.mrb[0].mxu0
      %1471 = vdwg.mxu0
      %1472 = vmatprep.subr.bf16.mxu0 0
      %1473 = vmatpush1.bf16.msra.mxu0 %v1370
      %1474 = vmatprep.subr.bf16.mxu0 0
      %1475 = vmatpush1.bf16.msra.mxu0 %v1371
      %1476 = vmatprep.subr.bf16.mxu0 0
      %1477 = vmatpush1.bf16.msra.mxu0 %v1372
      %1478 = vmatprep.subr.bf16.mxu0 0
      %1479 = vmatpush1.bf16.msra.mxu0 %v1373
      %1480 = vmatprep.subr.bf16.mxu0 0
      %1481 = vmatpush1.bf16.msra.mxu0 %v1374
      %1482 = vmatprep.subr.bf16.mxu0 0
      %1483 = vmatpush1.bf16.msra.mxu0 %v1375
      %1484 = vmatprep.subr.bf16.mxu0 0
      %1485 = vmatpush1.bf16.msra.mxu0 %v1376
      %1486 = vmatprep.subr.bf16.mxu0 0
      %1487 = vmatpush1.bf16.msra.mxu0 %v1377
      %1488 = vmatprep.subr.bf16.mxu0 0
      %1489 = vmatpush1.bf16.msra.mxu0 %v1378
      %1490 = vmatprep.subr.bf16.mxu0 0
      %1491 = vmatpush1.bf16.msra.mxu0 %v1379
      %1492 = vmatprep.subr.bf16.mxu0 0
      %1493 = vmatpush1.bf16.msra.mxu0 %v1380
      %1494 = vmatprep.subr.bf16.mxu0 0
      %1495 = vmatpush1.bf16.msra.mxu0 %v1381
      %1496 = vmatprep.subr.bf16.mxu0 0
      %1497 = vmatpush1.bf16.msra.mxu0 %v1382
      %1498 = vmatprep.subr.bf16.mxu0 0
      %1499 = vmatpush1.bf16.msra.mxu0 %v1383
      %1500 = vmatprep.subr.bf16.mxu0 0
      %1501 = vmatpush1.bf16.msra.mxu0 %v1384
      %1502 = vmatprep.subr.bf16.mxu0 0
      %1503 = vmatpush1.bf16.msra.mxu0 %v1385
      %1504 = vmatprep.mubr.bf16.mxu0 %v1188
      %1505 = vmatmul.mubr.bf16.gmra.mrb[0].mxu0 %v1187
      %v1506 = vpop.f32.mrb[0].mxu0
      %v1507 = vadd.f32 %v1466, %v1506
      %v1508 = vpop.f32.mrb[0].mxu0
      %v1509 = vpop.f32.mrb[0].mxu0
      %v1510 = vadd.f32 %v1469, %v1509
      %v1511 = vpop.f32.mrb[0].mxu0
      %1512 = vdwg.mxu0
      %1513 = vmatprep.subr.bf16.mxu0 0
      %1514 = vmatpush1.bf16.msra.mxu0 %v1386
      %1515 = vmatprep.subr.bf16.mxu0 0
      %1516 = vmatpush1.bf16.msra.mxu0 %v1387
      %1517 = vmatprep.subr.bf16.mxu0 0
      %1518 = vmatpush1.bf16.msra.mxu0 %v1388
      %1519 = vmatprep.subr.bf16.mxu0 0
      %1520 = vmatpush1.bf16.msra.mxu0 %v1389
      %1521 = vmatprep.subr.bf16.mxu0 0
      %1522 = vmatpush1.bf16.msra.mxu0 0
      %1523 = vmatprep.subr.bf16.mxu0 0
      %1524 = vmatpush1.bf16.msra.mxu0 0
      %1525 = vmatprep.subr.bf16.mxu0 0
      %1526 = vmatpush1.bf16.msra.mxu0 0
      %1527 = vmatprep.subr.bf16.mxu0 0
      %1528 = vmatpush1.bf16.msra.mxu0 0
      %1529 = vmatprep.subr.bf16.mxu0 0
      %1530 = vmatpush1.bf16.msra.mxu0 0
      %1531 = vmatprep.subr.bf16.mxu0 0
      %1532 = vmatpush1.bf16.msra.mxu0 0
      %1533 = vmatprep.subr.bf16.mxu0 0
      %1534 = vmatpush1.bf16.msra.mxu0 0
      %1535 = vmatprep.subr.bf16.mxu0 0
      %1536 = vmatpush1.bf16.msra.mxu0 0
      %1537 = vmatprep.subr.bf16.mxu0 0
      %1538 = vmatpush1.bf16.msra.mxu0 0
      %1539 = vmatprep.subr.bf16.mxu0 0
      %1540 = vmatpush1.bf16.msra.mxu0 0
      %1541 = vmatprep.subr.bf16.mxu0 0
      %1542 = vmatpush1.bf16.msra.mxu0 0
      %1543 = vmatprep.subr.bf16.mxu0 0
      %1544 = vmatpush1.bf16.msra.mxu0 0
      %1545 = vmatprep.mubr.bf16.mxu0 0
      %1546 = vmatmul.mubr.bf16.gmra.mrb[0].mxu0 %v1429
      %v1547 = vpop.f32.mrb[0].mxu0
      %v1548 = vadd.f32 %v1507, %v1547
      %v1549 = vpop.f32.mrb[0].mxu0
      %v1550 = vpop.f32.mrb[0].mxu0
      %v1551 = vadd.f32 %v1510, %v1550
      %v1552 = vpop.f32.mrb[0].mxu0
      %1553 = vdwg.mxu0
      %v1556 = vcombine.high %v1548, %v1548
      %v1557 = vcombine.high %v1551, %v1551
      %vm1560 = vcmp.gt.f32.partialorder %v1548, 0.0
      %vm1561 = vcmp.gt.f32.partialorder %v1556, 0.0
      %vm1562 = vcmp.gt.f32.partialorder %v1551, 0.0
      %vm1563 = vcmp.gt.f32.partialorder %v1557, 0.0
      %v1564 = vmul.f32 %v1548, 0.2
      %v1565 = vmul.f32 %v1556, 0.2
      %v1566 = vmul.f32 %v1551, 0.2
      %v1567 = vmul.f32 %v1557, 0.2
      %v1568 = vsel %vm1560, %v1548, %v1564
      %v1569 = vsel %vm1561, %v1556, %v1565
      %v1570 = vsel %vm1562, %v1551, %v1566
      %v1571 = vsel %vm1563, %v1557, %v1567
      %s1572 = smul.u32 %s745, 8
      %s1573 = scalar_lea.vmem [#allocation3], %s1572
      %vm1574 = vcmask 257024
      %1575 = vst.msk [vmem:[%s1573 + $0x1] sm:$0xf] %vm1574, %v1568
      %1576 = vst.msk [vmem:[%s1573 + $0x9] sm:$0xf] %vm1574, %v1569
      %1577 = vst.msk [vmem:[%s1573 + $0x11] sm:$0xf] %vm1574, %v1570
      %1578 = vst.msk [vmem:[%s1573 + $0x19] sm:$0xf] %vm1574, %v1571
      %v1579 = vld [vmem:[%s4] sm:$0xf]
      %v1580 = vld [vmem:[%s4 + $0x4] sm:$0xf]
      %v1581 = vld [vmem:[%s4 + $0x8] sm:$0xf]
      %v1582 = vld [vmem:[%s4 + $0xc] sm:$0xf]
      %v1583 = vld [vmem:[%s4 + $0x10] sm:$0xf]
      %v1584 = vld [vmem:[%s4 + $0x14] sm:$0xf]
      %v1585 = vld [vmem:[%s4 + $0x18] sm:$0xf]
      %v1586 = vld [vmem:[%s4 + $0x1c] sm:$0xf]
      %v1587 = vld [vmem:[%s4 + $0x20] sm:$0xf]
      %v1588 = vld [vmem:[%s4 + $0x24] sm:$0xf]
      %v1589 = vld [vmem:[%s4 + $0x28] sm:$0xf]
      %v1590 = vld [vmem:[%s4 + $0x2c] sm:$0xf]
      %v1591 = vld [vmem:[%s4 + $0x30] sm:$0xf]
      %v1592 = vld [vmem:[%s4 + $0x34] sm:$0xf]
      %v1593 = vld [vmem:[%s4 + $0x38] sm:$0xf]
      %v1594 = vld [vmem:[%s4 + $0x3c] sm:$0xf]
      %v1595 = vld [vmem:[%s4 + $0x40] sm:$0xf]
      %v1596 = vld [vmem:[%s4 + $0x44] sm:$0xf]
      %v1597 = vld [vmem:[%s4 + $0x48] sm:$0xf]
      %v1598 = vld [vmem:[%s4 + $0x4c] sm:$0xf]
      %v1599 = vld [vmem:[%s4 + $0x50] sm:$0xf]
      %v1600 = vld [vmem:[%s4 + $0x54] sm:$0xf]
      %v1601 = vld [vmem:[%s4 + $0x58] sm:$0xf]
      %v1602 = vld [vmem:[%s4 + $0x5c] sm:$0xf]
      %v1603 = vld [vmem:[%s4 + $0x60] sm:$0xf]
      %v1604 = vld [vmem:[%s4 + $0x64] sm:$0xf]
      %v1605 = vld [vmem:[%s4 + $0x68] sm:$0xf]
      %v1606 = vld [vmem:[%s4 + $0x6c] sm:$0xf]
      %v1607 = vld [vmem:[%s4 + $0x70] sm:$0xf]
      %v1608 = vld [vmem:[%s4 + $0x74] sm:$0xf]
      %v1609 = vld [vmem:[%s4 + $0x78] sm:$0xf]
      %v1610 = vld [vmem:[%s4 + $0x7c] sm:$0xf]
      %v1611 = vld [vmem:[%s4 + $0x80] sm:$0xf]
      %v1612 = vld [vmem:[%s4 + $0x84] sm:$0xf]
      %v1613 = vld [vmem:[%s4 + $0x88] sm:$0xf]
      %v1614 = vld [vmem:[%s4 + $0x8c] sm:$0xf]
      %v1615 = vld [vmem:[%s5] sm:$0x1]
      %s1616 = smul.u32 0, 8
      %s1617 = scalar_lea.vmem [#allocation3], %s1616
      %v1618 = vld [vmem:[%s1617] sm:$0xf]
      %v1619 = vld [vmem:[%s1617 + $0x8] sm:$0xf]
      %v1620 = vld [vmem:[%s1617 + $0x10] sm:$0xf]
      %v1621 = vld [vmem:[%s1617 + $0x18] sm:$0xf]
      %v1622 = vld [vmem:[%s1617 + $0x1] sm:$0xf]
      %v1623 = vld [vmem:[%s1617 + $0x9] sm:$0xf]
      %v1624 = vld [vmem:[%s1617 + $0x11] sm:$0xf]
      %v1625 = vld [vmem:[%s1617 + $0x19] sm:$0xf]
      %v1626 = vld [vmem:[%s1617 + $0x2] sm:$0xf]
      %v1627 = vld [vmem:[%s1617 + $0xa] sm:$0xf]
      %v1628 = vld [vmem:[%s1617 + $0x12] sm:$0xf]
      %v1629 = vld [vmem:[%s1617 + $0x1a] sm:$0xf]
      %v1630 = vld [vmem:[%s1573] sm:$0xf]
      %v1631 = vld [vmem:[%s1573 + $0x8] sm:$0xf]
      %v1632 = vld [vmem:[%s1573 + $0x10] sm:$0xf]
      %v1633 = vld [vmem:[%s1573 + $0x18] sm:$0xf]
      %v1634 = vld [vmem:[%s1573 + $0x1] sm:$0xf]
      %v1635 = vld [vmem:[%s1573 + $0x9] sm:$0xf]
      %v1636 = vld [vmem:[%s1573 + $0x11] sm:$0xf]
      %v1637 = vld [vmem:[%s1573 + $0x19] sm:$0xf]
      %v1638 = vld [vmem:[%s1573 + $0x2] sm:$0xf]
      %v1639 = vld [vmem:[%s1573 + $0xa] sm:$0xf]
      %v1640 = vld [vmem:[%s1573 + $0x12] sm:$0xf]
      %v1641 = vld [vmem:[%s1573 + $0x1a] sm:$0xf]
      %s1642 = smul.u32 %s760, 8
      %s1643 = scalar_lea.vmem [#allocation3], %s1642
      %v1644 = vld [vmem:[%s1643] sm:$0xf]
      %v1645 = vld [vmem:[%s1643 + $0x8] sm:$0xf]
      %v1646 = vld [vmem:[%s1643 + $0x10] sm:$0xf]
      %v1647 = vld [vmem:[%s1643 + $0x18] sm:$0xf]
      %v1648 = vld [vmem:[%s1643 + $0x1] sm:$0xf]
      %v1649 = vld [vmem:[%s1643 + $0x9] sm:$0xf]
      %v1650 = vld [vmem:[%s1643 + $0x11] sm:$0xf]
      %v1651 = vld [vmem:[%s1643 + $0x19] sm:$0xf]
      %v1652 = vld [vmem:[%s1643 + $0x2] sm:$0xf]
      %v1653 = vld [vmem:[%s1643 + $0xa] sm:$0xf]
      %v1654 = vld [vmem:[%s1643 + $0x12] sm:$0xf]
      %v1655 = vld [vmem:[%s1643 + $0x1a] sm:$0xf]
      %1660 = vrot.lane.b32.xlu0 %v1622, 32
      %v1661 = vpop.permute.xlu0 %1660
      %1662 = vrot.lane.b32.xlu0 %v1623, 32
      %v1663 = vpop.permute.xlu0 %1662
      %1664 = vrot.lane.b32.xlu0 %v1624, 32
      %v1665 = vpop.permute.xlu0 %1664
      %1666 = vrot.lane.b32.xlu0 %v1625, 32
      %v1667 = vpop.permute.xlu0 %1666
      %1676 = vrot.lane.b32.xlu0 %v1626, 64
      %v1677 = vpop.permute.xlu0 %1676
      %1678 = vrot.lane.b32.xlu0 %v1627, 64
      %v1679 = vpop.permute.xlu0 %1678
      %1680 = vrot.lane.b32.xlu0 %v1628, 64
      %v1681 = vpop.permute.xlu0 %1680
      %1682 = vrot.lane.b32.xlu0 %v1629, 64
      %v1683 = vpop.permute.xlu0 %1682
      %1692 = vrot.lane.b32.xlu0 %v1630, 96
      %v1693 = vpop.permute.xlu0 %1692
      %1694 = vrot.lane.b32.xlu0 %v1631, 96
      %v1695 = vpop.permute.xlu0 %1694
      %1696 = vrot.lane.b32.xlu0 %v1632, 96
      %v1697 = vpop.permute.xlu0 %1696
      %1698 = vrot.lane.b32.xlu0 %v1633, 96
      %v1699 = vpop.permute.xlu0 %1698
      %1708 = vrot.lane.b32.xlu0 %v1638, 32
      %v1709 = vpop.permute.xlu0 %1708
      %1710 = vrot.lane.b32.xlu0 %v1639, 32
      %v1711 = vpop.permute.xlu0 %1710
      %1712 = vrot.lane.b32.xlu0 %v1640, 32
      %v1713 = vpop.permute.xlu0 %1712
      %1714 = vrot.lane.b32.xlu0 %v1641, 32
      %v1715 = vpop.permute.xlu0 %1714
      %1724 = vrot.lane.b32.xlu0 %v1644, 64
      %v1725 = vpop.permute.xlu0 %1724
      %1726 = vrot.lane.b32.xlu0 %v1645, 64
      %v1727 = vpop.permute.xlu0 %1726
      %1728 = vrot.lane.b32.xlu0 %v1646, 64
      %v1729 = vpop.permute.xlu0 %1728
      %1730 = vrot.lane.b32.xlu0 %v1647, 64
      %v1731 = vpop.permute.xlu0 %1730
      %1740 = vrot.lane.b32.xlu0 %v1648, 96
      %v1741 = vpop.permute.xlu0 %1740
      %1742 = vrot.lane.b32.xlu0 %v1649, 96
      %v1743 = vpop.permute.xlu0 %1742
      %1744 = vrot.lane.b32.xlu0 %v1650, 96
      %v1745 = vpop.permute.xlu0 %1744
      %1746 = vrot.lane.b32.xlu0 %v1651, 96
      %v1747 = vpop.permute.xlu0 %1746
      %v1752 = vsel %vm591, %v1618, %v1661
      %v1753 = vsel %vm591, %v1619, %v1663
      %v1754 = vsel %vm591, %v1620, %v1665
      %v1755 = vsel %vm591, %v1621, %v1667
      %v1756 = vsel %vm987, %v1752, %v1677
      %v1757 = vsel %vm987, %v1753, %v1679
      %v1758 = vsel %vm987, %v1754, %v1681
      %v1759 = vsel %vm987, %v1755, %v1683
      %vm1760 = vcmask 785408
      %v1761 = vsel %vm1760, %v1756, %v1693
      %v1762 = vsel %vm1760, %v1757, %v1695
      %v1763 = vsel %vm1760, %v1758, %v1697
      %v1764 = vsel %vm1760, %v1759, %v1699
      %v1765 = vsel %vm591, %v1634, %v1709
      %v1766 = vsel %vm591, %v1635, %v1711
      %v1767 = vsel %vm591, %v1636, %v1713
      %v1768 = vsel %vm591, %v1637, %v1715
      %v1769 = vsel %vm987, %v1765, %v1725
      %v1770 = vsel %vm987, %v1766, %v1727
      %v1771 = vsel %vm987, %v1767, %v1729
      %v1772 = vsel %vm987, %v1768, %v1731
      %v1773 = vsel %vm1760, %v1769, %v1741
      %v1774 = vsel %vm1760, %v1770, %v1743
      %v1775 = vsel %vm1760, %v1771, %v1745
      %v1776 = vsel %vm1760, %v1772, %v1747
      %v1777 = vpack.c.bf16 %v1761, %v1761
      %v1778 = vpack.c.bf16 %v1773, %v1773
      %v1779 = vpack.c.bf16 %v1652, %v1652
      %v1780 = vpack.c.bf16 %v1762, %v1762
      %v1781 = vpack.c.bf16 %v1774, %v1774
      %v1782 = vpack.c.bf16 %v1653, %v1653
      %v1783 = vpack.c.bf16 %v1763, %v1763
      %v1784 = vpack.c.bf16 %v1775, %v1775
      %v1785 = vpack.c.bf16 %v1654, %v1654
      %v1786 = vpack.c.bf16 %v1764, %v1764
      %v1787 = vpack.c.bf16 %v1776, %v1776
      %v1788 = vpack.c.bf16 %v1655, %v1655
      %v1790 = vlaneseq
      %v1791 = vshrl.u32 %v1790, 7
      %v1792 = vsub.s32 0, %v1791
      %v1793 = vrot.slane %v1615, %v1792
      %v1806 = vcombine.low %v1777, %v1778
      %v1808 = vunpack.c.l.s4 1983009808
      %v1809 = vunpack.c.0.s8 %v1808
      %v1810 = vlaneseq
      %v1811 = vshrl.u32 %v1810, 7
      %v1812 = vsub.s32 %v1809, %v1811
      %v1813 = vrot.slane %v1806, %v1812
      %v1815 = vunpack.c.l.s4 1983009808
      %v1816 = vunpack.c.0.s8 %v1815
      %v1817 = vlaneseq
      %v1818 = vshrl.u32 %v1817, 7
      %v1819 = vsub.s32 %v1816, %v1818
      %v1820 = vrot.slane %v1779, %v1819
      %v1821 = vcombine.low %v1813, %v1820
      %v1822 = vcombine.low %v1780, %v1781
      %v1824 = vunpack.c.l.s4 1983009808
      %v1825 = vunpack.c.0.s8 %v1824
      %v1826 = vlaneseq
      %v1827 = vshrl.u32 %v1826, 7
      %v1828 = vsub.s32 %v1825, %v1827
      %v1829 = vrot.slane %v1822, %v1828
      %v1831 = vunpack.c.l.s4 1983009808
      %v1832 = vunpack.c.0.s8 %v1831
      %v1833 = vlaneseq
      %v1834 = vshrl.u32 %v1833, 7
      %v1835 = vsub.s32 %v1832, %v1834
      %v1836 = vrot.slane %v1782, %v1835
      %v1837 = vcombine.low %v1829, %v1836
      %v1838 = vcombine.low %v1783, %v1784
      %v1840 = vunpack.c.l.s4 1983009808
      %v1841 = vunpack.c.0.s8 %v1840
      %v1842 = vlaneseq
      %v1843 = vshrl.u32 %v1842, 7
      %v1844 = vsub.s32 %v1841, %v1843
      %v1845 = vrot.slane %v1838, %v1844
      %v1847 = vunpack.c.l.s4 1983009808
      %v1848 = vunpack.c.0.s8 %v1847
      %v1849 = vlaneseq
      %v1850 = vshrl.u32 %v1849, 7
      %v1851 = vsub.s32 %v1848, %v1850
      %v1852 = vrot.slane %v1785, %v1851
      %v1853 = vcombine.low %v1845, %v1852
      %v1854 = vcombine.low %v1786, %v1787
      %v1856 = vunpack.c.l.s4 1983009808
      %v1857 = vunpack.c.0.s8 %v1856
      %v1858 = vlaneseq
      %v1859 = vshrl.u32 %v1858, 7
      %v1860 = vsub.s32 %v1857, %v1859
      %v1861 = vrot.slane %v1854, %v1860
      %v1863 = vunpack.c.l.s4 1983009808
      %v1864 = vunpack.c.0.s8 %v1863
      %v1865 = vlaneseq
      %v1866 = vshrl.u32 %v1865, 7
      %v1867 = vsub.s32 %v1864, %v1866
      %v1868 = vrot.slane %v1788, %v1867
      %v1869 = vcombine.low %v1861, %v1868
      %v1870 = vcombine.low %v1821, %v1837
      %v1871 = vcombine.high %v1821, %v1837
      %v1872 = vcombine.low %v1853, %v1869
      %v1873 = vcombine.high %v1853, %v1869
      %v1875 = vunpack.c.l.s4 1983009808
      %v1876 = vunpack.c.0.s8 %v1875
      %v1877 = vlaneseq
      %v1878 = vshrl.u32 %v1877, 7
      %v1879 = vsub.s32 %v1876, %v1878
      %v1880 = vrot.slane %v1870, %v1879
      %v1882 = vunpack.c.l.s4 1983009808
      %v1883 = vunpack.c.0.s8 %v1882
      %v1884 = vlaneseq
      %v1885 = vshrl.u32 %v1884, 7
      %v1886 = vsub.s32 %v1883, %v1885
      %v1887 = vrot.slane %v1871, %v1886
      %v1889 = vunpack.c.l.s4 1983009808
      %v1890 = vunpack.c.0.s8 %v1889
      %v1891 = vlaneseq
      %v1892 = vshrl.u32 %v1891, 7
      %v1893 = vsub.s32 %v1890, %v1892
      %v1894 = vrot.slane %v1872, %v1893
      %v1896 = vunpack.c.l.s4 1983009808
      %v1897 = vunpack.c.0.s8 %v1896
      %v1898 = vlaneseq
      %v1899 = vshrl.u32 %v1898, 7
      %v1900 = vsub.s32 %v1897, %v1899
      %v1901 = vrot.slane %v1873, %v1900
      %v1902 = vcombine.low %v1880, %v1894
      %v1903 = vcombine.high %v1880, %v1894
      %v1904 = vcombine.low %v1887, %v1901
      %v1943 = vunpack.c.l.b16 %v1579
      %v1944 = vunpack.c.l.b16 %v1580
      %v1945 = vunpack.c.l.b16 %v1581
      %v1946 = vunpack.c.l.b16 %v1582
      %v1947 = vunpack.c.l.b16 %v1583
      %v1948 = vunpack.c.l.b16 %v1584
      %v1949 = vunpack.c.l.b16 %v1585
      %v1950 = vunpack.c.l.b16 %v1586
      %v1951 = vunpack.c.l.b16 %v1587
      %v1952 = vunpack.c.l.b16 %v1588
      %v1953 = vunpack.c.l.b16 %v1589
      %v1954 = vunpack.c.l.b16 %v1590
      %v1955 = vunpack.c.l.b16 %v1591
      %v1956 = vunpack.c.l.b16 %v1592
      %v1957 = vunpack.c.l.b16 %v1593
      %v1958 = vunpack.c.l.b16 %v1594
      %v1959 = vunpack.c.l.b16 %v1595
      %v1960 = vunpack.c.l.b16 %v1596
      %v1961 = vunpack.c.l.b16 %v1597
      %v1962 = vunpack.c.l.b16 %v1598
      %v1963 = vunpack.c.l.b16 %v1599
      %v1964 = vunpack.c.l.b16 %v1600
      %v1965 = vunpack.c.l.b16 %v1601
      %v1966 = vunpack.c.l.b16 %v1602
      %v1967 = vunpack.c.l.b16 %v1603
      %v1968 = vunpack.c.l.b16 %v1604
      %v1969 = vunpack.c.l.b16 %v1605
      %v1970 = vunpack.c.l.b16 %v1606
      %v1971 = vunpack.c.l.b16 %v1607
      %v1972 = vunpack.c.l.b16 %v1608
      %v1973 = vunpack.c.l.b16 %v1609
      %v1974 = vunpack.c.l.b16 %v1610
      %v1975 = vunpack.c.l.b16 %v1611
      %v1976 = vunpack.c.l.b16 %v1612
      %v1977 = vunpack.c.l.b16 %v1613
      %v1978 = vunpack.c.l.b16 %v1614
      %v1979 = vpack.c.b16 %v1944, %v1943
      %v1980 = vpack.c.b16 %v1946, %v1945
      %v1981 = vpack.c.b16 %v1948, %v1947
      %v1982 = vpack.c.b16 %v1950, %v1949
      %v1983 = vpack.c.b16 %v1952, %v1951
      %v1984 = vpack.c.b16 %v1954, %v1953
      %v1985 = vpack.c.b16 %v1956, %v1955
      %v1986 = vpack.c.b16 %v1958, %v1957
      %v1987 = vpack.c.b16 %v1960, %v1959
      %v1988 = vpack.c.b16 %v1962, %v1961
      %v1989 = vpack.c.b16 %v1964, %v1963
      %v1990 = vpack.c.b16 %v1966, %v1965
      %v1991 = vpack.c.b16 %v1968, %v1967
      %v1992 = vpack.c.b16 %v1970, %v1969
      %v1993 = vpack.c.b16 %v1972, %v1971
      %v1994 = vpack.c.b16 %v1974, %v1973
      %v1995 = vpack.c.b16 %v1976, %v1975
      %v1996 = vpack.c.b16 %v1978, %v1977
      %v2015 = vcombine.low %v1793, %v1793
      %v2018 = vsel %vm591, %v1904, 0
      %2020 = vmatprep.subr.bf16.mxu0 0
      %2021 = vmatpush1.bf16.msra.mxu0 %v1979
      %2022 = vmatprep.subr.bf16.mxu0 0
      %2023 = vmatpush1.bf16.msra.mxu0 %v1980
      %2024 = vmatprep.subr.bf16.mxu0 0
      %2025 = vmatpush1.bf16.msra.mxu0 %v1981
      %2026 = vmatprep.subr.bf16.mxu0 0
      %2027 = vmatpush1.bf16.msra.mxu0 %v1982
      %2028 = vmatprep.subr.bf16.mxu0 0
      %2029 = vmatpush1.bf16.msra.mxu0 %v1983
      %2030 = vmatprep.subr.bf16.mxu0 0
      %2031 = vmatpush1.bf16.msra.mxu0 %v1984
      %2032 = vmatprep.subr.bf16.mxu0 0
      %2033 = vmatpush1.bf16.msra.mxu0 %v1985
      %2034 = vmatprep.subr.bf16.mxu0 0
      %2035 = vmatpush1.bf16.msra.mxu0 %v1986
      %2036 = vmatprep.subr.bf16.mxu0 0
      %2037 = vmatpush1.bf16.msra.mxu0 %v1987
      %2038 = vmatprep.subr.bf16.mxu0 0
      %2039 = vmatpush1.bf16.msra.mxu0 %v1988
      %2040 = vmatprep.subr.bf16.mxu0 0
      %2041 = vmatpush1.bf16.msra.mxu0 %v1989
      %2042 = vmatprep.subr.bf16.mxu0 0
      %2043 = vmatpush1.bf16.msra.mxu0 %v1990
      %2044 = vmatprep.subr.bf16.mxu0 0
      %2045 = vmatpush1.bf16.msra.mxu0 %v1991
      %2046 = vmatprep.subr.bf16.mxu0 0
      %2047 = vmatpush1.bf16.msra.mxu0 %v1992
      %2048 = vmatprep.subr.bf16.mxu0 0
      %2049 = vmatpush1.bf16.msra.mxu0 %v1993
      %2050 = vmatprep.subr.bf16.mxu0 0
      %2051 = vmatpush1.bf16.msra.mxu0 %v1994
      %2052 = vmatprep.mubr.bf16.mxu0 %v1903
      %2053 = vmatmul.mubr.bf16.gmra.mrb[0].mxu0 %v1902
      %v2054 = vpop.f32.mrb[0].mxu0
      %v2055 = vadd.f32 %v2015, %v2054
      %v2056 = vpop.f32.mrb[0].mxu0
      %v2057 = vpop.f32.mrb[0].mxu0
      %v2058 = vadd.f32 %v2015, %v2057
      %v2059 = vpop.f32.mrb[0].mxu0
      %2060 = vdwg.mxu0
      %2061 = vmatprep.subr.bf16.mxu0 0
      %2062 = vmatpush1.bf16.msra.mxu0 %v1995
      %2063 = vmatprep.subr.bf16.mxu0 0
      %2064 = vmatpush1.bf16.msra.mxu0 %v1996
      %2065 = vmatprep.subr.bf16.mxu0 0
      %2066 = vmatpush1.bf16.msra.mxu0 0
      %2067 = vmatprep.subr.bf16.mxu0 0
      %2068 = vmatpush1.bf16.msra.mxu0 0
      %2069 = vmatprep.subr.bf16.mxu0 0
      %2070 = vmatpush1.bf16.msra.mxu0 0
      %2071 = vmatprep.subr.bf16.mxu0 0
      %2072 = vmatpush1.bf16.msra.mxu0 0
      %2073 = vmatprep.subr.bf16.mxu0 0
      %2074 = vmatpush1.bf16.msra.mxu0 0
      %2075 = vmatprep.subr.bf16.mxu0 0
      %2076 = vmatpush1.bf16.msra.mxu0 0
      %2077 = vmatprep.subr.bf16.mxu0 0
      %2078 = vmatpush1.bf16.msra.mxu0 0
      %2079 = vmatprep.subr.bf16.mxu0 0
      %2080 = vmatpush1.bf16.msra.mxu0 0
      %2081 = vmatprep.subr.bf16.mxu0 0
      %2082 = vmatpush1.bf16.msra.mxu0 0
      %2083 = vmatprep.subr.bf16.mxu0 0
      %2084 = vmatpush1.bf16.msra.mxu0 0
      %2085 = vmatprep.subr.bf16.mxu0 0
      %2086 = vmatpush1.bf16.msra.mxu0 0
      %2087 = vmatprep.subr.bf16.mxu0 0
      %2088 = vmatpush1.bf16.msra.mxu0 0
      %2089 = vmatprep.subr.bf16.mxu0 0
      %2090 = vmatpush1.bf16.msra.mxu0 0
      %2091 = vmatprep.subr.bf16.mxu0 0
      %2092 = vmatpush1.bf16.msra.mxu0 0
      %2093 = vmatprep.mubr.bf16.mxu0 0
      %2094 = vmatmul.mubr.bf16.gmra.mrb[0].mxu0 %v2018
      %v2095 = vpop.f32.mrb[0].mxu0
      %v2096 = vadd.f32 %v2055, %v2095
      %v2097 = vpop.f32.mrb[0].mxu0
      %v2098 = vpop.f32.mrb[0].mxu0
      %v2099 = vadd.f32 %v2058, %v2098
      %v2100 = vpop.f32.mrb[0].mxu0
      %2101 = vdwg.mxu0
      %v2104 = vcombine.high %v2096, %v2096
      %v2105 = vcombine.high %v2099, %v2099
      %vm2108 = vcmp.gt.f32.partialorder %v2096, 0.0
      %vm2109 = vcmp.gt.f32.partialorder %v2104, 0.0
      %vm2110 = vcmp.gt.f32.partialorder %v2099, 0.0
      %vm2111 = vcmp.gt.f32.partialorder %v2105, 0.0
      %v2112 = vmul.f32 %v2096, 0.2
      %v2113 = vmul.f32 %v2104, 0.2
      %v2114 = vmul.f32 %v2099, 0.2
      %v2115 = vmul.f32 %v2105, 0.2
      %v2116 = vsel %vm2108, %v2096, %v2112
      %v2117 = vsel %vm2109, %v2104, %v2113
      %v2118 = vsel %vm2110, %v2099, %v2114
      %v2119 = vsel %vm2111, %v2105, %v2115
      %s2120 = scalar_lea.vmem [#allocation4], %s1572
      %2121 = vst.msk [vmem:[%s2120 + $0x1] sm:$0xf] %vm1574, %v2116
      %2122 = vst.msk [vmem:[%s2120 + $0x9] sm:$0xf] %vm1574, %v2117
      %2123 = vst.msk [vmem:[%s2120 + $0x11] sm:$0xf] %vm1574, %v2118
      %2124 = vst.msk [vmem:[%s2120 + $0x19] sm:$0xf] %vm1574, %v2119
      %v2125 = vld [vmem:[%s6] sm:$0xf]
      %v2126 = vld [vmem:[%s6 + $0x4] sm:$0xf]
      %v2127 = vld [vmem:[%s6 + $0x8] sm:$0xf]
      %v2128 = vld [vmem:[%s6 + $0xc] sm:$0xf]
      %v2129 = vld [vmem:[%s6 + $0x10] sm:$0xf]
      %v2130 = vld [vmem:[%s6 + $0x14] sm:$0xf]
      %v2131 = vld [vmem:[%s6 + $0x18] sm:$0xf]
      %v2132 = vld [vmem:[%s6 + $0x1c] sm:$0xf]
      %v2133 = vld [vmem:[%s6 + $0x20] sm:$0xf]
      %v2134 = vld [vmem:[%s6 + $0x24] sm:$0xf]
      %v2135 = vld [vmem:[%s6 + $0x28] sm:$0xf]
      %v2136 = vld [vmem:[%s6 + $0x2c] sm:$0xf]
      %v2137 = vld [vmem:[%s6 + $0x30] sm:$0xf]
      %v2138 = vld [vmem:[%s6 + $0x34] sm:$0xf]
      %v2139 = vld [vmem:[%s6 + $0x38] sm:$0xf]
      %v2140 = vld [vmem:[%s6 + $0x3c] sm:$0xf]
      %v2141 = vld [vmem:[%s6 + $0x40] sm:$0xf]
      %v2142 = vld [vmem:[%s6 + $0x44] sm:$0xf]
      %v2143 = vld [vmem:[%s6 + $0x48] sm:$0xf]
      %v2144 = vld [vmem:[%s6 + $0x4c] sm:$0xf]
      %v2145 = vld [vmem:[%s6 + $0x50] sm:$0xf]
      %v2146 = vld [vmem:[%s6 + $0x54] sm:$0xf]
      %v2147 = vld [vmem:[%s6 + $0x58] sm:$0xf]
      %v2148 = vld [vmem:[%s6 + $0x5c] sm:$0xf]
      %v2149 = vld [vmem:[%s6 + $0x60] sm:$0xf]
      %v2150 = vld [vmem:[%s6 + $0x64] sm:$0xf]
      %v2151 = vld [vmem:[%s6 + $0x68] sm:$0xf]
      %v2152 = vld [vmem:[%s6 + $0x6c] sm:$0xf]
      %v2153 = vld [vmem:[%s6 + $0x70] sm:$0xf]
      %v2154 = vld [vmem:[%s6 + $0x74] sm:$0xf]
      %v2155 = vld [vmem:[%s6 + $0x78] sm:$0xf]
      %v2156 = vld [vmem:[%s6 + $0x7c] sm:$0xf]
      %v2157 = vld [vmem:[%s6 + $0x80] sm:$0xf]
      %v2158 = vld [vmem:[%s6 + $0x84] sm:$0xf]
      %v2159 = vld [vmem:[%s6 + $0x88] sm:$0xf]
      %v2160 = vld [vmem:[%s6 + $0x8c] sm:$0xf]
      %v2161 = vld [vmem:[%s7] sm:$0x1]
      %s2162 = scalar_lea.vmem [#allocation4], %s1616
      %v2163 = vld [vmem:[%s2162] sm:$0xf]
      %v2164 = vld [vmem:[%s2162 + $0x8] sm:$0xf]
      %v2165 = vld [vmem:[%s2162 + $0x10] sm:$0xf]
      %v2166 = vld [vmem:[%s2162 + $0x18] sm:$0xf]
      %v2167 = vld [vmem:[%s2162 + $0x1] sm:$0xf]
      %v2168 = vld [vmem:[%s2162 + $0x9] sm:$0xf]
      %v2169 = vld [vmem:[%s2162 + $0x11] sm:$0xf]
      %v2170 = vld [vmem:[%s2162 + $0x19] sm:$0xf]
      %v2171 = vld [vmem:[%s2162 + $0x2] sm:$0xf]
      %v2172 = vld [vmem:[%s2162 + $0xa] sm:$0xf]
      %v2173 = vld [vmem:[%s2162 + $0x12] sm:$0xf]
      %v2174 = vld [vmem:[%s2162 + $0x1a] sm:$0xf]
      %v2175 = vld [vmem:[%s2120] sm:$0xf]
      %v2176 = vld [vmem:[%s2120 + $0x8] sm:$0xf]
      %v2177 = vld [vmem:[%s2120 + $0x10] sm:$0xf]
      %v2178 = vld [vmem:[%s2120 + $0x18] sm:$0xf]
      %v2179 = vld [vmem:[%s2120 + $0x1] sm:$0xf]
      %v2180 = vld [vmem:[%s2120 + $0x9] sm:$0xf]
      %v2181 = vld [vmem:[%s2120 + $0x11] sm:$0xf]
      %v2182 = vld [vmem:[%s2120 + $0x19] sm:$0xf]
      %v2183 = vld [vmem:[%s2120 + $0x2] sm:$0xf]
      %v2184 = vld [vmem:[%s2120 + $0xa] sm:$0xf]
      %v2185 = vld [vmem:[%s2120 + $0x12] sm:$0xf]
      %v2186 = vld [vmem:[%s2120 + $0x1a] sm:$0xf]
      %s2187 = scalar_lea.vmem [#allocation4], %s1642
      %v2188 = vld [vmem:[%s2187] sm:$0xf]
      %v2189 = vld [vmem:[%s2187 + $0x8] sm:$0xf]
      %v2190 = vld [vmem:[%s2187 + $0x10] sm:$0xf]
      %v2191 = vld [vmem:[%s2187 + $0x18] sm:$0xf]
      %v2192 = vld [vmem:[%s2187 + $0x1] sm:$0xf]
      %v2193 = vld [vmem:[%s2187 + $0x9] sm:$0xf]
      %v2194 = vld [vmem:[%s2187 + $0x11] sm:$0xf]
      %v2195 = vld [vmem:[%s2187 + $0x19] sm:$0xf]
      %v2196 = vld [vmem:[%s2187 + $0x2] sm:$0xf]
      %v2197 = vld [vmem:[%s2187 + $0xa] sm:$0xf]
      %v2198 = vld [vmem:[%s2187 + $0x12] sm:$0xf]
      %v2199 = vld [vmem:[%s2187 + $0x1a] sm:$0xf]
      %2204 = vrot.lane.b32.xlu0 %v2167, 32
      %v2205 = vpop.permute.xlu0 %2204
      %2206 = vrot.lane.b32.xlu0 %v2168, 32
      %v2207 = vpop.permute.xlu0 %2206
      %2208 = vrot.lane.b32.xlu0 %v2169, 32
      %v2209 = vpop.permute.xlu0 %2208
      %2210 = vrot.lane.b32.xlu0 %v2170, 32
      %v2211 = vpop.permute.xlu0 %2210
      %2220 = vrot.lane.b32.xlu0 %v2171, 64
      %v2221 = vpop.permute.xlu0 %2220
      %2222 = vrot.lane.b32.xlu0 %v2172, 64
      %v2223 = vpop.permute.xlu0 %2222
      %2224 = vrot.lane.b32.xlu0 %v2173, 64
      %v2225 = vpop.permute.xlu0 %2224
      %2226 = vrot.lane.b32.xlu0 %v2174, 64
      %v2227 = vpop.permute.xlu0 %2226
      %2236 = vrot.lane.b32.xlu0 %v2175, 96
      %v2237 = vpop.permute.xlu0 %2236
      %2238 = vrot.lane.b32.xlu0 %v2176, 96
      %v2239 = vpop.permute.xlu0 %2238
      %2240 = vrot.lane.b32.xlu0 %v2177, 96
      %v2241 = vpop.permute.xlu0 %2240
      %2242 = vrot.lane.b32.xlu0 %v2178, 96
      %v2243 = vpop.permute.xlu0 %2242
      %2252 = vrot.lane.b32.xlu0 %v2183, 32
      %v2253 = vpop.permute.xlu0 %2252
      %2254 = vrot.lane.b32.xlu0 %v2184, 32
      %v2255 = vpop.permute.xlu0 %2254
      %2256 = vrot.lane.b32.xlu0 %v2185, 32
      %v2257 = vpop.permute.xlu0 %2256
      %2258 = vrot.lane.b32.xlu0 %v2186, 32
      %v2259 = vpop.permute.xlu0 %2258
      %2268 = vrot.lane.b32.xlu0 %v2188, 64
      %v2269 = vpop.permute.xlu0 %2268
      %2270 = vrot.lane.b32.xlu0 %v2189, 64
      %v2271 = vpop.permute.xlu0 %2270
      %2272 = vrot.lane.b32.xlu0 %v2190, 64
      %v2273 = vpop.permute.xlu0 %2272
      %2274 = vrot.lane.b32.xlu0 %v2191, 64
      %v2275 = vpop.permute.xlu0 %2274
      %2284 = vrot.lane.b32.xlu0 %v2192, 96
      %v2285 = vpop.permute.xlu0 %2284
      %2286 = vrot.lane.b32.xlu0 %v2193, 96
      %v2287 = vpop.permute.xlu0 %2286
      %2288 = vrot.lane.b32.xlu0 %v2194, 96
      %v2289 = vpop.permute.xlu0 %2288
      %2290 = vrot.lane.b32.xlu0 %v2195, 96
      %v2291 = vpop.permute.xlu0 %2290
      %v2296 = vsel %vm591, %v2163, %v2205
      %v2297 = vsel %vm591, %v2164, %v2207
      %v2298 = vsel %vm591, %v2165, %v2209
      %v2299 = vsel %vm591, %v2166, %v2211
      %v2300 = vsel %vm987, %v2296, %v2221
      %v2301 = vsel %vm987, %v2297, %v2223
      %v2302 = vsel %vm987, %v2298, %v2225
      %v2303 = vsel %vm987, %v2299, %v2227
      %v2304 = vsel %vm1760, %v2300, %v2237
      %v2305 = vsel %vm1760, %v2301, %v2239
      %v2306 = vsel %vm1760, %v2302, %v2241
      %v2307 = vsel %vm1760, %v2303, %v2243
      %v2308 = vsel %vm591, %v2179, %v2253
      %v2309 = vsel %vm591, %v2180, %v2255
      %v2310 = vsel %vm591, %v2181, %v2257
      %v2311 = vsel %vm591, %v2182, %v2259
      %v2312 = vsel %vm987, %v2308, %v2269
      %v2313 = vsel %vm987, %v2309, %v2271
      %v2314 = vsel %vm987, %v2310, %v2273
      %v2315 = vsel %vm987, %v2311, %v2275
      %v2316 = vsel %vm1760, %v2312, %v2285
      %v2317 = vsel %vm1760, %v2313, %v2287
      %v2318 = vsel %vm1760, %v2314, %v2289
      %v2319 = vsel %vm1760, %v2315, %v2291
      %v2320 = vpack.c.bf16 %v2304, %v2304
      %v2321 = vpack.c.bf16 %v2316, %v2316
      %v2322 = vpack.c.bf16 %v2196, %v2196
      %v2323 = vpack.c.bf16 %v2305, %v2305
      %v2324 = vpack.c.bf16 %v2317, %v2317
      %v2325 = vpack.c.bf16 %v2197, %v2197
      %v2326 = vpack.c.bf16 %v2306, %v2306
      %v2327 = vpack.c.bf16 %v2318, %v2318
      %v2328 = vpack.c.bf16 %v2198, %v2198
      %v2329 = vpack.c.bf16 %v2307, %v2307
      %v2330 = vpack.c.bf16 %v2319, %v2319
      %v2331 = vpack.c.bf16 %v2199, %v2199
      %v2333 = vlaneseq
      %v2334 = vshrl.u32 %v2333, 7
      %v2335 = vsub.s32 0, %v2334
      %v2336 = vrot.slane %v2161, %v2335
      %v2349 = vcombine.low %v2320, %v2321
      %v2351 = vunpack.c.l.s4 1983009808
      %v2352 = vunpack.c.0.s8 %v2351
      %v2353 = vlaneseq
      %v2354 = vshrl.u32 %v2353, 7
      %v2355 = vsub.s32 %v2352, %v2354
      %v2356 = vrot.slane %v2349, %v2355
      %v2358 = vunpack.c.l.s4 1983009808
      %v2359 = vunpack.c.0.s8 %v2358
      %v2360 = vlaneseq
      %v2361 = vshrl.u32 %v2360, 7
      %v2362 = vsub.s32 %v2359, %v2361
      %v2363 = vrot.slane %v2322, %v2362
      %v2364 = vcombine.low %v2356, %v2363
      %v2365 = vcombine.low %v2323, %v2324
      %v2367 = vunpack.c.l.s4 1983009808
      %v2368 = vunpack.c.0.s8 %v2367
      %v2369 = vlaneseq
      %v2370 = vshrl.u32 %v2369, 7
      %v2371 = vsub.s32 %v2368, %v2370
      %v2372 = vrot.slane %v2365, %v2371
      %v2374 = vunpack.c.l.s4 1983009808
      %v2375 = vunpack.c.0.s8 %v2374
      %v2376 = vlaneseq
      %v2377 = vshrl.u32 %v2376, 7
      %v2378 = vsub.s32 %v2375, %v2377
      %v2379 = vrot.slane %v2325, %v2378
      %v2380 = vcombine.low %v2372, %v2379
      %v2381 = vcombine.low %v2326, %v2327
      %v2383 = vunpack.c.l.s4 1983009808
      %v2384 = vunpack.c.0.s8 %v2383
      %v2385 = vlaneseq
      %v2386 = vshrl.u32 %v2385, 7
      %v2387 = vsub.s32 %v2384, %v2386
      %v2388 = vrot.slane %v2381, %v2387
      %v2390 = vunpack.c.l.s4 1983009808
      %v2391 = vunpack.c.0.s8 %v2390
      %v2392 = vlaneseq
      %v2393 = vshrl.u32 %v2392, 7
      %v2394 = vsub.s32 %v2391, %v2393
      %v2395 = vrot.slane %v2328, %v2394
      %v2396 = vcombine.low %v2388, %v2395
      %v2397 = vcombine.low %v2329, %v2330
      %v2399 = vunpack.c.l.s4 1983009808
      %v2400 = vunpack.c.0.s8 %v2399
      %v2401 = vlaneseq
      %v2402 = vshrl.u32 %v2401, 7
      %v2403 = vsub.s32 %v2400, %v2402
      %v2404 = vrot.slane %v2397, %v2403
      %v2406 = vunpack.c.l.s4 1983009808
      %v2407 = vunpack.c.0.s8 %v2406
      %v2408 = vlaneseq
      %v2409 = vshrl.u32 %v2408, 7
      %v2410 = vsub.s32 %v2407, %v2409
      %v2411 = vrot.slane %v2331, %v2410
      %v2412 = vcombine.low %v2404, %v2411
      %v2413 = vcombine.low %v2364, %v2380
      %v2414 = vcombine.high %v2364, %v2380
      %v2415 = vcombine.low %v2396, %v2412
      %v2416 = vcombine.high %v2396, %v2412
      %v2418 = vunpack.c.l.s4 1983009808
      %v2419 = vunpack.c.0.s8 %v2418
      %v2420 = vlaneseq
      %v2421 = vshrl.u32 %v2420, 7
      %v2422 = vsub.s32 %v2419, %v2421
      %v2423 = vrot.slane %v2413, %v2422
      %v2425 = vunpack.c.l.s4 1983009808
      %v2426 = vunpack.c.0.s8 %v2425
      %v2427 = vlaneseq
      %v2428 = vshrl.u32 %v2427, 7
      %v2429 = vsub.s32 %v2426, %v2428
      %v2430 = vrot.slane %v2414, %v2429
      %v2432 = vunpack.c.l.s4 1983009808
      %v2433 = vunpack.c.0.s8 %v2432
      %v2434 = vlaneseq
      %v2435 = vshrl.u32 %v2434, 7
      %v2436 = vsub.s32 %v2433, %v2435
      %v2437 = vrot.slane %v2415, %v2436
      %v2439 = vunpack.c.l.s4 1983009808
      %v2440 = vunpack.c.0.s8 %v2439
      %v2441 = vlaneseq
      %v2442 = vshrl.u32 %v2441, 7
      %v2443 = vsub.s32 %v2440, %v2442
      %v2444 = vrot.slane %v2416, %v2443
      %v2445 = vcombine.low %v2423, %v2437
      %v2446 = vcombine.high %v2423, %v2437
      %v2447 = vcombine.low %v2430, %v2444
      %v2486 = vunpack.c.l.b16 %v2125
      %v2487 = vunpack.c.l.b16 %v2126
      %v2488 = vunpack.c.l.b16 %v2127
      %v2489 = vunpack.c.l.b16 %v2128
      %v2490 = vunpack.c.l.b16 %v2129
      %v2491 = vunpack.c.l.b16 %v2130
      %v2492 = vunpack.c.l.b16 %v2131
      %v2493 = vunpack.c.l.b16 %v2132
      %v2494 = vunpack.c.l.b16 %v2133
      %v2495 = vunpack.c.l.b16 %v2134
      %v2496 = vunpack.c.l.b16 %v2135
      %v2497 = vunpack.c.l.b16 %v2136
      %v2498 = vunpack.c.l.b16 %v2137
      %v2499 = vunpack.c.l.b16 %v2138
      %v2500 = vunpack.c.l.b16 %v2139
      %v2501 = vunpack.c.l.b16 %v2140
      %v2502 = vunpack.c.l.b16 %v2141
      %v2503 = vunpack.c.l.b16 %v2142
      %v2504 = vunpack.c.l.b16 %v2143
      %v2505 = vunpack.c.l.b16 %v2144
      %v2506 = vunpack.c.l.b16 %v2145
      %v2507 = vunpack.c.l.b16 %v2146
      %v2508 = vunpack.c.l.b16 %v2147
      %v2509 = vunpack.c.l.b16 %v2148
      %v2510 = vunpack.c.l.b16 %v2149
      %v2511 = vunpack.c.l.b16 %v2150
      %v2512 = vunpack.c.l.b16 %v2151
      %v2513 = vunpack.c.l.b16 %v2152
      %v2514 = vunpack.c.l.b16 %v2153
      %v2515 = vunpack.c.l.b16 %v2154
      %v2516 = vunpack.c.l.b16 %v2155
      %v2517 = vunpack.c.l.b16 %v2156
      %v2518 = vunpack.c.l.b16 %v2157
      %v2519 = vunpack.c.l.b16 %v2158
      %v2520 = vunpack.c.l.b16 %v2159
      %v2521 = vunpack.c.l.b16 %v2160
      %v2522 = vpack.c.b16 %v2487, %v2486
      %v2523 = vpack.c.b16 %v2489, %v2488
      %v2524 = vpack.c.b16 %v2491, %v2490
      %v2525 = vpack.c.b16 %v2493, %v2492
      %v2526 = vpack.c.b16 %v2495, %v2494
      %v2527 = vpack.c.b16 %v2497, %v2496
      %v2528 = vpack.c.b16 %v2499, %v2498
      %v2529 = vpack.c.b16 %v2501, %v2500
      %v2530 = vpack.c.b16 %v2503, %v2502
      %v2531 = vpack.c.b16 %v2505, %v2504
      %v2532 = vpack.c.b16 %v2507, %v2506
      %v2533 = vpack.c.b16 %v2509, %v2508
      %v2534 = vpack.c.b16 %v2511, %v2510
      %v2535 = vpack.c.b16 %v2513, %v2512
      %v2536 = vpack.c.b16 %v2515, %v2514
      %v2537 = vpack.c.b16 %v2517, %v2516
      %v2538 = vpack.c.b16 %v2519, %v2518
      %v2539 = vpack.c.b16 %v2521, %v2520
      %v2558 = vcombine.low %v2336, %v2336
      %v2561 = vsel %vm591, %v2447, 0
      %2563 = vmatprep.subr.bf16.mxu0 0
      %2564 = vmatpush1.bf16.msra.mxu0 %v2522
      %2565 = vmatprep.subr.bf16.mxu0 0
      %2566 = vmatpush1.bf16.msra.mxu0 %v2523
      %2567 = vmatprep.subr.bf16.mxu0 0
      %2568 = vmatpush1.bf16.msra.mxu0 %v2524
      %2569 = vmatprep.subr.bf16.mxu0 0
      %2570 = vmatpush1.bf16.msra.mxu0 %v2525
      %2571 = vmatprep.subr.bf16.mxu0 0
      %2572 = vmatpush1.bf16.msra.mxu0 %v2526
      %2573 = vmatprep.subr.bf16.mxu0 0
      %2574 = vmatpush1.bf16.msra.mxu0 %v2527
      %2575 = vmatprep.subr.bf16.mxu0 0
      %2576 = vmatpush1.bf16.msra.mxu0 %v2528
      %2577 = vmatprep.subr.bf16.mxu0 0
      %2578 = vmatpush1.bf16.msra.mxu0 %v2529
      %2579 = vmatprep.subr.bf16.mxu0 0
      %2580 = vmatpush1.bf16.msra.mxu0 %v2530
      %2581 = vmatprep.subr.bf16.mxu0 0
      %2582 = vmatpush1.bf16.msra.mxu0 %v2531
      %2583 = vmatprep.subr.bf16.mxu0 0
      %2584 = vmatpush1.bf16.msra.mxu0 %v2532
      %2585 = vmatprep.subr.bf16.mxu0 0
      %2586 = vmatpush1.bf16.msra.mxu0 %v2533
      %2587 = vmatprep.subr.bf16.mxu0 0
      %2588 = vmatpush1.bf16.msra.mxu0 %v2534
      %2589 = vmatprep.subr.bf16.mxu0 0
      %2590 = vmatpush1.bf16.msra.mxu0 %v2535
      %2591 = vmatprep.subr.bf16.mxu0 0
      %2592 = vmatpush1.bf16.msra.mxu0 %v2536
      %2593 = vmatprep.subr.bf16.mxu0 0
      %2594 = vmatpush1.bf16.msra.mxu0 %v2537
      %2595 = vmatprep.mubr.bf16.mxu0 %v2446
      %2596 = vmatmul.mubr.bf16.gmra.mrb[0].mxu0 %v2445
      %v2597 = vpop.f32.mrb[0].mxu0
      %v2598 = vadd.f32 %v2558, %v2597
      %v2599 = vpop.f32.mrb[0].mxu0
      %v2600 = vpop.f32.mrb[0].mxu0
      %v2601 = vadd.f32 %v2558, %v2600
      %v2602 = vpop.f32.mrb[0].mxu0
      %2603 = vdwg.mxu0
      %2604 = vmatprep.subr.bf16.mxu0 0
      %2605 = vmatpush1.bf16.msra.mxu0 %v2538
      %2606 = vmatprep.subr.bf16.mxu0 0
      %2607 = vmatpush1.bf16.msra.mxu0 %v2539
      %2608 = vmatprep.subr.bf16.mxu0 0
      %2609 = vmatpush1.bf16.msra.mxu0 0
      %2610 = vmatprep.subr.bf16.mxu0 0
      %2611 = vmatpush1.bf16.msra.mxu0 0
      %2612 = vmatprep.subr.bf16.mxu0 0
      %2613 = vmatpush1.bf16.msra.mxu0 0
      %2614 = vmatprep.subr.bf16.mxu0 0
      %2615 = vmatpush1.bf16.msra.mxu0 0
      %2616 = vmatprep.subr.bf16.mxu0 0
      %2617 = vmatpush1.bf16.msra.mxu0 0
      %2618 = vmatprep.subr.bf16.mxu0 0
      %2619 = vmatpush1.bf16.msra.mxu0 0
      %2620 = vmatprep.subr.bf16.mxu0 0
      %2621 = vmatpush1.bf16.msra.mxu0 0
      %2622 = vmatprep.subr.bf16.mxu0 0
      %2623 = vmatpush1.bf16.msra.mxu0 0
      %2624 = vmatprep.subr.bf16.mxu0 0
      %2625 = vmatpush1.bf16.msra.mxu0 0
      %2626 = vmatprep.subr.bf16.mxu0 0
      %2627 = vmatpush1.bf16.msra.mxu0 0
      %2628 = vmatprep.subr.bf16.mxu0 0
      %2629 = vmatpush1.bf16.msra.mxu0 0
      %2630 = vmatprep.subr.bf16.mxu0 0
      %2631 = vmatpush1.bf16.msra.mxu0 0
      %2632 = vmatprep.subr.bf16.mxu0 0
      %2633 = vmatpush1.bf16.msra.mxu0 0
      %2634 = vmatprep.subr.bf16.mxu0 0
      %2635 = vmatpush1.bf16.msra.mxu0 0
      %2636 = vmatprep.mubr.bf16.mxu0 0
      %2637 = vmatmul.mubr.bf16.gmra.mrb[0].mxu0 %v2561
      %v2638 = vpop.f32.mrb[0].mxu0
      %v2639 = vadd.f32 %v2598, %v2638
      %v2640 = vpop.f32.mrb[0].mxu0
      %v2641 = vpop.f32.mrb[0].mxu0
      %v2642 = vadd.f32 %v2601, %v2641
      %v2643 = vpop.f32.mrb[0].mxu0
      %2644 = vdwg.mxu0
      %v2647 = vcombine.high %v2639, %v2639
      %v2648 = vcombine.high %v2642, %v2642
      %v2651 = vld [vmem:[%s1573 + $0x1] sm:$0xf]
      %v2652 = vld [vmem:[%s1573 + $0x9] sm:$0xf]
      %v2653 = vld [vmem:[%s1573 + $0x11] sm:$0xf]
      %v2654 = vld [vmem:[%s1573 + $0x19] sm:$0xf]
      %v2655 = vadd.f32 %v2639, %v2651
      %v2656 = vadd.f32 %v2647, %v2652
      %v2657 = vadd.f32 %v2642, %v2653
      %v2658 = vadd.f32 %v2648, %v2654
      %vm2659 = vcmp.gt.f32.partialorder %v2655, 0.0
      %vm2660 = vcmp.gt.f32.partialorder %v2656, 0.0
      %vm2661 = vcmp.gt.f32.partialorder %v2657, 0.0
      %vm2662 = vcmp.gt.f32.partialorder %v2658, 0.0
      %v2663 = vmul.f32 %v2655, 0.2
      %v2664 = vmul.f32 %v2656, 0.2
      %v2665 = vmul.f32 %v2657, 0.2
      %v2666 = vmul.f32 %v2658, 0.2
      %v2667 = vsel %vm2659, %v2655, %v2663
      %v2668 = vsel %vm2660, %v2656, %v2664
      %v2669 = vsel %vm2661, %v2657, %v2665
      %v2670 = vsel %vm2662, %v2658, %v2666
      %2671 = vst.msk [vmem:[%s1573 + $0x1] sm:$0xf] %vm1574, %v2667
      %2672 = vst.msk [vmem:[%s1573 + $0x9] sm:$0xf] %vm1574, %v2668
      %2673 = vst.msk [vmem:[%s1573 + $0x11] sm:$0xf] %vm1574, %v2669
      %2674 = vst.msk [vmem:[%s1573 + $0x19] sm:$0xf] %vm1574, %v2670
      %v2675 = vld [vmem:[%s8] sm:$0xf]
      %v2676 = vld [vmem:[%s8 + $0x4] sm:$0xf]
      %v2677 = vld [vmem:[%s8 + $0x8] sm:$0xf]
      %v2678 = vld [vmem:[%s8 + $0xc] sm:$0xf]
      %v2679 = vld [vmem:[%s8 + $0x10] sm:$0xf]
      %v2680 = vld [vmem:[%s8 + $0x14] sm:$0xf]
      %v2681 = vld [vmem:[%s8 + $0x18] sm:$0xf]
      %v2682 = vld [vmem:[%s8 + $0x1c] sm:$0xf]
      %v2683 = vld [vmem:[%s8 + $0x20] sm:$0xf]
      %v2684 = vld [vmem:[%s8 + $0x24] sm:$0xf]
      %v2685 = vld [vmem:[%s8 + $0x28] sm:$0xf]
      %v2686 = vld [vmem:[%s8 + $0x2c] sm:$0xf]
      %v2687 = vld [vmem:[%s8 + $0x30] sm:$0xf]
      %v2688 = vld [vmem:[%s8 + $0x34] sm:$0xf]
      %v2689 = vld [vmem:[%s8 + $0x38] sm:$0xf]
      %v2690 = vld [vmem:[%s8 + $0x3c] sm:$0xf]
      %v2691 = vld [vmem:[%s8 + $0x40] sm:$0xf]
      %v2692 = vld [vmem:[%s8 + $0x44] sm:$0xf]
      %v2693 = vld [vmem:[%s8 + $0x48] sm:$0xf]
      %v2694 = vld [vmem:[%s8 + $0x4c] sm:$0xf]
      %v2695 = vld [vmem:[%s8 + $0x50] sm:$0xf]
      %v2696 = vld [vmem:[%s8 + $0x54] sm:$0xf]
      %v2697 = vld [vmem:[%s8 + $0x58] sm:$0xf]
      %v2698 = vld [vmem:[%s8 + $0x5c] sm:$0xf]
      %v2699 = vld [vmem:[%s8 + $0x60] sm:$0xf]
      %v2700 = vld [vmem:[%s8 + $0x64] sm:$0xf]
      %v2701 = vld [vmem:[%s8 + $0x68] sm:$0xf]
      %v2702 = vld [vmem:[%s8 + $0x6c] sm:$0xf]
      %v2703 = vld [vmem:[%s8 + $0x70] sm:$0xf]
      %v2704 = vld [vmem:[%s8 + $0x74] sm:$0xf]
      %v2705 = vld [vmem:[%s8 + $0x78] sm:$0xf]
      %v2706 = vld [vmem:[%s8 + $0x7c] sm:$0xf]
      %v2707 = vld [vmem:[%s8 + $0x80] sm:$0xf]
      %v2708 = vld [vmem:[%s8 + $0x84] sm:$0xf]
      %v2709 = vld [vmem:[%s8 + $0x88] sm:$0xf]
      %v2710 = vld [vmem:[%s8 + $0x8c] sm:$0xf]
      %v2711 = vld [vmem:[%s9] sm:$0x1]
      %v2712 = vld [vmem:[%s1617] sm:$0xf]
      %v2713 = vld [vmem:[%s1617 + $0x8] sm:$0xf]
      %v2714 = vld [vmem:[%s1617 + $0x10] sm:$0xf]
      %v2715 = vld [vmem:[%s1617 + $0x18] sm:$0xf]
      %v2716 = vld [vmem:[%s1617 + $0x1] sm:$0xf]
      %v2717 = vld [vmem:[%s1617 + $0x9] sm:$0xf]
      %v2718 = vld [vmem:[%s1617 + $0x11] sm:$0xf]
      %v2719 = vld [vmem:[%s1617 + $0x19] sm:$0xf]
      %v2720 = vld [vmem:[%s1617 + $0x2] sm:$0xf]
      %v2721 = vld [vmem:[%s1617 + $0xa] sm:$0xf]
      %v2722 = vld [vmem:[%s1617 + $0x12] sm:$0xf]
      %v2723 = vld [vmem:[%s1617 + $0x1a] sm:$0xf]
      %v2724 = vld [vmem:[%s1573] sm:$0xf]
      %v2725 = vld [vmem:[%s1573 + $0x8] sm:$0xf]
      %v2726 = vld [vmem:[%s1573 + $0x10] sm:$0xf]
      %v2727 = vld [vmem:[%s1573 + $0x18] sm:$0xf]
      %v2728 = vld [vmem:[%s1573 + $0x1] sm:$0xf]
      %v2729 = vld [vmem:[%s1573 + $0x9] sm:$0xf]
      %v2730 = vld [vmem:[%s1573 + $0x11] sm:$0xf]
      %v2731 = vld [vmem:[%s1573 + $0x19] sm:$0xf]
      %v2732 = vld [vmem:[%s1573 + $0x2] sm:$0xf]
      %v2733 = vld [vmem:[%s1573 + $0xa] sm:$0xf]
      %v2734 = vld [vmem:[%s1573 + $0x12] sm:$0xf]
      %v2735 = vld [vmem:[%s1573 + $0x1a] sm:$0xf]
      %v2736 = vld [vmem:[%s1643] sm:$0xf]
      %v2737 = vld [vmem:[%s1643 + $0x8] sm:$0xf]
      %v2738 = vld [vmem:[%s1643 + $0x10] sm:$0xf]
      %v2739 = vld [vmem:[%s1643 + $0x18] sm:$0xf]
      %v2740 = vld [vmem:[%s1643 + $0x1] sm:$0xf]
      %v2741 = vld [vmem:[%s1643 + $0x9] sm:$0xf]
      %v2742 = vld [vmem:[%s1643 + $0x11] sm:$0xf]
      %v2743 = vld [vmem:[%s1643 + $0x19] sm:$0xf]
      %v2744 = vld [vmem:[%s1643 + $0x2] sm:$0xf]
      %v2745 = vld [vmem:[%s1643 + $0xa] sm:$0xf]
      %v2746 = vld [vmem:[%s1643 + $0x12] sm:$0xf]
      %v2747 = vld [vmem:[%s1643 + $0x1a] sm:$0xf]
      %2752 = vrot.lane.b32.xlu0 %v2716, 32
      %v2753 = vpop.permute.xlu0 %2752
      %2754 = vrot.lane.b32.xlu0 %v2717, 32
      %v2755 = vpop.permute.xlu0 %2754
      %2756 = vrot.lane.b32.xlu0 %v2718, 32
      %v2757 = vpop.permute.xlu0 %2756
      %2758 = vrot.lane.b32.xlu0 %v2719, 32
      %v2759 = vpop.permute.xlu0 %2758
      %2768 = vrot.lane.b32.xlu0 %v2720, 64
      %v2769 = vpop.permute.xlu0 %2768
      %2770 = vrot.lane.b32.xlu0 %v2721, 64
      %v2771 = vpop.permute.xlu0 %2770
      %2772 = vrot.lane.b32.xlu0 %v2722, 64
      %v2773 = vpop.permute.xlu0 %2772
      %2774 = vrot.lane.b32.xlu0 %v2723, 64
      %v2775 = vpop.permute.xlu0 %2774
      %2784 = vrot.lane.b32.xlu0 %v2724, 96
      %v2785 = vpop.permute.xlu0 %2784
      %2786 = vrot.lane.b32.xlu0 %v2725, 96
      %v2787 = vpop.permute.xlu0 %2786
      %2788 = vrot.lane.b32.xlu0 %v2726, 96
      %v2789 = vpop.permute.xlu0 %2788
      %2790 = vrot.lane.b32.xlu0 %v2727, 96
      %v2791 = vpop.permute.xlu0 %2790
      %2800 = vrot.lane.b32.xlu0 %v2732, 32
      %v2801 = vpop.permute.xlu0 %2800
      %2802 = vrot.lane.b32.xlu0 %v2733, 32
      %v2803 = vpop.permute.xlu0 %2802
      %2804 = vrot.lane.b32.xlu0 %v2734, 32
      %v2805 = vpop.permute.xlu0 %2804
      %2806 = vrot.lane.b32.xlu0 %v2735, 32
      %v2807 = vpop.permute.xlu0 %2806
      %2816 = vrot.lane.b32.xlu0 %v2736, 64
      %v2817 = vpop.permute.xlu0 %2816
      %2818 = vrot.lane.b32.xlu0 %v2737, 64
      %v2819 = vpop.permute.xlu0 %2818
      %2820 = vrot.lane.b32.xlu0 %v2738, 64
      %v2821 = vpop.permute.xlu0 %2820
      %2822 = vrot.lane.b32.xlu0 %v2739, 64
      %v2823 = vpop.permute.xlu0 %2822
      %2832 = vrot.lane.b32.xlu0 %v2740, 96
      %v2833 = vpop.permute.xlu0 %2832
      %2834 = vrot.lane.b32.xlu0 %v2741, 96
      %v2835 = vpop.permute.xlu0 %2834
      %2836 = vrot.lane.b32.xlu0 %v2742, 96
      %v2837 = vpop.permute.xlu0 %2836
      %2838 = vrot.lane.b32.xlu0 %v2743, 96
      %v2839 = vpop.permute.xlu0 %2838
      %v2844 = vsel %vm591, %v2712, %v2753
      %v2845 = vsel %vm591, %v2713, %v2755
      %v2846 = vsel %vm591, %v2714, %v2757
      %v2847 = vsel %vm591, %v2715, %v2759
      %v2848 = vsel %vm987, %v2844, %v2769
      %v2849 = vsel %vm987, %v2845, %v2771
      %v2850 = vsel %vm987, %v2846, %v2773
      %v2851 = vsel %vm987, %v2847, %v2775
      %v2852 = vsel %vm1760, %v2848, %v2785
      %v2853 = vsel %vm1760, %v2849, %v2787
      %v2854 = vsel %vm1760, %v2850, %v2789
      %v2855 = vsel %vm1760, %v2851, %v2791
      %v2856 = vsel %vm591, %v2728, %v2801
      %v2857 = vsel %vm591, %v2729, %v2803
      %v2858 = vsel %vm591, %v2730, %v2805
      %v2859 = vsel %vm591, %v2731, %v2807
      %v2860 = vsel %vm987, %v2856, %v2817
      %v2861 = vsel %vm987, %v2857, %v2819
      %v2862 = vsel %vm987, %v2858, %v2821
      %v2863 = vsel %vm987, %v2859, %v2823
      %v2864 = vsel %vm1760, %v2860, %v2833
      %v2865 = vsel %vm1760, %v2861, %v2835
      %v2866 = vsel %vm1760, %v2862, %v2837
      %v2867 = vsel %vm1760, %v2863, %v2839
      %v2868 = vpack.c.bf16 %v2852, %v2852
      %v2869 = vpack.c.bf16 %v2864, %v2864
      %v2870 = vpack.c.bf16 %v2744, %v2744
      %v2871 = vpack.c.bf16 %v2853, %v2853
      %v2872 = vpack.c.bf16 %v2865, %v2865
      %v2873 = vpack.c.bf16 %v2745, %v2745
      %v2874 = vpack.c.bf16 %v2854, %v2854
      %v2875 = vpack.c.bf16 %v2866, %v2866
      %v2876 = vpack.c.bf16 %v2746, %v2746
      %v2877 = vpack.c.bf16 %v2855, %v2855
      %v2878 = vpack.c.bf16 %v2867, %v2867
      %v2879 = vpack.c.bf16 %v2747, %v2747
      %v2881 = vlaneseq
      %v2882 = vshrl.u32 %v2881, 7
      %v2883 = vsub.s32 0, %v2882
      %v2884 = vrot.slane %v2711, %v2883
      %v2897 = vcombine.low %v2868, %v2869
      %v2899 = vunpack.c.l.s4 1983009808
      %v2900 = vunpack.c.0.s8 %v2899
      %v2901 = vlaneseq
      %v2902 = vshrl.u32 %v2901, 7
      %v2903 = vsub.s32 %v2900, %v2902
      %v2904 = vrot.slane %v2897, %v2903
      %v2906 = vunpack.c.l.s4 1983009808
      %v2907 = vunpack.c.0.s8 %v2906
      %v2908 = vlaneseq
      %v2909 = vshrl.u32 %v2908, 7
      %v2910 = vsub.s32 %v2907, %v2909
      %v2911 = vrot.slane %v2870, %v2910
      %v2912 = vcombine.low %v2904, %v2911
      %v2913 = vcombine.low %v2871, %v2872
      %v2915 = vunpack.c.l.s4 1983009808
      %v2916 = vunpack.c.0.s8 %v2915
      %v2917 = vlaneseq
      %v2918 = vshrl.u32 %v2917, 7
      %v2919 = vsub.s32 %v2916, %v2918
      %v2920 = vrot.slane %v2913, %v2919
      %v2922 = vunpack.c.l.s4 1983009808
      %v2923 = vunpack.c.0.s8 %v2922
      %v2924 = vlaneseq
      %v2925 = vshrl.u32 %v2924, 7
      %v2926 = vsub.s32 %v2923, %v2925
      %v2927 = vrot.slane %v2873, %v2926
      %v2928 = vcombine.low %v2920, %v2927
      %v2929 = vcombine.low %v2874, %v2875
      %v2931 = vunpack.c.l.s4 1983009808
      %v2932 = vunpack.c.0.s8 %v2931
      %v2933 = vlaneseq
      %v2934 = vshrl.u32 %v2933, 7
      %v2935 = vsub.s32 %v2932, %v2934
      %v2936 = vrot.slane %v2929, %v2935
      %v2938 = vunpack.c.l.s4 1983009808
      %v2939 = vunpack.c.0.s8 %v2938
      %v2940 = vlaneseq
      %v2941 = vshrl.u32 %v2940, 7
      %v2942 = vsub.s32 %v2939, %v2941
      %v2943 = vrot.slane %v2876, %v2942
      %v2944 = vcombine.low %v2936, %v2943
      %v2945 = vcombine.low %v2877, %v2878
      %v2947 = vunpack.c.l.s4 1983009808
      %v2948 = vunpack.c.0.s8 %v2947
      %v2949 = vlaneseq
      %v2950 = vshrl.u32 %v2949, 7
      %v2951 = vsub.s32 %v2948, %v2950
      %v2952 = vrot.slane %v2945, %v2951
      %v2954 = vunpack.c.l.s4 1983009808
      %v2955 = vunpack.c.0.s8 %v2954
      %v2956 = vlaneseq
      %v2957 = vshrl.u32 %v2956, 7
      %v2958 = vsub.s32 %v2955, %v2957
      %v2959 = vrot.slane %v2879, %v2958
      %v2960 = vcombine.low %v2952, %v2959
      %v2961 = vcombine.low %v2912, %v2928
      %v2962 = vcombine.high %v2912, %v2928
      %v2963 = vcombine.low %v2944, %v2960
      %v2964 = vcombine.high %v2944, %v2960
      %v2966 = vunpack.c.l.s4 1983009808
      %v2967 = vunpack.c.0.s8 %v2966
      %v2968 = vlaneseq
      %v2969 = vshrl.u32 %v2968, 7
      %v2970 = vsub.s32 %v2967, %v2969
      %v2971 = vrot.slane %v2961, %v2970
      %v2973 = vunpack.c.l.s4 1983009808
      %v2974 = vunpack.c.0.s8 %v2973
      %v2975 = vlaneseq
      %v2976 = vshrl.u32 %v2975, 7
      %v2977 = vsub.s32 %v2974, %v2976
      %v2978 = vrot.slane %v2962, %v2977
      %v2980 = vunpack.c.l.s4 1983009808
      %v2981 = vunpack.c.0.s8 %v2980
      %v2982 = vlaneseq
      %v2983 = vshrl.u32 %v2982, 7
      %v2984 = vsub.s32 %v2981, %v2983
      %v2985 = vrot.slane %v2963, %v2984
      %v2987 = vunpack.c.l.s4 1983009808
      %v2988 = vunpack.c.0.s8 %v2987
      %v2989 = vlaneseq
      %v2990 = vshrl.u32 %v2989, 7
      %v2991 = vsub.s32 %v2988, %v2990
      %v2992 = vrot.slane %v2964, %v2991
      %v2993 = vcombine.low %v2971, %v2985
      %v2994 = vcombine.high %v2971, %v2985
      %v2995 = vcombine.low %v2978, %v2992
      %v3034 = vunpack.c.l.b16 %v2675
      %v3035 = vunpack.c.l.b16 %v2676
      %v3036 = vunpack.c.l.b16 %v2677
      %v3037 = vunpack.c.l.b16 %v2678
      %v3038 = vunpack.c.l.b16 %v2679
      %v3039 = vunpack.c.l.b16 %v2680
      %v3040 = vunpack.c.l.b16 %v2681
      %v3041 = vunpack.c.l.b16 %v2682
      %v3042 = vunpack.c.l.b16 %v2683
      %v3043 = vunpack.c.l.b16 %v2684
      %v3044 = vunpack.c.l.b16 %v2685
      %v3045 = vunpack.c.l.b16 %v2686
      %v3046 = vunpack.c.l.b16 %v2687
      %v3047 = vunpack.c.l.b16 %v2688
      %v3048 = vunpack.c.l.b16 %v2689
      %v3049 = vunpack.c.l.b16 %v2690
      %v3050 = vunpack.c.l.b16 %v2691
      %v3051 = vunpack.c.l.b16 %v2692
      %v3052 = vunpack.c.l.b16 %v2693
      %v3053 = vunpack.c.l.b16 %v2694
      %v3054 = vunpack.c.l.b16 %v2695
      %v3055 = vunpack.c.l.b16 %v2696
      %v3056 = vunpack.c.l.b16 %v2697
      %v3057 = vunpack.c.l.b16 %v2698
      %v3058 = vunpack.c.l.b16 %v2699
      %v3059 = vunpack.c.l.b16 %v2700
      %v3060 = vunpack.c.l.b16 %v2701
      %v3061 = vunpack.c.l.b16 %v2702
      %v3062 = vunpack.c.l.b16 %v2703
      %v3063 = vunpack.c.l.b16 %v2704
      %v3064 = vunpack.c.l.b16 %v2705
      %v3065 = vunpack.c.l.b16 %v2706
      %v3066 = vunpack.c.l.b16 %v2707
      %v3067 = vunpack.c.l.b16 %v2708
      %v3068 = vunpack.c.l.b16 %v2709
      %v3069 = vunpack.c.l.b16 %v2710
      %v3070 = vpack.c.b16 %v3035, %v3034
      %v3071 = vpack.c.b16 %v3037, %v3036
      %v3072 = vpack.c.b16 %v3039, %v3038
      %v3073 = vpack.c.b16 %v3041, %v3040
      %v3074 = vpack.c.b16 %v3043, %v3042
      %v3075 = vpack.c.b16 %v3045, %v3044
      %v3076 = vpack.c.b16 %v3047, %v3046
      %v3077 = vpack.c.b16 %v3049, %v3048
      %v3078 = vpack.c.b16 %v3051, %v3050
      %v3079 = vpack.c.b16 %v3053, %v3052
      %v3080 = vpack.c.b16 %v3055, %v3054
      %v3081 = vpack.c.b16 %v3057, %v3056
      %v3082 = vpack.c.b16 %v3059, %v3058
      %v3083 = vpack.c.b16 %v3061, %v3060
      %v3084 = vpack.c.b16 %v3063, %v3062
      %v3085 = vpack.c.b16 %v3065, %v3064
      %v3086 = vpack.c.b16 %v3067, %v3066
      %v3087 = vpack.c.b16 %v3069, %v3068
      %v3106 = vcombine.low %v2884, %v2884
      %v3109 = vsel %vm591, %v2995, 0
      %3111 = vmatprep.subr.bf16.mxu0 0
      %3112 = vmatpush1.bf16.msra.mxu0 %v3070
      %3113 = vmatprep.subr.bf16.mxu0 0
      %3114 = vmatpush1.bf16.msra.mxu0 %v3071
      %3115 = vmatprep.subr.bf16.mxu0 0
      %3116 = vmatpush1.bf16.msra.mxu0 %v3072
      %3117 = vmatprep.subr.bf16.mxu0 0
      %3118 = vmatpush1.bf16.msra.mxu0 %v3073
      %3119 = vmatprep.subr.bf16.mxu0 0
      %3120 = vmatpush1.bf16.msra.mxu0 %v3074
      %3121 = vmatprep.subr.bf16.mxu0 0
      %3122 = vmatpush1.bf16.msra.mxu0 %v3075
      %3123 = vmatprep.subr.bf16.mxu0 0
      %3124 = vmatpush1.bf16.msra.mxu0 %v3076
      %3125 = vmatprep.subr.bf16.mxu0 0
      %3126 = vmatpush1.bf16.msra.mxu0 %v3077
      %3127 = vmatprep.subr.bf16.mxu0 0
      %3128 = vmatpush1.bf16.msra.mxu0 %v3078
      %3129 = vmatprep.subr.bf16.mxu0 0
      %3130 = vmatpush1.bf16.msra.mxu0 %v3079
      %3131 = vmatprep.subr.bf16.mxu0 0
      %3132 = vmatpush1.bf16.msra.mxu0 %v3080
      %3133 = vmatprep.subr.bf16.mxu0 0
      %3134 = vmatpush1.bf16.msra.mxu0 %v3081
      %3135 = vmatprep.subr.bf16.mxu0 0
      %3136 = vmatpush1.bf16.msra.mxu0 %v3082
      %3137 = vmatprep.subr.bf16.mxu0 0
      %3138 = vmatpush1.bf16.msra.mxu0 %v3083
      %3139 = vmatprep.subr.bf16.mxu0 0
      %3140 = vmatpush1.bf16.msra.mxu0 %v3084
      %3141 = vmatprep.subr.bf16.mxu0 0
      %3142 = vmatpush1.bf16.msra.mxu0 %v3085
      %3143 = vmatprep.mubr.bf16.mxu0 %v2994
      %3144 = vmatmul.mubr.bf16.gmra.mrb[0].mxu0 %v2993
      %v3145 = vpop.f32.mrb[0].mxu0
      %v3146 = vadd.f32 %v3106, %v3145
      %v3147 = vpop.f32.mrb[0].mxu0
      %v3148 = vpop.f32.mrb[0].mxu0
      %v3149 = vadd.f32 %v3106, %v3148
      %v3150 = vpop.f32.mrb[0].mxu0
      %3151 = vdwg.mxu0
      %3152 = vmatprep.subr.bf16.mxu0 0
      %3153 = vmatpush1.bf16.msra.mxu0 %v3086
      %3154 = vmatprep.subr.bf16.mxu0 0
      %3155 = vmatpush1.bf16.msra.mxu0 %v3087
      %3156 = vmatprep.subr.bf16.mxu0 0
      %3157 = vmatpush1.bf16.msra.mxu0 0
      %3158 = vmatprep.subr.bf16.mxu0 0
      %3159 = vmatpush1.bf16.msra.mxu0 0
      %3160 = vmatprep.subr.bf16.mxu0 0
      %3161 = vmatpush1.bf16.msra.mxu0 0
      %3162 = vmatprep.subr.bf16.mxu0 0
      %3163 = vmatpush1.bf16.msra.mxu0 0
      %3164 = vmatprep.subr.bf16.mxu0 0
      %3165 = vmatpush1.bf16.msra.mxu0 0
      %3166 = vmatprep.subr.bf16.mxu0 0
      %3167 = vmatpush1.bf16.msra.mxu0 0
      %3168 = vmatprep.subr.bf16.mxu0 0
      %3169 = vmatpush1.bf16.msra.mxu0 0
      %3170 = vmatprep.subr.bf16.mxu0 0
      %3171 = vmatpush1.bf16.msra.mxu0 0
      %3172 = vmatprep.subr.bf16.mxu0 0
      %3173 = vmatpush1.bf16.msra.mxu0 0
      %3174 = vmatprep.subr.bf16.mxu0 0
      %3175 = vmatpush1.bf16.msra.mxu0 0
      %3176 = vmatprep.subr.bf16.mxu0 0
      %3177 = vmatpush1.bf16.msra.mxu0 0
      %3178 = vmatprep.subr.bf16.mxu0 0
      %3179 = vmatpush1.bf16.msra.mxu0 0
      %3180 = vmatprep.subr.bf16.mxu0 0
      %3181 = vmatpush1.bf16.msra.mxu0 0
      %3182 = vmatprep.subr.bf16.mxu0 0
      %3183 = vmatpush1.bf16.msra.mxu0 0
      %3184 = vmatprep.mubr.bf16.mxu0 0
      %3185 = vmatmul.mubr.bf16.gmra.mrb[0].mxu0 %v3109
      %v3186 = vpop.f32.mrb[0].mxu0
      %v3187 = vadd.f32 %v3146, %v3186
      %v3188 = vpop.f32.mrb[0].mxu0
      %v3189 = vpop.f32.mrb[0].mxu0
      %v3190 = vadd.f32 %v3149, %v3189
      %v3191 = vpop.f32.mrb[0].mxu0
      %3192 = vdwg.mxu0
      %v3195 = vcombine.high %v3187, %v3187
      %v3196 = vcombine.high %v3190, %v3190
      %vm3199 = vcmp.gt.f32.partialorder %v3187, 0.0
      %vm3200 = vcmp.gt.f32.partialorder %v3195, 0.0
      %vm3201 = vcmp.gt.f32.partialorder %v3190, 0.0
      %vm3202 = vcmp.gt.f32.partialorder %v3196, 0.0
      %v3203 = vmul.f32 %v3187, 0.2
      %v3204 = vmul.f32 %v3195, 0.2
      %v3205 = vmul.f32 %v3190, 0.2
      %v3206 = vmul.f32 %v3196, 0.2
      %v3207 = vsel %vm3199, %v3187, %v3203
      %v3208 = vsel %vm3200, %v3195, %v3204
      %v3209 = vsel %vm3201, %v3190, %v3205
      %v3210 = vsel %vm3202, %v3196, %v3206
      %3211 = vst.msk [vmem:[%s2120 + $0x1] sm:$0xf] %vm1574, %v3207
      %3212 = vst.msk [vmem:[%s2120 + $0x9] sm:$0xf] %vm1574, %v3208
      %3213 = vst.msk [vmem:[%s2120 + $0x11] sm:$0xf] %vm1574, %v3209
      %3214 = vst.msk [vmem:[%s2120 + $0x19] sm:$0xf] %vm1574, %v3210
      %v3215 = vld [vmem:[%s10] sm:$0xf]
      %v3216 = vld [vmem:[%s10 + $0x4] sm:$0xf]
      %v3217 = vld [vmem:[%s10 + $0x8] sm:$0xf]
      %v3218 = vld [vmem:[%s10 + $0xc] sm:$0xf]
      %v3219 = vld [vmem:[%s10 + $0x10] sm:$0xf]
      %v3220 = vld [vmem:[%s10 + $0x14] sm:$0xf]
      %v3221 = vld [vmem:[%s10 + $0x18] sm:$0xf]
      %v3222 = vld [vmem:[%s10 + $0x1c] sm:$0xf]
      %v3223 = vld [vmem:[%s10 + $0x20] sm:$0xf]
      %v3224 = vld [vmem:[%s10 + $0x24] sm:$0xf]
      %v3225 = vld [vmem:[%s10 + $0x28] sm:$0xf]
      %v3226 = vld [vmem:[%s10 + $0x2c] sm:$0xf]
      %v3227 = vld [vmem:[%s10 + $0x30] sm:$0xf]
      %v3228 = vld [vmem:[%s10 + $0x34] sm:$0xf]
      %v3229 = vld [vmem:[%s10 + $0x38] sm:$0xf]
      %v3230 = vld [vmem:[%s10 + $0x3c] sm:$0xf]
      %v3231 = vld [vmem:[%s10 + $0x40] sm:$0xf]
      %v3232 = vld [vmem:[%s10 + $0x44] sm:$0xf]
      %v3233 = vld [vmem:[%s10 + $0x48] sm:$0xf]
      %v3234 = vld [vmem:[%s10 + $0x4c] sm:$0xf]
      %v3235 = vld [vmem:[%s10 + $0x50] sm:$0xf]
      %v3236 = vld [vmem:[%s10 + $0x54] sm:$0xf]
      %v3237 = vld [vmem:[%s10 + $0x58] sm:$0xf]
      %v3238 = vld [vmem:[%s10 + $0x5c] sm:$0xf]
      %v3239 = vld [vmem:[%s10 + $0x60] sm:$0xf]
      %v3240 = vld [vmem:[%s10 + $0x64] sm:$0xf]
      %v3241 = vld [vmem:[%s10 + $0x68] sm:$0xf]
      %v3242 = vld [vmem:[%s10 + $0x6c] sm:$0xf]
      %v3243 = vld [vmem:[%s10 + $0x70] sm:$0xf]
      %v3244 = vld [vmem:[%s10 + $0x74] sm:$0xf]
      %v3245 = vld [vmem:[%s10 + $0x78] sm:$0xf]
      %v3246 = vld [vmem:[%s10 + $0x7c] sm:$0xf]
      %v3247 = vld [vmem:[%s10 + $0x80] sm:$0xf]
      %v3248 = vld [vmem:[%s10 + $0x84] sm:$0xf]
      %v3249 = vld [vmem:[%s10 + $0x88] sm:$0xf]
      %v3250 = vld [vmem:[%s10 + $0x8c] sm:$0xf]
      %v3251 = vld [vmem:[%s11] sm:$0x1]
      %v3252 = vld [vmem:[%s2162] sm:$0xf]
      %v3253 = vld [vmem:[%s2162 + $0x8] sm:$0xf]
      %v3254 = vld [vmem:[%s2162 + $0x10] sm:$0xf]
      %v3255 = vld [vmem:[%s2162 + $0x18] sm:$0xf]
      %v3256 = vld [vmem:[%s2162 + $0x1] sm:$0xf]
      %v3257 = vld [vmem:[%s2162 + $0x9] sm:$0xf]
      %v3258 = vld [vmem:[%s2162 + $0x11] sm:$0xf]
      %v3259 = vld [vmem:[%s2162 + $0x19] sm:$0xf]
      %v3260 = vld [vmem:[%s2162 + $0x2] sm:$0xf]
      %v3261 = vld [vmem:[%s2162 + $0xa] sm:$0xf]
      %v3262 = vld [vmem:[%s2162 + $0x12] sm:$0xf]
      %v3263 = vld [vmem:[%s2162 + $0x1a] sm:$0xf]
      %v3264 = vld [vmem:[%s2120] sm:$0xf]
      %v3265 = vld [vmem:[%s2120 + $0x8] sm:$0xf]
      %v3266 = vld [vmem:[%s2120 + $0x10] sm:$0xf]
      %v3267 = vld [vmem:[%s2120 + $0x18] sm:$0xf]
      %v3268 = vld [vmem:[%s2120 + $0x1] sm:$0xf]
      %v3269 = vld [vmem:[%s2120 + $0x9] sm:$0xf]
      %v3270 = vld [vmem:[%s2120 + $0x11] sm:$0xf]
      %v3271 = vld [vmem:[%s2120 + $0x19] sm:$0xf]
      %v3272 = vld [vmem:[%s2120 + $0x2] sm:$0xf]
      %v3273 = vld [vmem:[%s2120 + $0xa] sm:$0xf]
      %v3274 = vld [vmem:[%s2120 + $0x12] sm:$0xf]
      %v3275 = vld [vmem:[%s2120 + $0x1a] sm:$0xf]
      %v3276 = vld [vmem:[%s2187] sm:$0xf]
      %v3277 = vld [vmem:[%s2187 + $0x8] sm:$0xf]
      %v3278 = vld [vmem:[%s2187 + $0x10] sm:$0xf]
      %v3279 = vld [vmem:[%s2187 + $0x18] sm:$0xf]
      %v3280 = vld [vmem:[%s2187 + $0x1] sm:$0xf]
      %v3281 = vld [vmem:[%s2187 + $0x9] sm:$0xf]
      %v3282 = vld [vmem:[%s2187 + $0x11] sm:$0xf]
      %v3283 = vld [vmem:[%s2187 + $0x19] sm:$0xf]
      %v3284 = vld [vmem:[%s2187 + $0x2] sm:$0xf]
      %v3285 = vld [vmem:[%s2187 + $0xa] sm:$0xf]
      %v3286 = vld [vmem:[%s2187 + $0x12] sm:$0xf]
      %v3287 = vld [vmem:[%s2187 + $0x1a] sm:$0xf]
      %3292 = vrot.lane.b32.xlu0 %v3256, 32
      %v3293 = vpop.permute.xlu0 %3292
      %3294 = vrot.lane.b32.xlu0 %v3257, 32
      %v3295 = vpop.permute.xlu0 %3294
      %3296 = vrot.lane.b32.xlu0 %v3258, 32
      %v3297 = vpop.permute.xlu0 %3296
      %3298 = vrot.lane.b32.xlu0 %v3259, 32
      %v3299 = vpop.permute.xlu0 %3298
      %3308 = vrot.lane.b32.xlu0 %v3260, 64
      %v3309 = vpop.permute.xlu0 %3308
      %3310 = vrot.lane.b32.xlu0 %v3261, 64
      %v3311 = vpop.permute.xlu0 %3310
      %3312 = vrot.lane.b32.xlu0 %v3262, 64
      %v3313 = vpop.permute.xlu0 %3312
      %3314 = vrot.lane.b32.xlu0 %v3263, 64
      %v3315 = vpop.permute.xlu0 %3314
      %3324 = vrot.lane.b32.xlu0 %v3264, 96
      %v3325 = vpop.permute.xlu0 %3324
      %3326 = vrot.lane.b32.xlu0 %v3265, 96
      %v3327 = vpop.permute.xlu0 %3326
      %3328 = vrot.lane.b32.xlu0 %v3266, 96
      %v3329 = vpop.permute.xlu0 %3328
      %3330 = vrot.lane.b32.xlu0 %v3267, 96
      %v3331 = vpop.permute.xlu0 %3330
      %3340 = vrot.lane.b32.xlu0 %v3272, 32
      %v3341 = vpop.permute.xlu0 %3340
      %3342 = vrot.lane.b32.xlu0 %v3273, 32
      %v3343 = vpop.permute.xlu0 %3342
      %3344 = vrot.lane.b32.xlu0 %v3274, 32
      %v3345 = vpop.permute.xlu0 %3344
      %3346 = vrot.lane.b32.xlu0 %v3275, 32
      %v3347 = vpop.permute.xlu0 %3346
      %3356 = vrot.lane.b32.xlu0 %v3276, 64
      %v3357 = vpop.permute.xlu0 %3356
      %3358 = vrot.lane.b32.xlu0 %v3277, 64
      %v3359 = vpop.permute.xlu0 %3358
      %3360 = vrot.lane.b32.xlu0 %v3278, 64
      %v3361 = vpop.permute.xlu0 %3360
      %3362 = vrot.lane.b32.xlu0 %v3279, 64
      %v3363 = vpop.permute.xlu0 %3362
      %3372 = vrot.lane.b32.xlu0 %v3280, 96
      %v3373 = vpop.permute.xlu0 %3372
      %3374 = vrot.lane.b32.xlu0 %v3281, 96
      %v3375 = vpop.permute.xlu0 %3374
      %3376 = vrot.lane.b32.xlu0 %v3282, 96
      %v3377 = vpop.permute.xlu0 %3376
      %3378 = vrot.lane.b32.xlu0 %v3283, 96
      %v3379 = vpop.permute.xlu0 %3378
      %v3384 = vsel %vm591, %v3252, %v3293
      %v3385 = vsel %vm591, %v3253, %v3295
      %v3386 = vsel %vm591, %v3254, %v3297
      %v3387 = vsel %vm591, %v3255, %v3299
      %v3388 = vsel %vm987, %v3384, %v3309
      %v3389 = vsel %vm987, %v3385, %v3311
      %v3390 = vsel %vm987, %v3386, %v3313
      %v3391 = vsel %vm987, %v3387, %v3315
      %v3392 = vsel %vm1760, %v3388, %v3325
      %v3393 = vsel %vm1760, %v3389, %v3327
      %v3394 = vsel %vm1760, %v3390, %v3329
      %v3395 = vsel %vm1760, %v3391, %v3331
      %v3396 = vsel %vm591, %v3268, %v3341
      %v3397 = vsel %vm591, %v3269, %v3343
      %v3398 = vsel %vm591, %v3270, %v3345
      %v3399 = vsel %vm591, %v3271, %v3347
      %v3400 = vsel %vm987, %v3396, %v3357
      %v3401 = vsel %vm987, %v3397, %v3359
      %v3402 = vsel %vm987, %v3398, %v3361
      %v3403 = vsel %vm987, %v3399, %v3363
      %v3404 = vsel %vm1760, %v3400, %v3373
      %v3405 = vsel %vm1760, %v3401, %v3375
      %v3406 = vsel %vm1760, %v3402, %v3377
      %v3407 = vsel %vm1760, %v3403, %v3379
      %v3408 = vpack.c.bf16 %v3392, %v3392
      %v3409 = vpack.c.bf16 %v3404, %v3404
      %v3410 = vpack.c.bf16 %v3284, %v3284
      %v3411 = vpack.c.bf16 %v3393, %v3393
      %v3412 = vpack.c.bf16 %v3405, %v3405
      %v3413 = vpack.c.bf16 %v3285, %v3285
      %v3414 = vpack.c.bf16 %v3394, %v3394
      %v3415 = vpack.c.bf16 %v3406, %v3406
      %v3416 = vpack.c.bf16 %v3286, %v3286
      %v3417 = vpack.c.bf16 %v3395, %v3395
      %v3418 = vpack.c.bf16 %v3407, %v3407
      %v3419 = vpack.c.bf16 %v3287, %v3287
      %v3421 = vlaneseq
      %v3422 = vshrl.u32 %v3421, 7
      %v3423 = vsub.s32 0, %v3422
      %v3424 = vrot.slane %v3251, %v3423
      %v3437 = vcombine.low %v3408, %v3409
      %v3439 = vunpack.c.l.s4 1983009808
      %v3440 = vunpack.c.0.s8 %v3439
      %v3441 = vlaneseq
      %v3442 = vshrl.u32 %v3441, 7
      %v3443 = vsub.s32 %v3440, %v3442
      %v3444 = vrot.slane %v3437, %v3443
      %v3446 = vunpack.c.l.s4 1983009808
      %v3447 = vunpack.c.0.s8 %v3446
      %v3448 = vlaneseq
      %v3449 = vshrl.u32 %v3448, 7
      %v3450 = vsub.s32 %v3447, %v3449
      %v3451 = vrot.slane %v3410, %v3450
      %v3452 = vcombine.low %v3444, %v3451
      %v3453 = vcombine.low %v3411, %v3412
      %v3455 = vunpack.c.l.s4 1983009808
      %v3456 = vunpack.c.0.s8 %v3455
      %v3457 = vlaneseq
      %v3458 = vshrl.u32 %v3457, 7
      %v3459 = vsub.s32 %v3456, %v3458
      %v3460 = vrot.slane %v3453, %v3459
      %v3462 = vunpack.c.l.s4 1983009808
      %v3463 = vunpack.c.0.s8 %v3462
      %v3464 = vlaneseq
      %v3465 = vshrl.u32 %v3464, 7
      %v3466 = vsub.s32 %v3463, %v3465
      %v3467 = vrot.slane %v3413, %v3466
      %v3468 = vcombine.low %v3460, %v3467
      %v3469 = vcombine.low %v3414, %v3415
      %v3471 = vunpack.c.l.s4 1983009808
      %v3472 = vunpack.c.0.s8 %v3471
      %v3473 = vlaneseq
      %v3474 = vshrl.u32 %v3473, 7
      %v3475 = vsub.s32 %v3472, %v3474
      %v3476 = vrot.slane %v3469, %v3475
      %v3478 = vunpack.c.l.s4 1983009808
      %v3479 = vunpack.c.0.s8 %v3478
      %v3480 = vlaneseq
      %v3481 = vshrl.u32 %v3480, 7
      %v3482 = vsub.s32 %v3479, %v3481
      %v3483 = vrot.slane %v3416, %v3482
      %v3484 = vcombine.low %v3476, %v3483
      %v3485 = vcombine.low %v3417, %v3418
      %v3487 = vunpack.c.l.s4 1983009808
      %v3488 = vunpack.c.0.s8 %v3487
      %v3489 = vlaneseq
      %v3490 = vshrl.u32 %v3489, 7
      %v3491 = vsub.s32 %v3488, %v3490
      %v3492 = vrot.slane %v3485, %v3491
      %v3494 = vunpack.c.l.s4 1983009808
      %v3495 = vunpack.c.0.s8 %v3494
      %v3496 = vlaneseq
      %v3497 = vshrl.u32 %v3496, 7
      %v3498 = vsub.s32 %v3495, %v3497
      %v3499 = vrot.slane %v3419, %v3498
      %v3500 = vcombine.low %v3492, %v3499
      %v3501 = vcombine.low %v3452, %v3468
      %v3502 = vcombine.high %v3452, %v3468
      %v3503 = vcombine.low %v3484, %v3500
      %v3504 = vcombine.high %v3484, %v3500
      %v3506 = vunpack.c.l.s4 1983009808
      %v3507 = vunpack.c.0.s8 %v3506
      %v3508 = vlaneseq
      %v3509 = vshrl.u32 %v3508, 7
      %v3510 = vsub.s32 %v3507, %v3509
      %v3511 = vrot.slane %v3501, %v3510
      %v3513 = vunpack.c.l.s4 1983009808
      %v3514 = vunpack.c.0.s8 %v3513
      %v3515 = vlaneseq
      %v3516 = vshrl.u32 %v3515, 7
      %v3517 = vsub.s32 %v3514, %v3516
      %v3518 = vrot.slane %v3502, %v3517
      %v3520 = vunpack.c.l.s4 1983009808
      %v3521 = vunpack.c.0.s8 %v3520
      %v3522 = vlaneseq
      %v3523 = vshrl.u32 %v3522, 7
      %v3524 = vsub.s32 %v3521, %v3523
      %v3525 = vrot.slane %v3503, %v3524
      %v3527 = vunpack.c.l.s4 1983009808
      %v3528 = vunpack.c.0.s8 %v3527
      %v3529 = vlaneseq
      %v3530 = vshrl.u32 %v3529, 7
      %v3531 = vsub.s32 %v3528, %v3530
      %v3532 = vrot.slane %v3504, %v3531
      %v3533 = vcombine.low %v3511, %v3525
      %v3534 = vcombine.high %v3511, %v3525
      %v3535 = vcombine.low %v3518, %v3532
      %v3574 = vunpack.c.l.b16 %v3215
      %v3575 = vunpack.c.l.b16 %v3216
      %v3576 = vunpack.c.l.b16 %v3217
      %v3577 = vunpack.c.l.b16 %v3218
      %v3578 = vunpack.c.l.b16 %v3219
      %v3579 = vunpack.c.l.b16 %v3220
      %v3580 = vunpack.c.l.b16 %v3221
      %v3581 = vunpack.c.l.b16 %v3222
      %v3582 = vunpack.c.l.b16 %v3223
      %v3583 = vunpack.c.l.b16 %v3224
      %v3584 = vunpack.c.l.b16 %v3225
      %v3585 = vunpack.c.l.b16 %v3226
      %v3586 = vunpack.c.l.b16 %v3227
      %v3587 = vunpack.c.l.b16 %v3228
      %v3588 = vunpack.c.l.b16 %v3229
      %v3589 = vunpack.c.l.b16 %v3230
      %v3590 = vunpack.c.l.b16 %v3231
      %v3591 = vunpack.c.l.b16 %v3232
      %v3592 = vunpack.c.l.b16 %v3233
      %v3593 = vunpack.c.l.b16 %v3234
      %v3594 = vunpack.c.l.b16 %v3235
      %v3595 = vunpack.c.l.b16 %v3236
      %v3596 = vunpack.c.l.b16 %v3237
      %v3597 = vunpack.c.l.b16 %v3238
      %v3598 = vunpack.c.l.b16 %v3239
      %v3599 = vunpack.c.l.b16 %v3240
      %v3600 = vunpack.c.l.b16 %v3241
      %v3601 = vunpack.c.l.b16 %v3242
      %v3602 = vunpack.c.l.b16 %v3243
      %v3603 = vunpack.c.l.b16 %v3244
      %v3604 = vunpack.c.l.b16 %v3245
      %v3605 = vunpack.c.l.b16 %v3246
      %v3606 = vunpack.c.l.b16 %v3247
      %v3607 = vunpack.c.l.b16 %v3248
      %v3608 = vunpack.c.l.b16 %v3249
      %v3609 = vunpack.c.l.b16 %v3250
      %v3610 = vpack.c.b16 %v3575, %v3574
      %v3611 = vpack.c.b16 %v3577, %v3576
      %v3612 = vpack.c.b16 %v3579, %v3578
      %v3613 = vpack.c.b16 %v3581, %v3580
      %v3614 = vpack.c.b16 %v3583, %v3582
      %v3615 = vpack.c.b16 %v3585, %v3584
      %v3616 = vpack.c.b16 %v3587, %v3586
      %v3617 = vpack.c.b16 %v3589, %v3588
      %v3618 = vpack.c.b16 %v3591, %v3590
      %v3619 = vpack.c.b16 %v3593, %v3592
      %v3620 = vpack.c.b16 %v3595, %v3594
      %v3621 = vpack.c.b16 %v3597, %v3596
      %v3622 = vpack.c.b16 %v3599, %v3598
      %v3623 = vpack.c.b16 %v3601, %v3600
      %v3624 = vpack.c.b16 %v3603, %v3602
      %v3625 = vpack.c.b16 %v3605, %v3604
      %v3626 = vpack.c.b16 %v3607, %v3606
      %v3627 = vpack.c.b16 %v3609, %v3608
      %v3646 = vcombine.low %v3424, %v3424
      %v3649 = vsel %vm591, %v3535, 0
      %3651 = vmatprep.subr.bf16.mxu0 0
      %3652 = vmatpush1.bf16.msra.mxu0 %v3610
      %3653 = vmatprep.subr.bf16.mxu0 0
      %3654 = vmatpush1.bf16.msra.mxu0 %v3611
      %3655 = vmatprep.subr.bf16.mxu0 0
      %3656 = vmatpush1.bf16.msra.mxu0 %v3612
      %3657 = vmatprep.subr.bf16.mxu0 0
      %3658 = vmatpush1.bf16.msra.mxu0 %v3613
      %3659 = vmatprep.subr.bf16.mxu0 0
      %3660 = vmatpush1.bf16.msra.mxu0 %v3614
      %3661 = vmatprep.subr.bf16.mxu0 0
      %3662 = vmatpush1.bf16.msra.mxu0 %v3615
      %3663 = vmatprep.subr.bf16.mxu0 0
      %3664 = vmatpush1.bf16.msra.mxu0 %v3616
      %3665 = vmatprep.subr.bf16.mxu0 0
      %3666 = vmatpush1.bf16.msra.mxu0 %v3617
      %3667 = vmatprep.subr.bf16.mxu0 0
      %3668 = vmatpush1.bf16.msra.mxu0 %v3618
      %3669 = vmatprep.subr.bf16.mxu0 0
      %3670 = vmatpush1.bf16.msra.mxu0 %v3619
      %3671 = vmatprep.subr.bf16.mxu0 0
      %3672 = vmatpush1.bf16.msra.mxu0 %v3620
      %3673 = vmatprep.subr.bf16.mxu0 0
      %3674 = vmatpush1.bf16.msra.mxu0 %v3621
      %3675 = vmatprep.subr.bf16.mxu0 0
      %3676 = vmatpush1.bf16.msra.mxu0 %v3622
      %3677 = vmatprep.subr.bf16.mxu0 0
      %3678 = vmatpush1.bf16.msra.mxu0 %v3623
      %3679 = vmatprep.subr.bf16.mxu0 0
      %3680 = vmatpush1.bf16.msra.mxu0 %v3624
      %3681 = vmatprep.subr.bf16.mxu0 0
      %3682 = vmatpush1.bf16.msra.mxu0 %v3625
      %3683 = vmatprep.mubr.bf16.mxu0 %v3534
      %3684 = vmatmul.mubr.bf16.gmra.mrb[0].mxu0 %v3533
      %v3685 = vpop.f32.mrb[0].mxu0
      %v3686 = vadd.f32 %v3646, %v3685
      %v3687 = vpop.f32.mrb[0].mxu0
      %v3688 = vpop.f32.mrb[0].mxu0
      %v3689 = vadd.f32 %v3646, %v3688
      %v3690 = vpop.f32.mrb[0].mxu0
      %3691 = vdwg.mxu0
      %3692 = vmatprep.subr.bf16.mxu0 0
      %3693 = vmatpush1.bf16.msra.mxu0 %v3626
      %3694 = vmatprep.subr.bf16.mxu0 0
      %3695 = vmatpush1.bf16.msra.mxu0 %v3627
      %3696 = vmatprep.subr.bf16.mxu0 0
      %3697 = vmatpush1.bf16.msra.mxu0 0
      %3698 = vmatprep.subr.bf16.mxu0 0
      %3699 = vmatpush1.bf16.msra.mxu0 0
      %3700 = vmatprep.subr.bf16.mxu0 0
      %3701 = vmatpush1.bf16.msra.mxu0 0
      %3702 = vmatprep.subr.bf16.mxu0 0
      %3703 = vmatpush1.bf16.msra.mxu0 0
      %3704 = vmatprep.subr.bf16.mxu0 0
      %3705 = vmatpush1.bf16.msra.mxu0 0
      %3706 = vmatprep.subr.bf16.mxu0 0
      %3707 = vmatpush1.bf16.msra.mxu0 0
      %3708 = vmatprep.subr.bf16.mxu0 0
      %3709 = vmatpush1.bf16.msra.mxu0 0
      %3710 = vmatprep.subr.bf16.mxu0 0
      %3711 = vmatpush1.bf16.msra.mxu0 0
      %3712 = vmatprep.subr.bf16.mxu0 0
      %3713 = vmatpush1.bf16.msra.mxu0 0
      %3714 = vmatprep.subr.bf16.mxu0 0
      %3715 = vmatpush1.bf16.msra.mxu0 0
      %3716 = vmatprep.subr.bf16.mxu0 0
      %3717 = vmatpush1.bf16.msra.mxu0 0
      %3718 = vmatprep.subr.bf16.mxu0 0
      %3719 = vmatpush1.bf16.msra.mxu0 0
      %3720 = vmatprep.subr.bf16.mxu0 0
      %3721 = vmatpush1.bf16.msra.mxu0 0
      %3722 = vmatprep.subr.bf16.mxu0 0
      %3723 = vmatpush1.bf16.msra.mxu0 0
      %3724 = vmatprep.mubr.bf16.mxu0 0
      %3725 = vmatmul.mubr.bf16.gmra.mrb[0].mxu0 %v3649
      %v3726 = vpop.f32.mrb[0].mxu0
      %v3727 = vadd.f32 %v3686, %v3726
      %v3728 = vpop.f32.mrb[0].mxu0
      %v3729 = vpop.f32.mrb[0].mxu0
      %v3730 = vadd.f32 %v3689, %v3729
      %v3731 = vpop.f32.mrb[0].mxu0
      %3732 = vdwg.mxu0
      %v3735 = vcombine.high %v3727, %v3727
      %v3736 = vcombine.high %v3730, %v3730
      %v3739 = vld [vmem:[%s1573 + $0x1] sm:$0xf]
      %v3740 = vld [vmem:[%s1573 + $0x9] sm:$0xf]
      %v3741 = vld [vmem:[%s1573 + $0x11] sm:$0xf]
      %v3742 = vld [vmem:[%s1573 + $0x19] sm:$0xf]
      %v3743 = vadd.f32 %v3727, %v3739
      %v3744 = vadd.f32 %v3735, %v3740
      %v3745 = vadd.f32 %v3730, %v3741
      %v3746 = vadd.f32 %v3736, %v3742
      %vm3747 = vcmp.gt.f32.partialorder %v3743, 0.0
      %vm3748 = vcmp.gt.f32.partialorder %v3744, 0.0
      %vm3749 = vcmp.gt.f32.partialorder %v3745, 0.0
      %vm3750 = vcmp.gt.f32.partialorder %v3746, 0.0
      %v3751 = vmul.f32 %v3743, 0.2
      %v3752 = vmul.f32 %v3744, 0.2
      %v3753 = vmul.f32 %v3745, 0.2
      %v3754 = vmul.f32 %v3746, 0.2
      %v3755 = vsel %vm3747, %v3743, %v3751
      %v3756 = vsel %vm3748, %v3744, %v3752
      %v3757 = vsel %vm3749, %v3745, %v3753
      %v3758 = vsel %vm3750, %v3746, %v3754
      %3759 = vst.msk [vmem:[%s1573 + $0x1] sm:$0xf] %vm1574, %v3755
      %3760 = vst.msk [vmem:[%s1573 + $0x9] sm:$0xf] %vm1574, %v3756
      %3761 = vst.msk [vmem:[%s1573 + $0x11] sm:$0xf] %vm1574, %v3757
      %3762 = vst.msk [vmem:[%s1573 + $0x19] sm:$0xf] %vm1574, %v3758
      %v3763 = vld [vmem:[%s12] sm:$0xf]
      %v3764 = vld [vmem:[%s12 + $0x4] sm:$0xf]
      %v3765 = vld [vmem:[%s12 + $0x8] sm:$0xf]
      %v3766 = vld [vmem:[%s12 + $0xc] sm:$0xf]
      %v3767 = vld [vmem:[%s12 + $0x10] sm:$0xf]
      %v3768 = vld [vmem:[%s12 + $0x14] sm:$0xf]
      %v3769 = vld [vmem:[%s12 + $0x18] sm:$0xf]
      %v3770 = vld [vmem:[%s12 + $0x1c] sm:$0xf]
      %v3771 = vld [vmem:[%s12 + $0x20] sm:$0xf]
      %v3772 = vld [vmem:[%s12 + $0x24] sm:$0xf]
      %v3773 = vld [vmem:[%s12 + $0x28] sm:$0xf]
      %v3774 = vld [vmem:[%s12 + $0x2c] sm:$0xf]
      %v3775 = vld [vmem:[%s12 + $0x30] sm:$0xf]
      %v3776 = vld [vmem:[%s12 + $0x34] sm:$0xf]
      %v3777 = vld [vmem:[%s12 + $0x38] sm:$0xf]
      %v3778 = vld [vmem:[%s12 + $0x3c] sm:$0xf]
      %v3779 = vld [vmem:[%s12 + $0x40] sm:$0xf]
      %v3780 = vld [vmem:[%s12 + $0x44] sm:$0xf]
      %v3781 = vld [vmem:[%s12 + $0x48] sm:$0xf]
      %v3782 = vld [vmem:[%s12 + $0x4c] sm:$0xf]
      %v3783 = vld [vmem:[%s12 + $0x50] sm:$0xf]
      %v3784 = vld [vmem:[%s12 + $0x54] sm:$0xf]
      %v3785 = vld [vmem:[%s12 + $0x58] sm:$0xf]
      %v3786 = vld [vmem:[%s12 + $0x5c] sm:$0xf]
      %v3787 = vld [vmem:[%s12 + $0x60] sm:$0xf]
      %v3788 = vld [vmem:[%s12 + $0x64] sm:$0xf]
      %v3789 = vld [vmem:[%s12 + $0x68] sm:$0xf]
      %v3790 = vld [vmem:[%s12 + $0x6c] sm:$0xf]
      %v3791 = vld [vmem:[%s12 + $0x70] sm:$0xf]
      %v3792 = vld [vmem:[%s12 + $0x74] sm:$0xf]
      %v3793 = vld [vmem:[%s12 + $0x78] sm:$0xf]
      %v3794 = vld [vmem:[%s12 + $0x7c] sm:$0xf]
      %v3795 = vld [vmem:[%s12 + $0x80] sm:$0xf]
      %v3796 = vld [vmem:[%s12 + $0x84] sm:$0xf]
      %v3797 = vld [vmem:[%s12 + $0x88] sm:$0xf]
      %v3798 = vld [vmem:[%s12 + $0x8c] sm:$0xf]
      %v3799 = vld [vmem:[%s13] sm:$0x1]
      %v3800 = vld [vmem:[%s1617] sm:$0xf]
      %v3801 = vld [vmem:[%s1617 + $0x8] sm:$0xf]
      %v3802 = vld [vmem:[%s1617 + $0x10] sm:$0xf]
      %v3803 = vld [vmem:[%s1617 + $0x18] sm:$0xf]
      %v3804 = vld [vmem:[%s1617 + $0x1] sm:$0xf]
      %v3805 = vld [vmem:[%s1617 + $0x9] sm:$0xf]
      %v3806 = vld [vmem:[%s1617 + $0x11] sm:$0xf]
      %v3807 = vld [vmem:[%s1617 + $0x19] sm:$0xf]
      %v3808 = vld [vmem:[%s1617 + $0x2] sm:$0xf]
      %v3809 = vld [vmem:[%s1617 + $0xa] sm:$0xf]
      %v3810 = vld [vmem:[%s1617 + $0x12] sm:$0xf]
      %v3811 = vld [vmem:[%s1617 + $0x1a] sm:$0xf]
      %v3812 = vld [vmem:[%s1573] sm:$0xf]
      %v3813 = vld [vmem:[%s1573 + $0x8] sm:$0xf]
      %v3814 = vld [vmem:[%s1573 + $0x10] sm:$0xf]
      %v3815 = vld [vmem:[%s1573 + $0x18] sm:$0xf]
      %v3816 = vld [vmem:[%s1573 + $0x1] sm:$0xf]
      %v3817 = vld [vmem:[%s1573 + $0x9] sm:$0xf]
      %v3818 = vld [vmem:[%s1573 + $0x11] sm:$0xf]
      %v3819 = vld [vmem:[%s1573 + $0x19] sm:$0xf]
      %v3820 = vld [vmem:[%s1573 + $0x2] sm:$0xf]
      %v3821 = vld [vmem:[%s1573 + $0xa] sm:$0xf]
      %v3822 = vld [vmem:[%s1573 + $0x12] sm:$0xf]
      %v3823 = vld [vmem:[%s1573 + $0x1a] sm:$0xf]
      %v3824 = vld [vmem:[%s1643] sm:$0xf]
      %v3825 = vld [vmem:[%s1643 + $0x8] sm:$0xf]
      %v3826 = vld [vmem:[%s1643 + $0x10] sm:$0xf]
      %v3827 = vld [vmem:[%s1643 + $0x18] sm:$0xf]
      %v3828 = vld [vmem:[%s1643 + $0x1] sm:$0xf]
      %v3829 = vld [vmem:[%s1643 + $0x9] sm:$0xf]
      %v3830 = vld [vmem:[%s1643 + $0x11] sm:$0xf]
      %v3831 = vld [vmem:[%s1643 + $0x19] sm:$0xf]
      %v3832 = vld [vmem:[%s1643 + $0x2] sm:$0xf]
      %v3833 = vld [vmem:[%s1643 + $0xa] sm:$0xf]
      %v3834 = vld [vmem:[%s1643 + $0x12] sm:$0xf]
      %v3835 = vld [vmem:[%s1643 + $0x1a] sm:$0xf]
      %3840 = vrot.lane.b32.xlu0 %v3804, 32
      %v3841 = vpop.permute.xlu0 %3840
      %3842 = vrot.lane.b32.xlu0 %v3805, 32
      %v3843 = vpop.permute.xlu0 %3842
      %3844 = vrot.lane.b32.xlu0 %v3806, 32
      %v3845 = vpop.permute.xlu0 %3844
      %3846 = vrot.lane.b32.xlu0 %v3807, 32
      %v3847 = vpop.permute.xlu0 %3846
      %3856 = vrot.lane.b32.xlu0 %v3808, 64
      %v3857 = vpop.permute.xlu0 %3856
      %3858 = vrot.lane.b32.xlu0 %v3809, 64
      %v3859 = vpop.permute.xlu0 %3858
      %3860 = vrot.lane.b32.xlu0 %v3810, 64
      %v3861 = vpop.permute.xlu0 %3860
      %3862 = vrot.lane.b32.xlu0 %v3811, 64
      %v3863 = vpop.permute.xlu0 %3862
      %3872 = vrot.lane.b32.xlu0 %v3812, 96
      %v3873 = vpop.permute.xlu0 %3872
      %3874 = vrot.lane.b32.xlu0 %v3813, 96
      %v3875 = vpop.permute.xlu0 %3874
      %3876 = vrot.lane.b32.xlu0 %v3814, 96
      %v3877 = vpop.permute.xlu0 %3876
      %3878 = vrot.lane.b32.xlu0 %v3815, 96
      %v3879 = vpop.permute.xlu0 %3878
      %3888 = vrot.lane.b32.xlu0 %v3820, 32
      %v3889 = vpop.permute.xlu0 %3888
      %3890 = vrot.lane.b32.xlu0 %v3821, 32
      %v3891 = vpop.permute.xlu0 %3890
      %3892 = vrot.lane.b32.xlu0 %v3822, 32
      %v3893 = vpop.permute.xlu0 %3892
      %3894 = vrot.lane.b32.xlu0 %v3823, 32
      %v3895 = vpop.permute.xlu0 %3894
      %3904 = vrot.lane.b32.xlu0 %v3824, 64
      %v3905 = vpop.permute.xlu0 %3904
      %3906 = vrot.lane.b32.xlu0 %v3825, 64
      %v3907 = vpop.permute.xlu0 %3906
      %3908 = vrot.lane.b32.xlu0 %v3826, 64
      %v3909 = vpop.permute.xlu0 %3908
      %3910 = vrot.lane.b32.xlu0 %v3827, 64
      %v3911 = vpop.permute.xlu0 %3910
      %3920 = vrot.lane.b32.xlu0 %v3828, 96
      %v3921 = vpop.permute.xlu0 %3920
      %3922 = vrot.lane.b32.xlu0 %v3829, 96
      %v3923 = vpop.permute.xlu0 %3922
      %3924 = vrot.lane.b32.xlu0 %v3830, 96
      %v3925 = vpop.permute.xlu0 %3924
      %3926 = vrot.lane.b32.xlu0 %v3831, 96
      %v3927 = vpop.permute.xlu0 %3926
      %v3932 = vsel %vm591, %v3800, %v3841
      %v3933 = vsel %vm591, %v3801, %v3843
      %v3934 = vsel %vm591, %v3802, %v3845
      %v3935 = vsel %vm591, %v3803, %v3847
      %v3936 = vsel %vm987, %v3932, %v3857
      %v3937 = vsel %vm987, %v3933, %v3859
      %v3938 = vsel %vm987, %v3934, %v3861
      %v3939 = vsel %vm987, %v3935, %v3863
      %v3940 = vsel %vm1760, %v3936, %v3873
      %v3941 = vsel %vm1760, %v3937, %v3875
      %v3942 = vsel %vm1760, %v3938, %v3877
      %v3943 = vsel %vm1760, %v3939, %v3879
      %v3944 = vsel %vm591, %v3816, %v3889
      %v3945 = vsel %vm591, %v3817, %v3891
      %v3946 = vsel %vm591, %v3818, %v3893
      %v3947 = vsel %vm591, %v3819, %v3895
      %v3948 = vsel %vm987, %v3944, %v3905
      %v3949 = vsel %vm987, %v3945, %v3907
      %v3950 = vsel %vm987, %v3946, %v3909
      %v3951 = vsel %vm987, %v3947, %v3911
      %v3952 = vsel %vm1760, %v3948, %v3921
      %v3953 = vsel %vm1760, %v3949, %v3923
      %v3954 = vsel %vm1760, %v3950, %v3925
      %v3955 = vsel %vm1760, %v3951, %v3927
      %v3956 = vpack.c.bf16 %v3940, %v3940
      %v3957 = vpack.c.bf16 %v3952, %v3952
      %v3958 = vpack.c.bf16 %v3832, %v3832
      %v3959 = vpack.c.bf16 %v3941, %v3941
      %v3960 = vpack.c.bf16 %v3953, %v3953
      %v3961 = vpack.c.bf16 %v3833, %v3833
      %v3962 = vpack.c.bf16 %v3942, %v3942
      %v3963 = vpack.c.bf16 %v3954, %v3954
      %v3964 = vpack.c.bf16 %v3834, %v3834
      %v3965 = vpack.c.bf16 %v3943, %v3943
      %v3966 = vpack.c.bf16 %v3955, %v3955
      %v3967 = vpack.c.bf16 %v3835, %v3835
      %v3969 = vlaneseq
      %v3970 = vshrl.u32 %v3969, 7
      %v3971 = vsub.s32 0, %v3970
      %v3972 = vrot.slane %v3799, %v3971
      %v3985 = vcombine.low %v3956, %v3957
      %v3987 = vunpack.c.l.s4 1983009808
      %v3988 = vunpack.c.0.s8 %v3987
      %v3989 = vlaneseq
      %v3990 = vshrl.u32 %v3989, 7
      %v3991 = vsub.s32 %v3988, %v3990
      %v3992 = vrot.slane %v3985, %v3991
      %v3994 = vunpack.c.l.s4 1983009808
      %v3995 = vunpack.c.0.s8 %v3994
      %v3996 = vlaneseq
      %v3997 = vshrl.u32 %v3996, 7
      %v3998 = vsub.s32 %v3995, %v3997
      %v3999 = vrot.slane %v3958, %v3998
      %v4000 = vcombine.low %v3992, %v3999
      %v4001 = vcombine.low %v3959, %v3960
      %v4003 = vunpack.c.l.s4 1983009808
      %v4004 = vunpack.c.0.s8 %v4003
      %v4005 = vlaneseq
      %v4006 = vshrl.u32 %v4005, 7
      %v4007 = vsub.s32 %v4004, %v4006
      %v4008 = vrot.slane %v4001, %v4007
      %v4010 = vunpack.c.l.s4 1983009808
      %v4011 = vunpack.c.0.s8 %v4010
      %v4012 = vlaneseq
      %v4013 = vshrl.u32 %v4012, 7
      %v4014 = vsub.s32 %v4011, %v4013
      %v4015 = vrot.slane %v3961, %v4014
      %v4016 = vcombine.low %v4008, %v4015
      %v4017 = vcombine.low %v3962, %v3963
      %v4019 = vunpack.c.l.s4 1983009808
      %v4020 = vunpack.c.0.s8 %v4019
      %v4021 = vlaneseq
      %v4022 = vshrl.u32 %v4021, 7
      %v4023 = vsub.s32 %v4020, %v4022
      %v4024 = vrot.slane %v4017, %v4023
      %v4026 = vunpack.c.l.s4 1983009808
      %v4027 = vunpack.c.0.s8 %v4026
      %v4028 = vlaneseq
      %v4029 = vshrl.u32 %v4028, 7
      %v4030 = vsub.s32 %v4027, %v4029
      %v4031 = vrot.slane %v3964, %v4030
      %v4032 = vcombine.low %v4024, %v4031
      %v4033 = vcombine.low %v3965, %v3966
      %v4035 = vunpack.c.l.s4 1983009808
      %v4036 = vunpack.c.0.s8 %v4035
      %v4037 = vlaneseq
      %v4038 = vshrl.u32 %v4037, 7
      %v4039 = vsub.s32 %v4036, %v4038
      %v4040 = vrot.slane %v4033, %v4039
      %v4042 = vunpack.c.l.s4 1983009808
      %v4043 = vunpack.c.0.s8 %v4042
      %v4044 = vlaneseq
      %v4045 = vshrl.u32 %v4044, 7
      %v4046 = vsub.s32 %v4043, %v4045
      %v4047 = vrot.slane %v3967, %v4046
      %v4048 = vcombine.low %v4040, %v4047
      %v4049 = vcombine.low %v4000, %v4016
      %v4050 = vcombine.high %v4000, %v4016
      %v4051 = vcombine.low %v4032, %v4048
      %v4052 = vcombine.high %v4032, %v4048
      %v4054 = vunpack.c.l.s4 1983009808
      %v4055 = vunpack.c.0.s8 %v4054
      %v4056 = vlaneseq
      %v4057 = vshrl.u32 %v4056, 7
      %v4058 = vsub.s32 %v4055, %v4057
      %v4059 = vrot.slane %v4049, %v4058
      %v4061 = vunpack.c.l.s4 1983009808
      %v4062 = vunpack.c.0.s8 %v4061
      %v4063 = vlaneseq
      %v4064 = vshrl.u32 %v4063, 7
      %v4065 = vsub.s32 %v4062, %v4064
      %v4066 = vrot.slane %v4050, %v4065
      %v4068 = vunpack.c.l.s4 1983009808
      %v4069 = vunpack.c.0.s8 %v4068
      %v4070 = vlaneseq
      %v4071 = vshrl.u32 %v4070, 7
      %v4072 = vsub.s32 %v4069, %v4071
      %v4073 = vrot.slane %v4051, %v4072
      %v4075 = vunpack.c.l.s4 1983009808
      %v4076 = vunpack.c.0.s8 %v4075
      %v4077 = vlaneseq
      %v4078 = vshrl.u32 %v4077, 7
      %v4079 = vsub.s32 %v4076, %v4078
      %v4080 = vrot.slane %v4052, %v4079
      %v4081 = vcombine.low %v4059, %v4073
      %v4082 = vcombine.high %v4059, %v4073
      %v4083 = vcombine.low %v4066, %v4080
      %v4122 = vunpack.c.l.b16 %v3763
      %v4123 = vunpack.c.l.b16 %v3764
      %v4124 = vunpack.c.l.b16 %v3765
      %v4125 = vunpack.c.l.b16 %v3766
      %v4126 = vunpack.c.l.b16 %v3767
      %v4127 = vunpack.c.l.b16 %v3768
      %v4128 = vunpack.c.l.b16 %v3769
      %v4129 = vunpack.c.l.b16 %v3770
      %v4130 = vunpack.c.l.b16 %v3771
      %v4131 = vunpack.c.l.b16 %v3772
      %v4132 = vunpack.c.l.b16 %v3773
      %v4133 = vunpack.c.l.b16 %v3774
      %v4134 = vunpack.c.l.b16 %v3775
      %v4135 = vunpack.c.l.b16 %v3776
      %v4136 = vunpack.c.l.b16 %v3777
      %v4137 = vunpack.c.l.b16 %v3778
      %v4138 = vunpack.c.l.b16 %v3779
      %v4139 = vunpack.c.l.b16 %v3780
      %v4140 = vunpack.c.l.b16 %v3781
      %v4141 = vunpack.c.l.b16 %v3782
      %v4142 = vunpack.c.l.b16 %v3783
      %v4143 = vunpack.c.l.b16 %v3784
      %v4144 = vunpack.c.l.b16 %v3785
      %v4145 = vunpack.c.l.b16 %v3786
      %v4146 = vunpack.c.l.b16 %v3787
      %v4147 = vunpack.c.l.b16 %v3788
      %v4148 = vunpack.c.l.b16 %v3789
      %v4149 = vunpack.c.l.b16 %v3790
      %v4150 = vunpack.c.l.b16 %v3791
      %v4151 = vunpack.c.l.b16 %v3792
      %v4152 = vunpack.c.l.b16 %v3793
      %v4153 = vunpack.c.l.b16 %v3794
      %v4154 = vunpack.c.l.b16 %v3795
      %v4155 = vunpack.c.l.b16 %v3796
      %v4156 = vunpack.c.l.b16 %v3797
      %v4157 = vunpack.c.l.b16 %v3798
      %v4158 = vpack.c.b16 %v4123, %v4122
      %v4159 = vpack.c.b16 %v4125, %v4124
      %v4160 = vpack.c.b16 %v4127, %v4126
      %v4161 = vpack.c.b16 %v4129, %v4128
      %v4162 = vpack.c.b16 %v4131, %v4130
      %v4163 = vpack.c.b16 %v4133, %v4132
      %v4164 = vpack.c.b16 %v4135, %v4134
      %v4165 = vpack.c.b16 %v4137, %v4136
      %v4166 = vpack.c.b16 %v4139, %v4138
      %v4167 = vpack.c.b16 %v4141, %v4140
      %v4168 = vpack.c.b16 %v4143, %v4142
      %v4169 = vpack.c.b16 %v4145, %v4144
      %v4170 = vpack.c.b16 %v4147, %v4146
      %v4171 = vpack.c.b16 %v4149, %v4148
      %v4172 = vpack.c.b16 %v4151, %v4150
      %v4173 = vpack.c.b16 %v4153, %v4152
      %v4174 = vpack.c.b16 %v4155, %v4154
      %v4175 = vpack.c.b16 %v4157, %v4156
      %v4194 = vcombine.low %v3972, %v3972
      %v4197 = vsel %vm591, %v4083, 0
      %4199 = vmatprep.subr.bf16.mxu0 0
      %4200 = vmatpush1.bf16.msra.mxu0 %v4158
      %4201 = vmatprep.subr.bf16.mxu0 0
      %4202 = vmatpush1.bf16.msra.mxu0 %v4159
      %4203 = vmatprep.subr.bf16.mxu0 0
      %4204 = vmatpush1.bf16.msra.mxu0 %v4160
      %4205 = vmatprep.subr.bf16.mxu0 0
      %4206 = vmatpush1.bf16.msra.mxu0 %v4161
      %4207 = vmatprep.subr.bf16.mxu0 0
      %4208 = vmatpush1.bf16.msra.mxu0 %v4162
      %4209 = vmatprep.subr.bf16.mxu0 0
      %4210 = vmatpush1.bf16.msra.mxu0 %v4163
      %4211 = vmatprep.subr.bf16.mxu0 0
      %4212 = vmatpush1.bf16.msra.mxu0 %v4164
      %4213 = vmatprep.subr.bf16.mxu0 0
      %4214 = vmatpush1.bf16.msra.mxu0 %v4165
      %4215 = vmatprep.subr.bf16.mxu0 0
      %4216 = vmatpush1.bf16.msra.mxu0 %v4166
      %4217 = vmatprep.subr.bf16.mxu0 0
      %4218 = vmatpush1.bf16.msra.mxu0 %v4167
      %4219 = vmatprep.subr.bf16.mxu0 0
      %4220 = vmatpush1.bf16.msra.mxu0 %v4168
      %4221 = vmatprep.subr.bf16.mxu0 0
      %4222 = vmatpush1.bf16.msra.mxu0 %v4169
      %4223 = vmatprep.subr.bf16.mxu0 0
      %4224 = vmatpush1.bf16.msra.mxu0 %v4170
      %4225 = vmatprep.subr.bf16.mxu0 0
      %4226 = vmatpush1.bf16.msra.mxu0 %v4171
      %4227 = vmatprep.subr.bf16.mxu0 0
      %4228 = vmatpush1.bf16.msra.mxu0 %v4172
      %4229 = vmatprep.subr.bf16.mxu0 0
      %4230 = vmatpush1.bf16.msra.mxu0 %v4173
      %4231 = vmatprep.mubr.bf16.mxu0 %v4082
      %4232 = vmatmul.mubr.bf16.gmra.mrb[0].mxu0 %v4081
      %v4233 = vpop.f32.mrb[0].mxu0
      %v4234 = vadd.f32 %v4194, %v4233
      %v4235 = vpop.f32.mrb[0].mxu0
      %v4236 = vpop.f32.mrb[0].mxu0
      %v4237 = vadd.f32 %v4194, %v4236
      %v4238 = vpop.f32.mrb[0].mxu0
      %4239 = vdwg.mxu0
      %4240 = vmatprep.subr.bf16.mxu0 0
      %4241 = vmatpush1.bf16.msra.mxu0 %v4174
      %4242 = vmatprep.subr.bf16.mxu0 0
      %4243 = vmatpush1.bf16.msra.mxu0 %v4175
      %4244 = vmatprep.subr.bf16.mxu0 0
      %4245 = vmatpush1.bf16.msra.mxu0 0
      %4246 = vmatprep.subr.bf16.mxu0 0
      %4247 = vmatpush1.bf16.msra.mxu0 0
      %4248 = vmatprep.subr.bf16.mxu0 0
      %4249 = vmatpush1.bf16.msra.mxu0 0
      %4250 = vmatprep.subr.bf16.mxu0 0
      %4251 = vmatpush1.bf16.msra.mxu0 0
      %4252 = vmatprep.subr.bf16.mxu0 0
      %4253 = vmatpush1.bf16.msra.mxu0 0
      %4254 = vmatprep.subr.bf16.mxu0 0
      %4255 = vmatpush1.bf16.msra.mxu0 0
      %4256 = vmatprep.subr.bf16.mxu0 0
      %4257 = vmatpush1.bf16.msra.mxu0 0
      %4258 = vmatprep.subr.bf16.mxu0 0
      %4259 = vmatpush1.bf16.msra.mxu0 0
      %4260 = vmatprep.subr.bf16.mxu0 0
      %4261 = vmatpush1.bf16.msra.mxu0 0
      %4262 = vmatprep.subr.bf16.mxu0 0
      %4263 = vmatpush1.bf16.msra.mxu0 0
      %4264 = vmatprep.subr.bf16.mxu0 0
      %4265 = vmatpush1.bf16.msra.mxu0 0
      %4266 = vmatprep.subr.bf16.mxu0 0
      %4267 = vmatpush1.bf16.msra.mxu0 0
      %4268 = vmatprep.subr.bf16.mxu0 0
      %4269 = vmatpush1.bf16.msra.mxu0 0
      %4270 = vmatprep.subr.bf16.mxu0 0
      %4271 = vmatpush1.bf16.msra.mxu0 0
      %4272 = vmatprep.mubr.bf16.mxu0 0
      %4273 = vmatmul.mubr.bf16.gmra.mrb[0].mxu0 %v4197
      %v4274 = vpop.f32.mrb[0].mxu0
      %v4275 = vadd.f32 %v4234, %v4274
      %v4276 = vpop.f32.mrb[0].mxu0
      %v4277 = vpop.f32.mrb[0].mxu0
      %v4278 = vadd.f32 %v4237, %v4277
      %v4279 = vpop.f32.mrb[0].mxu0
      %4280 = vdwg.mxu0
      %v4283 = vcombine.high %v4275, %v4275
      %v4284 = vcombine.high %v4278, %v4278
      %s4287 = smul.u32 0, 4
      %s4288 = scalar_lea.vmem %s477, %s4287
      %v4289 = vld [vmem:[%s4288] sm:$0xf]
      %v4290 = vld [vmem:[%s4288 + $0x4] sm:$0xf]
      %v4291 = vld [vmem:[%s4288 + $0x8] sm:$0xf]
      %v4292 = vld [vmem:[%s4288 + $0xc] sm:$0xf]
      %v4293 = vadd.f32 %v4275, %v4289
      %v4294 = vadd.f32 %v4283, %v4290
      %v4295 = vadd.f32 %v4278, %v4291
      %v4296 = vadd.f32 %v4284, %v4292
      %v4297 = vsel %vm591, %v4293, %v4275
      %v4298 = vsel %vm591, %v4294, %v4283
      %v4299 = vsel %vm591, %v4295, %v4278
      %v4300 = vsel %vm591, %v4296, %v4284
      %s4301 = scalar_lea.vmem %s487, %s4287
      %vm4302 = vcmask 273408
      %4303 = vst.msk [vmem:[%s4301] sm:$0xf] %vm4302, %v4297
      %4304 = vst.msk [vmem:[%s4301 + $0x4] sm:$0xf] %vm4302, %v4298
      %4305 = vst.msk [vmem:[%s4301 + $0x8] sm:$0xf] %vm4302, %v4299
      %4306 = vst.msk [vmem:[%s4301 + $0xc] sm:$0xf] %vm4302, %v4300
      %p4307 = scmp.lt.s32.totalorder %s25, 1
      %s4308 = scalar_select %p4307, %s25, 1
      %s4309 = smul.addr %s4308, 4
      %s4310 = smul.addr %s4309, 4
      %s4311 = scalar_lea.vmem %s14, %s4310
      // Predicated region
      $region77: #{leval_prop_forward.3} parent=75 // pred_check
        %p4312 = pneg %p347
      $region78: #{leval_prop_forward.3} parent=75 // pred_check_branch
        %4314 = sbr.rel (%p4312) target = $region80
      $region79: #{leval_prop_forward.3} parent=75 // pred_region
        _
      $region80: #{leval_prop_forward.3} parent=75 // pred_fallthru
        _
    $region76: #{leval_prop_forward.3} parent=5 // pred_fallthru
      _
    %p4315 = scmp.le.s32.totalorder 2, %s20
    // Predicated region
    $region81: #{leval_prop_forward.3} parent=5 // pred_check
      %p4316 = pneg %p4315
    $region82: #{leval_prop_forward.3} parent=5 // pred_check_branch
      %4318 = sbr.rel (%p4316) target = $region84
    $region83: #{leval_prop_forward.3} parent=5 // pred_region
      %s4319 = ssub.s32 %s20, 2
      // Predicated region
      $region85: #{leval_prop_forward.3} parent=83 // pred_check
        %p4320 = pneg %p353
      $region86: #{leval_prop_forward.3} parent=83 // pred_check_branch
        %4322 = sbr.rel (%p4320) target = $region88
      $region87: #{leval_prop_forward.3} parent=83 // pred_region
        %p4323 = scmp.lt.s32.totalorder %s26, 1
        %s4324 = scalar_select %p4323, %s26, 1
        %s4325 = smul.addr %s4324, 4
        %s4326 = smul.addr %s4325, 4
        %s4327 = scalar_lea.vmem %s14, %s4326
      $region88: #{leval_prop_forward.3} parent=83 // pred_fallthru
        _
    $region84: #{leval_prop_forward.3} parent=5 // pred_fallthru
      _
  $region6: #{leval_prop_forward.3} parent=0 // loop_footer
    %s24 = sadd.s32 1, %s20
  $region7: #{leval_prop_forward.3} parent=0 // loop_footer_branch
    %19 = sbr.rel target = $region3
  $region8: #{leval_prop_forward.3} parent=0 // loop_exit
    _

</llo_original>
